<compile_context>
chip_gen: v7x
topology: tpu7x:2x2x1
jax: 0.10.0
libtpu: 0.0.40
codegen_flags: <defaults>
</compile_context>

<pallas_src>
import functools

import jax
import jax.numpy as jnp
from jax.experimental import pallas as pl
from jax.experimental.pallas import tpu as pltpu


# ----------------------------------------------------------------------------
# Pallas kernel: one (batch-block, point-tile) grid step.
# ----------------------------------------------------------------------------
def stnkd_kernel(x_ref,
                 w1_ref, b1_ref, w2_ref, b2_ref, w3_ref, b3_ref,
                 w4_ref, b4_ref, w5_ref, b5_ref, w6_ref, b6_ref,
                 iden_ref, o_ref, gmax_ref):
    pt = pl.program_id(1)

    # Reset the running-max accumulator at the first point tile of this batch
    # block (the point axis is the innermost, "arbitrary", grid axis).
    @pl.when(pt == 0)
    def _():
        gmax_ref[...] = jnp.full_like(gmax_ref, -jnp.inf)

    tb, tn, k = x_ref.shape
    bf = jnp.bfloat16

    # Pointwise MLP (Conv1d kernel-size 1 == per-point matmul), BN folded in.
    # Flatten (TB, TN, k) -> (TB*TN, k) so every matmul has M = TB*TN rows.
    x = x_ref[...].reshape(tb * tn, k)                                # bf16
    h = jnp.tanh(jnp.dot(x, w1_ref[...],
                         preferred_element_type=jnp.float32) + b1_ref[...])
    h = jnp.tanh(jnp.dot(h.astype(bf), w2_ref[...],
                         preferred_element_type=jnp.float32) + b2_ref[...])
    h = jnp.tanh(jnp.dot(h.astype(bf), w3_ref[...],
                         preferred_element_type=jnp.float32) + b3_ref[...])
    # h: (TB*TN, 1024) f32

    # torch.max(x, 2): per-batch-element max over the points in this tile,
    # max-combined into the running accumulator.
    tile_max = jnp.max(h.reshape(tb, tn, h.shape[-1]), axis=1)       # (TB, 1024)
    gmax_ref[...] = jnp.maximum(gmax_ref[...], tile_max)

    # FC head + identity add: only once, after the last point tile.
    @pl.when(pt == pl.num_programs(1) - 1)
    def _():
        g = gmax_ref[...].astype(bf)                                  # (TB, 1024)
        f = jnp.tanh(jnp.dot(g, w4_ref[...],
                             preferred_element_type=jnp.float32) + b4_ref[...])
        f = jnp.tanh(jnp.dot(f.astype(bf), w5_ref[...],
                             preferred_element_type=jnp.float32) + b5_ref[...])
        out = (jnp.dot(f.astype(bf), w6_ref[...],
                       preferred_element_type=jnp.float32)
               + b6_ref[...] + iden_ref[...])                         # (TB, k*k)
        o_ref[...] = out


# ----------------------------------------------------------------------------
# Wrapper
# ----------------------------------------------------------------------------
def stnkd_forward(x, params, k, *, tb=8, tn=128):
    """x: (B, k, N) float32 (PyTorch NCL layout). Returns (B, k, k) float32."""
    B, k_in, N = x.shape
    assert k_in == k
    assert B % tb == 0 and N % tn == 0
    assert (tb % 8 == 0) or (tb == B)       # (8,128) block-shape rule (2nd-minor)
    assert (tn % 8 == 0) or (tn == N)

    # bf16 inputs/weights for the MXU; f32 biases/identity added post-accum.
    xt = jnp.transpose(x.astype(jnp.bfloat16), (0, 2, 1))             # (B, N, k)
    iden = jnp.eye(k, dtype=jnp.float32).reshape(1, k * k)

    plist = []
    for i in range(1, 7):
        plist.append(params[f"w{i}"].astype(jnp.bfloat16))
        plist.append(params[f"b{i}"].astype(jnp.float32))
    plist.append(iden)

    def const_spec(p):
        # Grid-invariant 2D parameter: block index never changes, so it is
        # DMA'd into VMEM exactly once across the whole grid.
        return pl.BlockSpec(p.shape, lambda b, pt: (0, 0))

    grid = (B // tb, N // tn)
    in_specs = ([pl.BlockSpec((tb, tn, k), lambda b, pt: (b, pt, 0))]
                + [const_spec(p) for p in plist])
    out_specs = pl.BlockSpec((tb, k * k), lambda b, pt: (b, 0))

    # Advisory cost estimate (helps XLA schedule the wrapper-side transpose).
    flops = 2 * B * (N * (k * 64 + 64 * 128 + 128 * 1024)
                     + 1024 * 512 + 512 * 256 + 256 * k * k)
    transcendentals = B * (N * (64 + 128 + 1024) + 512 + 256)
    bytes_accessed = int(xt.size * 2
                         + sum(p.size * p.dtype.itemsize for p in plist)
                         + B * k * k * 4)

    out = pl.pallas_call(
        stnkd_kernel,
        out_shape=jax.ShapeDtypeStruct((B, k * k), jnp.float32),
        grid_spec=pltpu.PrefetchScalarGridSpec(
            num_scalar_prefetch=0,
            grid=grid,
            in_specs=in_specs,
            out_specs=out_specs,
            scratch_shapes=[pltpu.VMEM((tb, 1024), jnp.float32)],
        ),
        compiler_params=pltpu.CompilerParams(
            dimension_semantics=("parallel", "arbitrary"),
            vmem_limit_bytes=32 * 1024 * 1024,   # explicit; safe on v5e/v6e/v7x
        ),
        cost_estimate=pl.CostEstimate(
            flops=flops,
            transcendentals=transcendentals,
            bytes_accessed=bytes_accessed),
    )(xt, *plist)

    return out.reshape(B, k, k)


# ----------------------------------------------------------------------------
# Deterministic parameter construction (synthetic; no checkpoint load).
# BatchNorm is eval-mode and folded into the preceding layer's weight/bias.
# ----------------------------------------------------------------------------
def fold_bn(w, b, gamma, beta, mean, var, eps=1e-5):
    scale = gamma / jnp.sqrt(var + eps)          # per output channel
    return w * scale[None, :], (b - mean) * scale + beta


def make_params(k, key):
    dims = [(k, 64), (64, 128), (128, 1024), (1024, 512), (512, 256),
            (256, k * k)]
    params = {}
    for i, (fan_in, fan_out) in enumerate(dims, start=1):
        key, kw, kb = jax.random.split(key, 3)
        w = jax.random.normal(kw, (fan_in, fan_out), jnp.float32) / jnp.sqrt(
            jnp.float32(fan_in))
        b = 0.1 * jax.random.normal(kb, (fan_out,), jnp.float32)
        if i <= 5:  # layers followed by BatchNorm (bn1..bn5)
            key, kg, kbeta, km, kv = jax.random.split(key, 5)
            gamma = jax.random.uniform(kg, (fan_out,), jnp.float32, 0.8, 1.2)
            beta = 0.1 * jax.random.normal(kbeta, (fan_out,), jnp.float32)
            mean = 0.1 * jax.random.normal(km, (fan_out,), jnp.float32)
            var = jax.random.uniform(kv, (fan_out,), jnp.float32, 0.5, 1.5)
            w, b = fold_bn(w, b, gamma, beta, mean, var)
        params[f"w{i}"] = w
        params[f"b{i}"] = b.reshape(1, fan_out)
    return params
    # TODO(synk): training-mode BatchNorm (batch statistics) is not modeled;
    # eval-mode (running stats) BN is folded into the weights above.


# ----------------------------------------------------------------------------
# Pure-JAX reference mirroring the kernel's bf16-weight / f32-accumulate math
# (the folded-BN f32 "true" math differs from this only by bf16 quantization,
# ~1e-2 absolute).
# ----------------------------------------------------------------------------
def stnkd_reference(x, params, k):
    bf = jnp.bfloat16
    B = x.shape[0]
    xt = jnp.transpose(x, (0, 2, 1)).astype(bf)                       # (B, N, k)

    def mm(a, name):
        return jnp.einsum("bnc,cd->bnd", a.astype(bf),
                          params[name].astype(bf),
                          preferred_element_type=jnp.float32)

    def fc(a, name):
        return jnp.dot(a.astype(bf), params[name].astype(bf),
                       preferred_element_type=jnp.float32)

    h = jnp.tanh(mm(xt, "w1") + params["b1"])
    h = jnp.tanh(mm(h, "w2") + params["b2"])
    h = jnp.tanh(mm(h, "w3") + params["b3"])
    g = jnp.max(h, axis=1)                                            # (B, 1024)
    f = jnp.tanh(fc(g, "w4") + params["b4"])
    f = jnp.tanh(fc(f, "w5") + params["b5"])
    o = (fc(f, "w6") + params["b6"]
         + jnp.eye(k, dtype=jnp.float32).reshape(1, k * k))
    return o.reshape(B, k, k)


if __name__ == "__main__":
    # Small shapes consistent with the module: batch=16, k=16 feature dims,
    # 256 points; tiles TB=8, TN=128 -> grid (2, 2).
    B, K, N = 16, 16, 256
    TB, TN = 8, 128
    key = jax.random.PRNGKey(0)
    key_x, key_p = jax.random.split(key)
    x = jax.random.normal(key_x, (B, K, N), jnp.float32)   # PyTorch NCL layout
    params = make_params(K, key_p)

    fwd = jax.jit(functools.partial(stnkd_forward, k=K, tb=TB, tn=TN))
    out = jax.block_until_ready(fwd(x, params))

    ref = stnkd_reference(x, params, K)
    assert out.shape == (B, K, K)
    assert jnp.allclose(out, ref, atol=2e-3, rtol=2e-3), \
        "mismatch vs bf16-matched reference"

    print("KERNEL_OK")
</pallas_src>

<mosaic_0001>
module attributes {stable_mosaic.version = 11 : i64} {
  func.func @stnkd_kernel(%arg0: i32, %arg1: i32, %arg2: memref<8x128x16xbf16, #tpu.memory_space<vmem>>, %arg3: memref<16x64xbf16, #tpu.memory_space<vmem>>, %arg4: memref<1x64xf32, #tpu.memory_space<vmem>>, %arg5: memref<64x128xbf16, #tpu.memory_space<vmem>>, %arg6: memref<1x128xf32, #tpu.memory_space<vmem>>, %arg7: memref<128x1024xbf16, #tpu.memory_space<vmem>>, %arg8: memref<1x1024xf32, #tpu.memory_space<vmem>>, %arg9: memref<1024x512xbf16, #tpu.memory_space<vmem>>, %arg10: memref<1x512xf32, #tpu.memory_space<vmem>>, %arg11: memref<512x256xbf16, #tpu.memory_space<vmem>>, %arg12: memref<1x256xf32, #tpu.memory_space<vmem>>, %arg13: memref<256x256xbf16, #tpu.memory_space<vmem>>, %arg14: memref<1x256xf32, #tpu.memory_space<vmem>>, %arg15: memref<1x256xf32, #tpu.memory_space<vmem>>, %arg16: memref<8x256xf32, #tpu.memory_space<vmem>>, %arg17: memref<8x1024xf32, #tpu.memory_space<vmem>>) attributes {dimension_semantics = [#tpu.dimension_semantics<parallel>, #tpu.dimension_semantics<arbitrary>], iteration_bounds = array<i64: 2, 2>, scalar_prefetch = 0 : i64, scratch_operands = 1 : i64, tpu.core_type = #tpu.core_type<tc>, window_params = [{transform_indices = @transform_0, window_bounds = array<i64: 8, 128, 16>}, {pipeline_mode = #tpu.pipeline_mode<synchronous>, transform_indices = @transform_1, window_bounds = array<i64: 16, 64>}, {pipeline_mode = #tpu.pipeline_mode<synchronous>, transform_indices = @transform_2, window_bounds = array<i64: 1, 64>}, {pipeline_mode = #tpu.pipeline_mode<synchronous>, transform_indices = @transform_3, window_bounds = array<i64: 64, 128>}, {pipeline_mode = #tpu.pipeline_mode<synchronous>, transform_indices = @transform_4, window_bounds = array<i64: 1, 128>}, {pipeline_mode = #tpu.pipeline_mode<synchronous>, transform_indices = @transform_5, window_bounds = array<i64: 128, 1024>}, {pipeline_mode = #tpu.pipeline_mode<synchronous>, transform_indices = @transform_6, window_bounds = array<i64: 1, 1024>}, {pipeline_mode = #tpu.pipeline_mode<synchronous>, transform_indices = @transform_7, window_bounds = array<i64: 1024, 512>}, {pipeline_mode = #tpu.pipeline_mode<synchronous>, transform_indices = @transform_8, window_bounds = array<i64: 1, 512>}, {pipeline_mode = #tpu.pipeline_mode<synchronous>, transform_indices = @transform_9, window_bounds = array<i64: 512, 256>}, {pipeline_mode = #tpu.pipeline_mode<synchronous>, transform_indices = @transform_10, window_bounds = array<i64: 1, 256>}, {pipeline_mode = #tpu.pipeline_mode<synchronous>, transform_indices = @transform_11, window_bounds = array<i64: 256, 256>}, {pipeline_mode = #tpu.pipeline_mode<synchronous>, transform_indices = @transform_12, window_bounds = array<i64: 1, 256>}, {pipeline_mode = #tpu.pipeline_mode<synchronous>, transform_indices = @transform_13, window_bounds = array<i64: 1, 256>}, {transform_indices = @transform_14, window_bounds = array<i64: 8, 256>}]} {
    %c0_i32 = arith.constant 0 : i32
    %0 = arith.cmpi eq, %arg1, %c0_i32 : i32
    %1 = arith.extui %0 : i1 to i32
    %c0_i32_0 = arith.constant 0 : i32
    %2 = arith.cmpi ne, %1, %c0_i32_0 : i32
    scf.if %2 {
      %cst_23 = arith.constant 0xFF800000 : f32
      %33 = vector.broadcast %cst_23 : f32 to vector<8x1024xf32>
      %c0_24 = arith.constant 0 : index
      %c0_25 = arith.constant 0 : index
      %34 = vector.load %arg17[%c0_24, %c0_25] : memref<8x1024xf32, #tpu.memory_space<vmem>>, vector<8x1024xf32>
      tpu.vector_store %arg17[%c0_24, %c0_25], %33 {strides = array<i32>} : memref<8x1024xf32, #tpu.memory_space<vmem>>, vector<8x1024xf32>,
    } else {
    }
    %c0 = arith.constant 0 : index
    %c0_1 = arith.constant 0 : index
    %c0_2 = arith.constant 0 : index
    %3 = vector.load %arg2[%c0, %c0_1, %c0_2] : memref<8x128x16xbf16, #tpu.memory_space<vmem>>, vector<8x128x16xbf16>
    %4 = vector.shape_cast %3 : vector<8x128x16xbf16> to vector<1024x16xbf16>
    %c0_3 = arith.constant 0 : index
    %c0_4 = arith.constant 0 : index
    %5 = vector.load %arg3[%c0_3, %c0_4] : memref<16x64xbf16, #tpu.memory_space<vmem>>, vector<16x64xbf16>
    %cst = arith.constant dense<0.000000e+00> : vector<1024x64xf32>
    %6 = tpu.matmul %4, %5, %cst {dimension_numbers = #tpu.dot_dimension_numbers<[1], [0], [0], [1], [0, 0, 1, 1], [], []>} : vector<1024x16xbf16>, vector<16x64xbf16>, vector<1024x64xf32> -> vector<1024x64xf32>
    %c0_5 = arith.constant 0 : index
    %c0_6 = arith.constant 0 : index
    %7 = vector.load %arg4[%c0_5, %c0_6] : memref<1x64xf32, #tpu.memory_space<vmem>>, vector<1x64xf32>
    %8 = vector.broadcast %7 : vector<1x64xf32> to vector<1024x64xf32>
    %9 = arith.addf %6, %8 : vector<1024x64xf32>
    %10 = math.tanh %9 : vector<1024x64xf32>
    %11 = arith.truncf %10 : vector<1024x64xf32> to vector<1024x64xbf16>
    %c0_7 = arith.constant 0 : index
    %c0_8 = arith.constant 0 : index
    %12 = vector.load %arg5[%c0_7, %c0_8] : memref<64x128xbf16, #tpu.memory_space<vmem>>, vector<64x128xbf16>
    %cst_9 = arith.constant dense<0.000000e+00> : vector<1024x128xf32>
    %13 = tpu.matmul %11, %12, %cst_9 {dimension_numbers = #tpu.dot_dimension_numbers<[1], [0], [0], [1], [0, 0, 1, 1], [], []>} : vector<1024x64xbf16>, vector<64x128xbf16>, vector<1024x128xf32> -> vector<1024x128xf32>
    %c0_10 = arith.constant 0 : index
    %c0_11 = arith.constant 0 : index
    %14 = vector.load %arg6[%c0_10, %c0_11] : memref<1x128xf32, #tpu.memory_space<vmem>>, vector<1x128xf32>
    %15 = vector.broadcast %14 : vector<1x128xf32> to vector<1024x128xf32>
    %16 = arith.addf %13, %15 : vector<1024x128xf32>
    %17 = math.tanh %16 : vector<1024x128xf32>
    %18 = arith.truncf %17 : vector<1024x128xf32> to vector<1024x128xbf16>
    %c0_12 = arith.constant 0 : index
    %c0_13 = arith.constant 0 : index
    %19 = vector.load %arg7[%c0_12, %c0_13] : memref<128x1024xbf16, #tpu.memory_space<vmem>>, vector<128x1024xbf16>
    %cst_14 = arith.constant dense<0.000000e+00> : vector<1024x1024xf32>
    %20 = tpu.matmul %18, %19, %cst_14 {dimension_numbers = #tpu.dot_dimension_numbers<[1], [0], [0], [1], [0, 0, 1, 1], [], []>} : vector<1024x128xbf16>, vector<128x1024xbf16>, vector<1024x1024xf32> -> vector<1024x1024xf32>
    %c0_15 = arith.constant 0 : index
    %c0_16 = arith.constant 0 : index
    %21 = vector.load %arg8[%c0_15, %c0_16] : memref<1x1024xf32, #tpu.memory_space<vmem>>, vector<1x1024xf32>
    %22 = vector.broadcast %21 : vector<1x1024xf32> to vector<1024x1024xf32>
    %23 = arith.addf %20, %22 : vector<1024x1024xf32>
    %24 = math.tanh %23 : vector<1024x1024xf32>
    %25 = vector.shape_cast %24 : vector<1024x1024xf32> to vector<8x128x1024xf32>
    %cst_17 = arith.constant dense<0xFF800000> : vector<8x1024xf32>
    %26 = vector.multi_reduction <maximumf>, %25, %cst_17 [1] : vector<8x128x1024xf32> to vector<8x1024xf32>
    %c0_18 = arith.constant 0 : index
    %c0_19 = arith.constant 0 : index
    %27 = vector.load %arg17[%c0_18, %c0_19] : memref<8x1024xf32, #tpu.memory_space<vmem>>, vector<8x1024xf32>
    %28 = arith.maximumf %27, %26 : vector<8x1024xf32>
    %c0_20 = arith.constant 0 : index
    %c0_21 = arith.constant 0 : index
    %29 = vector.load %arg17[%c0_20, %c0_21] : memref<8x1024xf32, #tpu.memory_space<vmem>>, vector<8x1024xf32>
    tpu.vector_store %arg17[%c0_20, %c0_21], %28 {strides = array<i32>} : memref<8x1024xf32, #tpu.memory_space<vmem>>, vector<8x1024xf32>,
    %c1_i32 = arith.constant 1 : i32
    %30 = arith.cmpi eq, %arg1, %c1_i32 : i32
    %31 = arith.extui %30 : i1 to i32
    %c0_i32_22 = arith.constant 0 : i32
    %32 = arith.cmpi ne, %31, %c0_i32_22 : i32
    scf.if %32 {
      %c0_23 = arith.constant 0 : index
      %c0_24 = arith.constant 0 : index
      %33 = vector.load %arg17[%c0_23, %c0_24] : memref<8x1024xf32, #tpu.memory_space<vmem>>, vector<8x1024xf32>
      %34 = arith.truncf %33 : vector<8x1024xf32> to vector<8x1024xbf16>
      %c0_25 = arith.constant 0 : index
      %c0_26 = arith.constant 0 : index
      %35 = vector.load %arg9[%c0_25, %c0_26] : memref<1024x512xbf16, #tpu.memory_space<vmem>>, vector<1024x512xbf16>
      %cst_27 = arith.constant dense<0.000000e+00> : vector<8x512xf32>
      %36 = tpu.matmul %34, %35, %cst_27 {dimension_numbers = #tpu.dot_dimension_numbers<[1], [0], [0], [1], [0, 0, 1, 1], [], []>} : vector<8x1024xbf16>, vector<1024x512xbf16>, vector<8x512xf32> -> vector<8x512xf32>
      %c0_28 = arith.constant 0 : index
      %c0_29 = arith.constant 0 : index
      %37 = vector.load %arg10[%c0_28, %c0_29] : memref<1x512xf32, #tpu.memory_space<vmem>>, vector<1x512xf32>
      %38 = vector.broadcast %37 : vector<1x512xf32> to vector<8x512xf32>
      %39 = arith.addf %36, %38 : vector<8x512xf32>
      %40 = math.tanh %39 : vector<8x512xf32>
      %41 = arith.truncf %40 : vector<8x512xf32> to vector<8x512xbf16>
      %c0_30 = arith.constant 0 : index
      %c0_31 = arith.constant 0 : index
      %42 = vector.load %arg11[%c0_30, %c0_31] : memref<512x256xbf16, #tpu.memory_space<vmem>>, vector<512x256xbf16>
      %cst_32 = arith.constant dense<0.000000e+00> : vector<8x256xf32>
      %43 = tpu.matmul %41, %42, %cst_32 {dimension_numbers = #tpu.dot_dimension_numbers<[1], [0], [0], [1], [0, 0, 1, 1], [], []>} : vector<8x512xbf16>, vector<512x256xbf16>, vector<8x256xf32> -> vector<8x256xf32>
      %c0_33 = arith.constant 0 : index
      %c0_34 = arith.constant 0 : index
      %44 = vector.load %arg12[%c0_33, %c0_34] : memref<1x256xf32, #tpu.memory_space<vmem>>, vector<1x256xf32>
      %45 = vector.broadcast %44 : vector<1x256xf32> to vector<8x256xf32>
      %46 = arith.addf %43, %45 : vector<8x256xf32>
      %47 = math.tanh %46 : vector<8x256xf32>
      %48 = arith.truncf %47 : vector<8x256xf32> to vector<8x256xbf16>
      %c0_35 = arith.constant 0 : index
      %c0_36 = arith.constant 0 : index
      %49 = vector.load %arg13[%c0_35, %c0_36] : memref<256x256xbf16, #tpu.memory_space<vmem>>, vector<256x256xbf16>
      %cst_37 = arith.constant dense<0.000000e+00> : vector<8x256xf32>
      %50 = tpu.matmul %48, %49, %cst_37 {dimension_numbers = #tpu.dot_dimension_numbers<[1], [0], [0], [1], [0, 0, 1, 1], [], []>} : vector<8x256xbf16>, vector<256x256xbf16>, vector<8x256xf32> -> vector<8x256xf32>
      %c0_38 = arith.constant 0 : index
      %c0_39 = arith.constant 0 : index
      %51 = vector.load %arg14[%c0_38, %c0_39] : memref<1x256xf32, #tpu.memory_space<vmem>>, vector<1x256xf32>
      %52 = vector.broadcast %51 : vector<1x256xf32> to vector<8x256xf32>
      %53 = arith.addf %50, %52 : vector<8x256xf32>
      %c0_40 = arith.constant 0 : index
      %c0_41 = arith.constant 0 : index
      %54 = vector.load %arg15[%c0_40, %c0_41] : memref<1x256xf32, #tpu.memory_space<vmem>>, vector<1x256xf32>
      %55 = vector.broadcast %54 : vector<1x256xf32> to vector<8x256xf32>
      %56 = arith.addf %53, %55 : vector<8x256xf32>
      %c0_42 = arith.constant 0 : index
      %c0_43 = arith.constant 0 : index
      %57 = vector.load %arg16[%c0_42, %c0_43] : memref<8x256xf32, #tpu.memory_space<vmem>>, vector<8x256xf32>
      tpu.vector_store %arg16[%c0_42, %c0_43], %56 {strides = array<i32>} : memref<8x256xf32, #tpu.memory_space<vmem>>, vector<8x256xf32>,
    } else {
    }
    return
  }
  func.func @transform_0(%arg0: i32, %arg1: i32) -> (i32, i32, i32) {
    %c0_i32 = arith.constant 0 : i32
    %c0_i32_0 = arith.constant 0 : i32
    return %arg0, %arg1, %c0_i32 : i32, i32, i32
  }
  func.func @transform_1(%arg0: i32, %arg1: i32) -> (i32, i32) {
    %c0_i32 = arith.constant 0 : i32
    %c0_i32_0 = arith.constant 0 : i32
    %c0_i32_1 = arith.constant 0 : i32
    return %c0_i32, %c0_i32_0 : i32, i32
  }
  func.func @transform_2(%arg0: i32, %arg1: i32) -> (i32, i32) {
    %c0_i32 = arith.constant 0 : i32
    %c0_i32_0 = arith.constant 0 : i32
    %c0_i32_1 = arith.constant 0 : i32
    return %c0_i32, %c0_i32_0 : i32, i32
  }
  func.func @transform_3(%arg0: i32, %arg1: i32) -> (i32, i32) {
    %c0_i32 = arith.constant 0 : i32
    %c0_i32_0 = arith.constant 0 : i32
    %c0_i32_1 = arith.constant 0 : i32
    return %c0_i32, %c0_i32_0 : i32, i32
  }
  func.func @transform_4(%arg0: i32, %arg1: i32) -> (i32, i32) {
    %c0_i32 = arith.constant 0 : i32
    %c0_i32_0 = arith.constant 0 : i32
    %c0_i32_1 = arith.constant 0 : i32
    return %c0_i32, %c0_i32_0 : i32, i32
  }
  func.func @transform_5(%arg0: i32, %arg1: i32) -> (i32, i32) {
    %c0_i32 = arith.constant 0 : i32
    %c0_i32_0 = arith.constant 0 : i32
    %c0_i32_1 = arith.constant 0 : i32
    return %c0_i32, %c0_i32_0 : i32, i32
  }
  func.func @transform_6(%arg0: i32, %arg1: i32) -> (i32, i32) {
    %c0_i32 = arith.constant 0 : i32
    %c0_i32_0 = arith.constant 0 : i32
    %c0_i32_1 = arith.constant 0 : i32
    return %c0_i32, %c0_i32_0 : i32, i32
  }
  func.func @transform_7(%arg0: i32, %arg1: i32) -> (i32, i32) {
    %c0_i32 = arith.constant 0 : i32
    %c0_i32_0 = arith.constant 0 : i32
    %c0_i32_1 = arith.constant 0 : i32
    return %c0_i32, %c0_i32_0 : i32, i32
  }
  func.func @transform_8(%arg0: i32, %arg1: i32) -> (i32, i32) {
    %c0_i32 = arith.constant 0 : i32
    %c0_i32_0 = arith.constant 0 : i32
    %c0_i32_1 = arith.constant 0 : i32
    return %c0_i32, %c0_i32_0 : i32, i32
  }
  func.func @transform_9(%arg0: i32, %arg1: i32) -> (i32, i32) {
    %c0_i32 = arith.constant 0 : i32
    %c0_i32_0 = arith.constant 0 : i32
    %c0_i32_1 = arith.constant 0 : i32
    return %c0_i32, %c0_i32_0 : i32, i32
  }
  func.func @transform_10(%arg0: i32, %arg1: i32) -> (i32, i32) {
    %c0_i32 = arith.constant 0 : i32
    %c0_i32_0 = arith.constant 0 : i32
    %c0_i32_1 = arith.constant 0 : i32
    return %c0_i32, %c0_i32_0 : i32, i32
  }
  func.func @transform_11(%arg0: i32, %arg1: i32) -> (i32, i32) {
    %c0_i32 = arith.constant 0 : i32
    %c0_i32_0 = arith.constant 0 : i32
    %c0_i32_1 = arith.constant 0 : i32
    return %c0_i32, %c0_i32_0 : i32, i32
  }
  func.func @transform_12(%arg0: i32, %arg1: i32) -> (i32, i32) {
    %c0_i32 = arith.constant 0 : i32
    %c0_i32_0 = arith.constant 0 : i32
    %c0_i32_1 = arith.constant 0 : i32
    return %c0_i32, %c0_i32_0 : i32, i32
  }
  func.func @transform_13(%arg0: i32, %arg1: i32) -> (i32, i32) {
    %c0_i32 = arith.constant 0 : i32
    %c0_i32_0 = arith.constant 0 : i32
    %c0_i32_1 = arith.constant 0 : i32
    return %c0_i32, %c0_i32_0 : i32, i32
  }
  func.func @transform_14(%arg0: i32, %arg1: i32) -> (i32, i32) {
    %c0_i32 = arith.constant 0 : i32
    %c0_i32_0 = arith.constant 0 : i32
    return %arg0, %c0_i32 : i32, i32
  }
}

</mosaic_0001>

<llo_original>
// kernel: stnkd_forward.1
$region0: #{stnkd_forward.1}
  #allocation0 [shape = 'u32[]', space=smem, size = 0x4, offset = 0x4, fixed_abs, tag = 'smem constant byte address 0x4 - core index']
  #allocation1 [shape = 'u32[144,128]{1,0:T(1,128)}', space=vmem, size = 0x12000, scoped, tag = 'internal scratch']
  #allocation2 [shape = 'f32[8,1024]{1,0:T(8,128)}', space=vmem, size = 0x8000, scoped, tag = 'scratch operand']
  %s0 = inlined_call_operand.vmem [shape: bf16[16,256,16], index: 0, kind: input, shape index: {}]
  %s1 = inlined_call_operand.vmem [shape: bf16[16,64], index: 1, kind: input, shape index: {}]
  %s2 = inlined_call_operand.vmem [shape: f32[1,64], index: 2, kind: input, shape index: {}]
  %s3 = inlined_call_operand.vmem [shape: bf16[64,128], index: 3, kind: input, shape index: {}]
  %s4 = inlined_call_operand.vmem [shape: f32[1,128], index: 4, kind: input, shape index: {}]
  %s5 = inlined_call_operand.vmem [shape: bf16[128,1024], index: 5, kind: input, shape index: {}]
  %s6 = inlined_call_operand.vmem [shape: f32[1,1024], index: 6, kind: input, shape index: {}]
  %s7 = inlined_call_operand.vmem [shape: bf16[1024,512], index: 7, kind: input, shape index: {}]
  %s8 = inlined_call_operand.vmem [shape: f32[1,512], index: 8, kind: input, shape index: {}]
  %s9 = inlined_call_operand.vmem [shape: bf16[512,256], index: 9, kind: input, shape index: {}]
  %s10 = inlined_call_operand.vmem [shape: f32[1,256], index: 10, kind: input, shape index: {}]
  %s11 = inlined_call_operand.vmem [shape: bf16[256,256], index: 11, kind: input, shape index: {}]
  %s12 = inlined_call_operand.vmem [shape: f32[1,256], index: 12, kind: input, shape index: {}]
  %s13 = inlined_call_operand.vmem [shape: f32[1,256], index: 13, kind: input, shape index: {}]
  %s14 = inlined_call_operand.vmem [shape: f32[16,256], index: 14, kind: output, shape index: {}]
  %s15 = sld [smem:[#allocation0]]
  $region138: #{stnkd_forward.1} parent=0
    _
  %s17 = ssub.s32 1, %s15
  %s18 = scalar_select 0, %s17, %s15
  $region1: #{stnkd_forward.1} parent=0
    #allocation3 [shape = 'u8[524288]{0}', space=vmem, size = 0x80000, scoped, tag = 'input window, operand 0']
    loop: start=0, step=1, limit=6
    $region2: #{stnkd_forward.1} parent=1 // loop_pre_header
      _
    $region3: #{stnkd_forward.1} parent=1 // loop_header
      %s20 = sphi 0, %s24
      %p21 = scmp.ge.s32.totalorder %s20, 6
      %s27 = sphi 0, %s39
      %s28 = sphi 0, %s35
      %s29 = sphi 0, %s27
      %s30 = sphi 0, %s28
      %s31 = sphi 0, %s29
      %s32 = sphi 0, %s30
      %s44 = sphi 0, %s46
      %s47 = sphi 0, %s44
      %s48 = sphi 0, %s47
      %s64 = sphi 0, %s48
      %s68 = sphi 0, %s68
      %s70 = sphi 0, %s68
      %s71 = sphi 0, %s70
      %s85 = sphi 0, %s71
      %s89 = sphi 0, %s89
      %s91 = sphi 0, %s89
      %s92 = sphi 0, %s91
      %s106 = sphi 0, %s92
      %s110 = sphi 0, %s110
      %s112 = sphi 0, %s110
      %s113 = sphi 0, %s112
      %s127 = sphi 0, %s113
      %s131 = sphi 0, %s131
      %s133 = sphi 0, %s131
      %s134 = sphi 0, %s133
      %s148 = sphi 0, %s134
      %s152 = sphi 0, %s152
      %s154 = sphi 0, %s152
      %s155 = sphi 0, %s154
      %s169 = sphi 0, %s155
      %s173 = sphi 0, %s173
      %s175 = sphi 0, %s173
      %s176 = sphi 0, %s175
      %s190 = sphi 0, %s176
      %s194 = sphi 0, %s194
      %s196 = sphi 0, %s194
      %s197 = sphi 0, %s196
      %s211 = sphi 0, %s197
      %s215 = sphi 0, %s215
      %s217 = sphi 0, %s215
      %s218 = sphi 0, %s217
      %s232 = sphi 0, %s218
      %s236 = sphi 0, %s236
      %s238 = sphi 0, %s236
      %s239 = sphi 0, %s238
      %s253 = sphi 0, %s239
      %s257 = sphi 0, %s257
      %s259 = sphi 0, %s257
      %s260 = sphi 0, %s259
      %s274 = sphi 0, %s260
      %s278 = sphi 0, %s278
      %s280 = sphi 0, %s278
      %s281 = sphi 0, %s280
      %s295 = sphi 0, %s281
      %s299 = sphi 0, %s299
      %s301 = sphi 0, %s299
      %s302 = sphi 0, %s301
      %s316 = sphi 0, %s302
      %s320 = sphi 0, %s320
      %s322 = sphi 0, %s320
      %s323 = sphi 0, %s322
      %s337 = sphi 0, %s323
      %s343 = sphi 0, %s345
      %s346 = sphi 0, %s343
      %s347 = sphi 0, %s346
      %s363 = sphi 0, %s347
    $region4: #{stnkd_forward.1} parent=1 // loop_header_branch
      %23 = sbr.rel (%p21) target = $region8
    $region5: #{stnkd_forward.1} parent=1 // loop_body
      %s25 = ssub.s32 %s20, 1
      %s26 = ssub.s32 %s20, 2
      %s33 = sadd.s32 1, %s28
      %p34 = scmp.ge.s32.totalorder %s33, 2
      %s35 = scalar_select %p34, 0, %s33
      %s36 = sadd.s32 1, %s27
      %s37 = scalar_select %p34, %s36, %s27
      %p38 = scmp.ge.s32.totalorder %s37, 2
      %s39 = scalar_select %p38, 0, %s37
      %s40 = ssub.s32 %s27, %s39
      %s41 = ssub.s32 %s28, %s35
      %s42 = sor.u32 %s40, %s41
      %p43 = scmp.eq.s32.totalorder %s42, 0
      %s45 = sadd.s32 %s44, 1
      %s46 = scalar_select %p43, %s44, %s45
      %p49 = pneg %p43
      %p50 = scmp.eq.s32.totalorder %s20, 3
      %p51 = por %p49, %p50
      %p52 = scmp.ne.s32.totalorder %s44, %s47
      %p53 = scmp.eq.s32.totalorder %s20, 0
      %p54 = por %p52, %p53
      %p55 = scmp.ne.s32.totalorder %s44, %s47
      %p56 = scmp.eq.s32.totalorder %s25, 3
      %p57 = por %p55, %p56
      %p58 = scmp.ne.s32.totalorder %s47, %s48
      %p59 = scmp.eq.s32.totalorder %s25, 0
      %p60 = por %p58, %p59
      %p61 = scmp.ne.s32.totalorder %s47, %s48
      %p62 = scmp.eq.s32.totalorder %s26, 3
      %p63 = por %p61, %p62
      %p65 = scmp.ne.s32.totalorder %s48, %s64
      %p66 = scmp.eq.s32.totalorder %s26, 0
      %p67 = por %p65, %p66
      %s69 = sadd.s32 %s68, 1
      %p72 = scmp.eq.s32.totalorder %s20, 3
      %p73 = scmp.ne.s32.totalorder %s68, %s70
      %p74 = scmp.eq.s32.totalorder %s20, 0
      %p75 = por %p73, %p74
      %p76 = scmp.ne.s32.totalorder %s68, %s70
      %p77 = scmp.eq.s32.totalorder %s25, 3
      %p78 = por %p76, %p77
      %p79 = scmp.ne.s32.totalorder %s70, %s71
      %p80 = scmp.eq.s32.totalorder %s25, 0
      %p81 = por %p79, %p80
      %p82 = scmp.ne.s32.totalorder %s70, %s71
      %p83 = scmp.eq.s32.totalorder %s26, 3
      %p84 = por %p82, %p83
      %p86 = scmp.ne.s32.totalorder %s71, %s85
      %p87 = scmp.eq.s32.totalorder %s26, 0
      %p88 = por %p86, %p87
      %s90 = sadd.s32 %s89, 1
      %p93 = scmp.eq.s32.totalorder %s20, 3
      %p94 = scmp.ne.s32.totalorder %s89, %s91
      %p95 = scmp.eq.s32.totalorder %s20, 0
      %p96 = por %p94, %p95
      %p97 = scmp.ne.s32.totalorder %s89, %s91
      %p98 = scmp.eq.s32.totalorder %s25, 3
      %p99 = por %p97, %p98
      %p100 = scmp.ne.s32.totalorder %s91, %s92
      %p101 = scmp.eq.s32.totalorder %s25, 0
      %p102 = por %p100, %p101
      %p103 = scmp.ne.s32.totalorder %s91, %s92
      %p104 = scmp.eq.s32.totalorder %s26, 3
      %p105 = por %p103, %p104
      %p107 = scmp.ne.s32.totalorder %s92, %s106
      %p108 = scmp.eq.s32.totalorder %s26, 0
      %p109 = por %p107, %p108
      %s111 = sadd.s32 %s110, 1
      %p114 = scmp.eq.s32.totalorder %s20, 3
      %p115 = scmp.ne.s32.totalorder %s110, %s112
      %p116 = scmp.eq.s32.totalorder %s20, 0
      %p117 = por %p115, %p116
      %p118 = scmp.ne.s32.totalorder %s110, %s112
      %p119 = scmp.eq.s32.totalorder %s25, 3
      %p120 = por %p118, %p119
      %p121 = scmp.ne.s32.totalorder %s112, %s113
      %p122 = scmp.eq.s32.totalorder %s25, 0
      %p123 = por %p121, %p122
      %p124 = scmp.ne.s32.totalorder %s112, %s113
      %p125 = scmp.eq.s32.totalorder %s26, 3
      %p126 = por %p124, %p125
      %p128 = scmp.ne.s32.totalorder %s113, %s127
      %p129 = scmp.eq.s32.totalorder %s26, 0
      %p130 = por %p128, %p129
      %s132 = sadd.s32 %s131, 1
      %p135 = scmp.eq.s32.totalorder %s20, 3
      %p136 = scmp.ne.s32.totalorder %s131, %s133
      %p137 = scmp.eq.s32.totalorder %s20, 0
      %p138 = por %p136, %p137
      %p139 = scmp.ne.s32.totalorder %s131, %s133
      %p140 = scmp.eq.s32.totalorder %s25, 3
      %p141 = por %p139, %p140
      %p142 = scmp.ne.s32.totalorder %s133, %s134
      %p143 = scmp.eq.s32.totalorder %s25, 0
      %p144 = por %p142, %p143
      %p145 = scmp.ne.s32.totalorder %s133, %s134
      %p146 = scmp.eq.s32.totalorder %s26, 3
      %p147 = por %p145, %p146
      %p149 = scmp.ne.s32.totalorder %s134, %s148
      %p150 = scmp.eq.s32.totalorder %s26, 0
      %p151 = por %p149, %p150
      %s153 = sadd.s32 %s152, 1
      %p156 = scmp.eq.s32.totalorder %s20, 3
      %p157 = scmp.ne.s32.totalorder %s152, %s154
      %p158 = scmp.eq.s32.totalorder %s20, 0
      %p159 = por %p157, %p158
      %p160 = scmp.ne.s32.totalorder %s152, %s154
      %p161 = scmp.eq.s32.totalorder %s25, 3
      %p162 = por %p160, %p161
      %p163 = scmp.ne.s32.totalorder %s154, %s155
      %p164 = scmp.eq.s32.totalorder %s25, 0
      %p165 = por %p163, %p164
      %p166 = scmp.ne.s32.totalorder %s154, %s155
      %p167 = scmp.eq.s32.totalorder %s26, 3
      %p168 = por %p166, %p167
      %p170 = scmp.ne.s32.totalorder %s155, %s169
      %p171 = scmp.eq.s32.totalorder %s26, 0
      %p172 = por %p170, %p171
      %s174 = sadd.s32 %s173, 1
      %p177 = scmp.eq.s32.totalorder %s20, 3
      %p178 = scmp.ne.s32.totalorder %s173, %s175
      %p179 = scmp.eq.s32.totalorder %s20, 0
      %p180 = por %p178, %p179
      %p181 = scmp.ne.s32.totalorder %s173, %s175
      %p182 = scmp.eq.s32.totalorder %s25, 3
      %p183 = por %p181, %p182
      %p184 = scmp.ne.s32.totalorder %s175, %s176
      %p185 = scmp.eq.s32.totalorder %s25, 0
      %p186 = por %p184, %p185
      %p187 = scmp.ne.s32.totalorder %s175, %s176
      %p188 = scmp.eq.s32.totalorder %s26, 3
      %p189 = por %p187, %p188
      %p191 = scmp.ne.s32.totalorder %s176, %s190
      %p192 = scmp.eq.s32.totalorder %s26, 0
      %p193 = por %p191, %p192
      %s195 = sadd.s32 %s194, 1
      %p198 = scmp.eq.s32.totalorder %s20, 3
      %p199 = scmp.ne.s32.totalorder %s194, %s196
      %p200 = scmp.eq.s32.totalorder %s20, 0
      %p201 = por %p199, %p200
      %p202 = scmp.ne.s32.totalorder %s194, %s196
      %p203 = scmp.eq.s32.totalorder %s25, 3
      %p204 = por %p202, %p203
      %p205 = scmp.ne.s32.totalorder %s196, %s197
      %p206 = scmp.eq.s32.totalorder %s25, 0
      %p207 = por %p205, %p206
      %p208 = scmp.ne.s32.totalorder %s196, %s197
      %p209 = scmp.eq.s32.totalorder %s26, 3
      %p210 = por %p208, %p209
      %p212 = scmp.ne.s32.totalorder %s197, %s211
      %p213 = scmp.eq.s32.totalorder %s26, 0
      %p214 = por %p212, %p213
      %s216 = sadd.s32 %s215, 1
      %p219 = scmp.eq.s32.totalorder %s20, 3
      %p220 = scmp.ne.s32.totalorder %s215, %s217
      %p221 = scmp.eq.s32.totalorder %s20, 0
      %p222 = por %p220, %p221
      %p223 = scmp.ne.s32.totalorder %s215, %s217
      %p224 = scmp.eq.s32.totalorder %s25, 3
      %p225 = por %p223, %p224
      %p226 = scmp.ne.s32.totalorder %s217, %s218
      %p227 = scmp.eq.s32.totalorder %s25, 0
      %p228 = por %p226, %p227
      %p229 = scmp.ne.s32.totalorder %s217, %s218
      %p230 = scmp.eq.s32.totalorder %s26, 3
      %p231 = por %p229, %p230
      %p233 = scmp.ne.s32.totalorder %s218, %s232
      %p234 = scmp.eq.s32.totalorder %s26, 0
      %p235 = por %p233, %p234
      %s237 = sadd.s32 %s236, 1
      %p240 = scmp.eq.s32.totalorder %s20, 3
      %p241 = scmp.ne.s32.totalorder %s236, %s238
      %p242 = scmp.eq.s32.totalorder %s20, 0
      %p243 = por %p241, %p242
      %p244 = scmp.ne.s32.totalorder %s236, %s238
      %p245 = scmp.eq.s32.totalorder %s25, 3
      %p246 = por %p244, %p245
      %p247 = scmp.ne.s32.totalorder %s238, %s239
      %p248 = scmp.eq.s32.totalorder %s25, 0
      %p249 = por %p247, %p248
      %p250 = scmp.ne.s32.totalorder %s238, %s239
      %p251 = scmp.eq.s32.totalorder %s26, 3
      %p252 = por %p250, %p251
      %p254 = scmp.ne.s32.totalorder %s239, %s253
      %p255 = scmp.eq.s32.totalorder %s26, 0
      %p256 = por %p254, %p255
      %s258 = sadd.s32 %s257, 1
      %p261 = scmp.eq.s32.totalorder %s20, 3
      %p262 = scmp.ne.s32.totalorder %s257, %s259
      %p263 = scmp.eq.s32.totalorder %s20, 0
      %p264 = por %p262, %p263
      %p265 = scmp.ne.s32.totalorder %s257, %s259
      %p266 = scmp.eq.s32.totalorder %s25, 3
      %p267 = por %p265, %p266
      %p268 = scmp.ne.s32.totalorder %s259, %s260
      %p269 = scmp.eq.s32.totalorder %s25, 0
      %p270 = por %p268, %p269
      %p271 = scmp.ne.s32.totalorder %s259, %s260
      %p272 = scmp.eq.s32.totalorder %s26, 3
      %p273 = por %p271, %p272
      %p275 = scmp.ne.s32.totalorder %s260, %s274
      %p276 = scmp.eq.s32.totalorder %s26, 0
      %p277 = por %p275, %p276
      %s279 = sadd.s32 %s278, 1
      %p282 = scmp.eq.s32.totalorder %s20, 3
      %p283 = scmp.ne.s32.totalorder %s278, %s280
      %p284 = scmp.eq.s32.totalorder %s20, 0
      %p285 = por %p283, %p284
      %p286 = scmp.ne.s32.totalorder %s278, %s280
      %p287 = scmp.eq.s32.totalorder %s25, 3
      %p288 = por %p286, %p287
      %p289 = scmp.ne.s32.totalorder %s280, %s281
      %p290 = scmp.eq.s32.totalorder %s25, 0
      %p291 = por %p289, %p290
      %p292 = scmp.ne.s32.totalorder %s280, %s281
      %p293 = scmp.eq.s32.totalorder %s26, 3
      %p294 = por %p292, %p293
      %p296 = scmp.ne.s32.totalorder %s281, %s295
      %p297 = scmp.eq.s32.totalorder %s26, 0
      %p298 = por %p296, %p297
      %s300 = sadd.s32 %s299, 1
      %p303 = scmp.eq.s32.totalorder %s20, 3
      %p304 = scmp.ne.s32.totalorder %s299, %s301
      %p305 = scmp.eq.s32.totalorder %s20, 0
      %p306 = por %p304, %p305
      %p307 = scmp.ne.s32.totalorder %s299, %s301
      %p308 = scmp.eq.s32.totalorder %s25, 3
      %p309 = por %p307, %p308
      %p310 = scmp.ne.s32.totalorder %s301, %s302
      %p311 = scmp.eq.s32.totalorder %s25, 0
      %p312 = por %p310, %p311
      %p313 = scmp.ne.s32.totalorder %s301, %s302
      %p314 = scmp.eq.s32.totalorder %s26, 3
      %p315 = por %p313, %p314
      %p317 = scmp.ne.s32.totalorder %s302, %s316
      %p318 = scmp.eq.s32.totalorder %s26, 0
      %p319 = por %p317, %p318
      %s321 = sadd.s32 %s320, 1
      %p324 = scmp.eq.s32.totalorder %s20, 3
      %p325 = scmp.ne.s32.totalorder %s320, %s322
      %p326 = scmp.eq.s32.totalorder %s20, 0
      %p327 = por %p325, %p326
      %p328 = scmp.ne.s32.totalorder %s320, %s322
      %p329 = scmp.eq.s32.totalorder %s25, 3
      %p330 = por %p328, %p329
      %p331 = scmp.ne.s32.totalorder %s322, %s323
      %p332 = scmp.eq.s32.totalorder %s25, 0
      %p333 = por %p331, %p332
      %p334 = scmp.ne.s32.totalorder %s322, %s323
      %p335 = scmp.eq.s32.totalorder %s26, 3
      %p336 = por %p334, %p335
      %p338 = scmp.ne.s32.totalorder %s323, %s337
      %p339 = scmp.eq.s32.totalorder %s26, 0
      %p340 = por %p338, %p339
      %s341 = ssub.s32 %s27, %s39
      %p342 = scmp.eq.s32.totalorder %s341, 0
      %s344 = sadd.s32 %s343, 1
      %s345 = scalar_select %p342, %s343, %s344
      %p348 = pneg %p342
      %p349 = scmp.eq.s32.totalorder %s20, 3
      %p350 = por %p348, %p349
      %p351 = scmp.ne.s32.totalorder %s343, %s346
      %p352 = scmp.eq.s32.totalorder %s20, 0
      %p353 = por %p351, %p352
      %p354 = scmp.ne.s32.totalorder %s343, %s346
      %p355 = scmp.eq.s32.totalorder %s25, 3
      %p356 = por %p354, %p355
      %p357 = scmp.ne.s32.totalorder %s346, %s347
      %p358 = scmp.eq.s32.totalorder %s25, 0
      %p359 = por %p357, %p358
      %p360 = scmp.ne.s32.totalorder %s346, %s347
      %p361 = scmp.eq.s32.totalorder %s26, 3
      %p362 = por %p360, %p361
      %p364 = scmp.ne.s32.totalorder %s347, %s363
      %p365 = scmp.eq.s32.totalorder %s26, 0
      %p366 = por %p364, %p365
      %p367 = scmp.le.s32.totalorder 1, %s20
      %p368 = scmp.lt.s32.totalorder %s20, 5
      %p369 = pnand %p367, %p368
      %p370 = pneg %p369
      // Predicated region
      $region9: #{stnkd_forward.1} parent=5 // pred_check
        _
      $region10: #{stnkd_forward.1} parent=5 // pred_check_branch
        %372 = sbr.rel (%p369) target = $region12
      $region11: #{stnkd_forward.1} parent=5 // pred_region
        %s373 = ssub.s32 %s20, 1
        // Predicated region
        $region13: #{stnkd_forward.1} parent=11 // pred_check
          %p374 = pneg %p81
        $region14: #{stnkd_forward.1} parent=11 // pred_check_branch
          %376 = sbr.rel (%p374) target = $region16
        $region15: #{stnkd_forward.1} parent=11 // pred_region
          _
        $region16: #{stnkd_forward.1} parent=11 // pred_fallthru
          _
        // Predicated region
        $region17: #{stnkd_forward.1} parent=11 // pred_check
          %p377 = pneg %p102
        $region18: #{stnkd_forward.1} parent=11 // pred_check_branch
          %379 = sbr.rel (%p377) target = $region20
        $region19: #{stnkd_forward.1} parent=11 // pred_region
          _
        $region20: #{stnkd_forward.1} parent=11 // pred_fallthru
          _
        // Predicated region
        $region21: #{stnkd_forward.1} parent=11 // pred_check
          %p380 = pneg %p123
        $region22: #{stnkd_forward.1} parent=11 // pred_check_branch
          %382 = sbr.rel (%p380) target = $region24
        $region23: #{stnkd_forward.1} parent=11 // pred_region
          _
        $region24: #{stnkd_forward.1} parent=11 // pred_fallthru
          _
        // Predicated region
        $region25: #{stnkd_forward.1} parent=11 // pred_check
          %p383 = pneg %p144
        $region26: #{stnkd_forward.1} parent=11 // pred_check_branch
          %385 = sbr.rel (%p383) target = $region28
        $region27: #{stnkd_forward.1} parent=11 // pred_region
          _
        $region28: #{stnkd_forward.1} parent=11 // pred_fallthru
          _
        // Predicated region
        $region29: #{stnkd_forward.1} parent=11 // pred_check
          %p386 = pneg %p165
        $region30: #{stnkd_forward.1} parent=11 // pred_check_branch
          %388 = sbr.rel (%p386) target = $region32
        $region31: #{stnkd_forward.1} parent=11 // pred_region
          _
        $region32: #{stnkd_forward.1} parent=11 // pred_fallthru
          _
        // Predicated region
        $region33: #{stnkd_forward.1} parent=11 // pred_check
          %p389 = pneg %p186
        $region34: #{stnkd_forward.1} parent=11 // pred_check_branch
          %391 = sbr.rel (%p389) target = $region36
        $region35: #{stnkd_forward.1} parent=11 // pred_region
          _
        $region36: #{stnkd_forward.1} parent=11 // pred_fallthru
          _
        // Predicated region
        $region37: #{stnkd_forward.1} parent=11 // pred_check
          %p392 = pneg %p207
        $region38: #{stnkd_forward.1} parent=11 // pred_check_branch
          %394 = sbr.rel (%p392) target = $region40
        $region39: #{stnkd_forward.1} parent=11 // pred_region
          _
        $region40: #{stnkd_forward.1} parent=11 // pred_fallthru
          _
        // Predicated region
        $region41: #{stnkd_forward.1} parent=11 // pred_check
          %p395 = pneg %p228
        $region42: #{stnkd_forward.1} parent=11 // pred_check_branch
          %397 = sbr.rel (%p395) target = $region44
        $region43: #{stnkd_forward.1} parent=11 // pred_region
          _
        $region44: #{stnkd_forward.1} parent=11 // pred_fallthru
          _
        // Predicated region
        $region45: #{stnkd_forward.1} parent=11 // pred_check
          %p398 = pneg %p249
        $region46: #{stnkd_forward.1} parent=11 // pred_check_branch
          %400 = sbr.rel (%p398) target = $region48
        $region47: #{stnkd_forward.1} parent=11 // pred_region
          _
        $region48: #{stnkd_forward.1} parent=11 // pred_fallthru
          _
        // Predicated region
        $region49: #{stnkd_forward.1} parent=11 // pred_check
          %p401 = pneg %p270
        $region50: #{stnkd_forward.1} parent=11 // pred_check_branch
          %403 = sbr.rel (%p401) target = $region52
        $region51: #{stnkd_forward.1} parent=11 // pred_region
          _
        $region52: #{stnkd_forward.1} parent=11 // pred_fallthru
          _
        // Predicated region
        $region53: #{stnkd_forward.1} parent=11 // pred_check
          %p404 = pneg %p291
        $region54: #{stnkd_forward.1} parent=11 // pred_check_branch
          %406 = sbr.rel (%p404) target = $region56
        $region55: #{stnkd_forward.1} parent=11 // pred_region
          _
        $region56: #{stnkd_forward.1} parent=11 // pred_fallthru
          _
        // Predicated region
        $region57: #{stnkd_forward.1} parent=11 // pred_check
          %p407 = pneg %p312
        $region58: #{stnkd_forward.1} parent=11 // pred_check_branch
          %409 = sbr.rel (%p407) target = $region60
        $region59: #{stnkd_forward.1} parent=11 // pred_region
          _
        $region60: #{stnkd_forward.1} parent=11 // pred_fallthru
          _
        // Predicated region
        $region61: #{stnkd_forward.1} parent=11 // pred_check
          %p410 = pneg %p333
        $region62: #{stnkd_forward.1} parent=11 // pred_check_branch
          %412 = sbr.rel (%p410) target = $region64
        $region63: #{stnkd_forward.1} parent=11 // pred_region
          _
        $region64: #{stnkd_forward.1} parent=11 // pred_fallthru
          _
      $region12: #{stnkd_forward.1} parent=5 // pred_fallthru
        _
      %p413 = scmp.lt.s32.totalorder %s20, 4
      // Predicated region
      $region65: #{stnkd_forward.1} parent=5 // pred_check
        %p414 = pneg %p413
      $region66: #{stnkd_forward.1} parent=5 // pred_check_branch
        %416 = sbr.rel (%p414) target = $region68
      $region67: #{stnkd_forward.1} parent=5 // pred_region
        // Predicated region
        $region69: #{stnkd_forward.1} parent=67 // pred_check
          %p417 = pneg %p54
        $region70: #{stnkd_forward.1} parent=67 // pred_check_branch
          %419 = sbr.rel (%p417) target = $region72
        $region71: #{stnkd_forward.1} parent=67 // pred_region
          %s420 = sand.u32 %s44, 1
          %s421 = sand.u32 %s44, 1
          %s422 = smul.addr %s421, 512
          %s423 = scalar_lea.vmem [#allocation3], %s422
          %s424 = smul.u32 8, %s27
          %s425 = smul.u32 16, %s28
          %s426 = smul.addr %s424, 32
          %s427 = sadd.s32 %s425, %s426
          %s428 = smul.addr %s427, 4
          %s429 = scalar_lea.vmem %s0, %s428
          // Predicated region
          $region73: #{stnkd_forward.1} parent=71 // pred_check
            _
          $region74: #{stnkd_forward.1} parent=71 // pred_check_branch
            %431 = sbr.rel (0) target = $region76
          $region75: #{stnkd_forward.1} parent=71 // pred_region
            // Predicated region
            $region77: #{stnkd_forward.1} parent=75 // pred_check
              _
            $region78: #{stnkd_forward.1} parent=75 // pred_check_branch
              %433 = sbr.rel target = $region80
            $region79: #{stnkd_forward.1} parent=75 // pred_region
              // Predicated region
              $region92: #{stnkd_forward.1} parent=79 // pred_check
                _
              $region93: #{stnkd_forward.1} parent=79 // pred_check_branch
                %702 = sbr.rel (0) target = $region95
              $region94: #{stnkd_forward.1} parent=79 // pred_region
                loop: start=0, step=1, limit=1
                $region96: #{stnkd_forward.1} parent=94 // loop_pre_header
                  _
                $region97: #{stnkd_forward.1} parent=94 // loop_header
                  %s704 = sphi 0, %s708
                  %p705 = scmp.ge.s32.totalorder %s704, 1
                  %s709 = sphi %s429, %s429
                  %s710 = sphi %s423, %s423
                $region98: #{stnkd_forward.1} parent=94 // loop_header_branch
                  %707 = sbr.rel (%p705) target = $region102
                $region99: #{stnkd_forward.1} parent=94 // loop_body
                  _
                $region100: #{stnkd_forward.1} parent=94 // loop_footer
                  %s708 = sadd.s32 1, %s704
                $region101: #{stnkd_forward.1} parent=94 // loop_footer_branch
                  %703 = sbr.rel target = $region97
                $region102: #{stnkd_forward.1} parent=94 // loop_exit
                  _
                loop: start=0, step=1, limit=1
                $region103: #{stnkd_forward.1} parent=94 // loop_pre_header
                  _
                $region104: #{stnkd_forward.1} parent=94 // loop_header
                  %s713 = sphi 0, %s717
                  %p714 = scmp.ge.s32.totalorder %s713, 1
                  %s718 = sphi %s429, %s429
                  %s719 = sphi %s423, %s423
                $region105: #{stnkd_forward.1} parent=94 // loop_header_branch
                  %716 = sbr.rel (%p714) target = $region109
                $region106: #{stnkd_forward.1} parent=94 // loop_body
                  %v720 = vld [vmem:[%s718] sm:$0xf]
                  %721 = vst [vmem:[%s719] sm:$0xf] %v720
                  %v722 = vld [vmem:[%s718 + $0x4] sm:$0xf]
                  %723 = vst [vmem:[%s719 + $0x4] sm:$0xf] %v722
                  %v724 = vld [vmem:[%s718 + $0x8] sm:$0xf]
                  %725 = vst [vmem:[%s719 + $0x8] sm:$0xf] %v724
                  %v726 = vld [vmem:[%s718 + $0xc] sm:$0xf]
                  %727 = vst [vmem:[%s719 + $0xc] sm:$0xf] %v726
                  %v728 = vld [vmem:[%s718 + $0x10] sm:$0xf]
                  %729 = vst [vmem:[%s719 + $0x10] sm:$0xf] %v728
                  %v730 = vld [vmem:[%s718 + $0x14] sm:$0xf]
                  %731 = vst [vmem:[%s719 + $0x14] sm:$0xf] %v730
                  %v732 = vld [vmem:[%s718 + $0x18] sm:$0xf]
                  %733 = vst [vmem:[%s719 + $0x18] sm:$0xf] %v732
                  %v734 = vld [vmem:[%s718 + $0x1c] sm:$0xf]
                  %735 = vst [vmem:[%s719 + $0x1c] sm:$0xf] %v734
                  %v736 = vld [vmem:[%s718 + $0x20] sm:$0xf]
                  %737 = vst [vmem:[%s719 + $0x20] sm:$0xf] %v736
                  %v738 = vld [vmem:[%s718 + $0x24] sm:$0xf]
                  %739 = vst [vmem:[%s719 + $0x24] sm:$0xf] %v738
                  %v740 = vld [vmem:[%s718 + $0x28] sm:$0xf]
                  %741 = vst [vmem:[%s719 + $0x28] sm:$0xf] %v740
                  %v742 = vld [vmem:[%s718 + $0x2c] sm:$0xf]
                  %743 = vst [vmem:[%s719 + $0x2c] sm:$0xf] %v742
                  %v744 = vld [vmem:[%s718 + $0x30] sm:$0xf]
                  %745 = vst [vmem:[%s719 + $0x30] sm:$0xf] %v744
                  %v746 = vld [vmem:[%s718 + $0x34] sm:$0xf]
                  %747 = vst [vmem:[%s719 + $0x34] sm:$0xf] %v746
                  %v748 = vld [vmem:[%s718 + $0x38] sm:$0xf]
                  %749 = vst [vmem:[%s719 + $0x38] sm:$0xf] %v748
                  %v750 = vld [vmem:[%s718 + $0x3c] sm:$0xf]
                  %751 = vst [vmem:[%s719 + $0x3c] sm:$0xf] %v750
                  %v752 = vld [vmem:[%s718 + $0x80] sm:$0xf]
                  %753 = vst [vmem:[%s719 + $0x40] sm:$0xf] %v752
                  %v754 = vld [vmem:[%s718 + $0x84] sm:$0xf]
                  %755 = vst [vmem:[%s719 + $0x44] sm:$0xf] %v754
                  %v756 = vld [vmem:[%s718 + $0x88] sm:$0xf]
                  %757 = vst [vmem:[%s719 + $0x48] sm:$0xf] %v756
                  %v758 = vld [vmem:[%s718 + $0x8c] sm:$0xf]
                  %759 = vst [vmem:[%s719 + $0x4c] sm:$0xf] %v758
                  %v760 = vld [vmem:[%s718 + $0x90] sm:$0xf]
                  %761 = vst [vmem:[%s719 + $0x50] sm:$0xf] %v760
                  %v762 = vld [vmem:[%s718 + $0x94] sm:$0xf]
                  %763 = vst [vmem:[%s719 + $0x54] sm:$0xf] %v762
                  %v764 = vld [vmem:[%s718 + $0x98] sm:$0xf]
                  %765 = vst [vmem:[%s719 + $0x58] sm:$0xf] %v764
                  %v766 = vld [vmem:[%s718 + $0x9c] sm:$0xf]
                  %767 = vst [vmem:[%s719 + $0x5c] sm:$0xf] %v766
                  %v768 = vld [vmem:[%s718 + $0xa0] sm:$0xf]
                  %769 = vst [vmem:[%s719 + $0x60] sm:$0xf] %v768
                  %v770 = vld [vmem:[%s718 + $0xa4] sm:$0xf]
                  %771 = vst [vmem:[%s719 + $0x64] sm:$0xf] %v770
                  %v772 = vld [vmem:[%s718 + $0xa8] sm:$0xf]
                  %773 = vst [vmem:[%s719 + $0x68] sm:$0xf] %v772
                  %v774 = vld [vmem:[%s718 + $0xac] sm:$0xf]
                  %775 = vst [vmem:[%s719 + $0x6c] sm:$0xf] %v774
                  %v776 = vld [vmem:[%s718 + $0xb0] sm:$0xf]
                  %777 = vst [vmem:[%s719 + $0x70] sm:$0xf] %v776
                  %v778 = vld [vmem:[%s718 + $0xb4] sm:$0xf]
                  %779 = vst [vmem:[%s719 + $0x74] sm:$0xf] %v778
                  %v780 = vld [vmem:[%s718 + $0xb8] sm:$0xf]
                  %781 = vst [vmem:[%s719 + $0x78] sm:$0xf] %v780
                  %v782 = vld [vmem:[%s718 + $0xbc] sm:$0xf]
                  %783 = vst [vmem:[%s719 + $0x7c] sm:$0xf] %v782
                  %v784 = vld [vmem:[%s718 + $0x100] sm:$0xf]
                  %785 = vst [vmem:[%s719 + $0x80] sm:$0xf] %v784
                  %v786 = vld [vmem:[%s718 + $0x104] sm:$0xf]
                  %787 = vst [vmem:[%s719 + $0x84] sm:$0xf] %v786
                  %v788 = vld [vmem:[%s718 + $0x108] sm:$0xf]
                  %789 = vst [vmem:[%s719 + $0x88] sm:$0xf] %v788
                  %v790 = vld [vmem:[%s718 + $0x10c] sm:$0xf]
                  %791 = vst [vmem:[%s719 + $0x8c] sm:$0xf] %v790
                  %v792 = vld [vmem:[%s718 + $0x110] sm:$0xf]
                  %793 = vst [vmem:[%s719 + $0x90] sm:$0xf] %v792
                  %v794 = vld [vmem:[%s718 + $0x114] sm:$0xf]
                  %795 = vst [vmem:[%s719 + $0x94] sm:$0xf] %v794
                  %v796 = vld [vmem:[%s718 + $0x118] sm:$0xf]
                  %797 = vst [vmem:[%s719 + $0x98] sm:$0xf] %v796
                  %v798 = vld [vmem:[%s718 + $0x11c] sm:$0xf]
                  %799 = vst [vmem:[%s719 + $0x9c] sm:$0xf] %v798
                  %v800 = vld [vmem:[%s718 + $0x120] sm:$0xf]
                  %801 = vst [vmem:[%s719 + $0xa0] sm:$0xf] %v800
                  %v802 = vld [vmem:[%s718 + $0x124] sm:$0xf]
                  %803 = vst [vmem:[%s719 + $0xa4] sm:$0xf] %v802
                  %v804 = vld [vmem:[%s718 + $0x128] sm:$0xf]
                  %805 = vst [vmem:[%s719 + $0xa8] sm:$0xf] %v804
                  %v806 = vld [vmem:[%s718 + $0x12c] sm:$0xf]
                  %807 = vst [vmem:[%s719 + $0xac] sm:$0xf] %v806
                  %v808 = vld [vmem:[%s718 + $0x130] sm:$0xf]
                  %809 = vst [vmem:[%s719 + $0xb0] sm:$0xf] %v808
                  %v810 = vld [vmem:[%s718 + $0x134] sm:$0xf]
                  %811 = vst [vmem:[%s719 + $0xb4] sm:$0xf] %v810
                  %v812 = vld [vmem:[%s718 + $0x138] sm:$0xf]
                  %813 = vst [vmem:[%s719 + $0xb8] sm:$0xf] %v812
                  %v814 = vld [vmem:[%s718 + $0x13c] sm:$0xf]
                  %815 = vst [vmem:[%s719 + $0xbc] sm:$0xf] %v814
                  %v816 = vld [vmem:[%s718 + $0x180] sm:$0xf]
                  %817 = vst [vmem:[%s719 + $0xc0] sm:$0xf] %v816
                  %v818 = vld [vmem:[%s718 + $0x184] sm:$0xf]
                  %819 = vst [vmem:[%s719 + $0xc4] sm:$0xf] %v818
                  %v820 = vld [vmem:[%s718 + $0x188] sm:$0xf]
                  %821 = vst [vmem:[%s719 + $0xc8] sm:$0xf] %v820
                  %v822 = vld [vmem:[%s718 + $0x18c] sm:$0xf]
                  %823 = vst [vmem:[%s719 + $0xcc] sm:$0xf] %v822
                  %v824 = vld [vmem:[%s718 + $0x190] sm:$0xf]
                  %825 = vst [vmem:[%s719 + $0xd0] sm:$0xf] %v824
                  %v826 = vld [vmem:[%s718 + $0x194] sm:$0xf]
                  %827 = vst [vmem:[%s719 + $0xd4] sm:$0xf] %v826
                  %v828 = vld [vmem:[%s718 + $0x198] sm:$0xf]
                  %829 = vst [vmem:[%s719 + $0xd8] sm:$0xf] %v828
                  %v830 = vld [vmem:[%s718 + $0x19c] sm:$0xf]
                  %831 = vst [vmem:[%s719 + $0xdc] sm:$0xf] %v830
                  %v832 = vld [vmem:[%s718 + $0x1a0] sm:$0xf]
                  %833 = vst [vmem:[%s719 + $0xe0] sm:$0xf] %v832
                  %v834 = vld [vmem:[%s718 + $0x1a4] sm:$0xf]
                  %835 = vst [vmem:[%s719 + $0xe4] sm:$0xf] %v834
                  %v836 = vld [vmem:[%s718 + $0x1a8] sm:$0xf]
                  %837 = vst [vmem:[%s719 + $0xe8] sm:$0xf] %v836
                  %v838 = vld [vmem:[%s718 + $0x1ac] sm:$0xf]
                  %839 = vst [vmem:[%s719 + $0xec] sm:$0xf] %v838
                  %v840 = vld [vmem:[%s718 + $0x1b0] sm:$0xf]
                  %841 = vst [vmem:[%s719 + $0xf0] sm:$0xf] %v840
                  %v842 = vld [vmem:[%s718 + $0x1b4] sm:$0xf]
                  %843 = vst [vmem:[%s719 + $0xf4] sm:$0xf] %v842
                  %v844 = vld [vmem:[%s718 + $0x1b8] sm:$0xf]
                  %845 = vst [vmem:[%s719 + $0xf8] sm:$0xf] %v844
                  %v846 = vld [vmem:[%s718 + $0x1bc] sm:$0xf]
                  %847 = vst [vmem:[%s719 + $0xfc] sm:$0xf] %v846
                  %v848 = vld [vmem:[%s718 + $0x200] sm:$0xf]
                  %849 = vst [vmem:[%s719 + $0x100] sm:$0xf] %v848
                  %v850 = vld [vmem:[%s718 + $0x204] sm:$0xf]
                  %851 = vst [vmem:[%s719 + $0x104] sm:$0xf] %v850
                  %v852 = vld [vmem:[%s718 + $0x208] sm:$0xf]
                  %853 = vst [vmem:[%s719 + $0x108] sm:$0xf] %v852
                  %v854 = vld [vmem:[%s718 + $0x20c] sm:$0xf]
                  %855 = vst [vmem:[%s719 + $0x10c] sm:$0xf] %v854
                  %v856 = vld [vmem:[%s718 + $0x210] sm:$0xf]
                  %857 = vst [vmem:[%s719 + $0x110] sm:$0xf] %v856
                  %v858 = vld [vmem:[%s718 + $0x214] sm:$0xf]
                  %859 = vst [vmem:[%s719 + $0x114] sm:$0xf] %v858
                  %v860 = vld [vmem:[%s718 + $0x218] sm:$0xf]
                  %861 = vst [vmem:[%s719 + $0x118] sm:$0xf] %v860
                  %v862 = vld [vmem:[%s718 + $0x21c] sm:$0xf]
                  %863 = vst [vmem:[%s719 + $0x11c] sm:$0xf] %v862
                  %v864 = vld [vmem:[%s718 + $0x220] sm:$0xf]
                  %865 = vst [vmem:[%s719 + $0x120] sm:$0xf] %v864
                  %v866 = vld [vmem:[%s718 + $0x224] sm:$0xf]
                  %867 = vst [vmem:[%s719 + $0x124] sm:$0xf] %v866
                  %v868 = vld [vmem:[%s718 + $0x228] sm:$0xf]
                  %869 = vst [vmem:[%s719 + $0x128] sm:$0xf] %v868
                  %v870 = vld [vmem:[%s718 + $0x22c] sm:$0xf]
                  %871 = vst [vmem:[%s719 + $0x12c] sm:$0xf] %v870
                  %v872 = vld [vmem:[%s718 + $0x230] sm:$0xf]
                  %873 = vst [vmem:[%s719 + $0x130] sm:$0xf] %v872
                  %v874 = vld [vmem:[%s718 + $0x234] sm:$0xf]
                  %875 = vst [vmem:[%s719 + $0x134] sm:$0xf] %v874
                  %v876 = vld [vmem:[%s718 + $0x238] sm:$0xf]
                  %877 = vst [vmem:[%s719 + $0x138] sm:$0xf] %v876
                  %v878 = vld [vmem:[%s718 + $0x23c] sm:$0xf]
                  %879 = vst [vmem:[%s719 + $0x13c] sm:$0xf] %v878
                  %v880 = vld [vmem:[%s718 + $0x280] sm:$0xf]
                  %881 = vst [vmem:[%s719 + $0x140] sm:$0xf] %v880
                  %v882 = vld [vmem:[%s718 + $0x284] sm:$0xf]
                  %883 = vst [vmem:[%s719 + $0x144] sm:$0xf] %v882
                  %v884 = vld [vmem:[%s718 + $0x288] sm:$0xf]
                  %885 = vst [vmem:[%s719 + $0x148] sm:$0xf] %v884
                  %v886 = vld [vmem:[%s718 + $0x28c] sm:$0xf]
                  %887 = vst [vmem:[%s719 + $0x14c] sm:$0xf] %v886
                  %v888 = vld [vmem:[%s718 + $0x290] sm:$0xf]
                  %889 = vst [vmem:[%s719 + $0x150] sm:$0xf] %v888
                  %v890 = vld [vmem:[%s718 + $0x294] sm:$0xf]
                  %891 = vst [vmem:[%s719 + $0x154] sm:$0xf] %v890
                  %v892 = vld [vmem:[%s718 + $0x298] sm:$0xf]
                  %893 = vst [vmem:[%s719 + $0x158] sm:$0xf] %v892
                  %v894 = vld [vmem:[%s718 + $0x29c] sm:$0xf]
                  %895 = vst [vmem:[%s719 + $0x15c] sm:$0xf] %v894
                  %v896 = vld [vmem:[%s718 + $0x2a0] sm:$0xf]
                  %897 = vst [vmem:[%s719 + $0x160] sm:$0xf] %v896
                  %v898 = vld [vmem:[%s718 + $0x2a4] sm:$0xf]
                  %899 = vst [vmem:[%s719 + $0x164] sm:$0xf] %v898
                  %v900 = vld [vmem:[%s718 + $0x2a8] sm:$0xf]
                  %901 = vst [vmem:[%s719 + $0x168] sm:$0xf] %v900
                  %v902 = vld [vmem:[%s718 + $0x2ac] sm:$0xf]
                  %903 = vst [vmem:[%s719 + $0x16c] sm:$0xf] %v902
                  %v904 = vld [vmem:[%s718 + $0x2b0] sm:$0xf]
                  %905 = vst [vmem:[%s719 + $0x170] sm:$0xf] %v904
                  %v906 = vld [vmem:[%s718 + $0x2b4] sm:$0xf]
                  %907 = vst [vmem:[%s719 + $0x174] sm:$0xf] %v906
                  %v908 = vld [vmem:[%s718 + $0x2b8] sm:$0xf]
                  %909 = vst [vmem:[%s719 + $0x178] sm:$0xf] %v908
                  %v910 = vld [vmem:[%s718 + $0x2bc] sm:$0xf]
                  %911 = vst [vmem:[%s719 + $0x17c] sm:$0xf] %v910
                  %v912 = vld [vmem:[%s718 + $0x300] sm:$0xf]
                  %913 = vst [vmem:[%s719 + $0x180] sm:$0xf] %v912
                  %v914 = vld [vmem:[%s718 + $0x304] sm:$0xf]
                  %915 = vst [vmem:[%s719 + $0x184] sm:$0xf] %v914
                  %v916 = vld [vmem:[%s718 + $0x308] sm:$0xf]
                  %917 = vst [vmem:[%s719 + $0x188] sm:$0xf] %v916
                  %v918 = vld [vmem:[%s718 + $0x30c] sm:$0xf]
                  %919 = vst [vmem:[%s719 + $0x18c] sm:$0xf] %v918
                  %v920 = vld [vmem:[%s718 + $0x310] sm:$0xf]
                  %921 = vst [vmem:[%s719 + $0x190] sm:$0xf] %v920
                  %v922 = vld [vmem:[%s718 + $0x314] sm:$0xf]
                  %923 = vst [vmem:[%s719 + $0x194] sm:$0xf] %v922
                  %v924 = vld [vmem:[%s718 + $0x318] sm:$0xf]
                  %925 = vst [vmem:[%s719 + $0x198] sm:$0xf] %v924
                  %v926 = vld [vmem:[%s718 + $0x31c] sm:$0xf]
                  %927 = vst [vmem:[%s719 + $0x19c] sm:$0xf] %v926
                  %v928 = vld [vmem:[%s718 + $0x320] sm:$0xf]
                  %929 = vst [vmem:[%s719 + $0x1a0] sm:$0xf] %v928
                  %v930 = vld [vmem:[%s718 + $0x324] sm:$0xf]
                  %931 = vst [vmem:[%s719 + $0x1a4] sm:$0xf] %v930
                  %v932 = vld [vmem:[%s718 + $0x328] sm:$0xf]
                  %933 = vst [vmem:[%s719 + $0x1a8] sm:$0xf] %v932
                  %v934 = vld [vmem:[%s718 + $0x32c] sm:$0xf]
                  %935 = vst [vmem:[%s719 + $0x1ac] sm:$0xf] %v934
                  %v936 = vld [vmem:[%s718 + $0x330] sm:$0xf]
                  %937 = vst [vmem:[%s719 + $0x1b0] sm:$0xf] %v936
                  %v938 = vld [vmem:[%s718 + $0x334] sm:$0xf]
                  %939 = vst [vmem:[%s719 + $0x1b4] sm:$0xf] %v938
                  %v940 = vld [vmem:[%s718 + $0x338] sm:$0xf]
                  %941 = vst [vmem:[%s719 + $0x1b8] sm:$0xf] %v940
                  %v942 = vld [vmem:[%s718 + $0x33c] sm:$0xf]
                  %943 = vst [vmem:[%s719 + $0x1bc] sm:$0xf] %v942
                  %v944 = vld [vmem:[%s718 + $0x380] sm:$0xf]
                  %945 = vst [vmem:[%s719 + $0x1c0] sm:$0xf] %v944
                  %v946 = vld [vmem:[%s718 + $0x384] sm:$0xf]
                  %947 = vst [vmem:[%s719 + $0x1c4] sm:$0xf] %v946
                  %v948 = vld [vmem:[%s718 + $0x388] sm:$0xf]
                  %949 = vst [vmem:[%s719 + $0x1c8] sm:$0xf] %v948
                  %v950 = vld [vmem:[%s718 + $0x38c] sm:$0xf]
                  %951 = vst [vmem:[%s719 + $0x1cc] sm:$0xf] %v950
                  %v952 = vld [vmem:[%s718 + $0x390] sm:$0xf]
                  %953 = vst [vmem:[%s719 + $0x1d0] sm:$0xf] %v952
                  %v954 = vld [vmem:[%s718 + $0x394] sm:$0xf]
                  %955 = vst [vmem:[%s719 + $0x1d4] sm:$0xf] %v954
                  %v956 = vld [vmem:[%s718 + $0x398] sm:$0xf]
                  %957 = vst [vmem:[%s719 + $0x1d8] sm:$0xf] %v956
                  %v958 = vld [vmem:[%s718 + $0x39c] sm:$0xf]
                  %959 = vst [vmem:[%s719 + $0x1dc] sm:$0xf] %v958
                  %v960 = vld [vmem:[%s718 + $0x3a0] sm:$0xf]
                  %961 = vst [vmem:[%s719 + $0x1e0] sm:$0xf] %v960
                  %v962 = vld [vmem:[%s718 + $0x3a4] sm:$0xf]
                  %963 = vst [vmem:[%s719 + $0x1e4] sm:$0xf] %v962
                  %v964 = vld [vmem:[%s718 + $0x3a8] sm:$0xf]
                  %965 = vst [vmem:[%s719 + $0x1e8] sm:$0xf] %v964
                  %v966 = vld [vmem:[%s718 + $0x3ac] sm:$0xf]
                  %967 = vst [vmem:[%s719 + $0x1ec] sm:$0xf] %v966
                  %v968 = vld [vmem:[%s718 + $0x3b0] sm:$0xf]
                  %969 = vst [vmem:[%s719 + $0x1f0] sm:$0xf] %v968
                  %v970 = vld [vmem:[%s718 + $0x3b4] sm:$0xf]
                  %971 = vst [vmem:[%s719 + $0x1f4] sm:$0xf] %v970
                  %v972 = vld [vmem:[%s718 + $0x3b8] sm:$0xf]
                  %973 = vst [vmem:[%s719 + $0x1f8] sm:$0xf] %v972
                  %v974 = vld [vmem:[%s718 + $0x3bc] sm:$0xf]
                  %975 = vst [vmem:[%s719 + $0x1fc] sm:$0xf] %v974
                $region107: #{stnkd_forward.1} parent=94 // loop_footer
                  %s717 = sadd.s32 1, %s713
                $region108: #{stnkd_forward.1} parent=94 // loop_footer_branch
                  %712 = sbr.rel target = $region104
                $region109: #{stnkd_forward.1} parent=94 // loop_exit
                  _
              $region95: #{stnkd_forward.1} parent=79 // pred_fallthru
                _
            $region80: #{stnkd_forward.1} parent=75 // pred_fallthru
              _
            // Predicated region
            $region81: #{stnkd_forward.1} parent=75 // pred_check
              _
            $region82: #{stnkd_forward.1} parent=75 // pred_check_branch
              %435 = sbr.rel (0) target = $region84
            $region83: #{stnkd_forward.1} parent=75 // pred_region
              loop: start=0, step=1, limit=1
              $region85: #{stnkd_forward.1} parent=83 // loop_pre_header
                _
              $region86: #{stnkd_forward.1} parent=83 // loop_header
                %s438 = sphi 0, %s442
                %p439 = scmp.ge.s32.totalorder %s438, 1
                %s443 = sphi %s429, %s429
                %s444 = sphi %s423, %s423
              $region87: #{stnkd_forward.1} parent=83 // loop_header_branch
                %441 = sbr.rel (%p439) target = $region91
              $region88: #{stnkd_forward.1} parent=83 // loop_body
                %v445 = vld [vmem:[%s443] sm:$0xf]
                %446 = vst [vmem:[%s444] sm:$0xf] %v445
                %v447 = vld [vmem:[%s443 + $0x4] sm:$0xf]
                %448 = vst [vmem:[%s444 + $0x4] sm:$0xf] %v447
                %v449 = vld [vmem:[%s443 + $0x8] sm:$0xf]
                %450 = vst [vmem:[%s444 + $0x8] sm:$0xf] %v449
                %v451 = vld [vmem:[%s443 + $0xc] sm:$0xf]
                %452 = vst [vmem:[%s444 + $0xc] sm:$0xf] %v451
                %v453 = vld [vmem:[%s443 + $0x10] sm:$0xf]
                %454 = vst [vmem:[%s444 + $0x10] sm:$0xf] %v453
                %v455 = vld [vmem:[%s443 + $0x14] sm:$0xf]
                %456 = vst [vmem:[%s444 + $0x14] sm:$0xf] %v455
                %v457 = vld [vmem:[%s443 + $0x18] sm:$0xf]
                %458 = vst [vmem:[%s444 + $0x18] sm:$0xf] %v457
                %v459 = vld [vmem:[%s443 + $0x1c] sm:$0xf]
                %460 = vst [vmem:[%s444 + $0x1c] sm:$0xf] %v459
                %v461 = vld [vmem:[%s443 + $0x20] sm:$0xf]
                %462 = vst [vmem:[%s444 + $0x20] sm:$0xf] %v461
                %v463 = vld [vmem:[%s443 + $0x24] sm:$0xf]
                %464 = vst [vmem:[%s444 + $0x24] sm:$0xf] %v463
                %v465 = vld [vmem:[%s443 + $0x28] sm:$0xf]
                %466 = vst [vmem:[%s444 + $0x28] sm:$0xf] %v465
                %v467 = vld [vmem:[%s443 + $0x2c] sm:$0xf]
                %468 = vst [vmem:[%s444 + $0x2c] sm:$0xf] %v467
                %v469 = vld [vmem:[%s443 + $0x30] sm:$0xf]
                %470 = vst [vmem:[%s444 + $0x30] sm:$0xf] %v469
                %v471 = vld [vmem:[%s443 + $0x34] sm:$0xf]
                %472 = vst [vmem:[%s444 + $0x34] sm:$0xf] %v471
                %v473 = vld [vmem:[%s443 + $0x38] sm:$0xf]
                %474 = vst [vmem:[%s444 + $0x38] sm:$0xf] %v473
                %v475 = vld [vmem:[%s443 + $0x3c] sm:$0xf]
                %476 = vst [vmem:[%s444 + $0x3c] sm:$0xf] %v475
                %v477 = vld [vmem:[%s443 + $0x80] sm:$0xf]
                %478 = vst [vmem:[%s444 + $0x40] sm:$0xf] %v477
                %v479 = vld [vmem:[%s443 + $0x84] sm:$0xf]
                %480 = vst [vmem:[%s444 + $0x44] sm:$0xf] %v479
                %v481 = vld [vmem:[%s443 + $0x88] sm:$0xf]
                %482 = vst [vmem:[%s444 + $0x48] sm:$0xf] %v481
                %v483 = vld [vmem:[%s443 + $0x8c] sm:$0xf]
                %484 = vst [vmem:[%s444 + $0x4c] sm:$0xf] %v483
                %v485 = vld [vmem:[%s443 + $0x90] sm:$0xf]
                %486 = vst [vmem:[%s444 + $0x50] sm:$0xf] %v485
                %v487 = vld [vmem:[%s443 + $0x94] sm:$0xf]
                %488 = vst [vmem:[%s444 + $0x54] sm:$0xf] %v487
                %v489 = vld [vmem:[%s443 + $0x98] sm:$0xf]
                %490 = vst [vmem:[%s444 + $0x58] sm:$0xf] %v489
                %v491 = vld [vmem:[%s443 + $0x9c] sm:$0xf]
                %492 = vst [vmem:[%s444 + $0x5c] sm:$0xf] %v491
                %v493 = vld [vmem:[%s443 + $0xa0] sm:$0xf]
                %494 = vst [vmem:[%s444 + $0x60] sm:$0xf] %v493
                %v495 = vld [vmem:[%s443 + $0xa4] sm:$0xf]
                %496 = vst [vmem:[%s444 + $0x64] sm:$0xf] %v495
                %v497 = vld [vmem:[%s443 + $0xa8] sm:$0xf]
                %498 = vst [vmem:[%s444 + $0x68] sm:$0xf] %v497
                %v499 = vld [vmem:[%s443 + $0xac] sm:$0xf]
                %500 = vst [vmem:[%s444 + $0x6c] sm:$0xf] %v499
                %v501 = vld [vmem:[%s443 + $0xb0] sm:$0xf]
                %502 = vst [vmem:[%s444 + $0x70] sm:$0xf] %v501
                %v503 = vld [vmem:[%s443 + $0xb4] sm:$0xf]
                %504 = vst [vmem:[%s444 + $0x74] sm:$0xf] %v503
                %v505 = vld [vmem:[%s443 + $0xb8] sm:$0xf]
                %506 = vst [vmem:[%s444 + $0x78] sm:$0xf] %v505
                %v507 = vld [vmem:[%s443 + $0xbc] sm:$0xf]
                %508 = vst [vmem:[%s444 + $0x7c] sm:$0xf] %v507
                %v509 = vld [vmem:[%s443 + $0x100] sm:$0xf]
                %510 = vst [vmem:[%s444 + $0x80] sm:$0xf] %v509
                %v511 = vld [vmem:[%s443 + $0x104] sm:$0xf]
                %512 = vst [vmem:[%s444 + $0x84] sm:$0xf] %v511
                %v513 = vld [vmem:[%s443 + $0x108] sm:$0xf]
                %514 = vst [vmem:[%s444 + $0x88] sm:$0xf] %v513
                %v515 = vld [vmem:[%s443 + $0x10c] sm:$0xf]
                %516 = vst [vmem:[%s444 + $0x8c] sm:$0xf] %v515
                %v517 = vld [vmem:[%s443 + $0x110] sm:$0xf]
                %518 = vst [vmem:[%s444 + $0x90] sm:$0xf] %v517
                %v519 = vld [vmem:[%s443 + $0x114] sm:$0xf]
                %520 = vst [vmem:[%s444 + $0x94] sm:$0xf] %v519
                %v521 = vld [vmem:[%s443 + $0x118] sm:$0xf]
                %522 = vst [vmem:[%s444 + $0x98] sm:$0xf] %v521
                %v523 = vld [vmem:[%s443 + $0x11c] sm:$0xf]
                %524 = vst [vmem:[%s444 + $0x9c] sm:$0xf] %v523
                %v525 = vld [vmem:[%s443 + $0x120] sm:$0xf]
                %526 = vst [vmem:[%s444 + $0xa0] sm:$0xf] %v525
                %v527 = vld [vmem:[%s443 + $0x124] sm:$0xf]
                %528 = vst [vmem:[%s444 + $0xa4] sm:$0xf] %v527
                %v529 = vld [vmem:[%s443 + $0x128] sm:$0xf]
                %530 = vst [vmem:[%s444 + $0xa8] sm:$0xf] %v529
                %v531 = vld [vmem:[%s443 + $0x12c] sm:$0xf]
                %532 = vst [vmem:[%s444 + $0xac] sm:$0xf] %v531
                %v533 = vld [vmem:[%s443 + $0x130] sm:$0xf]
                %534 = vst [vmem:[%s444 + $0xb0] sm:$0xf] %v533
                %v535 = vld [vmem:[%s443 + $0x134] sm:$0xf]
                %536 = vst [vmem:[%s444 + $0xb4] sm:$0xf] %v535
                %v537 = vld [vmem:[%s443 + $0x138] sm:$0xf]
                %538 = vst [vmem:[%s444 + $0xb8] sm:$0xf] %v537
                %v539 = vld [vmem:[%s443 + $0x13c] sm:$0xf]
                %540 = vst [vmem:[%s444 + $0xbc] sm:$0xf] %v539
                %v541 = vld [vmem:[%s443 + $0x180] sm:$0xf]
                %542 = vst [vmem:[%s444 + $0xc0] sm:$0xf] %v541
                %v543 = vld [vmem:[%s443 + $0x184] sm:$0xf]
                %544 = vst [vmem:[%s444 + $0xc4] sm:$0xf] %v543
                %v545 = vld [vmem:[%s443 + $0x188] sm:$0xf]
                %546 = vst [vmem:[%s444 + $0xc8] sm:$0xf] %v545
                %v547 = vld [vmem:[%s443 + $0x18c] sm:$0xf]
                %548 = vst [vmem:[%s444 + $0xcc] sm:$0xf] %v547
                %v549 = vld [vmem:[%s443 + $0x190] sm:$0xf]
                %550 = vst [vmem:[%s444 + $0xd0] sm:$0xf] %v549
                %v551 = vld [vmem:[%s443 + $0x194] sm:$0xf]
                %552 = vst [vmem:[%s444 + $0xd4] sm:$0xf] %v551
                %v553 = vld [vmem:[%s443 + $0x198] sm:$0xf]
                %554 = vst [vmem:[%s444 + $0xd8] sm:$0xf] %v553
                %v555 = vld [vmem:[%s443 + $0x19c] sm:$0xf]
                %556 = vst [vmem:[%s444 + $0xdc] sm:$0xf] %v555
                %v557 = vld [vmem:[%s443 + $0x1a0] sm:$0xf]
                %558 = vst [vmem:[%s444 + $0xe0] sm:$0xf] %v557
                %v559 = vld [vmem:[%s443 + $0x1a4] sm:$0xf]
                %560 = vst [vmem:[%s444 + $0xe4] sm:$0xf] %v559
                %v561 = vld [vmem:[%s443 + $0x1a8] sm:$0xf]
                %562 = vst [vmem:[%s444 + $0xe8] sm:$0xf] %v561
                %v563 = vld [vmem:[%s443 + $0x1ac] sm:$0xf]
                %564 = vst [vmem:[%s444 + $0xec] sm:$0xf] %v563
                %v565 = vld [vmem:[%s443 + $0x1b0] sm:$0xf]
                %566 = vst [vmem:[%s444 + $0xf0] sm:$0xf] %v565
                %v567 = vld [vmem:[%s443 + $0x1b4] sm:$0xf]
                %568 = vst [vmem:[%s444 + $0xf4] sm:$0xf] %v567
                %v569 = vld [vmem:[%s443 + $0x1b8] sm:$0xf]
                %570 = vst [vmem:[%s444 + $0xf8] sm:$0xf] %v569
                %v571 = vld [vmem:[%s443 + $0x1bc] sm:$0xf]
                %572 = vst [vmem:[%s444 + $0xfc] sm:$0xf] %v571
                %v573 = vld [vmem:[%s443 + $0x200] sm:$0xf]
                %574 = vst [vmem:[%s444 + $0x100] sm:$0xf] %v573
                %v575 = vld [vmem:[%s443 + $0x204] sm:$0xf]
                %576 = vst [vmem:[%s444 + $0x104] sm:$0xf] %v575
                %v577 = vld [vmem:[%s443 + $0x208] sm:$0xf]
                %578 = vst [vmem:[%s444 + $0x108] sm:$0xf] %v577
                %v579 = vld [vmem:[%s443 + $0x20c] sm:$0xf]
                %580 = vst [vmem:[%s444 + $0x10c] sm:$0xf] %v579
                %v581 = vld [vmem:[%s443 + $0x210] sm:$0xf]
                %582 = vst [vmem:[%s444 + $0x110] sm:$0xf] %v581
                %v583 = vld [vmem:[%s443 + $0x214] sm:$0xf]
                %584 = vst [vmem:[%s444 + $0x114] sm:$0xf] %v583
                %v585 = vld [vmem:[%s443 + $0x218] sm:$0xf]
                %586 = vst [vmem:[%s444 + $0x118] sm:$0xf] %v585
                %v587 = vld [vmem:[%s443 + $0x21c] sm:$0xf]
                %588 = vst [vmem:[%s444 + $0x11c] sm:$0xf] %v587
                %v589 = vld [vmem:[%s443 + $0x220] sm:$0xf]
                %590 = vst [vmem:[%s444 + $0x120] sm:$0xf] %v589
                %v591 = vld [vmem:[%s443 + $0x224] sm:$0xf]
                %592 = vst [vmem:[%s444 + $0x124] sm:$0xf] %v591
                %v593 = vld [vmem:[%s443 + $0x228] sm:$0xf]
                %594 = vst [vmem:[%s444 + $0x128] sm:$0xf] %v593
                %v595 = vld [vmem:[%s443 + $0x22c] sm:$0xf]
                %596 = vst [vmem:[%s444 + $0x12c] sm:$0xf] %v595
                %v597 = vld [vmem:[%s443 + $0x230] sm:$0xf]
                %598 = vst [vmem:[%s444 + $0x130] sm:$0xf] %v597
                %v599 = vld [vmem:[%s443 + $0x234] sm:$0xf]
                %600 = vst [vmem:[%s444 + $0x134] sm:$0xf] %v599
                %v601 = vld [vmem:[%s443 + $0x238] sm:$0xf]
                %602 = vst [vmem:[%s444 + $0x138] sm:$0xf] %v601
                %v603 = vld [vmem:[%s443 + $0x23c] sm:$0xf]
                %604 = vst [vmem:[%s444 + $0x13c] sm:$0xf] %v603
                %v605 = vld [vmem:[%s443 + $0x280] sm:$0xf]
                %606 = vst [vmem:[%s444 + $0x140] sm:$0xf] %v605
                %v607 = vld [vmem:[%s443 + $0x284] sm:$0xf]
                %608 = vst [vmem:[%s444 + $0x144] sm:$0xf] %v607
                %v609 = vld [vmem:[%s443 + $0x288] sm:$0xf]
                %610 = vst [vmem:[%s444 + $0x148] sm:$0xf] %v609
                %v611 = vld [vmem:[%s443 + $0x28c] sm:$0xf]
                %612 = vst [vmem:[%s444 + $0x14c] sm:$0xf] %v611
                %v613 = vld [vmem:[%s443 + $0x290] sm:$0xf]
                %614 = vst [vmem:[%s444 + $0x150] sm:$0xf] %v613
                %v615 = vld [vmem:[%s443 + $0x294] sm:$0xf]
                %616 = vst [vmem:[%s444 + $0x154] sm:$0xf] %v615
                %v617 = vld [vmem:[%s443 + $0x298] sm:$0xf]
                %618 = vst [vmem:[%s444 + $0x158] sm:$0xf] %v617
                %v619 = vld [vmem:[%s443 + $0x29c] sm:$0xf]
                %620 = vst [vmem:[%s444 + $0x15c] sm:$0xf] %v619
                %v621 = vld [vmem:[%s443 + $0x2a0] sm:$0xf]
                %622 = vst [vmem:[%s444 + $0x160] sm:$0xf] %v621
                %v623 = vld [vmem:[%s443 + $0x2a4] sm:$0xf]
                %624 = vst [vmem:[%s444 + $0x164] sm:$0xf] %v623
                %v625 = vld [vmem:[%s443 + $0x2a8] sm:$0xf]
                %626 = vst [vmem:[%s444 + $0x168] sm:$0xf] %v625
                %v627 = vld [vmem:[%s443 + $0x2ac] sm:$0xf]
                %628 = vst [vmem:[%s444 + $0x16c] sm:$0xf] %v627
                %v629 = vld [vmem:[%s443 + $0x2b0] sm:$0xf]
                %630 = vst [vmem:[%s444 + $0x170] sm:$0xf] %v629
                %v631 = vld [vmem:[%s443 + $0x2b4] sm:$0xf]
                %632 = vst [vmem:[%s444 + $0x174] sm:$0xf] %v631
                %v633 = vld [vmem:[%s443 + $0x2b8] sm:$0xf]
                %634 = vst [vmem:[%s444 + $0x178] sm:$0xf] %v633
                %v635 = vld [vmem:[%s443 + $0x2bc] sm:$0xf]
                %636 = vst [vmem:[%s444 + $0x17c] sm:$0xf] %v635
                %v637 = vld [vmem:[%s443 + $0x300] sm:$0xf]
                %638 = vst [vmem:[%s444 + $0x180] sm:$0xf] %v637
                %v639 = vld [vmem:[%s443 + $0x304] sm:$0xf]
                %640 = vst [vmem:[%s444 + $0x184] sm:$0xf] %v639
                %v641 = vld [vmem:[%s443 + $0x308] sm:$0xf]
                %642 = vst [vmem:[%s444 + $0x188] sm:$0xf] %v641
                %v643 = vld [vmem:[%s443 + $0x30c] sm:$0xf]
                %644 = vst [vmem:[%s444 + $0x18c] sm:$0xf] %v643
                %v645 = vld [vmem:[%s443 + $0x310] sm:$0xf]
                %646 = vst [vmem:[%s444 + $0x190] sm:$0xf] %v645
                %v647 = vld [vmem:[%s443 + $0x314] sm:$0xf]
                %648 = vst [vmem:[%s444 + $0x194] sm:$0xf] %v647
                %v649 = vld [vmem:[%s443 + $0x318] sm:$0xf]
                %650 = vst [vmem:[%s444 + $0x198] sm:$0xf] %v649
                %v651 = vld [vmem:[%s443 + $0x31c] sm:$0xf]
                %652 = vst [vmem:[%s444 + $0x19c] sm:$0xf] %v651
                %v653 = vld [vmem:[%s443 + $0x320] sm:$0xf]
                %654 = vst [vmem:[%s444 + $0x1a0] sm:$0xf] %v653
                %v655 = vld [vmem:[%s443 + $0x324] sm:$0xf]
                %656 = vst [vmem:[%s444 + $0x1a4] sm:$0xf] %v655
                %v657 = vld [vmem:[%s443 + $0x328] sm:$0xf]
                %658 = vst [vmem:[%s444 + $0x1a8] sm:$0xf] %v657
                %v659 = vld [vmem:[%s443 + $0x32c] sm:$0xf]
                %660 = vst [vmem:[%s444 + $0x1ac] sm:$0xf] %v659
                %v661 = vld [vmem:[%s443 + $0x330] sm:$0xf]
                %662 = vst [vmem:[%s444 + $0x1b0] sm:$0xf] %v661
                %v663 = vld [vmem:[%s443 + $0x334] sm:$0xf]
                %664 = vst [vmem:[%s444 + $0x1b4] sm:$0xf] %v663
                %v665 = vld [vmem:[%s443 + $0x338] sm:$0xf]
                %666 = vst [vmem:[%s444 + $0x1b8] sm:$0xf] %v665
                %v667 = vld [vmem:[%s443 + $0x33c] sm:$0xf]
                %668 = vst [vmem:[%s444 + $0x1bc] sm:$0xf] %v667
                %v669 = vld [vmem:[%s443 + $0x380] sm:$0xf]
                %670 = vst [vmem:[%s444 + $0x1c0] sm:$0xf] %v669
                %v671 = vld [vmem:[%s443 + $0x384] sm:$0xf]
                %672 = vst [vmem:[%s444 + $0x1c4] sm:$0xf] %v671
                %v673 = vld [vmem:[%s443 + $0x388] sm:$0xf]
                %674 = vst [vmem:[%s444 + $0x1c8] sm:$0xf] %v673
                %v675 = vld [vmem:[%s443 + $0x38c] sm:$0xf]
                %676 = vst [vmem:[%s444 + $0x1cc] sm:$0xf] %v675
                %v677 = vld [vmem:[%s443 + $0x390] sm:$0xf]
                %678 = vst [vmem:[%s444 + $0x1d0] sm:$0xf] %v677
                %v679 = vld [vmem:[%s443 + $0x394] sm:$0xf]
                %680 = vst [vmem:[%s444 + $0x1d4] sm:$0xf] %v679
                %v681 = vld [vmem:[%s443 + $0x398] sm:$0xf]
                %682 = vst [vmem:[%s444 + $0x1d8] sm:$0xf] %v681
                %v683 = vld [vmem:[%s443 + $0x39c] sm:$0xf]
                %684 = vst [vmem:[%s444 + $0x1dc] sm:$0xf] %v683
                %v685 = vld [vmem:[%s443 + $0x3a0] sm:$0xf]
                %686 = vst [vmem:[%s444 + $0x1e0] sm:$0xf] %v685
                %v687 = vld [vmem:[%s443 + $0x3a4] sm:$0xf]
                %688 = vst [vmem:[%s444 + $0x1e4] sm:$0xf] %v687
                %v689 = vld [vmem:[%s443 + $0x3a8] sm:$0xf]
                %690 = vst [vmem:[%s444 + $0x1e8] sm:$0xf] %v689
                %v691 = vld [vmem:[%s443 + $0x3ac] sm:$0xf]
                %692 = vst [vmem:[%s444 + $0x1ec] sm:$0xf] %v691
                %v693 = vld [vmem:[%s443 + $0x3b0] sm:$0xf]
                %694 = vst [vmem:[%s444 + $0x1f0] sm:$0xf] %v693
                %v695 = vld [vmem:[%s443 + $0x3b4] sm:$0xf]
                %696 = vst [vmem:[%s444 + $0x1f4] sm:$0xf] %v695
                %v697 = vld [vmem:[%s443 + $0x3b8] sm:$0xf]
                %698 = vst [vmem:[%s444 + $0x1f8] sm:$0xf] %v697
                %v699 = vld [vmem:[%s443 + $0x3bc] sm:$0xf]
                %700 = vst [vmem:[%s444 + $0x1fc] sm:$0xf] %v699
              $region89: #{stnkd_forward.1} parent=83 // loop_footer
                %s442 = sadd.s32 1, %s438
              $region90: #{stnkd_forward.1} parent=83 // loop_footer_branch
                %437 = sbr.rel target = $region86
              $region91: #{stnkd_forward.1} parent=83 // loop_exit
                _
            $region84: #{stnkd_forward.1} parent=75 // pred_fallthru
              _
          $region76: #{stnkd_forward.1} parent=71 // pred_fallthru
            _
          %976 = vnop
        $region72: #{stnkd_forward.1} parent=67 // pred_fallthru
          _
      $region68: #{stnkd_forward.1} parent=5 // pred_fallthru
        _
      %p977 = scmp.le.s32.totalorder 1, %s20
      %p978 = scmp.lt.s32.totalorder %s20, 5
      %p979 = pnand %p977, %p978
      %p980 = pneg %p979
      // Predicated region
      $region110: #{stnkd_forward.1} parent=5 // pred_check
        _
      $region111: #{stnkd_forward.1} parent=5 // pred_check_branch
        %982 = sbr.rel (%p979) target = $region113
      $region112: #{stnkd_forward.1} parent=5 // pred_region
        %s983 = ssub.s32 %s20, 1
        %s984 = sand.u32 %s47, 1
        %s985 = sand.u32 %s47, 1
        %s986 = smul.addr %s985, 512
        %s987 = scalar_lea.vmem [#allocation3], %s986
        // Predicated region
        $region114: #{stnkd_forward.1} parent=112 // pred_check
          %p988 = pneg %p60
        $region115: #{stnkd_forward.1} parent=112 // pred_check_branch
          %990 = sbr.rel (%p988) target = $region117
        $region116: #{stnkd_forward.1} parent=112 // pred_region
          _
        $region117: #{stnkd_forward.1} parent=112 // pred_fallthru
          _
        %s991 = sand.u32 %s47, 1
        %s992 = sand.u32 %s47, 1
        %s993 = smul.addr %s992, 512
        %s994 = scalar_lea.vmem [#allocation3], %s993
        %p995 = pneg %p60
        %p996 = pneg %p57
        %p997 = pneg %p81
        %p998 = pneg %p78
        %p999 = pneg %p102
        %p1000 = pneg %p99
        %p1001 = pneg %p123
        %p1002 = pneg %p120
        %p1003 = pneg %p144
        %p1004 = pneg %p141
        %p1005 = pneg %p165
        %p1006 = pneg %p162
        %p1007 = pneg %p186
        %p1008 = pneg %p183
        %p1009 = pneg %p207
        %p1010 = pneg %p204
        %p1011 = pneg %p228
        %p1012 = pneg %p225
        %p1013 = pneg %p249
        %p1014 = pneg %p246
        %p1015 = pneg %p270
        %p1016 = pneg %p267
        %p1017 = pneg %p291
        %p1018 = pneg %p288
        %p1019 = pneg %p312
        %p1020 = pneg %p309
        %p1021 = pneg %p333
        %p1022 = pneg %p330
        %p1023 = pneg %p359
        %p1024 = pneg %p356
        %p1025 = scmp.lt.s32.totalorder %s29, 1
        %s1026 = scalar_select %p1025, %s29, 1
        %s1027 = smul.addr %s1026, 2
        %s1028 = smul.addr %s1027, 8
        %s1029 = scalar_lea.vmem %s14, %s1028
        %s1030 = smul.u32 8, %s29
        %s1031 = smul.u32 16, %s30
        %p1032 = scmp.lt.s32.totalorder %s29, 1
        %s1033 = scalar_select %p1032, %s29, 1
        %s1034 = smul.addr %s1033, 2
        %s1035 = smul.addr %s1034, 8
        %s1036 = scalar_lea.vmem %s14, %s1035
        %p1038 = scmp.eq.s32.totalorder %s30, 0
        // Predicated region
        $region118: #{stnkd_forward.1} parent=112 // pred_check
          %p1039 = pneg %p1038
        $region119: #{stnkd_forward.1} parent=112 // pred_check_branch
          %1041 = sbr.rel (%p1039) target = $region121
        $region120: #{stnkd_forward.1} parent=112 // pred_region
          %1042 = vst [vmem:[#allocation2] sm:$0xff] -inf
          %1043 = vst [vmem:[#allocation2 + $0x8] sm:$0xff] -inf
          %1044 = vst [vmem:[#allocation2 + $0x10] sm:$0xff] -inf
          %1045 = vst [vmem:[#allocation2 + $0x18] sm:$0xff] -inf
          %1046 = vst [vmem:[#allocation2 + $0x20] sm:$0xff] -inf
          %1047 = vst [vmem:[#allocation2 + $0x28] sm:$0xff] -inf
          %1048 = vst [vmem:[#allocation2 + $0x30] sm:$0xff] -inf
          %1049 = vst [vmem:[#allocation2 + $0x38] sm:$0xff] -inf
        $region121: #{stnkd_forward.1} parent=112 // pred_fallthru
          _
        %v1050 = vld [vmem:[%s987] sm:$0xf]
        %v1051 = vld [vmem:[%s987 + $0x4] sm:$0xf]
        %v1052 = vld [vmem:[%s987 + $0x8] sm:$0xf]
        %v1053 = vld [vmem:[%s987 + $0xc] sm:$0xf]
        %v1054 = vld [vmem:[%s987 + $0x10] sm:$0xf]
        %v1055 = vld [vmem:[%s987 + $0x14] sm:$0xf]
        %v1056 = vld [vmem:[%s987 + $0x18] sm:$0xf]
        %v1057 = vld [vmem:[%s987 + $0x1c] sm:$0xf]
        %v1058 = vld [vmem:[%s987 + $0x20] sm:$0xf]
        %v1059 = vld [vmem:[%s987 + $0x24] sm:$0xf]
        %v1060 = vld [vmem:[%s987 + $0x28] sm:$0xf]
        %v1061 = vld [vmem:[%s987 + $0x2c] sm:$0xf]
        %v1062 = vld [vmem:[%s987 + $0x30] sm:$0xf]
        %v1063 = vld [vmem:[%s987 + $0x34] sm:$0xf]
        %v1064 = vld [vmem:[%s987 + $0x38] sm:$0xf]
        %v1065 = vld [vmem:[%s987 + $0x3c] sm:$0xf]
        %v1066 = vld [vmem:[%s987 + $0x40] sm:$0xf]
        %v1067 = vld [vmem:[%s987 + $0x44] sm:$0xf]
        %v1068 = vld [vmem:[%s987 + $0x48] sm:$0xf]
        %v1069 = vld [vmem:[%s987 + $0x4c] sm:$0xf]
        %v1070 = vld [vmem:[%s987 + $0x50] sm:$0xf]
        %v1071 = vld [vmem:[%s987 + $0x54] sm:$0xf]
        %v1072 = vld [vmem:[%s987 + $0x58] sm:$0xf]
        %v1073 = vld [vmem:[%s987 + $0x5c] sm:$0xf]
        %v1074 = vld [vmem:[%s987 + $0x60] sm:$0xf]
        %v1075 = vld [vmem:[%s987 + $0x64] sm:$0xf]
        %v1076 = vld [vmem:[%s987 + $0x68] sm:$0xf]
        %v1077 = vld [vmem:[%s987 + $0x6c] sm:$0xf]
        %v1078 = vld [vmem:[%s987 + $0x70] sm:$0xf]
        %v1079 = vld [vmem:[%s987 + $0x74] sm:$0xf]
        %v1080 = vld [vmem:[%s987 + $0x78] sm:$0xf]
        %v1081 = vld [vmem:[%s987 + $0x7c] sm:$0xf]
        %v1082 = vld [vmem:[%s987 + $0x80] sm:$0xf]
        %v1083 = vld [vmem:[%s987 + $0x84] sm:$0xf]
        %v1084 = vld [vmem:[%s987 + $0x88] sm:$0xf]
        %v1085 = vld [vmem:[%s987 + $0x8c] sm:$0xf]
        %v1086 = vld [vmem:[%s987 + $0x90] sm:$0xf]
        %v1087 = vld [vmem:[%s987 + $0x94] sm:$0xf]
        %v1088 = vld [vmem:[%s987 + $0x98] sm:$0xf]
        %v1089 = vld [vmem:[%s987 + $0x9c] sm:$0xf]
        %v1090 = vld [vmem:[%s987 + $0xa0] sm:$0xf]
        %v1091 = vld [vmem:[%s987 + $0xa4] sm:$0xf]
        %v1092 = vld [vmem:[%s987 + $0xa8] sm:$0xf]
        %v1093 = vld [vmem:[%s987 + $0xac] sm:$0xf]
        %v1094 = vld [vmem:[%s987 + $0xb0] sm:$0xf]
        %v1095 = vld [vmem:[%s987 + $0xb4] sm:$0xf]
        %v1096 = vld [vmem:[%s987 + $0xb8] sm:$0xf]
        %v1097 = vld [vmem:[%s987 + $0xbc] sm:$0xf]
        %v1098 = vld [vmem:[%s987 + $0xc0] sm:$0xf]
        %v1099 = vld [vmem:[%s987 + $0xc4] sm:$0xf]
        %v1100 = vld [vmem:[%s987 + $0xc8] sm:$0xf]
        %v1101 = vld [vmem:[%s987 + $0xcc] sm:$0xf]
        %v1102 = vld [vmem:[%s987 + $0xd0] sm:$0xf]
        %v1103 = vld [vmem:[%s987 + $0xd4] sm:$0xf]
        %v1104 = vld [vmem:[%s987 + $0xd8] sm:$0xf]
        %v1105 = vld [vmem:[%s987 + $0xdc] sm:$0xf]
        %v1106 = vld [vmem:[%s987 + $0xe0] sm:$0xf]
        %v1107 = vld [vmem:[%s987 + $0xe4] sm:$0xf]
        %v1108 = vld [vmem:[%s987 + $0xe8] sm:$0xf]
        %v1109 = vld [vmem:[%s987 + $0xec] sm:$0xf]
        %v1110 = vld [vmem:[%s987 + $0xf0] sm:$0xf]
        %v1111 = vld [vmem:[%s987 + $0xf4] sm:$0xf]
        %v1112 = vld [vmem:[%s987 + $0xf8] sm:$0xf]
        %v1113 = vld [vmem:[%s987 + $0xfc] sm:$0xf]
        %v1114 = vld [vmem:[%s987 + $0x100] sm:$0xf]
        %v1115 = vld [vmem:[%s987 + $0x104] sm:$0xf]
        %v1116 = vld [vmem:[%s987 + $0x108] sm:$0xf]
        %v1117 = vld [vmem:[%s987 + $0x10c] sm:$0xf]
        %v1118 = vld [vmem:[%s987 + $0x110] sm:$0xf]
        %v1119 = vld [vmem:[%s987 + $0x114] sm:$0xf]
        %v1120 = vld [vmem:[%s987 + $0x118] sm:$0xf]
        %v1121 = vld [vmem:[%s987 + $0x11c] sm:$0xf]
        %v1122 = vld [vmem:[%s987 + $0x120] sm:$0xf]
        %v1123 = vld [vmem:[%s987 + $0x124] sm:$0xf]
        %v1124 = vld [vmem:[%s987 + $0x128] sm:$0xf]
        %v1125 = vld [vmem:[%s987 + $0x12c] sm:$0xf]
        %v1126 = vld [vmem:[%s987 + $0x130] sm:$0xf]
        %v1127 = vld [vmem:[%s987 + $0x134] sm:$0xf]
        %v1128 = vld [vmem:[%s987 + $0x138] sm:$0xf]
        %v1129 = vld [vmem:[%s987 + $0x13c] sm:$0xf]
        %v1130 = vld [vmem:[%s987 + $0x140] sm:$0xf]
        %v1131 = vld [vmem:[%s987 + $0x144] sm:$0xf]
        %v1132 = vld [vmem:[%s987 + $0x148] sm:$0xf]
        %v1133 = vld [vmem:[%s987 + $0x14c] sm:$0xf]
        %v1134 = vld [vmem:[%s987 + $0x150] sm:$0xf]
        %v1135 = vld [vmem:[%s987 + $0x154] sm:$0xf]
        %v1136 = vld [vmem:[%s987 + $0x158] sm:$0xf]
        %v1137 = vld [vmem:[%s987 + $0x15c] sm:$0xf]
        %v1138 = vld [vmem:[%s987 + $0x160] sm:$0xf]
        %v1139 = vld [vmem:[%s987 + $0x164] sm:$0xf]
        %v1140 = vld [vmem:[%s987 + $0x168] sm:$0xf]
        %v1141 = vld [vmem:[%s987 + $0x16c] sm:$0xf]
        %v1142 = vld [vmem:[%s987 + $0x170] sm:$0xf]
        %v1143 = vld [vmem:[%s987 + $0x174] sm:$0xf]
        %v1144 = vld [vmem:[%s987 + $0x178] sm:$0xf]
        %v1145 = vld [vmem:[%s987 + $0x17c] sm:$0xf]
        %v1146 = vld [vmem:[%s987 + $0x180] sm:$0xf]
        %v1147 = vld [vmem:[%s987 + $0x184] sm:$0xf]
        %v1148 = vld [vmem:[%s987 + $0x188] sm:$0xf]
        %v1149 = vld [vmem:[%s987 + $0x18c] sm:$0xf]
        %v1150 = vld [vmem:[%s987 + $0x190] sm:$0xf]
        %v1151 = vld [vmem:[%s987 + $0x194] sm:$0xf]
        %v1152 = vld [vmem:[%s987 + $0x198] sm:$0xf]
        %v1153 = vld [vmem:[%s987 + $0x19c] sm:$0xf]
        %v1154 = vld [vmem:[%s987 + $0x1a0] sm:$0xf]
        %v1155 = vld [vmem:[%s987 + $0x1a4] sm:$0xf]
        %v1156 = vld [vmem:[%s987 + $0x1a8] sm:$0xf]
        %v1157 = vld [vmem:[%s987 + $0x1ac] sm:$0xf]
        %v1158 = vld [vmem:[%s987 + $0x1b0] sm:$0xf]
        %v1159 = vld [vmem:[%s987 + $0x1b4] sm:$0xf]
        %v1160 = vld [vmem:[%s987 + $0x1b8] sm:$0xf]
        %v1161 = vld [vmem:[%s987 + $0x1bc] sm:$0xf]
        %v1162 = vld [vmem:[%s987 + $0x1c0] sm:$0xf]
        %v1163 = vld [vmem:[%s987 + $0x1c4] sm:$0xf]
        %v1164 = vld [vmem:[%s987 + $0x1c8] sm:$0xf]
        %v1165 = vld [vmem:[%s987 + $0x1cc] sm:$0xf]
        %v1166 = vld [vmem:[%s987 + $0x1d0] sm:$0xf]
        %v1167 = vld [vmem:[%s987 + $0x1d4] sm:$0xf]
        %v1168 = vld [vmem:[%s987 + $0x1d8] sm:$0xf]
        %v1169 = vld [vmem:[%s987 + $0x1dc] sm:$0xf]
        %v1170 = vld [vmem:[%s987 + $0x1e0] sm:$0xf]
        %v1171 = vld [vmem:[%s987 + $0x1e4] sm:$0xf]
        %v1172 = vld [vmem:[%s987 + $0x1e8] sm:$0xf]
        %v1173 = vld [vmem:[%s987 + $0x1ec] sm:$0xf]
        %v1174 = vld [vmem:[%s987 + $0x1f0] sm:$0xf]
        %v1175 = vld [vmem:[%s987 + $0x1f4] sm:$0xf]
        %v1176 = vld [vmem:[%s987 + $0x1f8] sm:$0xf]
        %v1177 = vld [vmem:[%s987 + $0x1fc] sm:$0xf]
        %v1178 = vld [vmem:[%s1] sm:$0xf]
        %v1179 = vld [vmem:[%s1 + $0x4] sm:$0xf]
        %v1180 = vld [vmem:[%s2] sm:$0x1]
        %v1182 = vlaneseq
        %v1183 = vshrl.u32 %v1182, 7
        %v1184 = vsub.s32 0, %v1183
        %v1185 = vrot.slane %v1180, %v1184
        %v1315 = vunpack.c.l.b16 %v1050
        %v1316 = vunpack.c.l.b16 %v1051
        %v1317 = vunpack.c.l.b16 %v1052
        %v1318 = vunpack.c.l.b16 %v1053
        %v1319 = vunpack.c.l.b16 %v1054
        %v1320 = vunpack.c.l.b16 %v1055
        %v1321 = vunpack.c.l.b16 %v1056
        %v1322 = vunpack.c.l.b16 %v1057
        %v1323 = vunpack.c.l.b16 %v1058
        %v1324 = vunpack.c.l.b16 %v1059
        %v1325 = vunpack.c.l.b16 %v1060
        %v1326 = vunpack.c.l.b16 %v1061
        %v1327 = vunpack.c.l.b16 %v1062
        %v1328 = vunpack.c.l.b16 %v1063
        %v1329 = vunpack.c.l.b16 %v1064
        %v1330 = vunpack.c.l.b16 %v1065
        %v1331 = vunpack.c.l.b16 %v1066
        %v1332 = vunpack.c.l.b16 %v1067
        %v1333 = vunpack.c.l.b16 %v1068
        %v1334 = vunpack.c.l.b16 %v1069
        %v1335 = vunpack.c.l.b16 %v1070
        %v1336 = vunpack.c.l.b16 %v1071
        %v1337 = vunpack.c.l.b16 %v1072
        %v1338 = vunpack.c.l.b16 %v1073
        %v1339 = vunpack.c.l.b16 %v1074
        %v1340 = vunpack.c.l.b16 %v1075
        %v1341 = vunpack.c.l.b16 %v1076
        %v1342 = vunpack.c.l.b16 %v1077
        %v1343 = vunpack.c.l.b16 %v1078
        %v1344 = vunpack.c.l.b16 %v1079
        %v1345 = vunpack.c.l.b16 %v1080
        %v1346 = vunpack.c.l.b16 %v1081
        %v1347 = vunpack.c.l.b16 %v1082
        %v1348 = vunpack.c.l.b16 %v1083
        %v1349 = vunpack.c.l.b16 %v1084
        %v1350 = vunpack.c.l.b16 %v1085
        %v1351 = vunpack.c.l.b16 %v1086
        %v1352 = vunpack.c.l.b16 %v1087
        %v1353 = vunpack.c.l.b16 %v1088
        %v1354 = vunpack.c.l.b16 %v1089
        %v1355 = vunpack.c.l.b16 %v1090
        %v1356 = vunpack.c.l.b16 %v1091
        %v1357 = vunpack.c.l.b16 %v1092
        %v1358 = vunpack.c.l.b16 %v1093
        %v1359 = vunpack.c.l.b16 %v1094
        %v1360 = vunpack.c.l.b16 %v1095
        %v1361 = vunpack.c.l.b16 %v1096
        %v1362 = vunpack.c.l.b16 %v1097
        %v1363 = vunpack.c.l.b16 %v1098
        %v1364 = vunpack.c.l.b16 %v1099
        %v1365 = vunpack.c.l.b16 %v1100
        %v1366 = vunpack.c.l.b16 %v1101
        %v1367 = vunpack.c.l.b16 %v1102
        %v1368 = vunpack.c.l.b16 %v1103
        %v1369 = vunpack.c.l.b16 %v1104
        %v1370 = vunpack.c.l.b16 %v1105
        %v1371 = vunpack.c.l.b16 %v1106
        %v1372 = vunpack.c.l.b16 %v1107
        %v1373 = vunpack.c.l.b16 %v1108
        %v1374 = vunpack.c.l.b16 %v1109
        %v1375 = vunpack.c.l.b16 %v1110
        %v1376 = vunpack.c.l.b16 %v1111
        %v1377 = vunpack.c.l.b16 %v1112
        %v1378 = vunpack.c.l.b16 %v1113
        %v1379 = vunpack.c.l.b16 %v1114
        %v1380 = vunpack.c.l.b16 %v1115
        %v1381 = vunpack.c.l.b16 %v1116
        %v1382 = vunpack.c.l.b16 %v1117
        %v1383 = vunpack.c.l.b16 %v1118
        %v1384 = vunpack.c.l.b16 %v1119
        %v1385 = vunpack.c.l.b16 %v1120
        %v1386 = vunpack.c.l.b16 %v1121
        %v1387 = vunpack.c.l.b16 %v1122
        %v1388 = vunpack.c.l.b16 %v1123
        %v1389 = vunpack.c.l.b16 %v1124
        %v1390 = vunpack.c.l.b16 %v1125
        %v1391 = vunpack.c.l.b16 %v1126
        %v1392 = vunpack.c.l.b16 %v1127
        %v1393 = vunpack.c.l.b16 %v1128
        %v1394 = vunpack.c.l.b16 %v1129
        %v1395 = vunpack.c.l.b16 %v1130
        %v1396 = vunpack.c.l.b16 %v1131
        %v1397 = vunpack.c.l.b16 %v1132
        %v1398 = vunpack.c.l.b16 %v1133
        %v1399 = vunpack.c.l.b16 %v1134
        %v1400 = vunpack.c.l.b16 %v1135
        %v1401 = vunpack.c.l.b16 %v1136
        %v1402 = vunpack.c.l.b16 %v1137
        %v1403 = vunpack.c.l.b16 %v1138
        %v1404 = vunpack.c.l.b16 %v1139
        %v1405 = vunpack.c.l.b16 %v1140
        %v1406 = vunpack.c.l.b16 %v1141
        %v1407 = vunpack.c.l.b16 %v1142
        %v1408 = vunpack.c.l.b16 %v1143
        %v1409 = vunpack.c.l.b16 %v1144
        %v1410 = vunpack.c.l.b16 %v1145
        %v1411 = vunpack.c.l.b16 %v1146
        %v1412 = vunpack.c.l.b16 %v1147
        %v1413 = vunpack.c.l.b16 %v1148
        %v1414 = vunpack.c.l.b16 %v1149
        %v1415 = vunpack.c.l.b16 %v1150
        %v1416 = vunpack.c.l.b16 %v1151
        %v1417 = vunpack.c.l.b16 %v1152
        %v1418 = vunpack.c.l.b16 %v1153
        %v1419 = vunpack.c.l.b16 %v1154
        %v1420 = vunpack.c.l.b16 %v1155
        %v1421 = vunpack.c.l.b16 %v1156
        %v1422 = vunpack.c.l.b16 %v1157
        %v1423 = vunpack.c.l.b16 %v1158
        %v1424 = vunpack.c.l.b16 %v1159
        %v1425 = vunpack.c.l.b16 %v1160
        %v1426 = vunpack.c.l.b16 %v1161
        %v1427 = vunpack.c.l.b16 %v1162
        %v1428 = vunpack.c.l.b16 %v1163
        %v1429 = vunpack.c.l.b16 %v1164
        %v1430 = vunpack.c.l.b16 %v1165
        %v1431 = vunpack.c.l.b16 %v1166
        %v1432 = vunpack.c.l.b16 %v1167
        %v1433 = vunpack.c.l.b16 %v1168
        %v1434 = vunpack.c.l.b16 %v1169
        %v1435 = vunpack.c.l.b16 %v1170
        %v1436 = vunpack.c.l.b16 %v1171
        %v1437 = vunpack.c.l.b16 %v1172
        %v1438 = vunpack.c.l.b16 %v1173
        %v1439 = vunpack.c.l.b16 %v1174
        %v1440 = vunpack.c.l.b16 %v1175
        %v1441 = vunpack.c.l.b16 %v1176
        %v1442 = vunpack.c.l.b16 %v1177
        %v1443 = vpack.c.b16 %v1316, %v1315
        %v1444 = vpack.c.b16 %v1318, %v1317
        %v1445 = vpack.c.b16 %v1320, %v1319
        %v1446 = vpack.c.b16 %v1322, %v1321
        %v1447 = vpack.c.b16 %v1324, %v1323
        %v1448 = vpack.c.b16 %v1326, %v1325
        %v1449 = vpack.c.b16 %v1328, %v1327
        %v1450 = vpack.c.b16 %v1330, %v1329
        %v1451 = vpack.c.b16 %v1332, %v1331
        %v1452 = vpack.c.b16 %v1334, %v1333
        %v1453 = vpack.c.b16 %v1336, %v1335
        %v1454 = vpack.c.b16 %v1338, %v1337
        %v1455 = vpack.c.b16 %v1340, %v1339
        %v1456 = vpack.c.b16 %v1342, %v1341
        %v1457 = vpack.c.b16 %v1344, %v1343
        %v1458 = vpack.c.b16 %v1346, %v1345
        %v1459 = vpack.c.b16 %v1348, %v1347
        %v1460 = vpack.c.b16 %v1350, %v1349
        %v1461 = vpack.c.b16 %v1352, %v1351
        %v1462 = vpack.c.b16 %v1354, %v1353
        %v1463 = vpack.c.b16 %v1356, %v1355
        %v1464 = vpack.c.b16 %v1358, %v1357
        %v1465 = vpack.c.b16 %v1360, %v1359
        %v1466 = vpack.c.b16 %v1362, %v1361
        %v1467 = vpack.c.b16 %v1364, %v1363
        %v1468 = vpack.c.b16 %v1366, %v1365
        %v1469 = vpack.c.b16 %v1368, %v1367
        %v1470 = vpack.c.b16 %v1370, %v1369
        %v1471 = vpack.c.b16 %v1372, %v1371
        %v1472 = vpack.c.b16 %v1374, %v1373
        %v1473 = vpack.c.b16 %v1376, %v1375
        %v1474 = vpack.c.b16 %v1378, %v1377
        %v1475 = vpack.c.b16 %v1380, %v1379
        %v1476 = vpack.c.b16 %v1382, %v1381
        %v1477 = vpack.c.b16 %v1384, %v1383
        %v1478 = vpack.c.b16 %v1386, %v1385
        %v1479 = vpack.c.b16 %v1388, %v1387
        %v1480 = vpack.c.b16 %v1390, %v1389
        %v1481 = vpack.c.b16 %v1392, %v1391
        %v1482 = vpack.c.b16 %v1394, %v1393
        %v1483 = vpack.c.b16 %v1396, %v1395
        %v1484 = vpack.c.b16 %v1398, %v1397
        %v1485 = vpack.c.b16 %v1400, %v1399
        %v1486 = vpack.c.b16 %v1402, %v1401
        %v1487 = vpack.c.b16 %v1404, %v1403
        %v1488 = vpack.c.b16 %v1406, %v1405
        %v1489 = vpack.c.b16 %v1408, %v1407
        %v1490 = vpack.c.b16 %v1410, %v1409
        %v1491 = vpack.c.b16 %v1412, %v1411
        %v1492 = vpack.c.b16 %v1414, %v1413
        %v1493 = vpack.c.b16 %v1416, %v1415
        %v1494 = vpack.c.b16 %v1418, %v1417
        %v1495 = vpack.c.b16 %v1420, %v1419
        %v1496 = vpack.c.b16 %v1422, %v1421
        %v1497 = vpack.c.b16 %v1424, %v1423
        %v1498 = vpack.c.b16 %v1426, %v1425
        %v1499 = vpack.c.b16 %v1428, %v1427
        %v1500 = vpack.c.b16 %v1430, %v1429
        %v1501 = vpack.c.b16 %v1432, %v1431
        %v1502 = vpack.c.b16 %v1434, %v1433
        %v1503 = vpack.c.b16 %v1436, %v1435
        %v1504 = vpack.c.b16 %v1438, %v1437
        %v1505 = vpack.c.b16 %v1440, %v1439
        %v1506 = vpack.c.b16 %v1442, %v1441
        %v1509 = vunpack.c.l.b16 %v1178
        %v1510 = vunpack.c.l.b16 %v1179
        %v1511 = vpack.c.b16 %v1510, %v1509
        %vm1513 = vcmask 130048
        %v1515 = vsel %vm1513, %v1443, 0
        %v1518 = vsel %vm1513, %v1444, 0
        %v1521 = vsel %vm1513, %v1445, 0
        %v1524 = vsel %vm1513, %v1446, 0
        %v1527 = vsel %vm1513, %v1447, 0
        %v1530 = vsel %vm1513, %v1448, 0
        %v1533 = vsel %vm1513, %v1449, 0
        %v1536 = vsel %vm1513, %v1450, 0
        %v1539 = vsel %vm1513, %v1451, 0
        %v1542 = vsel %vm1513, %v1452, 0
        %v1545 = vsel %vm1513, %v1453, 0
        %v1548 = vsel %vm1513, %v1454, 0
        %v1551 = vsel %vm1513, %v1455, 0
        %v1554 = vsel %vm1513, %v1456, 0
        %v1557 = vsel %vm1513, %v1457, 0
        %v1560 = vsel %vm1513, %v1458, 0
        %v1563 = vsel %vm1513, %v1459, 0
        %v1566 = vsel %vm1513, %v1460, 0
        %v1569 = vsel %vm1513, %v1461, 0
        %v1572 = vsel %vm1513, %v1462, 0
        %v1575 = vsel %vm1513, %v1463, 0
        %v1578 = vsel %vm1513, %v1464, 0
        %v1581 = vsel %vm1513, %v1465, 0
        %v1584 = vsel %vm1513, %v1466, 0
        %v1587 = vsel %vm1513, %v1467, 0
        %v1590 = vsel %vm1513, %v1468, 0
        %v1593 = vsel %vm1513, %v1469, 0
        %v1596 = vsel %vm1513, %v1470, 0
        %v1599 = vsel %vm1513, %v1471, 0
        %v1602 = vsel %vm1513, %v1472, 0
        %v1605 = vsel %vm1513, %v1473, 0
        %v1608 = vsel %vm1513, %v1474, 0
        %v1611 = vsel %vm1513, %v1475, 0
        %v1614 = vsel %vm1513, %v1476, 0
        %v1617 = vsel %vm1513, %v1477, 0
        %v1620 = vsel %vm1513, %v1478, 0
        %v1623 = vsel %vm1513, %v1479, 0
        %v1626 = vsel %vm1513, %v1480, 0
        %v1629 = vsel %vm1513, %v1481, 0
        %v1632 = vsel %vm1513, %v1482, 0
        %v1635 = vsel %vm1513, %v1483, 0
        %v1638 = vsel %vm1513, %v1484, 0
        %v1641 = vsel %vm1513, %v1485, 0
        %v1644 = vsel %vm1513, %v1486, 0
        %v1647 = vsel %vm1513, %v1487, 0
        %v1650 = vsel %vm1513, %v1488, 0
        %v1653 = vsel %vm1513, %v1489, 0
        %v1656 = vsel %vm1513, %v1490, 0
        %v1659 = vsel %vm1513, %v1491, 0
        %v1662 = vsel %vm1513, %v1492, 0
        %v1665 = vsel %vm1513, %v1493, 0
        %v1668 = vsel %vm1513, %v1494, 0
        %v1671 = vsel %vm1513, %v1495, 0
        %v1674 = vsel %vm1513, %v1496, 0
        %v1677 = vsel %vm1513, %v1497, 0
        %v1680 = vsel %vm1513, %v1498, 0
        %v1683 = vsel %vm1513, %v1499, 0
        %v1686 = vsel %vm1513, %v1500, 0
        %v1689 = vsel %vm1513, %v1501, 0
        %v1692 = vsel %vm1513, %v1502, 0
        %v1695 = vsel %vm1513, %v1503, 0
        %v1698 = vsel %vm1513, %v1504, 0
        %v1701 = vsel %vm1513, %v1505, 0
        %v1704 = vsel %vm1513, %v1506, 0
        %1706 = vmatprep.subr.bf16.mxu0 0
        %1707 = vmatpush1.bf16.msra.mxu0 %v1511
        %1708 = vmatprep.subr.bf16.mxu0 0
        %1709 = vmatpush1.bf16.msra.mxu0 0
        %1710 = vmatprep.subr.bf16.mxu0 0
        %1711 = vmatpush1.bf16.msra.mxu0 0
        %1712 = vmatprep.subr.bf16.mxu0 0
        %1713 = vmatpush1.bf16.msra.mxu0 0
        %1714 = vmatprep.subr.bf16.mxu0 0
        %1715 = vmatpush1.bf16.msra.mxu0 0
        %1716 = vmatprep.subr.bf16.mxu0 0
        %1717 = vmatpush1.bf16.msra.mxu0 0
        %1718 = vmatprep.subr.bf16.mxu0 0
        %1719 = vmatpush1.bf16.msra.mxu0 0
        %1720 = vmatprep.subr.bf16.mxu0 0
        %1721 = vmatpush1.bf16.msra.mxu0 0
        %1722 = vmatprep.subr.bf16.mxu0 0
        %1723 = vmatpush1.bf16.msra.mxu0 0
        %1724 = vmatprep.subr.bf16.mxu0 0
        %1725 = vmatpush1.bf16.msra.mxu0 0
        %1726 = vmatprep.subr.bf16.mxu0 0
        %1727 = vmatpush1.bf16.msra.mxu0 0
        %1728 = vmatprep.subr.bf16.mxu0 0
        %1729 = vmatpush1.bf16.msra.mxu0 0
        %1730 = vmatprep.subr.bf16.mxu0 0
        %1731 = vmatpush1.bf16.msra.mxu0 0
        %1732 = vmatprep.subr.bf16.mxu0 0
        %1733 = vmatpush1.bf16.msra.mxu0 0
        %1734 = vmatprep.subr.bf16.mxu0 0
        %1735 = vmatpush1.bf16.msra.mxu0 0
        %1736 = vmatprep.subr.bf16.mxu0 0
        %1737 = vmatpush1.bf16.msra.mxu0 0
        %1738 = vmatprep.mubr.bf16.mxu0 0
        %1739 = vmatmul.mubr.bf16.gmra.mrb[0].mxu0 %v1515
        %v1740 = vpop.f32.mrb[0].mxu0
        %v1741 = vadd.f32 %v1185, %v1740
        %v1742 = vpop.f32.mrb[0].mxu0
        %v1743 = vpop.f32.mrb[0].mxu0
        %v1744 = vadd.f32 %v1185, %v1743
        %v1745 = vpop.f32.mrb[0].mxu0
        %1746 = vmatprep.mubr.bf16.mxu0 0
        %1747 = vmatmul.mubr.bf16.gmra.mrb[0].mxu0 %v1518
        %v1748 = vpop.f32.mrb[0].mxu0
        %v1749 = vadd.f32 %v1185, %v1748
        %v1750 = vpop.f32.mrb[0].mxu0
        %v1751 = vpop.f32.mrb[0].mxu0
        %v1752 = vadd.f32 %v1185, %v1751
        %v1753 = vpop.f32.mrb[0].mxu0
        %1754 = vmatprep.mubr.bf16.mxu0 0
        %1755 = vmatmul.mubr.bf16.gmra.mrb[0].mxu0 %v1521
        %v1756 = vpop.f32.mrb[0].mxu0
        %v1757 = vadd.f32 %v1185, %v1756
        %v1758 = vpop.f32.mrb[0].mxu0
        %v1759 = vpop.f32.mrb[0].mxu0
        %v1760 = vadd.f32 %v1185, %v1759
        %v1761 = vpop.f32.mrb[0].mxu0
        %1762 = vmatprep.mubr.bf16.mxu0 0
        %1763 = vmatmul.mubr.bf16.gmra.mrb[0].mxu0 %v1524
        %v1764 = vpop.f32.mrb[0].mxu0
        %v1765 = vadd.f32 %v1185, %v1764
        %v1766 = vpop.f32.mrb[0].mxu0
        %v1767 = vpop.f32.mrb[0].mxu0
        %v1768 = vadd.f32 %v1185, %v1767
        %v1769 = vpop.f32.mrb[0].mxu0
        %1770 = vmatprep.mubr.bf16.mxu0 0
        %1771 = vmatmul.mubr.bf16.gmra.mrb[0].mxu0 %v1527
        %v1772 = vpop.f32.mrb[0].mxu0
        %v1773 = vadd.f32 %v1185, %v1772
        %v1774 = vpop.f32.mrb[0].mxu0
        %v1775 = vpop.f32.mrb[0].mxu0
        %v1776 = vadd.f32 %v1185, %v1775
        %v1777 = vpop.f32.mrb[0].mxu0
        %1778 = vmatprep.mubr.bf16.mxu0 0
        %1779 = vmatmul.mubr.bf16.gmra.mrb[0].mxu0 %v1530
        %v1780 = vpop.f32.mrb[0].mxu0
        %v1781 = vadd.f32 %v1185, %v1780
        %v1782 = vpop.f32.mrb[0].mxu0
        %v1783 = vpop.f32.mrb[0].mxu0
        %v1784 = vadd.f32 %v1185, %v1783
        %v1785 = vpop.f32.mrb[0].mxu0
        %1786 = vmatprep.mubr.bf16.mxu0 0
        %1787 = vmatmul.mubr.bf16.gmra.mrb[0].mxu0 %v1533
        %v1788 = vpop.f32.mrb[0].mxu0
        %v1789 = vadd.f32 %v1185, %v1788
        %v1790 = vpop.f32.mrb[0].mxu0
        %v1791 = vpop.f32.mrb[0].mxu0
        %v1792 = vadd.f32 %v1185, %v1791
        %v1793 = vpop.f32.mrb[0].mxu0
        %1794 = vmatprep.mubr.bf16.mxu0 0
        %1795 = vmatmul.mubr.bf16.gmra.mrb[0].mxu0 %v1536
        %v1796 = vpop.f32.mrb[0].mxu0
        %v1797 = vadd.f32 %v1185, %v1796
        %v1798 = vpop.f32.mrb[0].mxu0
        %v1799 = vpop.f32.mrb[0].mxu0
        %v1800 = vadd.f32 %v1185, %v1799
        %v1801 = vpop.f32.mrb[0].mxu0
        %1802 = vmatprep.mubr.bf16.mxu0 0
        %1803 = vmatmul.mubr.bf16.gmra.mrb[0].mxu0 %v1539
        %v1804 = vpop.f32.mrb[0].mxu0
        %v1805 = vadd.f32 %v1185, %v1804
        %v1806 = vpop.f32.mrb[0].mxu0
        %v1807 = vpop.f32.mrb[0].mxu0
        %v1808 = vadd.f32 %v1185, %v1807
        %v1809 = vpop.f32.mrb[0].mxu0
        %1810 = vmatprep.mubr.bf16.mxu0 0
        %1811 = vmatmul.mubr.bf16.gmra.mrb[0].mxu0 %v1542
        %v1812 = vpop.f32.mrb[0].mxu0
        %v1813 = vadd.f32 %v1185, %v1812
        %v1814 = vpop.f32.mrb[0].mxu0
        %v1815 = vpop.f32.mrb[0].mxu0
        %v1816 = vadd.f32 %v1185, %v1815
        %v1817 = vpop.f32.mrb[0].mxu0
        %1818 = vmatprep.mubr.bf16.mxu0 0
        %1819 = vmatmul.mubr.bf16.gmra.mrb[0].mxu0 %v1545
        %v1820 = vpop.f32.mrb[0].mxu0
        %v1821 = vadd.f32 %v1185, %v1820
        %v1822 = vpop.f32.mrb[0].mxu0
        %v1823 = vpop.f32.mrb[0].mxu0
        %v1824 = vadd.f32 %v1185, %v1823
        %v1825 = vpop.f32.mrb[0].mxu0
        %1826 = vmatprep.mubr.bf16.mxu0 0
        %1827 = vmatmul.mubr.bf16.gmra.mrb[0].mxu0 %v1548
        %v1828 = vpop.f32.mrb[0].mxu0
        %v1829 = vadd.f32 %v1185, %v1828
        %v1830 = vpop.f32.mrb[0].mxu0
        %v1831 = vpop.f32.mrb[0].mxu0
        %v1832 = vadd.f32 %v1185, %v1831
        %v1833 = vpop.f32.mrb[0].mxu0
        %1834 = vmatprep.mubr.bf16.mxu0 0
        %1835 = vmatmul.mubr.bf16.gmra.mrb[0].mxu0 %v1551
        %v1836 = vpop.f32.mrb[0].mxu0
        %v1837 = vadd.f32 %v1185, %v1836
        %v1838 = vpop.f32.mrb[0].mxu0
        %v1839 = vpop.f32.mrb[0].mxu0
        %v1840 = vadd.f32 %v1185, %v1839
        %v1841 = vpop.f32.mrb[0].mxu0
        %1842 = vmatprep.mubr.bf16.mxu0 0
        %1843 = vmatmul.mubr.bf16.gmra.mrb[0].mxu0 %v1554
        %v1844 = vpop.f32.mrb[0].mxu0
        %v1845 = vadd.f32 %v1185, %v1844
        %v1846 = vpop.f32.mrb[0].mxu0
        %v1847 = vpop.f32.mrb[0].mxu0
        %v1848 = vadd.f32 %v1185, %v1847
        %v1849 = vpop.f32.mrb[0].mxu0
        %1850 = vmatprep.mubr.bf16.mxu0 0
        %1851 = vmatmul.mubr.bf16.gmra.mrb[0].mxu0 %v1557
        %v1852 = vpop.f32.mrb[0].mxu0
        %v1853 = vadd.f32 %v1185, %v1852
        %v1854 = vpop.f32.mrb[0].mxu0
        %v1855 = vpop.f32.mrb[0].mxu0
        %v1856 = vadd.f32 %v1185, %v1855
        %v1857 = vpop.f32.mrb[0].mxu0
        %1858 = vmatprep.mubr.bf16.mxu0 0
        %1859 = vmatmul.mubr.bf16.gmra.mrb[0].mxu0 %v1560
        %v1860 = vpop.f32.mrb[0].mxu0
        %v1861 = vadd.f32 %v1185, %v1860
        %v1862 = vpop.f32.mrb[0].mxu0
        %v1863 = vpop.f32.mrb[0].mxu0
        %v1864 = vadd.f32 %v1185, %v1863
        %v1865 = vpop.f32.mrb[0].mxu0
        %1866 = vmatprep.mubr.bf16.mxu0 0
        %1867 = vmatmul.mubr.bf16.gmra.mrb[0].mxu0 %v1563
        %v1868 = vpop.f32.mrb[0].mxu0
        %v1869 = vadd.f32 %v1185, %v1868
        %v1870 = vpop.f32.mrb[0].mxu0
        %v1871 = vpop.f32.mrb[0].mxu0
        %v1872 = vadd.f32 %v1185, %v1871
        %v1873 = vpop.f32.mrb[0].mxu0
        %1874 = vmatprep.mubr.bf16.mxu0 0
        %1875 = vmatmul.mubr.bf16.gmra.mrb[0].mxu0 %v1566
        %v1876 = vpop.f32.mrb[0].mxu0
        %v1877 = vadd.f32 %v1185, %v1876
        %v1878 = vpop.f32.mrb[0].mxu0
        %v1879 = vpop.f32.mrb[0].mxu0
        %v1880 = vadd.f32 %v1185, %v1879
        %v1881 = vpop.f32.mrb[0].mxu0
        %1882 = vmatprep.mubr.bf16.mxu0 0
        %1883 = vmatmul.mubr.bf16.gmra.mrb[0].mxu0 %v1569
        %v1884 = vpop.f32.mrb[0].mxu0
        %v1885 = vadd.f32 %v1185, %v1884
        %v1886 = vpop.f32.mrb[0].mxu0
        %v1887 = vpop.f32.mrb[0].mxu0
        %v1888 = vadd.f32 %v1185, %v1887
        %v1889 = vpop.f32.mrb[0].mxu0
        %1890 = vmatprep.mubr.bf16.mxu0 0
        %1891 = vmatmul.mubr.bf16.gmra.mrb[0].mxu0 %v1572
        %v1892 = vpop.f32.mrb[0].mxu0
        %v1893 = vadd.f32 %v1185, %v1892
        %v1894 = vpop.f32.mrb[0].mxu0
        %v1895 = vpop.f32.mrb[0].mxu0
        %v1896 = vadd.f32 %v1185, %v1895
        %v1897 = vpop.f32.mrb[0].mxu0
        %1898 = vmatprep.mubr.bf16.mxu0 0
        %1899 = vmatmul.mubr.bf16.gmra.mrb[0].mxu0 %v1575
        %v1900 = vpop.f32.mrb[0].mxu0
        %v1901 = vadd.f32 %v1185, %v1900
        %v1902 = vpop.f32.mrb[0].mxu0
        %v1903 = vpop.f32.mrb[0].mxu0
        %v1904 = vadd.f32 %v1185, %v1903
        %v1905 = vpop.f32.mrb[0].mxu0
        %1906 = vmatprep.mubr.bf16.mxu0 0
        %1907 = vmatmul.mubr.bf16.gmra.mrb[0].mxu0 %v1578
        %v1908 = vpop.f32.mrb[0].mxu0
        %v1909 = vadd.f32 %v1185, %v1908
        %v1910 = vpop.f32.mrb[0].mxu0
        %v1911 = vpop.f32.mrb[0].mxu0
        %v1912 = vadd.f32 %v1185, %v1911
        %v1913 = vpop.f32.mrb[0].mxu0
        %1914 = vmatprep.mubr.bf16.mxu0 0
        %1915 = vmatmul.mubr.bf16.gmra.mrb[0].mxu0 %v1581
        %v1916 = vpop.f32.mrb[0].mxu0
        %v1917 = vadd.f32 %v1185, %v1916
        %v1918 = vpop.f32.mrb[0].mxu0
        %v1919 = vpop.f32.mrb[0].mxu0
        %v1920 = vadd.f32 %v1185, %v1919
        %v1921 = vpop.f32.mrb[0].mxu0
        %1922 = vmatprep.mubr.bf16.mxu0 0
        %1923 = vmatmul.mubr.bf16.gmra.mrb[0].mxu0 %v1584
        %v1924 = vpop.f32.mrb[0].mxu0
        %v1925 = vadd.f32 %v1185, %v1924
        %v1926 = vpop.f32.mrb[0].mxu0
        %v1927 = vpop.f32.mrb[0].mxu0
        %v1928 = vadd.f32 %v1185, %v1927
        %v1929 = vpop.f32.mrb[0].mxu0
        %1930 = vmatprep.mubr.bf16.mxu0 0
        %1931 = vmatmul.mubr.bf16.gmra.mrb[0].mxu0 %v1587
        %v1932 = vpop.f32.mrb[0].mxu0
        %v1933 = vadd.f32 %v1185, %v1932
        %v1934 = vpop.f32.mrb[0].mxu0
        %v1935 = vpop.f32.mrb[0].mxu0
        %v1936 = vadd.f32 %v1185, %v1935
        %v1937 = vpop.f32.mrb[0].mxu0
        %1938 = vmatprep.mubr.bf16.mxu0 0
        %1939 = vmatmul.mubr.bf16.gmra.mrb[0].mxu0 %v1590
        %v1940 = vpop.f32.mrb[0].mxu0
        %v1941 = vadd.f32 %v1185, %v1940
        %v1942 = vpop.f32.mrb[0].mxu0
        %v1943 = vpop.f32.mrb[0].mxu0
        %v1944 = vadd.f32 %v1185, %v1943
        %v1945 = vpop.f32.mrb[0].mxu0
        %1946 = vmatprep.mubr.bf16.mxu0 0
        %1947 = vmatmul.mubr.bf16.gmra.mrb[0].mxu0 %v1593
        %v1948 = vpop.f32.mrb[0].mxu0
        %v1949 = vadd.f32 %v1185, %v1948
        %v1950 = vpop.f32.mrb[0].mxu0
        %v1951 = vpop.f32.mrb[0].mxu0
        %v1952 = vadd.f32 %v1185, %v1951
        %v1953 = vpop.f32.mrb[0].mxu0
        %1954 = vmatprep.mubr.bf16.mxu0 0
        %1955 = vmatmul.mubr.bf16.gmra.mrb[0].mxu0 %v1596
        %v1956 = vpop.f32.mrb[0].mxu0
        %v1957 = vadd.f32 %v1185, %v1956
        %v1958 = vpop.f32.mrb[0].mxu0
        %v1959 = vpop.f32.mrb[0].mxu0
        %v1960 = vadd.f32 %v1185, %v1959
        %v1961 = vpop.f32.mrb[0].mxu0
        %1962 = vmatprep.mubr.bf16.mxu0 0
        %1963 = vmatmul.mubr.bf16.gmra.mrb[0].mxu0 %v1599
        %v1964 = vpop.f32.mrb[0].mxu0
        %v1965 = vadd.f32 %v1185, %v1964
        %v1966 = vpop.f32.mrb[0].mxu0
        %v1967 = vpop.f32.mrb[0].mxu0
        %v1968 = vadd.f32 %v1185, %v1967
        %v1969 = vpop.f32.mrb[0].mxu0
        %1970 = vmatprep.mubr.bf16.mxu0 0
        %1971 = vmatmul.mubr.bf16.gmra.mrb[0].mxu0 %v1602
        %v1972 = vpop.f32.mrb[0].mxu0
        %v1973 = vadd.f32 %v1185, %v1972
        %v1974 = vpop.f32.mrb[0].mxu0
        %v1975 = vpop.f32.mrb[0].mxu0
        %v1976 = vadd.f32 %v1185, %v1975
        %v1977 = vpop.f32.mrb[0].mxu0
        %1978 = vmatprep.mubr.bf16.mxu0 0
        %1979 = vmatmul.mubr.bf16.gmra.mrb[0].mxu0 %v1605
        %v1980 = vpop.f32.mrb[0].mxu0
        %v1981 = vadd.f32 %v1185, %v1980
        %v1982 = vpop.f32.mrb[0].mxu0
        %v1983 = vpop.f32.mrb[0].mxu0
        %v1984 = vadd.f32 %v1185, %v1983
        %v1985 = vpop.f32.mrb[0].mxu0
        %1986 = vmatprep.mubr.bf16.mxu0 0
        %1987 = vmatmul.mubr.bf16.gmra.mrb[0].mxu0 %v1608
        %v1988 = vpop.f32.mrb[0].mxu0
        %v1989 = vadd.f32 %v1185, %v1988
        %v1990 = vpop.f32.mrb[0].mxu0
        %v1991 = vpop.f32.mrb[0].mxu0
        %v1992 = vadd.f32 %v1185, %v1991
        %v1993 = vpop.f32.mrb[0].mxu0
        %1994 = vmatprep.mubr.bf16.mxu0 0
        %1995 = vmatmul.mubr.bf16.gmra.mrb[0].mxu0 %v1611
        %v1996 = vpop.f32.mrb[0].mxu0
        %v1997 = vadd.f32 %v1185, %v1996
        %v1998 = vpop.f32.mrb[0].mxu0
        %v1999 = vpop.f32.mrb[0].mxu0
        %v2000 = vadd.f32 %v1185, %v1999
        %v2001 = vpop.f32.mrb[0].mxu0
        %2002 = vmatprep.mubr.bf16.mxu0 0
        %2003 = vmatmul.mubr.bf16.gmra.mrb[0].mxu0 %v1614
        %v2004 = vpop.f32.mrb[0].mxu0
        %v2005 = vadd.f32 %v1185, %v2004
        %v2006 = vpop.f32.mrb[0].mxu0
        %v2007 = vpop.f32.mrb[0].mxu0
        %v2008 = vadd.f32 %v1185, %v2007
        %v2009 = vpop.f32.mrb[0].mxu0
        %2010 = vmatprep.mubr.bf16.mxu0 0
        %2011 = vmatmul.mubr.bf16.gmra.mrb[0].mxu0 %v1617
        %v2012 = vpop.f32.mrb[0].mxu0
        %v2013 = vadd.f32 %v1185, %v2012
        %v2014 = vpop.f32.mrb[0].mxu0
        %v2015 = vpop.f32.mrb[0].mxu0
        %v2016 = vadd.f32 %v1185, %v2015
        %v2017 = vpop.f32.mrb[0].mxu0
        %2018 = vmatprep.mubr.bf16.mxu0 0
        %2019 = vmatmul.mubr.bf16.gmra.mrb[0].mxu0 %v1620
        %v2020 = vpop.f32.mrb[0].mxu0
        %v2021 = vadd.f32 %v1185, %v2020
        %v2022 = vpop.f32.mrb[0].mxu0
        %v2023 = vpop.f32.mrb[0].mxu0
        %v2024 = vadd.f32 %v1185, %v2023
        %v2025 = vpop.f32.mrb[0].mxu0
        %2026 = vmatprep.mubr.bf16.mxu0 0
        %2027 = vmatmul.mubr.bf16.gmra.mrb[0].mxu0 %v1623
        %v2028 = vpop.f32.mrb[0].mxu0
        %v2029 = vadd.f32 %v1185, %v2028
        %v2030 = vpop.f32.mrb[0].mxu0
        %v2031 = vpop.f32.mrb[0].mxu0
        %v2032 = vadd.f32 %v1185, %v2031
        %v2033 = vpop.f32.mrb[0].mxu0
        %2034 = vmatprep.mubr.bf16.mxu0 0
        %2035 = vmatmul.mubr.bf16.gmra.mrb[0].mxu0 %v1626
        %v2036 = vpop.f32.mrb[0].mxu0
        %v2037 = vadd.f32 %v1185, %v2036
        %v2038 = vpop.f32.mrb[0].mxu0
        %v2039 = vpop.f32.mrb[0].mxu0
        %v2040 = vadd.f32 %v1185, %v2039
        %v2041 = vpop.f32.mrb[0].mxu0
        %2042 = vmatprep.mubr.bf16.mxu0 0
        %2043 = vmatmul.mubr.bf16.gmra.mrb[0].mxu0 %v1629
        %v2044 = vpop.f32.mrb[0].mxu0
        %v2045 = vadd.f32 %v1185, %v2044
        %v2046 = vpop.f32.mrb[0].mxu0
        %v2047 = vpop.f32.mrb[0].mxu0
        %v2048 = vadd.f32 %v1185, %v2047
        %v2049 = vpop.f32.mrb[0].mxu0
        %2050 = vmatprep.mubr.bf16.mxu0 0
        %2051 = vmatmul.mubr.bf16.gmra.mrb[0].mxu0 %v1632
        %v2052 = vpop.f32.mrb[0].mxu0
        %v2053 = vadd.f32 %v1185, %v2052
        %v2054 = vpop.f32.mrb[0].mxu0
        %v2055 = vpop.f32.mrb[0].mxu0
        %v2056 = vadd.f32 %v1185, %v2055
        %v2057 = vpop.f32.mrb[0].mxu0
        %2058 = vmatprep.mubr.bf16.mxu0 0
        %2059 = vmatmul.mubr.bf16.gmra.mrb[0].mxu0 %v1635
        %v2060 = vpop.f32.mrb[0].mxu0
        %v2061 = vadd.f32 %v1185, %v2060
        %v2062 = vpop.f32.mrb[0].mxu0
        %v2063 = vpop.f32.mrb[0].mxu0
        %v2064 = vadd.f32 %v1185, %v2063
        %v2065 = vpop.f32.mrb[0].mxu0
        %2066 = vmatprep.mubr.bf16.mxu0 0
        %2067 = vmatmul.mubr.bf16.gmra.mrb[0].mxu0 %v1638
        %v2068 = vpop.f32.mrb[0].mxu0
        %v2069 = vadd.f32 %v1185, %v2068
        %v2070 = vpop.f32.mrb[0].mxu0
        %v2071 = vpop.f32.mrb[0].mxu0
        %v2072 = vadd.f32 %v1185, %v2071
        %v2073 = vpop.f32.mrb[0].mxu0
        %2074 = vmatprep.mubr.bf16.mxu0 0
        %2075 = vmatmul.mubr.bf16.gmra.mrb[0].mxu0 %v1641
        %v2076 = vpop.f32.mrb[0].mxu0
        %v2077 = vadd.f32 %v1185, %v2076
        %v2078 = vpop.f32.mrb[0].mxu0
        %v2079 = vpop.f32.mrb[0].mxu0
        %v2080 = vadd.f32 %v1185, %v2079
        %v2081 = vpop.f32.mrb[0].mxu0
        %2082 = vmatprep.mubr.bf16.mxu0 0
        %2083 = vmatmul.mubr.bf16.gmra.mrb[0].mxu0 %v1644
        %v2084 = vpop.f32.mrb[0].mxu0
        %v2085 = vadd.f32 %v1185, %v2084
        %v2086 = vpop.f32.mrb[0].mxu0
        %v2087 = vpop.f32.mrb[0].mxu0
        %v2088 = vadd.f32 %v1185, %v2087
        %v2089 = vpop.f32.mrb[0].mxu0
        %2090 = vmatprep.mubr.bf16.mxu0 0
        %2091 = vmatmul.mubr.bf16.gmra.mrb[0].mxu0 %v1647
        %v2092 = vpop.f32.mrb[0].mxu0
        %v2093 = vadd.f32 %v1185, %v2092
        %v2094 = vpop.f32.mrb[0].mxu0
        %v2095 = vpop.f32.mrb[0].mxu0
        %v2096 = vadd.f32 %v1185, %v2095
        %v2097 = vpop.f32.mrb[0].mxu0
        %2098 = vmatprep.mubr.bf16.mxu0 0
        %2099 = vmatmul.mubr.bf16.gmra.mrb[0].mxu0 %v1650
        %v2100 = vpop.f32.mrb[0].mxu0
        %v2101 = vadd.f32 %v1185, %v2100
        %v2102 = vpop.f32.mrb[0].mxu0
        %v2103 = vpop.f32.mrb[0].mxu0
        %v2104 = vadd.f32 %v1185, %v2103
        %v2105 = vpop.f32.mrb[0].mxu0
        %2106 = vmatprep.mubr.bf16.mxu0 0
        %2107 = vmatmul.mubr.bf16.gmra.mrb[0].mxu0 %v1653
        %v2108 = vpop.f32.mrb[0].mxu0
        %v2109 = vadd.f32 %v1185, %v2108
        %v2110 = vpop.f32.mrb[0].mxu0
        %v2111 = vpop.f32.mrb[0].mxu0
        %v2112 = vadd.f32 %v1185, %v2111
        %v2113 = vpop.f32.mrb[0].mxu0
        %2114 = vmatprep.mubr.bf16.mxu0 0
        %2115 = vmatmul.mubr.bf16.gmra.mrb[0].mxu0 %v1656
        %v2116 = vpop.f32.mrb[0].mxu0
        %v2117 = vadd.f32 %v1185, %v2116
        %v2118 = vpop.f32.mrb[0].mxu0
        %v2119 = vpop.f32.mrb[0].mxu0
        %v2120 = vadd.f32 %v1185, %v2119
        %v2121 = vpop.f32.mrb[0].mxu0
        %2122 = vmatprep.mubr.bf16.mxu0 0
        %2123 = vmatmul.mubr.bf16.gmra.mrb[0].mxu0 %v1659
        %v2124 = vpop.f32.mrb[0].mxu0
        %v2125 = vadd.f32 %v1185, %v2124
        %v2126 = vpop.f32.mrb[0].mxu0
        %v2127 = vpop.f32.mrb[0].mxu0
        %v2128 = vadd.f32 %v1185, %v2127
        %v2129 = vpop.f32.mrb[0].mxu0
        %2130 = vmatprep.mubr.bf16.mxu0 0
        %2131 = vmatmul.mubr.bf16.gmra.mrb[0].mxu0 %v1662
        %v2132 = vpop.f32.mrb[0].mxu0
        %v2133 = vadd.f32 %v1185, %v2132
        %v2134 = vpop.f32.mrb[0].mxu0
        %v2135 = vpop.f32.mrb[0].mxu0
        %v2136 = vadd.f32 %v1185, %v2135
        %v2137 = vpop.f32.mrb[0].mxu0
        %2138 = vmatprep.mubr.bf16.mxu0 0
        %2139 = vmatmul.mubr.bf16.gmra.mrb[0].mxu0 %v1665
        %v2140 = vpop.f32.mrb[0].mxu0
        %v2141 = vadd.f32 %v1185, %v2140
        %v2142 = vpop.f32.mrb[0].mxu0
        %v2143 = vpop.f32.mrb[0].mxu0
        %v2144 = vadd.f32 %v1185, %v2143
        %v2145 = vpop.f32.mrb[0].mxu0
        %2146 = vmatprep.mubr.bf16.mxu0 0
        %2147 = vmatmul.mubr.bf16.gmra.mrb[0].mxu0 %v1668
        %v2148 = vpop.f32.mrb[0].mxu0
        %v2149 = vadd.f32 %v1185, %v2148
        %v2150 = vpop.f32.mrb[0].mxu0
        %v2151 = vpop.f32.mrb[0].mxu0
        %v2152 = vadd.f32 %v1185, %v2151
        %v2153 = vpop.f32.mrb[0].mxu0
        %2154 = vmatprep.mubr.bf16.mxu0 0
        %2155 = vmatmul.mubr.bf16.gmra.mrb[0].mxu0 %v1671
        %v2156 = vpop.f32.mrb[0].mxu0
        %v2157 = vadd.f32 %v1185, %v2156
        %v2158 = vpop.f32.mrb[0].mxu0
        %v2159 = vpop.f32.mrb[0].mxu0
        %v2160 = vadd.f32 %v1185, %v2159
        %v2161 = vpop.f32.mrb[0].mxu0
        %2162 = vmatprep.mubr.bf16.mxu0 0
        %2163 = vmatmul.mubr.bf16.gmra.mrb[0].mxu0 %v1674
        %v2164 = vpop.f32.mrb[0].mxu0
        %v2165 = vadd.f32 %v1185, %v2164
        %v2166 = vpop.f32.mrb[0].mxu0
        %v2167 = vpop.f32.mrb[0].mxu0
        %v2168 = vadd.f32 %v1185, %v2167
        %v2169 = vpop.f32.mrb[0].mxu0
        %2170 = vmatprep.mubr.bf16.mxu0 0
        %2171 = vmatmul.mubr.bf16.gmra.mrb[0].mxu0 %v1677
        %v2172 = vpop.f32.mrb[0].mxu0
        %v2173 = vadd.f32 %v1185, %v2172
        %v2174 = vpop.f32.mrb[0].mxu0
        %v2175 = vpop.f32.mrb[0].mxu0
        %v2176 = vadd.f32 %v1185, %v2175
        %v2177 = vpop.f32.mrb[0].mxu0
        %2178 = vmatprep.mubr.bf16.mxu0 0
        %2179 = vmatmul.mubr.bf16.gmra.mrb[0].mxu0 %v1680
        %v2180 = vpop.f32.mrb[0].mxu0
        %v2181 = vadd.f32 %v1185, %v2180
        %v2182 = vpop.f32.mrb[0].mxu0
        %v2183 = vpop.f32.mrb[0].mxu0
        %v2184 = vadd.f32 %v1185, %v2183
        %v2185 = vpop.f32.mrb[0].mxu0
        %2186 = vmatprep.mubr.bf16.mxu0 0
        %2187 = vmatmul.mubr.bf16.gmra.mrb[0].mxu0 %v1683
        %v2188 = vpop.f32.mrb[0].mxu0
        %v2189 = vadd.f32 %v1185, %v2188
        %v2190 = vpop.f32.mrb[0].mxu0
        %v2191 = vpop.f32.mrb[0].mxu0
        %v2192 = vadd.f32 %v1185, %v2191
        %v2193 = vpop.f32.mrb[0].mxu0
        %2194 = vmatprep.mubr.bf16.mxu0 0
        %2195 = vmatmul.mubr.bf16.gmra.mrb[0].mxu0 %v1686
        %v2196 = vpop.f32.mrb[0].mxu0
        %v2197 = vadd.f32 %v1185, %v2196
        %v2198 = vpop.f32.mrb[0].mxu0
        %v2199 = vpop.f32.mrb[0].mxu0
        %v2200 = vadd.f32 %v1185, %v2199
        %v2201 = vpop.f32.mrb[0].mxu0
        %2202 = vmatprep.mubr.bf16.mxu0 0
        %2203 = vmatmul.mubr.bf16.gmra.mrb[0].mxu0 %v1689
        %v2204 = vpop.f32.mrb[0].mxu0
        %v2205 = vadd.f32 %v1185, %v2204
        %v2206 = vpop.f32.mrb[0].mxu0
        %v2207 = vpop.f32.mrb[0].mxu0
        %v2208 = vadd.f32 %v1185, %v2207
        %v2209 = vpop.f32.mrb[0].mxu0
        %2210 = vmatprep.mubr.bf16.mxu0 0
        %2211 = vmatmul.mubr.bf16.gmra.mrb[0].mxu0 %v1692
        %v2212 = vpop.f32.mrb[0].mxu0
        %v2213 = vadd.f32 %v1185, %v2212
        %v2214 = vpop.f32.mrb[0].mxu0
        %v2215 = vpop.f32.mrb[0].mxu0
        %v2216 = vadd.f32 %v1185, %v2215
        %v2217 = vpop.f32.mrb[0].mxu0
        %2218 = vmatprep.mubr.bf16.mxu0 0
        %2219 = vmatmul.mubr.bf16.gmra.mrb[0].mxu0 %v1695
        %v2220 = vpop.f32.mrb[0].mxu0
        %v2221 = vadd.f32 %v1185, %v2220
        %v2222 = vpop.f32.mrb[0].mxu0
        %v2223 = vpop.f32.mrb[0].mxu0
        %v2224 = vadd.f32 %v1185, %v2223
        %v2225 = vpop.f32.mrb[0].mxu0
        %2226 = vmatprep.mubr.bf16.mxu0 0
        %2227 = vmatmul.mubr.bf16.gmra.mrb[0].mxu0 %v1698
        %v2228 = vpop.f32.mrb[0].mxu0
        %v2229 = vadd.f32 %v1185, %v2228
        %v2230 = vpop.f32.mrb[0].mxu0
        %v2231 = vpop.f32.mrb[0].mxu0
        %v2232 = vadd.f32 %v1185, %v2231
        %v2233 = vpop.f32.mrb[0].mxu0
        %2234 = vmatprep.mubr.bf16.mxu0 0
        %2235 = vmatmul.mubr.bf16.gmra.mrb[0].mxu0 %v1701
        %v2236 = vpop.f32.mrb[0].mxu0
        %v2237 = vadd.f32 %v1185, %v2236
        %v2238 = vpop.f32.mrb[0].mxu0
        %v2239 = vpop.f32.mrb[0].mxu0
        %v2240 = vadd.f32 %v1185, %v2239
        %v2241 = vpop.f32.mrb[0].mxu0
        %2242 = vmatprep.mubr.bf16.mxu0 0
        %2243 = vmatmul.mubr.bf16.gmra.mrb[0].mxu0 %v1704
        %v2244 = vpop.f32.mrb[0].mxu0
        %v2245 = vadd.f32 %v1185, %v2244
        %v2246 = vpop.f32.mrb[0].mxu0
        %v2247 = vpop.f32.mrb[0].mxu0
        %v2248 = vadd.f32 %v1185, %v2247
        %v2249 = vpop.f32.mrb[0].mxu0
        %2250 = vdwg.mxu0
        %v2251 = vtanh.pop %v1741
        %v2252 = vtanh.pop %v1744
        %v2253 = vtanh.pop %v1749
        %v2254 = vtanh.pop %v1752
        %v2255 = vtanh.pop %v1757
        %v2256 = vtanh.pop %v1760
        %v2257 = vtanh.pop %v1765
        %v2258 = vtanh.pop %v1768
        %v2259 = vtanh.pop %v1773
        %v2260 = vtanh.pop %v1776
        %v2261 = vtanh.pop %v1781
        %v2262 = vtanh.pop %v1784
        %v2263 = vtanh.pop %v1789
        %v2264 = vtanh.pop %v1792
        %v2265 = vtanh.pop %v1797
        %v2266 = vtanh.pop %v1800
        %v2267 = vtanh.pop %v1805
        %v2268 = vtanh.pop %v1808
        %v2269 = vtanh.pop %v1813
        %v2270 = vtanh.pop %v1816
        %v2271 = vtanh.pop %v1821
        %v2272 = vtanh.pop %v1824
        %v2273 = vtanh.pop %v1829
        %v2274 = vtanh.pop %v1832
        %v2275 = vtanh.pop %v1837
        %v2276 = vtanh.pop %v1840
        %v2277 = vtanh.pop %v1845
        %v2278 = vtanh.pop %v1848
        %v2279 = vtanh.pop %v1853
        %v2280 = vtanh.pop %v1856
        %v2281 = vtanh.pop %v1861
        %v2282 = vtanh.pop %v1864
        %v2283 = vtanh.pop %v1869
        %v2284 = vtanh.pop %v1872
        %v2285 = vtanh.pop %v1877
        %v2286 = vtanh.pop %v1880
        %v2287 = vtanh.pop %v1885
        %v2288 = vtanh.pop %v1888
        %v2289 = vtanh.pop %v1893
        %v2290 = vtanh.pop %v1896
        %v2291 = vtanh.pop %v1901
        %v2292 = vtanh.pop %v1904
        %v2293 = vtanh.pop %v1909
        %v2294 = vtanh.pop %v1912
        %v2295 = vtanh.pop %v1917
        %v2296 = vtanh.pop %v1920
        %v2297 = vtanh.pop %v1925
        %v2298 = vtanh.pop %v1928
        %v2299 = vtanh.pop %v1933
        %v2300 = vtanh.pop %v1936
        %v2301 = vtanh.pop %v1941
        %v2302 = vtanh.pop %v1944
        %v2303 = vtanh.pop %v1949
        %v2304 = vtanh.pop %v1952
        %v2305 = vtanh.pop %v1957
        %v2306 = vtanh.pop %v1960
        %v2307 = vtanh.pop %v1965
        %v2308 = vtanh.pop %v1968
        %v2309 = vtanh.pop %v1973
        %v2310 = vtanh.pop %v1976
        %v2311 = vtanh.pop %v1981
        %v2312 = vtanh.pop %v1984
        %v2313 = vtanh.pop %v1989
        %v2314 = vtanh.pop %v1992
        %v2315 = vtanh.pop %v1997
        %v2316 = vtanh.pop %v2000
        %v2317 = vtanh.pop %v2005
        %v2318 = vtanh.pop %v2008
        %v2319 = vtanh.pop %v2013
        %v2320 = vtanh.pop %v2016
        %v2321 = vtanh.pop %v2021
        %v2322 = vtanh.pop %v2024
        %v2323 = vtanh.pop %v2029
        %v2324 = vtanh.pop %v2032
        %v2325 = vtanh.pop %v2037
        %v2326 = vtanh.pop %v2040
        %v2327 = vtanh.pop %v2045
        %v2328 = vtanh.pop %v2048
        %v2329 = vtanh.pop %v2053
        %v2330 = vtanh.pop %v2056
        %v2331 = vtanh.pop %v2061
        %v2332 = vtanh.pop %v2064
        %v2333 = vtanh.pop %v2069
        %v2334 = vtanh.pop %v2072
        %v2335 = vtanh.pop %v2077
        %v2336 = vtanh.pop %v2080
        %v2337 = vtanh.pop %v2085
        %v2338 = vtanh.pop %v2088
        %v2339 = vtanh.pop %v2093
        %v2340 = vtanh.pop %v2096
        %v2341 = vtanh.pop %v2101
        %v2342 = vtanh.pop %v2104
        %v2343 = vtanh.pop %v2109
        %v2344 = vtanh.pop %v2112
        %v2345 = vtanh.pop %v2117
        %v2346 = vtanh.pop %v2120
        %v2347 = vtanh.pop %v2125
        %v2348 = vtanh.pop %v2128
        %v2349 = vtanh.pop %v2133
        %v2350 = vtanh.pop %v2136
        %v2351 = vtanh.pop %v2141
        %v2352 = vtanh.pop %v2144
        %v2353 = vtanh.pop %v2149
        %v2354 = vtanh.pop %v2152
        %v2355 = vtanh.pop %v2157
        %v2356 = vtanh.pop %v2160
        %v2357 = vtanh.pop %v2165
        %v2358 = vtanh.pop %v2168
        %v2359 = vtanh.pop %v2173
        %v2360 = vtanh.pop %v2176
        %v2361 = vtanh.pop %v2181
        %v2362 = vtanh.pop %v2184
        %v2363 = vtanh.pop %v2189
        %v2364 = vtanh.pop %v2192
        %v2365 = vtanh.pop %v2197
        %v2366 = vtanh.pop %v2200
        %v2367 = vtanh.pop %v2205
        %v2368 = vtanh.pop %v2208
        %v2369 = vtanh.pop %v2213
        %v2370 = vtanh.pop %v2216
        %v2371 = vtanh.pop %v2221
        %v2372 = vtanh.pop %v2224
        %v2373 = vtanh.pop %v2229
        %v2374 = vtanh.pop %v2232
        %v2375 = vtanh.pop %v2237
        %v2376 = vtanh.pop %v2240
        %v2377 = vtanh.pop %v2245
        %v2378 = vtanh.pop %v2248
        %v2379 = vpack.c.bf16 %v2252, %v2251
        %v2380 = vpack.c.bf16 %v2254, %v2253
        %v2381 = vpack.c.bf16 %v2256, %v2255
        %v2382 = vpack.c.bf16 %v2258, %v2257
        %v2383 = vpack.c.bf16 %v2260, %v2259
        %v2384 = vpack.c.bf16 %v2262, %v2261
        %v2385 = vpack.c.bf16 %v2264, %v2263
        %v2386 = vpack.c.bf16 %v2266, %v2265
        %v2387 = vpack.c.bf16 %v2268, %v2267
        %v2388 = vpack.c.bf16 %v2270, %v2269
        %v2389 = vpack.c.bf16 %v2272, %v2271
        %v2390 = vpack.c.bf16 %v2274, %v2273
        %v2391 = vpack.c.bf16 %v2276, %v2275
        %v2392 = vpack.c.bf16 %v2278, %v2277
        %v2393 = vpack.c.bf16 %v2280, %v2279
        %v2394 = vpack.c.bf16 %v2282, %v2281
        %v2395 = vpack.c.bf16 %v2284, %v2283
        %v2396 = vpack.c.bf16 %v2286, %v2285
        %v2397 = vpack.c.bf16 %v2288, %v2287
        %v2398 = vpack.c.bf16 %v2290, %v2289
        %v2399 = vpack.c.bf16 %v2292, %v2291
        %v2400 = vpack.c.bf16 %v2294, %v2293
        %v2401 = vpack.c.bf16 %v2296, %v2295
        %v2402 = vpack.c.bf16 %v2298, %v2297
        %v2403 = vpack.c.bf16 %v2300, %v2299
        %v2404 = vpack.c.bf16 %v2302, %v2301
        %v2405 = vpack.c.bf16 %v2304, %v2303
        %v2406 = vpack.c.bf16 %v2306, %v2305
        %v2407 = vpack.c.bf16 %v2308, %v2307
        %v2408 = vpack.c.bf16 %v2310, %v2309
        %v2409 = vpack.c.bf16 %v2312, %v2311
        %v2410 = vpack.c.bf16 %v2314, %v2313
        %v2411 = vpack.c.bf16 %v2316, %v2315
        %v2412 = vpack.c.bf16 %v2318, %v2317
        %v2413 = vpack.c.bf16 %v2320, %v2319
        %v2414 = vpack.c.bf16 %v2322, %v2321
        %v2415 = vpack.c.bf16 %v2324, %v2323
        %v2416 = vpack.c.bf16 %v2326, %v2325
        %v2417 = vpack.c.bf16 %v2328, %v2327
        %v2418 = vpack.c.bf16 %v2330, %v2329
        %v2419 = vpack.c.bf16 %v2332, %v2331
        %v2420 = vpack.c.bf16 %v2334, %v2333
        %v2421 = vpack.c.bf16 %v2336, %v2335
        %v2422 = vpack.c.bf16 %v2338, %v2337
        %v2423 = vpack.c.bf16 %v2340, %v2339
        %v2424 = vpack.c.bf16 %v2342, %v2341
        %v2425 = vpack.c.bf16 %v2344, %v2343
        %v2426 = vpack.c.bf16 %v2346, %v2345
        %v2427 = vpack.c.bf16 %v2348, %v2347
        %v2428 = vpack.c.bf16 %v2350, %v2349
        %v2429 = vpack.c.bf16 %v2352, %v2351
        %v2430 = vpack.c.bf16 %v2354, %v2353
        %v2431 = vpack.c.bf16 %v2356, %v2355
        %v2432 = vpack.c.bf16 %v2358, %v2357
        %v2433 = vpack.c.bf16 %v2360, %v2359
        %v2434 = vpack.c.bf16 %v2362, %v2361
        %v2435 = vpack.c.bf16 %v2364, %v2363
        %v2436 = vpack.c.bf16 %v2366, %v2365
        %v2437 = vpack.c.bf16 %v2368, %v2367
        %v2438 = vpack.c.bf16 %v2370, %v2369
        %v2439 = vpack.c.bf16 %v2372, %v2371
        %v2440 = vpack.c.bf16 %v2374, %v2373
        %v2441 = vpack.c.bf16 %v2376, %v2375
        %v2442 = vpack.c.bf16 %v2378, %v2377
        %v2443 = vld [vmem:[%s3] sm:$0xf]
        %v2444 = vld [vmem:[%s3 + $0x4] sm:$0xf]
        %v2445 = vld [vmem:[%s3 + $0x8] sm:$0xf]
        %v2446 = vld [vmem:[%s3 + $0xc] sm:$0xf]
        %v2447 = vld [vmem:[%s3 + $0x10] sm:$0xf]
        %v2448 = vld [vmem:[%s3 + $0x14] sm:$0xf]
        %v2449 = vld [vmem:[%s3 + $0x18] sm:$0xf]
        %v2450 = vld [vmem:[%s3 + $0x1c] sm:$0xf]
        %v2451 = vld [vmem:[%s4] sm:$0x1]
        %v2453 = vlaneseq
        %v2454 = vshrl.u32 %v2453, 7
        %v2455 = vsub.s32 0, %v2454
        %v2456 = vrot.slane %v2451, %v2455
        %v2466 = vunpack.c.l.b16 %v2443
        %v2467 = vunpack.c.l.b16 %v2444
        %v2468 = vunpack.c.l.b16 %v2445
        %v2469 = vunpack.c.l.b16 %v2446
        %v2470 = vunpack.c.l.b16 %v2447
        %v2471 = vunpack.c.l.b16 %v2448
        %v2472 = vunpack.c.l.b16 %v2449
        %v2473 = vunpack.c.l.b16 %v2450
        %v2474 = vpack.c.b16 %v2467, %v2466
        %v2475 = vpack.c.b16 %v2469, %v2468
        %v2476 = vpack.c.b16 %v2471, %v2470
        %v2477 = vpack.c.b16 %v2473, %v2472
        %vm2482 = vcmask 523264
        %v2484 = vsel %vm2482, %v2379, 0
        %v2487 = vsel %vm2482, %v2380, 0
        %v2490 = vsel %vm2482, %v2381, 0
        %v2493 = vsel %vm2482, %v2382, 0
        %v2496 = vsel %vm2482, %v2383, 0
        %v2499 = vsel %vm2482, %v2384, 0
        %v2502 = vsel %vm2482, %v2385, 0
        %v2505 = vsel %vm2482, %v2386, 0
        %v2508 = vsel %vm2482, %v2387, 0
        %v2511 = vsel %vm2482, %v2388, 0
        %v2514 = vsel %vm2482, %v2389, 0
        %v2517 = vsel %vm2482, %v2390, 0
        %v2520 = vsel %vm2482, %v2391, 0
        %v2523 = vsel %vm2482, %v2392, 0
        %v2526 = vsel %vm2482, %v2393, 0
        %v2529 = vsel %vm2482, %v2394, 0
        %v2532 = vsel %vm2482, %v2395, 0
        %v2535 = vsel %vm2482, %v2396, 0
        %v2538 = vsel %vm2482, %v2397, 0
        %v2541 = vsel %vm2482, %v2398, 0
        %v2544 = vsel %vm2482, %v2399, 0
        %v2547 = vsel %vm2482, %v2400, 0
        %v2550 = vsel %vm2482, %v2401, 0
        %v2553 = vsel %vm2482, %v2402, 0
        %v2556 = vsel %vm2482, %v2403, 0
        %v2559 = vsel %vm2482, %v2404, 0
        %v2562 = vsel %vm2482, %v2405, 0
        %v2565 = vsel %vm2482, %v2406, 0
        %v2568 = vsel %vm2482, %v2407, 0
        %v2571 = vsel %vm2482, %v2408, 0
        %v2574 = vsel %vm2482, %v2409, 0
        %v2577 = vsel %vm2482, %v2410, 0
        %v2580 = vsel %vm2482, %v2411, 0
        %v2583 = vsel %vm2482, %v2412, 0
        %v2586 = vsel %vm2482, %v2413, 0
        %v2589 = vsel %vm2482, %v2414, 0
        %v2592 = vsel %vm2482, %v2415, 0
        %v2595 = vsel %vm2482, %v2416, 0
        %v2598 = vsel %vm2482, %v2417, 0
        %v2601 = vsel %vm2482, %v2418, 0
        %v2604 = vsel %vm2482, %v2419, 0
        %v2607 = vsel %vm2482, %v2420, 0
        %v2610 = vsel %vm2482, %v2421, 0
        %v2613 = vsel %vm2482, %v2422, 0
        %v2616 = vsel %vm2482, %v2423, 0
        %v2619 = vsel %vm2482, %v2424, 0
        %v2622 = vsel %vm2482, %v2425, 0
        %v2625 = vsel %vm2482, %v2426, 0
        %v2628 = vsel %vm2482, %v2427, 0
        %v2631 = vsel %vm2482, %v2428, 0
        %v2634 = vsel %vm2482, %v2429, 0
        %v2637 = vsel %vm2482, %v2430, 0
        %v2640 = vsel %vm2482, %v2431, 0
        %v2643 = vsel %vm2482, %v2432, 0
        %v2646 = vsel %vm2482, %v2433, 0
        %v2649 = vsel %vm2482, %v2434, 0
        %v2652 = vsel %vm2482, %v2435, 0
        %v2655 = vsel %vm2482, %v2436, 0
        %v2658 = vsel %vm2482, %v2437, 0
        %v2661 = vsel %vm2482, %v2438, 0
        %v2664 = vsel %vm2482, %v2439, 0
        %v2667 = vsel %vm2482, %v2440, 0
        %v2670 = vsel %vm2482, %v2441, 0
        %v2673 = vsel %vm2482, %v2442, 0
        %2675 = vmatprep.subr.bf16.mxu0 0
        %2676 = vmatpush1.bf16.msra.mxu0 %v2474
        %2677 = vmatprep.subr.bf16.mxu0 0
        %2678 = vmatpush1.bf16.msra.mxu0 %v2475
        %2679 = vmatprep.subr.bf16.mxu0 0
        %2680 = vmatpush1.bf16.msra.mxu0 %v2476
        %2681 = vmatprep.subr.bf16.mxu0 0
        %2682 = vmatpush1.bf16.msra.mxu0 %v2477
        %2683 = vmatprep.subr.bf16.mxu0 0
        %2684 = vmatpush1.bf16.msra.mxu0 0
        %2685 = vmatprep.subr.bf16.mxu0 0
        %2686 = vmatpush1.bf16.msra.mxu0 0
        %2687 = vmatprep.subr.bf16.mxu0 0
        %2688 = vmatpush1.bf16.msra.mxu0 0
        %2689 = vmatprep.subr.bf16.mxu0 0
        %2690 = vmatpush1.bf16.msra.mxu0 0
        %2691 = vmatprep.subr.bf16.mxu0 0
        %2692 = vmatpush1.bf16.msra.mxu0 0
        %2693 = vmatprep.subr.bf16.mxu0 0
        %2694 = vmatpush1.bf16.msra.mxu0 0
        %2695 = vmatprep.subr.bf16.mxu0 0
        %2696 = vmatpush1.bf16.msra.mxu0 0
        %2697 = vmatprep.subr.bf16.mxu0 0
        %2698 = vmatpush1.bf16.msra.mxu0 0
        %2699 = vmatprep.subr.bf16.mxu0 0
        %2700 = vmatpush1.bf16.msra.mxu0 0
        %2701 = vmatprep.subr.bf16.mxu0 0
        %2702 = vmatpush1.bf16.msra.mxu0 0
        %2703 = vmatprep.subr.bf16.mxu0 0
        %2704 = vmatpush1.bf16.msra.mxu0 0
        %2705 = vmatprep.subr.bf16.mxu0 0
        %2706 = vmatpush1.bf16.msra.mxu0 0
        %2707 = vmatprep.mubr.bf16.mxu0 0
        %2708 = vmatmul.mubr.bf16.gmra.mrb[0].mxu0 %v2484
        %v2709 = vpop.f32.mrb[0].mxu0
        %v2710 = vadd.f32 %v2456, %v2709
        %v2711 = vpop.f32.mrb[0].mxu0
        %v2712 = vpop.f32.mrb[0].mxu0
        %v2713 = vadd.f32 %v2456, %v2712
        %v2714 = vpop.f32.mrb[0].mxu0
        %2715 = vmatprep.mubr.bf16.mxu0 0
        %2716 = vmatmul.mubr.bf16.gmra.mrb[0].mxu0 %v2487
        %v2717 = vpop.f32.mrb[0].mxu0
        %v2718 = vadd.f32 %v2456, %v2717
        %v2719 = vpop.f32.mrb[0].mxu0
        %v2720 = vpop.f32.mrb[0].mxu0
        %v2721 = vadd.f32 %v2456, %v2720
        %v2722 = vpop.f32.mrb[0].mxu0
        %2723 = vmatprep.mubr.bf16.mxu0 0
        %2724 = vmatmul.mubr.bf16.gmra.mrb[0].mxu0 %v2490
        %v2725 = vpop.f32.mrb[0].mxu0
        %v2726 = vadd.f32 %v2456, %v2725
        %v2727 = vpop.f32.mrb[0].mxu0
        %v2728 = vpop.f32.mrb[0].mxu0
        %v2729 = vadd.f32 %v2456, %v2728
        %v2730 = vpop.f32.mrb[0].mxu0
        %2731 = vmatprep.mubr.bf16.mxu0 0
        %2732 = vmatmul.mubr.bf16.gmra.mrb[0].mxu0 %v2493
        %v2733 = vpop.f32.mrb[0].mxu0
        %v2734 = vadd.f32 %v2456, %v2733
        %v2735 = vpop.f32.mrb[0].mxu0
        %v2736 = vpop.f32.mrb[0].mxu0
        %v2737 = vadd.f32 %v2456, %v2736
        %v2738 = vpop.f32.mrb[0].mxu0
        %2739 = vmatprep.mubr.bf16.mxu0 0
        %2740 = vmatmul.mubr.bf16.gmra.mrb[0].mxu0 %v2496
        %v2741 = vpop.f32.mrb[0].mxu0
        %v2742 = vadd.f32 %v2456, %v2741
        %v2743 = vpop.f32.mrb[0].mxu0
        %v2744 = vpop.f32.mrb[0].mxu0
        %v2745 = vadd.f32 %v2456, %v2744
        %v2746 = vpop.f32.mrb[0].mxu0
        %2747 = vmatprep.mubr.bf16.mxu0 0
        %2748 = vmatmul.mubr.bf16.gmra.mrb[0].mxu0 %v2499
        %v2749 = vpop.f32.mrb[0].mxu0
        %v2750 = vadd.f32 %v2456, %v2749
        %v2751 = vpop.f32.mrb[0].mxu0
        %v2752 = vpop.f32.mrb[0].mxu0
        %v2753 = vadd.f32 %v2456, %v2752
        %v2754 = vpop.f32.mrb[0].mxu0
        %2755 = vmatprep.mubr.bf16.mxu0 0
        %2756 = vmatmul.mubr.bf16.gmra.mrb[0].mxu0 %v2502
        %v2757 = vpop.f32.mrb[0].mxu0
        %v2758 = vadd.f32 %v2456, %v2757
        %v2759 = vpop.f32.mrb[0].mxu0
        %v2760 = vpop.f32.mrb[0].mxu0
        %v2761 = vadd.f32 %v2456, %v2760
        %v2762 = vpop.f32.mrb[0].mxu0
        %2763 = vmatprep.mubr.bf16.mxu0 0
        %2764 = vmatmul.mubr.bf16.gmra.mrb[0].mxu0 %v2505
        %v2765 = vpop.f32.mrb[0].mxu0
        %v2766 = vadd.f32 %v2456, %v2765
        %v2767 = vpop.f32.mrb[0].mxu0
        %v2768 = vpop.f32.mrb[0].mxu0
        %v2769 = vadd.f32 %v2456, %v2768
        %v2770 = vpop.f32.mrb[0].mxu0
        %2771 = vmatprep.mubr.bf16.mxu0 0
        %2772 = vmatmul.mubr.bf16.gmra.mrb[0].mxu0 %v2508
        %v2773 = vpop.f32.mrb[0].mxu0
        %v2774 = vadd.f32 %v2456, %v2773
        %v2775 = vpop.f32.mrb[0].mxu0
        %v2776 = vpop.f32.mrb[0].mxu0
        %v2777 = vadd.f32 %v2456, %v2776
        %v2778 = vpop.f32.mrb[0].mxu0
        %2779 = vmatprep.mubr.bf16.mxu0 0
        %2780 = vmatmul.mubr.bf16.gmra.mrb[0].mxu0 %v2511
        %v2781 = vpop.f32.mrb[0].mxu0
        %v2782 = vadd.f32 %v2456, %v2781
        %v2783 = vpop.f32.mrb[0].mxu0
        %v2784 = vpop.f32.mrb[0].mxu0
        %v2785 = vadd.f32 %v2456, %v2784
        %v2786 = vpop.f32.mrb[0].mxu0
        %2787 = vmatprep.mubr.bf16.mxu0 0
        %2788 = vmatmul.mubr.bf16.gmra.mrb[0].mxu0 %v2514
        %v2789 = vpop.f32.mrb[0].mxu0
        %v2790 = vadd.f32 %v2456, %v2789
        %v2791 = vpop.f32.mrb[0].mxu0
        %v2792 = vpop.f32.mrb[0].mxu0
        %v2793 = vadd.f32 %v2456, %v2792
        %v2794 = vpop.f32.mrb[0].mxu0
        %2795 = vmatprep.mubr.bf16.mxu0 0
        %2796 = vmatmul.mubr.bf16.gmra.mrb[0].mxu0 %v2517
        %v2797 = vpop.f32.mrb[0].mxu0
        %v2798 = vadd.f32 %v2456, %v2797
        %v2799 = vpop.f32.mrb[0].mxu0
        %v2800 = vpop.f32.mrb[0].mxu0
        %v2801 = vadd.f32 %v2456, %v2800
        %v2802 = vpop.f32.mrb[0].mxu0
        %2803 = vmatprep.mubr.bf16.mxu0 0
        %2804 = vmatmul.mubr.bf16.gmra.mrb[0].mxu0 %v2520
        %v2805 = vpop.f32.mrb[0].mxu0
        %v2806 = vadd.f32 %v2456, %v2805
        %v2807 = vpop.f32.mrb[0].mxu0
        %v2808 = vpop.f32.mrb[0].mxu0
        %v2809 = vadd.f32 %v2456, %v2808
        %v2810 = vpop.f32.mrb[0].mxu0
        %2811 = vmatprep.mubr.bf16.mxu0 0
        %2812 = vmatmul.mubr.bf16.gmra.mrb[0].mxu0 %v2523
        %v2813 = vpop.f32.mrb[0].mxu0
        %v2814 = vadd.f32 %v2456, %v2813
        %v2815 = vpop.f32.mrb[0].mxu0
        %v2816 = vpop.f32.mrb[0].mxu0
        %v2817 = vadd.f32 %v2456, %v2816
        %v2818 = vpop.f32.mrb[0].mxu0
        %2819 = vmatprep.mubr.bf16.mxu0 0
        %2820 = vmatmul.mubr.bf16.gmra.mrb[0].mxu0 %v2526
        %v2821 = vpop.f32.mrb[0].mxu0
        %v2822 = vadd.f32 %v2456, %v2821
        %v2823 = vpop.f32.mrb[0].mxu0
        %v2824 = vpop.f32.mrb[0].mxu0
        %v2825 = vadd.f32 %v2456, %v2824
        %v2826 = vpop.f32.mrb[0].mxu0
        %2827 = vmatprep.mubr.bf16.mxu0 0
        %2828 = vmatmul.mubr.bf16.gmra.mrb[0].mxu0 %v2529
        %v2829 = vpop.f32.mrb[0].mxu0
        %v2830 = vadd.f32 %v2456, %v2829
        %v2831 = vpop.f32.mrb[0].mxu0
        %v2832 = vpop.f32.mrb[0].mxu0
        %v2833 = vadd.f32 %v2456, %v2832
        %v2834 = vpop.f32.mrb[0].mxu0
        %2835 = vmatprep.mubr.bf16.mxu0 0
        %2836 = vmatmul.mubr.bf16.gmra.mrb[0].mxu0 %v2532
        %v2837 = vpop.f32.mrb[0].mxu0
        %v2838 = vadd.f32 %v2456, %v2837
        %v2839 = vpop.f32.mrb[0].mxu0
        %v2840 = vpop.f32.mrb[0].mxu0
        %v2841 = vadd.f32 %v2456, %v2840
        %v2842 = vpop.f32.mrb[0].mxu0
        %2843 = vmatprep.mubr.bf16.mxu0 0
        %2844 = vmatmul.mubr.bf16.gmra.mrb[0].mxu0 %v2535
        %v2845 = vpop.f32.mrb[0].mxu0
        %v2846 = vadd.f32 %v2456, %v2845
        %v2847 = vpop.f32.mrb[0].mxu0
        %v2848 = vpop.f32.mrb[0].mxu0
        %v2849 = vadd.f32 %v2456, %v2848
        %v2850 = vpop.f32.mrb[0].mxu0
        %2851 = vmatprep.mubr.bf16.mxu0 0
        %2852 = vmatmul.mubr.bf16.gmra.mrb[0].mxu0 %v2538
        %v2853 = vpop.f32.mrb[0].mxu0
        %v2854 = vadd.f32 %v2456, %v2853
        %v2855 = vpop.f32.mrb[0].mxu0
        %v2856 = vpop.f32.mrb[0].mxu0
        %v2857 = vadd.f32 %v2456, %v2856
        %v2858 = vpop.f32.mrb[0].mxu0
        %2859 = vmatprep.mubr.bf16.mxu0 0
        %2860 = vmatmul.mubr.bf16.gmra.mrb[0].mxu0 %v2541
        %v2861 = vpop.f32.mrb[0].mxu0
        %v2862 = vadd.f32 %v2456, %v2861
        %v2863 = vpop.f32.mrb[0].mxu0
        %v2864 = vpop.f32.mrb[0].mxu0
        %v2865 = vadd.f32 %v2456, %v2864
        %v2866 = vpop.f32.mrb[0].mxu0
        %2867 = vmatprep.mubr.bf16.mxu0 0
        %2868 = vmatmul.mubr.bf16.gmra.mrb[0].mxu0 %v2544
        %v2869 = vpop.f32.mrb[0].mxu0
        %v2870 = vadd.f32 %v2456, %v2869
        %v2871 = vpop.f32.mrb[0].mxu0
        %v2872 = vpop.f32.mrb[0].mxu0
        %v2873 = vadd.f32 %v2456, %v2872
        %v2874 = vpop.f32.mrb[0].mxu0
        %2875 = vmatprep.mubr.bf16.mxu0 0
        %2876 = vmatmul.mubr.bf16.gmra.mrb[0].mxu0 %v2547
        %v2877 = vpop.f32.mrb[0].mxu0
        %v2878 = vadd.f32 %v2456, %v2877
        %v2879 = vpop.f32.mrb[0].mxu0
        %v2880 = vpop.f32.mrb[0].mxu0
        %v2881 = vadd.f32 %v2456, %v2880
        %v2882 = vpop.f32.mrb[0].mxu0
        %2883 = vmatprep.mubr.bf16.mxu0 0
        %2884 = vmatmul.mubr.bf16.gmra.mrb[0].mxu0 %v2550
        %v2885 = vpop.f32.mrb[0].mxu0
        %v2886 = vadd.f32 %v2456, %v2885
        %v2887 = vpop.f32.mrb[0].mxu0
        %v2888 = vpop.f32.mrb[0].mxu0
        %v2889 = vadd.f32 %v2456, %v2888
        %v2890 = vpop.f32.mrb[0].mxu0
        %2891 = vmatprep.mubr.bf16.mxu0 0
        %2892 = vmatmul.mubr.bf16.gmra.mrb[0].mxu0 %v2553
        %v2893 = vpop.f32.mrb[0].mxu0
        %v2894 = vadd.f32 %v2456, %v2893
        %v2895 = vpop.f32.mrb[0].mxu0
        %v2896 = vpop.f32.mrb[0].mxu0
        %v2897 = vadd.f32 %v2456, %v2896
        %v2898 = vpop.f32.mrb[0].mxu0
        %2899 = vmatprep.mubr.bf16.mxu0 0
        %2900 = vmatmul.mubr.bf16.gmra.mrb[0].mxu0 %v2556
        %v2901 = vpop.f32.mrb[0].mxu0
        %v2902 = vadd.f32 %v2456, %v2901
        %v2903 = vpop.f32.mrb[0].mxu0
        %v2904 = vpop.f32.mrb[0].mxu0
        %v2905 = vadd.f32 %v2456, %v2904
        %v2906 = vpop.f32.mrb[0].mxu0
        %2907 = vmatprep.mubr.bf16.mxu0 0
        %2908 = vmatmul.mubr.bf16.gmra.mrb[0].mxu0 %v2559
        %v2909 = vpop.f32.mrb[0].mxu0
        %v2910 = vadd.f32 %v2456, %v2909
        %v2911 = vpop.f32.mrb[0].mxu0
        %v2912 = vpop.f32.mrb[0].mxu0
        %v2913 = vadd.f32 %v2456, %v2912
        %v2914 = vpop.f32.mrb[0].mxu0
        %2915 = vmatprep.mubr.bf16.mxu0 0
        %2916 = vmatmul.mubr.bf16.gmra.mrb[0].mxu0 %v2562
        %v2917 = vpop.f32.mrb[0].mxu0
        %v2918 = vadd.f32 %v2456, %v2917
        %v2919 = vpop.f32.mrb[0].mxu0
        %v2920 = vpop.f32.mrb[0].mxu0
        %v2921 = vadd.f32 %v2456, %v2920
        %v2922 = vpop.f32.mrb[0].mxu0
        %2923 = vmatprep.mubr.bf16.mxu0 0
        %2924 = vmatmul.mubr.bf16.gmra.mrb[0].mxu0 %v2565
        %v2925 = vpop.f32.mrb[0].mxu0
        %v2926 = vadd.f32 %v2456, %v2925
        %v2927 = vpop.f32.mrb[0].mxu0
        %v2928 = vpop.f32.mrb[0].mxu0
        %v2929 = vadd.f32 %v2456, %v2928
        %v2930 = vpop.f32.mrb[0].mxu0
        %2931 = vmatprep.mubr.bf16.mxu0 0
        %2932 = vmatmul.mubr.bf16.gmra.mrb[0].mxu0 %v2568
        %v2933 = vpop.f32.mrb[0].mxu0
        %v2934 = vadd.f32 %v2456, %v2933
        %v2935 = vpop.f32.mrb[0].mxu0
        %v2936 = vpop.f32.mrb[0].mxu0
        %v2937 = vadd.f32 %v2456, %v2936
        %v2938 = vpop.f32.mrb[0].mxu0
        %2939 = vmatprep.mubr.bf16.mxu0 0
        %2940 = vmatmul.mubr.bf16.gmra.mrb[0].mxu0 %v2571
        %v2941 = vpop.f32.mrb[0].mxu0
        %v2942 = vadd.f32 %v2456, %v2941
        %v2943 = vpop.f32.mrb[0].mxu0
        %v2944 = vpop.f32.mrb[0].mxu0
        %v2945 = vadd.f32 %v2456, %v2944
        %v2946 = vpop.f32.mrb[0].mxu0
        %2947 = vmatprep.mubr.bf16.mxu0 0
        %2948 = vmatmul.mubr.bf16.gmra.mrb[0].mxu0 %v2574
        %v2949 = vpop.f32.mrb[0].mxu0
        %v2950 = vadd.f32 %v2456, %v2949
        %v2951 = vpop.f32.mrb[0].mxu0
        %v2952 = vpop.f32.mrb[0].mxu0
        %v2953 = vadd.f32 %v2456, %v2952
        %v2954 = vpop.f32.mrb[0].mxu0
        %2955 = vmatprep.mubr.bf16.mxu0 0
        %2956 = vmatmul.mubr.bf16.gmra.mrb[0].mxu0 %v2577
        %v2957 = vpop.f32.mrb[0].mxu0
        %v2958 = vadd.f32 %v2456, %v2957
        %v2959 = vpop.f32.mrb[0].mxu0
        %v2960 = vpop.f32.mrb[0].mxu0
        %v2961 = vadd.f32 %v2456, %v2960
        %v2962 = vpop.f32.mrb[0].mxu0
        %2963 = vmatprep.mubr.bf16.mxu0 0
        %2964 = vmatmul.mubr.bf16.gmra.mrb[0].mxu0 %v2580
        %v2965 = vpop.f32.mrb[0].mxu0
        %v2966 = vadd.f32 %v2456, %v2965
        %v2967 = vpop.f32.mrb[0].mxu0
        %v2968 = vpop.f32.mrb[0].mxu0
        %v2969 = vadd.f32 %v2456, %v2968
        %v2970 = vpop.f32.mrb[0].mxu0
        %2971 = vmatprep.mubr.bf16.mxu0 0
        %2972 = vmatmul.mubr.bf16.gmra.mrb[0].mxu0 %v2583
        %v2973 = vpop.f32.mrb[0].mxu0
        %v2974 = vadd.f32 %v2456, %v2973
        %v2975 = vpop.f32.mrb[0].mxu0
        %v2976 = vpop.f32.mrb[0].mxu0
        %v2977 = vadd.f32 %v2456, %v2976
        %v2978 = vpop.f32.mrb[0].mxu0
        %2979 = vmatprep.mubr.bf16.mxu0 0
        %2980 = vmatmul.mubr.bf16.gmra.mrb[0].mxu0 %v2586
        %v2981 = vpop.f32.mrb[0].mxu0
        %v2982 = vadd.f32 %v2456, %v2981
        %v2983 = vpop.f32.mrb[0].mxu0
        %v2984 = vpop.f32.mrb[0].mxu0
        %v2985 = vadd.f32 %v2456, %v2984
        %v2986 = vpop.f32.mrb[0].mxu0
        %2987 = vmatprep.mubr.bf16.mxu0 0
        %2988 = vmatmul.mubr.bf16.gmra.mrb[0].mxu0 %v2589
        %v2989 = vpop.f32.mrb[0].mxu0
        %v2990 = vadd.f32 %v2456, %v2989
        %v2991 = vpop.f32.mrb[0].mxu0
        %v2992 = vpop.f32.mrb[0].mxu0
        %v2993 = vadd.f32 %v2456, %v2992
        %v2994 = vpop.f32.mrb[0].mxu0
        %2995 = vmatprep.mubr.bf16.mxu0 0
        %2996 = vmatmul.mubr.bf16.gmra.mrb[0].mxu0 %v2592
        %v2997 = vpop.f32.mrb[0].mxu0
        %v2998 = vadd.f32 %v2456, %v2997
        %v2999 = vpop.f32.mrb[0].mxu0
        %v3000 = vpop.f32.mrb[0].mxu0
        %v3001 = vadd.f32 %v2456, %v3000
        %v3002 = vpop.f32.mrb[0].mxu0
        %3003 = vmatprep.mubr.bf16.mxu0 0
        %3004 = vmatmul.mubr.bf16.gmra.mrb[0].mxu0 %v2595
        %v3005 = vpop.f32.mrb[0].mxu0
        %v3006 = vadd.f32 %v2456, %v3005
        %v3007 = vpop.f32.mrb[0].mxu0
        %v3008 = vpop.f32.mrb[0].mxu0
        %v3009 = vadd.f32 %v2456, %v3008
        %v3010 = vpop.f32.mrb[0].mxu0
        %3011 = vmatprep.mubr.bf16.mxu0 0
        %3012 = vmatmul.mubr.bf16.gmra.mrb[0].mxu0 %v2598
        %v3013 = vpop.f32.mrb[0].mxu0
        %v3014 = vadd.f32 %v2456, %v3013
        %v3015 = vpop.f32.mrb[0].mxu0
        %v3016 = vpop.f32.mrb[0].mxu0
        %v3017 = vadd.f32 %v2456, %v3016
        %v3018 = vpop.f32.mrb[0].mxu0
        %3019 = vmatprep.mubr.bf16.mxu0 0
        %3020 = vmatmul.mubr.bf16.gmra.mrb[0].mxu0 %v2601
        %v3021 = vpop.f32.mrb[0].mxu0
        %v3022 = vadd.f32 %v2456, %v3021
        %v3023 = vpop.f32.mrb[0].mxu0
        %v3024 = vpop.f32.mrb[0].mxu0
        %v3025 = vadd.f32 %v2456, %v3024
        %v3026 = vpop.f32.mrb[0].mxu0
        %3027 = vmatprep.mubr.bf16.mxu0 0
        %3028 = vmatmul.mubr.bf16.gmra.mrb[0].mxu0 %v2604
        %v3029 = vpop.f32.mrb[0].mxu0
        %v3030 = vadd.f32 %v2456, %v3029
        %v3031 = vpop.f32.mrb[0].mxu0
        %v3032 = vpop.f32.mrb[0].mxu0
        %v3033 = vadd.f32 %v2456, %v3032
        %v3034 = vpop.f32.mrb[0].mxu0
        %3035 = vmatprep.mubr.bf16.mxu0 0
        %3036 = vmatmul.mubr.bf16.gmra.mrb[0].mxu0 %v2607
        %v3037 = vpop.f32.mrb[0].mxu0
        %v3038 = vadd.f32 %v2456, %v3037
        %v3039 = vpop.f32.mrb[0].mxu0
        %v3040 = vpop.f32.mrb[0].mxu0
        %v3041 = vadd.f32 %v2456, %v3040
        %v3042 = vpop.f32.mrb[0].mxu0
        %3043 = vmatprep.mubr.bf16.mxu0 0
        %3044 = vmatmul.mubr.bf16.gmra.mrb[0].mxu0 %v2610
        %v3045 = vpop.f32.mrb[0].mxu0
        %v3046 = vadd.f32 %v2456, %v3045
        %v3047 = vpop.f32.mrb[0].mxu0
        %v3048 = vpop.f32.mrb[0].mxu0
        %v3049 = vadd.f32 %v2456, %v3048
        %v3050 = vpop.f32.mrb[0].mxu0
        %3051 = vmatprep.mubr.bf16.mxu0 0
        %3052 = vmatmul.mubr.bf16.gmra.mrb[0].mxu0 %v2613
        %v3053 = vpop.f32.mrb[0].mxu0
        %v3054 = vadd.f32 %v2456, %v3053
        %v3055 = vpop.f32.mrb[0].mxu0
        %v3056 = vpop.f32.mrb[0].mxu0
        %v3057 = vadd.f32 %v2456, %v3056
        %v3058 = vpop.f32.mrb[0].mxu0
        %3059 = vmatprep.mubr.bf16.mxu0 0
        %3060 = vmatmul.mubr.bf16.gmra.mrb[0].mxu0 %v2616
        %v3061 = vpop.f32.mrb[0].mxu0
        %v3062 = vadd.f32 %v2456, %v3061
        %v3063 = vpop.f32.mrb[0].mxu0
        %v3064 = vpop.f32.mrb[0].mxu0
        %v3065 = vadd.f32 %v2456, %v3064
        %v3066 = vpop.f32.mrb[0].mxu0
        %3067 = vmatprep.mubr.bf16.mxu0 0
        %3068 = vmatmul.mubr.bf16.gmra.mrb[0].mxu0 %v2619
        %v3069 = vpop.f32.mrb[0].mxu0
        %v3070 = vadd.f32 %v2456, %v3069
        %v3071 = vpop.f32.mrb[0].mxu0
        %v3072 = vpop.f32.mrb[0].mxu0
        %v3073 = vadd.f32 %v2456, %v3072
        %v3074 = vpop.f32.mrb[0].mxu0
        %3075 = vmatprep.mubr.bf16.mxu0 0
        %3076 = vmatmul.mubr.bf16.gmra.mrb[0].mxu0 %v2622
        %v3077 = vpop.f32.mrb[0].mxu0
        %v3078 = vadd.f32 %v2456, %v3077
        %v3079 = vpop.f32.mrb[0].mxu0
        %v3080 = vpop.f32.mrb[0].mxu0
        %v3081 = vadd.f32 %v2456, %v3080
        %v3082 = vpop.f32.mrb[0].mxu0
        %3083 = vmatprep.mubr.bf16.mxu0 0
        %3084 = vmatmul.mubr.bf16.gmra.mrb[0].mxu0 %v2625
        %v3085 = vpop.f32.mrb[0].mxu0
        %v3086 = vadd.f32 %v2456, %v3085
        %v3087 = vpop.f32.mrb[0].mxu0
        %v3088 = vpop.f32.mrb[0].mxu0
        %v3089 = vadd.f32 %v2456, %v3088
        %v3090 = vpop.f32.mrb[0].mxu0
        %3091 = vmatprep.mubr.bf16.mxu0 0
        %3092 = vmatmul.mubr.bf16.gmra.mrb[0].mxu0 %v2628
        %v3093 = vpop.f32.mrb[0].mxu0
        %v3094 = vadd.f32 %v2456, %v3093
        %v3095 = vpop.f32.mrb[0].mxu0
        %v3096 = vpop.f32.mrb[0].mxu0
        %v3097 = vadd.f32 %v2456, %v3096
        %v3098 = vpop.f32.mrb[0].mxu0
        %3099 = vmatprep.mubr.bf16.mxu0 0
        %3100 = vmatmul.mubr.bf16.gmra.mrb[0].mxu0 %v2631
        %v3101 = vpop.f32.mrb[0].mxu0
        %v3102 = vadd.f32 %v2456, %v3101
        %v3103 = vpop.f32.mrb[0].mxu0
        %v3104 = vpop.f32.mrb[0].mxu0
        %v3105 = vadd.f32 %v2456, %v3104
        %v3106 = vpop.f32.mrb[0].mxu0
        %3107 = vmatprep.mubr.bf16.mxu0 0
        %3108 = vmatmul.mubr.bf16.gmra.mrb[0].mxu0 %v2634
        %v3109 = vpop.f32.mrb[0].mxu0
        %v3110 = vadd.f32 %v2456, %v3109
        %v3111 = vpop.f32.mrb[0].mxu0
        %v3112 = vpop.f32.mrb[0].mxu0
        %v3113 = vadd.f32 %v2456, %v3112
        %v3114 = vpop.f32.mrb[0].mxu0
        %3115 = vmatprep.mubr.bf16.mxu0 0
        %3116 = vmatmul.mubr.bf16.gmra.mrb[0].mxu0 %v2637
        %v3117 = vpop.f32.mrb[0].mxu0
        %v3118 = vadd.f32 %v2456, %v3117
        %v3119 = vpop.f32.mrb[0].mxu0
        %v3120 = vpop.f32.mrb[0].mxu0
        %v3121 = vadd.f32 %v2456, %v3120
        %v3122 = vpop.f32.mrb[0].mxu0
        %3123 = vmatprep.mubr.bf16.mxu0 0
        %3124 = vmatmul.mubr.bf16.gmra.mrb[0].mxu0 %v2640
        %v3125 = vpop.f32.mrb[0].mxu0
        %v3126 = vadd.f32 %v2456, %v3125
        %v3127 = vpop.f32.mrb[0].mxu0
        %v3128 = vpop.f32.mrb[0].mxu0
        %v3129 = vadd.f32 %v2456, %v3128
        %v3130 = vpop.f32.mrb[0].mxu0
        %3131 = vmatprep.mubr.bf16.mxu0 0
        %3132 = vmatmul.mubr.bf16.gmra.mrb[0].mxu0 %v2643
        %v3133 = vpop.f32.mrb[0].mxu0
        %v3134 = vadd.f32 %v2456, %v3133
        %v3135 = vpop.f32.mrb[0].mxu0
        %v3136 = vpop.f32.mrb[0].mxu0
        %v3137 = vadd.f32 %v2456, %v3136
        %v3138 = vpop.f32.mrb[0].mxu0
        %3139 = vmatprep.mubr.bf16.mxu0 0
        %3140 = vmatmul.mubr.bf16.gmra.mrb[0].mxu0 %v2646
        %v3141 = vpop.f32.mrb[0].mxu0
        %v3142 = vadd.f32 %v2456, %v3141
        %v3143 = vpop.f32.mrb[0].mxu0
        %v3144 = vpop.f32.mrb[0].mxu0
        %v3145 = vadd.f32 %v2456, %v3144
        %v3146 = vpop.f32.mrb[0].mxu0
        %3147 = vmatprep.mubr.bf16.mxu0 0
        %3148 = vmatmul.mubr.bf16.gmra.mrb[0].mxu0 %v2649
        %v3149 = vpop.f32.mrb[0].mxu0
        %v3150 = vadd.f32 %v2456, %v3149
        %v3151 = vpop.f32.mrb[0].mxu0
        %v3152 = vpop.f32.mrb[0].mxu0
        %v3153 = vadd.f32 %v2456, %v3152
        %v3154 = vpop.f32.mrb[0].mxu0
        %3155 = vmatprep.mubr.bf16.mxu0 0
        %3156 = vmatmul.mubr.bf16.gmra.mrb[0].mxu0 %v2652
        %v3157 = vpop.f32.mrb[0].mxu0
        %v3158 = vadd.f32 %v2456, %v3157
        %v3159 = vpop.f32.mrb[0].mxu0
        %v3160 = vpop.f32.mrb[0].mxu0
        %v3161 = vadd.f32 %v2456, %v3160
        %v3162 = vpop.f32.mrb[0].mxu0
        %3163 = vmatprep.mubr.bf16.mxu0 0
        %3164 = vmatmul.mubr.bf16.gmra.mrb[0].mxu0 %v2655
        %v3165 = vpop.f32.mrb[0].mxu0
        %v3166 = vadd.f32 %v2456, %v3165
        %v3167 = vpop.f32.mrb[0].mxu0
        %v3168 = vpop.f32.mrb[0].mxu0
        %v3169 = vadd.f32 %v2456, %v3168
        %v3170 = vpop.f32.mrb[0].mxu0
        %3171 = vmatprep.mubr.bf16.mxu0 0
        %3172 = vmatmul.mubr.bf16.gmra.mrb[0].mxu0 %v2658
        %v3173 = vpop.f32.mrb[0].mxu0
        %v3174 = vadd.f32 %v2456, %v3173
        %v3175 = vpop.f32.mrb[0].mxu0
        %v3176 = vpop.f32.mrb[0].mxu0
        %v3177 = vadd.f32 %v2456, %v3176
        %v3178 = vpop.f32.mrb[0].mxu0
        %3179 = vmatprep.mubr.bf16.mxu0 0
        %3180 = vmatmul.mubr.bf16.gmra.mrb[0].mxu0 %v2661
        %v3181 = vpop.f32.mrb[0].mxu0
        %v3182 = vadd.f32 %v2456, %v3181
        %v3183 = vpop.f32.mrb[0].mxu0
        %v3184 = vpop.f32.mrb[0].mxu0
        %v3185 = vadd.f32 %v2456, %v3184
        %v3186 = vpop.f32.mrb[0].mxu0
        %3187 = vmatprep.mubr.bf16.mxu0 0
        %3188 = vmatmul.mubr.bf16.gmra.mrb[0].mxu0 %v2664
        %v3189 = vpop.f32.mrb[0].mxu0
        %v3190 = vadd.f32 %v2456, %v3189
        %v3191 = vpop.f32.mrb[0].mxu0
        %v3192 = vpop.f32.mrb[0].mxu0
        %v3193 = vadd.f32 %v2456, %v3192
        %v3194 = vpop.f32.mrb[0].mxu0
        %3195 = vmatprep.mubr.bf16.mxu0 0
        %3196 = vmatmul.mubr.bf16.gmra.mrb[0].mxu0 %v2667
        %v3197 = vpop.f32.mrb[0].mxu0
        %v3198 = vadd.f32 %v2456, %v3197
        %v3199 = vpop.f32.mrb[0].mxu0
        %v3200 = vpop.f32.mrb[0].mxu0
        %v3201 = vadd.f32 %v2456, %v3200
        %v3202 = vpop.f32.mrb[0].mxu0
        %3203 = vmatprep.mubr.bf16.mxu0 0
        %3204 = vmatmul.mubr.bf16.gmra.mrb[0].mxu0 %v2670
        %v3205 = vpop.f32.mrb[0].mxu0
        %v3206 = vadd.f32 %v2456, %v3205
        %v3207 = vpop.f32.mrb[0].mxu0
        %v3208 = vpop.f32.mrb[0].mxu0
        %v3209 = vadd.f32 %v2456, %v3208
        %v3210 = vpop.f32.mrb[0].mxu0
        %3211 = vmatprep.mubr.bf16.mxu0 0
        %3212 = vmatmul.mubr.bf16.gmra.mrb[0].mxu0 %v2673
        %v3213 = vpop.f32.mrb[0].mxu0
        %v3214 = vadd.f32 %v2456, %v3213
        %v3215 = vpop.f32.mrb[0].mxu0
        %v3216 = vpop.f32.mrb[0].mxu0
        %v3217 = vadd.f32 %v2456, %v3216
        %v3218 = vpop.f32.mrb[0].mxu0
        %3219 = vdwg.mxu0
        %v3220 = vtanh.pop %v2710
        %v3221 = vtanh.pop %v2713
        %v3222 = vtanh.pop %v2718
        %v3223 = vtanh.pop %v2721
        %v3224 = vtanh.pop %v2726
        %v3225 = vtanh.pop %v2729
        %v3226 = vtanh.pop %v2734
        %v3227 = vtanh.pop %v2737
        %v3228 = vtanh.pop %v2742
        %v3229 = vtanh.pop %v2745
        %v3230 = vtanh.pop %v2750
        %v3231 = vtanh.pop %v2753
        %v3232 = vtanh.pop %v2758
        %v3233 = vtanh.pop %v2761
        %v3234 = vtanh.pop %v2766
        %v3235 = vtanh.pop %v2769
        %v3236 = vtanh.pop %v2774
        %v3237 = vtanh.pop %v2777
        %v3238 = vtanh.pop %v2782
        %v3239 = vtanh.pop %v2785
        %v3240 = vtanh.pop %v2790
        %v3241 = vtanh.pop %v2793
        %v3242 = vtanh.pop %v2798
        %v3243 = vtanh.pop %v2801
        %v3244 = vtanh.pop %v2806
        %v3245 = vtanh.pop %v2809
        %v3246 = vtanh.pop %v2814
        %v3247 = vtanh.pop %v2817
        %v3248 = vtanh.pop %v2822
        %v3249 = vtanh.pop %v2825
        %v3250 = vtanh.pop %v2830
        %v3251 = vtanh.pop %v2833
        %v3252 = vtanh.pop %v2838
        %v3253 = vtanh.pop %v2841
        %v3254 = vtanh.pop %v2846
        %v3255 = vtanh.pop %v2849
        %v3256 = vtanh.pop %v2854
        %v3257 = vtanh.pop %v2857
        %v3258 = vtanh.pop %v2862
        %v3259 = vtanh.pop %v2865
        %v3260 = vtanh.pop %v2870
        %v3261 = vtanh.pop %v2873
        %v3262 = vtanh.pop %v2878
        %v3263 = vtanh.pop %v2881
        %v3264 = vtanh.pop %v2886
        %v3265 = vtanh.pop %v2889
        %v3266 = vtanh.pop %v2894
        %v3267 = vtanh.pop %v2897
        %v3268 = vtanh.pop %v2902
        %v3269 = vtanh.pop %v2905
        %v3270 = vtanh.pop %v2910
        %v3271 = vtanh.pop %v2913
        %v3272 = vtanh.pop %v2918
        %v3273 = vtanh.pop %v2921
        %v3274 = vtanh.pop %v2926
        %v3275 = vtanh.pop %v2929
        %v3276 = vtanh.pop %v2934
        %v3277 = vtanh.pop %v2937
        %v3278 = vtanh.pop %v2942
        %v3279 = vtanh.pop %v2945
        %v3280 = vtanh.pop %v2950
        %v3281 = vtanh.pop %v2953
        %v3282 = vtanh.pop %v2958
        %v3283 = vtanh.pop %v2961
        %v3284 = vtanh.pop %v2966
        %v3285 = vtanh.pop %v2969
        %v3286 = vtanh.pop %v2974
        %v3287 = vtanh.pop %v2977
        %v3288 = vtanh.pop %v2982
        %v3289 = vtanh.pop %v2985
        %v3290 = vtanh.pop %v2990
        %v3291 = vtanh.pop %v2993
        %v3292 = vtanh.pop %v2998
        %v3293 = vtanh.pop %v3001
        %v3294 = vtanh.pop %v3006
        %v3295 = vtanh.pop %v3009
        %v3296 = vtanh.pop %v3014
        %v3297 = vtanh.pop %v3017
        %v3298 = vtanh.pop %v3022
        %v3299 = vtanh.pop %v3025
        %v3300 = vtanh.pop %v3030
        %v3301 = vtanh.pop %v3033
        %v3302 = vtanh.pop %v3038
        %v3303 = vtanh.pop %v3041
        %v3304 = vtanh.pop %v3046
        %v3305 = vtanh.pop %v3049
        %v3306 = vtanh.pop %v3054
        %v3307 = vtanh.pop %v3057
        %v3308 = vtanh.pop %v3062
        %v3309 = vtanh.pop %v3065
        %v3310 = vtanh.pop %v3070
        %v3311 = vtanh.pop %v3073
        %v3312 = vtanh.pop %v3078
        %v3313 = vtanh.pop %v3081
        %v3314 = vtanh.pop %v3086
        %v3315 = vtanh.pop %v3089
        %v3316 = vtanh.pop %v3094
        %v3317 = vtanh.pop %v3097
        %v3318 = vtanh.pop %v3102
        %v3319 = vtanh.pop %v3105
        %v3320 = vtanh.pop %v3110
        %v3321 = vtanh.pop %v3113
        %v3322 = vtanh.pop %v3118
        %v3323 = vtanh.pop %v3121
        %v3324 = vtanh.pop %v3126
        %v3325 = vtanh.pop %v3129
        %v3326 = vtanh.pop %v3134
        %v3327 = vtanh.pop %v3137
        %v3328 = vtanh.pop %v3142
        %v3329 = vtanh.pop %v3145
        %v3330 = vtanh.pop %v3150
        %v3331 = vtanh.pop %v3153
        %v3332 = vtanh.pop %v3158
        %v3333 = vtanh.pop %v3161
        %v3334 = vtanh.pop %v3166
        %v3335 = vtanh.pop %v3169
        %v3336 = vtanh.pop %v3174
        %v3337 = vtanh.pop %v3177
        %v3338 = vtanh.pop %v3182
        %v3339 = vtanh.pop %v3185
        %v3340 = vtanh.pop %v3190
        %v3341 = vtanh.pop %v3193
        %v3342 = vtanh.pop %v3198
        %v3343 = vtanh.pop %v3201
        %v3344 = vtanh.pop %v3206
        %v3345 = vtanh.pop %v3209
        %v3346 = vtanh.pop %v3214
        %v3347 = vtanh.pop %v3217
        %v3348 = vpack.c.bf16 %v3221, %v3220
        %v3349 = vpack.c.bf16 %v3223, %v3222
        %v3350 = vpack.c.bf16 %v3225, %v3224
        %v3351 = vpack.c.bf16 %v3227, %v3226
        %v3352 = vpack.c.bf16 %v3229, %v3228
        %v3353 = vpack.c.bf16 %v3231, %v3230
        %v3354 = vpack.c.bf16 %v3233, %v3232
        %v3355 = vpack.c.bf16 %v3235, %v3234
        %v3356 = vpack.c.bf16 %v3237, %v3236
        %v3357 = vpack.c.bf16 %v3239, %v3238
        %v3358 = vpack.c.bf16 %v3241, %v3240
        %v3359 = vpack.c.bf16 %v3243, %v3242
        %v3360 = vpack.c.bf16 %v3245, %v3244
        %v3361 = vpack.c.bf16 %v3247, %v3246
        %v3362 = vpack.c.bf16 %v3249, %v3248
        %v3363 = vpack.c.bf16 %v3251, %v3250
        %v3364 = vpack.c.bf16 %v3253, %v3252
        %v3365 = vpack.c.bf16 %v3255, %v3254
        %v3366 = vpack.c.bf16 %v3257, %v3256
        %v3367 = vpack.c.bf16 %v3259, %v3258
        %v3368 = vpack.c.bf16 %v3261, %v3260
        %v3369 = vpack.c.bf16 %v3263, %v3262
        %v3370 = vpack.c.bf16 %v3265, %v3264
        %v3371 = vpack.c.bf16 %v3267, %v3266
        %v3372 = vpack.c.bf16 %v3269, %v3268
        %v3373 = vpack.c.bf16 %v3271, %v3270
        %v3374 = vpack.c.bf16 %v3273, %v3272
        %v3375 = vpack.c.bf16 %v3275, %v3274
        %v3376 = vpack.c.bf16 %v3277, %v3276
        %v3377 = vpack.c.bf16 %v3279, %v3278
        %v3378 = vpack.c.bf16 %v3281, %v3280
        %v3379 = vpack.c.bf16 %v3283, %v3282
        %v3380 = vpack.c.bf16 %v3285, %v3284
        %v3381 = vpack.c.bf16 %v3287, %v3286
        %v3382 = vpack.c.bf16 %v3289, %v3288
        %v3383 = vpack.c.bf16 %v3291, %v3290
        %v3384 = vpack.c.bf16 %v3293, %v3292
        %v3385 = vpack.c.bf16 %v3295, %v3294
        %v3386 = vpack.c.bf16 %v3297, %v3296
        %v3387 = vpack.c.bf16 %v3299, %v3298
        %v3388 = vpack.c.bf16 %v3301, %v3300
        %v3389 = vpack.c.bf16 %v3303, %v3302
        %v3390 = vpack.c.bf16 %v3305, %v3304
        %v3391 = vpack.c.bf16 %v3307, %v3306
        %v3392 = vpack.c.bf16 %v3309, %v3308
        %v3393 = vpack.c.bf16 %v3311, %v3310
        %v3394 = vpack.c.bf16 %v3313, %v3312
        %v3395 = vpack.c.bf16 %v3315, %v3314
        %v3396 = vpack.c.bf16 %v3317, %v3316
        %v3397 = vpack.c.bf16 %v3319, %v3318
        %v3398 = vpack.c.bf16 %v3321, %v3320
        %v3399 = vpack.c.bf16 %v3323, %v3322
        %v3400 = vpack.c.bf16 %v3325, %v3324
        %v3401 = vpack.c.bf16 %v3327, %v3326
        %v3402 = vpack.c.bf16 %v3329, %v3328
        %v3403 = vpack.c.bf16 %v3331, %v3330
        %v3404 = vpack.c.bf16 %v3333, %v3332
        %v3405 = vpack.c.bf16 %v3335, %v3334
        %v3406 = vpack.c.bf16 %v3337, %v3336
        %v3407 = vpack.c.bf16 %v3339, %v3338
        %v3408 = vpack.c.bf16 %v3341, %v3340
        %v3409 = vpack.c.bf16 %v3343, %v3342
        %v3410 = vpack.c.bf16 %v3345, %v3344
        %v3411 = vpack.c.bf16 %v3347, %v3346
        %v3412 = vld [vmem:[%s5] sm:$0xff]
        %v3413 = vld [vmem:[%s5 + $0x8] sm:$0xff]
        %v3414 = vld [vmem:[%s5 + $0x10] sm:$0xff]
        %v3415 = vld [vmem:[%s5 + $0x18] sm:$0xff]
        %v3416 = vld [vmem:[%s5 + $0x20] sm:$0xff]
        %v3417 = vld [vmem:[%s5 + $0x28] sm:$0xff]
        %v3418 = vld [vmem:[%s5 + $0x30] sm:$0xff]
        %v3419 = vld [vmem:[%s5 + $0x38] sm:$0xff]
        %v3420 = vld [vmem:[%s5 + $0x40] sm:$0xff]
        %v3421 = vld [vmem:[%s5 + $0x48] sm:$0xff]
        %v3422 = vld [vmem:[%s5 + $0x50] sm:$0xff]
        %v3423 = vld [vmem:[%s5 + $0x58] sm:$0xff]
        %v3424 = vld [vmem:[%s5 + $0x60] sm:$0xff]
        %v3425 = vld [vmem:[%s5 + $0x68] sm:$0xff]
        %v3426 = vld [vmem:[%s5 + $0x70] sm:$0xff]
        %v3427 = vld [vmem:[%s5 + $0x78] sm:$0xff]
        %v3428 = vld [vmem:[%s5 + $0x80] sm:$0xff]
        %v3429 = vld [vmem:[%s5 + $0x88] sm:$0xff]
        %v3430 = vld [vmem:[%s5 + $0x90] sm:$0xff]
        %v3431 = vld [vmem:[%s5 + $0x98] sm:$0xff]
        %v3432 = vld [vmem:[%s5 + $0xa0] sm:$0xff]
        %v3433 = vld [vmem:[%s5 + $0xa8] sm:$0xff]
        %v3434 = vld [vmem:[%s5 + $0xb0] sm:$0xff]
        %v3435 = vld [vmem:[%s5 + $0xb8] sm:$0xff]
        %v3436 = vld [vmem:[%s5 + $0xc0] sm:$0xff]
        %v3437 = vld [vmem:[%s5 + $0xc8] sm:$0xff]
        %v3438 = vld [vmem:[%s5 + $0xd0] sm:$0xff]
        %v3439 = vld [vmem:[%s5 + $0xd8] sm:$0xff]
        %v3440 = vld [vmem:[%s5 + $0xe0] sm:$0xff]
        %v3441 = vld [vmem:[%s5 + $0xe8] sm:$0xff]
        %v3442 = vld [vmem:[%s5 + $0xf0] sm:$0xff]
        %v3443 = vld [vmem:[%s5 + $0xf8] sm:$0xff]
        %v3444 = vld [vmem:[%s5 + $0x100] sm:$0xff]
        %v3445 = vld [vmem:[%s5 + $0x108] sm:$0xff]
        %v3446 = vld [vmem:[%s5 + $0x110] sm:$0xff]
        %v3447 = vld [vmem:[%s5 + $0x118] sm:$0xff]
        %v3448 = vld [vmem:[%s5 + $0x120] sm:$0xff]
        %v3449 = vld [vmem:[%s5 + $0x128] sm:$0xff]
        %v3450 = vld [vmem:[%s5 + $0x130] sm:$0xff]
        %v3451 = vld [vmem:[%s5 + $0x138] sm:$0xff]
        %v3452 = vld [vmem:[%s5 + $0x140] sm:$0xff]
        %v3453 = vld [vmem:[%s5 + $0x148] sm:$0xff]
        %v3454 = vld [vmem:[%s5 + $0x150] sm:$0xff]
        %v3455 = vld [vmem:[%s5 + $0x158] sm:$0xff]
        %v3456 = vld [vmem:[%s5 + $0x160] sm:$0xff]
        %v3457 = vld [vmem:[%s5 + $0x168] sm:$0xff]
        %v3458 = vld [vmem:[%s5 + $0x170] sm:$0xff]
        %v3459 = vld [vmem:[%s5 + $0x178] sm:$0xff]
        %v3460 = vld [vmem:[%s5 + $0x180] sm:$0xff]
        %v3461 = vld [vmem:[%s5 + $0x188] sm:$0xff]
        %v3462 = vld [vmem:[%s5 + $0x190] sm:$0xff]
        %v3463 = vld [vmem:[%s5 + $0x198] sm:$0xff]
        %v3464 = vld [vmem:[%s5 + $0x1a0] sm:$0xff]
        %v3465 = vld [vmem:[%s5 + $0x1a8] sm:$0xff]
        %v3466 = vld [vmem:[%s5 + $0x1b0] sm:$0xff]
        %v3467 = vld [vmem:[%s5 + $0x1b8] sm:$0xff]
        %v3468 = vld [vmem:[%s5 + $0x1c0] sm:$0xff]
        %v3469 = vld [vmem:[%s5 + $0x1c8] sm:$0xff]
        %v3470 = vld [vmem:[%s5 + $0x1d0] sm:$0xff]
        %v3471 = vld [vmem:[%s5 + $0x1d8] sm:$0xff]
        %v3472 = vld [vmem:[%s5 + $0x1e0] sm:$0xff]
        %v3473 = vld [vmem:[%s5 + $0x1e8] sm:$0xff]
        %v3474 = vld [vmem:[%s5 + $0x1f0] sm:$0xff]
        %v3475 = vld [vmem:[%s5 + $0x1f8] sm:$0xff]
        %v3476 = vld [vmem:[%s6] sm:$0xff]
        %v3478 = vlaneseq
        %v3479 = vshrl.u32 %v3478, 7
        %v3480 = vsub.s32 0, %v3479
        %v3481 = vrot.slane %v3476, %v3480
        %v3482 = vlaneseq
        %v3483 = vshrl.u32 %v3482, 7
        %v3484 = vsub.s32 1, %v3483
        %v3485 = vrot.slane %v3476, %v3484
        %v3486 = vlaneseq
        %v3487 = vshrl.u32 %v3486, 7
        %v3488 = vsub.s32 2, %v3487
        %v3489 = vrot.slane %v3476, %v3488
        %v3490 = vlaneseq
        %v3491 = vshrl.u32 %v3490, 7
        %v3492 = vsub.s32 3, %v3491
        %v3493 = vrot.slane %v3476, %v3492
        %v3494 = vlaneseq
        %v3495 = vshrl.u32 %v3494, 7
        %v3496 = vsub.s32 4, %v3495
        %v3497 = vrot.slane %v3476, %v3496
        %v3498 = vlaneseq
        %v3499 = vshrl.u32 %v3498, 7
        %v3500 = vsub.s32 5, %v3499
        %v3501 = vrot.slane %v3476, %v3500
        %v3502 = vlaneseq
        %v3503 = vshrl.u32 %v3502, 7
        %v3504 = vsub.s32 6, %v3503
        %v3505 = vrot.slane %v3476, %v3504
        %v3506 = vlaneseq
        %v3507 = vshrl.u32 %v3506, 7
        %v3508 = vsub.s32 7, %v3507
        %v3509 = vrot.slane %v3476, %v3508
        %v3582 = vunpack.c.l.b16 %v3412
        %v3583 = vunpack.c.h.b16 %v3412
        %v3584 = vunpack.c.l.b16 %v3413
        %v3585 = vunpack.c.h.b16 %v3413
        %v3586 = vunpack.c.l.b16 %v3414
        %v3587 = vunpack.c.h.b16 %v3414
        %v3588 = vunpack.c.l.b16 %v3415
        %v3589 = vunpack.c.h.b16 %v3415
        %v3590 = vunpack.c.l.b16 %v3416
        %v3591 = vunpack.c.h.b16 %v3416
        %v3592 = vunpack.c.l.b16 %v3417
        %v3593 = vunpack.c.h.b16 %v3417
        %v3594 = vunpack.c.l.b16 %v3418
        %v3595 = vunpack.c.h.b16 %v3418
        %v3596 = vunpack.c.l.b16 %v3419
        %v3597 = vunpack.c.h.b16 %v3419
        %v3598 = vunpack.c.l.b16 %v3420
        %v3599 = vunpack.c.h.b16 %v3420
        %v3600 = vunpack.c.l.b16 %v3421
        %v3601 = vunpack.c.h.b16 %v3421
        %v3602 = vunpack.c.l.b16 %v3422
        %v3603 = vunpack.c.h.b16 %v3422
        %v3604 = vunpack.c.l.b16 %v3423
        %v3605 = vunpack.c.h.b16 %v3423
        %v3606 = vunpack.c.l.b16 %v3424
        %v3607 = vunpack.c.h.b16 %v3424
        %v3608 = vunpack.c.l.b16 %v3425
        %v3609 = vunpack.c.h.b16 %v3425
        %v3610 = vunpack.c.l.b16 %v3426
        %v3611 = vunpack.c.h.b16 %v3426
        %v3612 = vunpack.c.l.b16 %v3427
        %v3613 = vunpack.c.h.b16 %v3427
        %v3614 = vunpack.c.l.b16 %v3428
        %v3615 = vunpack.c.h.b16 %v3428
        %v3616 = vunpack.c.l.b16 %v3429
        %v3617 = vunpack.c.h.b16 %v3429
        %v3618 = vunpack.c.l.b16 %v3430
        %v3619 = vunpack.c.h.b16 %v3430
        %v3620 = vunpack.c.l.b16 %v3431
        %v3621 = vunpack.c.h.b16 %v3431
        %v3622 = vunpack.c.l.b16 %v3432
        %v3623 = vunpack.c.h.b16 %v3432
        %v3624 = vunpack.c.l.b16 %v3433
        %v3625 = vunpack.c.h.b16 %v3433
        %v3626 = vunpack.c.l.b16 %v3434
        %v3627 = vunpack.c.h.b16 %v3434
        %v3628 = vunpack.c.l.b16 %v3435
        %v3629 = vunpack.c.h.b16 %v3435
        %v3630 = vunpack.c.l.b16 %v3436
        %v3631 = vunpack.c.h.b16 %v3436
        %v3632 = vunpack.c.l.b16 %v3437
        %v3633 = vunpack.c.h.b16 %v3437
        %v3634 = vunpack.c.l.b16 %v3438
        %v3635 = vunpack.c.h.b16 %v3438
        %v3636 = vunpack.c.l.b16 %v3439
        %v3637 = vunpack.c.h.b16 %v3439
        %v3638 = vunpack.c.l.b16 %v3440
        %v3639 = vunpack.c.h.b16 %v3440
        %v3640 = vunpack.c.l.b16 %v3441
        %v3641 = vunpack.c.h.b16 %v3441
        %v3642 = vunpack.c.l.b16 %v3442
        %v3643 = vunpack.c.h.b16 %v3442
        %v3644 = vunpack.c.l.b16 %v3443
        %v3645 = vunpack.c.h.b16 %v3443
        %v3646 = vunpack.c.l.b16 %v3444
        %v3647 = vunpack.c.h.b16 %v3444
        %v3648 = vunpack.c.l.b16 %v3445
        %v3649 = vunpack.c.h.b16 %v3445
        %v3650 = vunpack.c.l.b16 %v3446
        %v3651 = vunpack.c.h.b16 %v3446
        %v3652 = vunpack.c.l.b16 %v3447
        %v3653 = vunpack.c.h.b16 %v3447
        %v3654 = vunpack.c.l.b16 %v3448
        %v3655 = vunpack.c.h.b16 %v3448
        %v3656 = vunpack.c.l.b16 %v3449
        %v3657 = vunpack.c.h.b16 %v3449
        %v3658 = vunpack.c.l.b16 %v3450
        %v3659 = vunpack.c.h.b16 %v3450
        %v3660 = vunpack.c.l.b16 %v3451
        %v3661 = vunpack.c.h.b16 %v3451
        %v3662 = vunpack.c.l.b16 %v3452
        %v3663 = vunpack.c.h.b16 %v3452
        %v3664 = vunpack.c.l.b16 %v3453
        %v3665 = vunpack.c.h.b16 %v3453
        %v3666 = vunpack.c.l.b16 %v3454
        %v3667 = vunpack.c.h.b16 %v3454
        %v3668 = vunpack.c.l.b16 %v3455
        %v3669 = vunpack.c.h.b16 %v3455
        %v3670 = vunpack.c.l.b16 %v3456
        %v3671 = vunpack.c.h.b16 %v3456
        %v3672 = vunpack.c.l.b16 %v3457
        %v3673 = vunpack.c.h.b16 %v3457
        %v3674 = vunpack.c.l.b16 %v3458
        %v3675 = vunpack.c.h.b16 %v3458
        %v3676 = vunpack.c.l.b16 %v3459
        %v3677 = vunpack.c.h.b16 %v3459
        %v3678 = vunpack.c.l.b16 %v3460
        %v3679 = vunpack.c.h.b16 %v3460
        %v3680 = vunpack.c.l.b16 %v3461
        %v3681 = vunpack.c.h.b16 %v3461
        %v3682 = vunpack.c.l.b16 %v3462
        %v3683 = vunpack.c.h.b16 %v3462
        %v3684 = vunpack.c.l.b16 %v3463
        %v3685 = vunpack.c.h.b16 %v3463
        %v3686 = vunpack.c.l.b16 %v3464
        %v3687 = vunpack.c.h.b16 %v3464
        %v3688 = vunpack.c.l.b16 %v3465
        %v3689 = vunpack.c.h.b16 %v3465
        %v3690 = vunpack.c.l.b16 %v3466
        %v3691 = vunpack.c.h.b16 %v3466
        %v3692 = vunpack.c.l.b16 %v3467
        %v3693 = vunpack.c.h.b16 %v3467
        %v3694 = vunpack.c.l.b16 %v3468
        %v3695 = vunpack.c.h.b16 %v3468
        %v3696 = vunpack.c.l.b16 %v3469
        %v3697 = vunpack.c.h.b16 %v3469
        %v3698 = vunpack.c.l.b16 %v3470
        %v3699 = vunpack.c.h.b16 %v3470
        %v3700 = vunpack.c.l.b16 %v3471
        %v3701 = vunpack.c.h.b16 %v3471
        %v3702 = vunpack.c.l.b16 %v3472
        %v3703 = vunpack.c.h.b16 %v3472
        %v3704 = vunpack.c.l.b16 %v3473
        %v3705 = vunpack.c.h.b16 %v3473
        %v3706 = vunpack.c.l.b16 %v3474
        %v3707 = vunpack.c.h.b16 %v3474
        %v3708 = vunpack.c.l.b16 %v3475
        %v3709 = vunpack.c.h.b16 %v3475
        %v3710 = vpack.c.b16 %v3590, %v3582
        %v3711 = vpack.c.b16 %v3591, %v3583
        %v3712 = vpack.c.b16 %v3592, %v3584
        %v3713 = vpack.c.b16 %v3593, %v3585
        %v3714 = vpack.c.b16 %v3594, %v3586
        %v3715 = vpack.c.b16 %v3595, %v3587
        %v3716 = vpack.c.b16 %v3596, %v3588
        %v3717 = vpack.c.b16 %v3597, %v3589
        %v3718 = vpack.c.b16 %v3606, %v3598
        %v3719 = vpack.c.b16 %v3607, %v3599
        %v3720 = vpack.c.b16 %v3608, %v3600
        %v3721 = vpack.c.b16 %v3609, %v3601
        %v3722 = vpack.c.b16 %v3610, %v3602
        %v3723 = vpack.c.b16 %v3611, %v3603
        %v3724 = vpack.c.b16 %v3612, %v3604
        %v3725 = vpack.c.b16 %v3613, %v3605
        %v3726 = vpack.c.b16 %v3622, %v3614
        %v3727 = vpack.c.b16 %v3623, %v3615
        %v3728 = vpack.c.b16 %v3624, %v3616
        %v3729 = vpack.c.b16 %v3625, %v3617
        %v3730 = vpack.c.b16 %v3626, %v3618
        %v3731 = vpack.c.b16 %v3627, %v3619
        %v3732 = vpack.c.b16 %v3628, %v3620
        %v3733 = vpack.c.b16 %v3629, %v3621
        %v3734 = vpack.c.b16 %v3638, %v3630
        %v3735 = vpack.c.b16 %v3639, %v3631
        %v3736 = vpack.c.b16 %v3640, %v3632
        %v3737 = vpack.c.b16 %v3641, %v3633
        %v3738 = vpack.c.b16 %v3642, %v3634
        %v3739 = vpack.c.b16 %v3643, %v3635
        %v3740 = vpack.c.b16 %v3644, %v3636
        %v3741 = vpack.c.b16 %v3645, %v3637
        %v3742 = vpack.c.b16 %v3654, %v3646
        %v3743 = vpack.c.b16 %v3655, %v3647
        %v3744 = vpack.c.b16 %v3656, %v3648
        %v3745 = vpack.c.b16 %v3657, %v3649
        %v3746 = vpack.c.b16 %v3658, %v3650
        %v3747 = vpack.c.b16 %v3659, %v3651
        %v3748 = vpack.c.b16 %v3660, %v3652
        %v3749 = vpack.c.b16 %v3661, %v3653
        %v3750 = vpack.c.b16 %v3670, %v3662
        %v3751 = vpack.c.b16 %v3671, %v3663
        %v3752 = vpack.c.b16 %v3672, %v3664
        %v3753 = vpack.c.b16 %v3673, %v3665
        %v3754 = vpack.c.b16 %v3674, %v3666
        %v3755 = vpack.c.b16 %v3675, %v3667
        %v3756 = vpack.c.b16 %v3676, %v3668
        %v3757 = vpack.c.b16 %v3677, %v3669
        %v3758 = vpack.c.b16 %v3686, %v3678
        %v3759 = vpack.c.b16 %v3687, %v3679
        %v3760 = vpack.c.b16 %v3688, %v3680
        %v3761 = vpack.c.b16 %v3689, %v3681
        %v3762 = vpack.c.b16 %v3690, %v3682
        %v3763 = vpack.c.b16 %v3691, %v3683
        %v3764 = vpack.c.b16 %v3692, %v3684
        %v3765 = vpack.c.b16 %v3693, %v3685
        %v3766 = vpack.c.b16 %v3702, %v3694
        %v3767 = vpack.c.b16 %v3703, %v3695
        %v3768 = vpack.c.b16 %v3704, %v3696
        %v3769 = vpack.c.b16 %v3705, %v3697
        %v3770 = vpack.c.b16 %v3706, %v3698
        %v3771 = vpack.c.b16 %v3707, %v3699
        %v3772 = vpack.c.b16 %v3708, %v3700
        %v3773 = vpack.c.b16 %v3709, %v3701
        %3838 = vmatprep.subr.bf16.mxu0 %v3711
        %3839 = vmatpush1.bf16.msra.mxu0 %v3710
        %3840 = vmatprep.subr.bf16.mxu0 %v3719
        %3841 = vmatpush1.bf16.msra.mxu0 %v3718
        %3842 = vmatprep.subr.bf16.mxu0 %v3727
        %3843 = vmatpush1.bf16.msra.mxu0 %v3726
        %3844 = vmatprep.subr.bf16.mxu0 %v3735
        %3845 = vmatpush1.bf16.msra.mxu0 %v3734
        %3846 = vmatprep.subr.bf16.mxu0 %v3743
        %3847 = vmatpush1.bf16.msra.mxu0 %v3742
        %3848 = vmatprep.subr.bf16.mxu0 %v3751
        %3849 = vmatpush1.bf16.msra.mxu0 %v3750
        %3850 = vmatprep.subr.bf16.mxu0 %v3759
        %3851 = vmatpush1.bf16.msra.mxu0 %v3758
        %3852 = vmatprep.subr.bf16.mxu0 %v3767
        %3853 = vmatpush1.bf16.msra.mxu0 %v3766
        %3854 = vmatprep.subr.bf16.mxu0 0
        %3855 = vmatpush1.bf16.msra.mxu0 0
        %3856 = vmatprep.subr.bf16.mxu0 0
        %3857 = vmatpush1.bf16.msra.mxu0 0
        %3858 = vmatprep.subr.bf16.mxu0 0
        %3859 = vmatpush1.bf16.msra.mxu0 0
        %3860 = vmatprep.subr.bf16.mxu0 0
        %3861 = vmatpush1.bf16.msra.mxu0 0
        %3862 = vmatprep.subr.bf16.mxu0 0
        %3863 = vmatpush1.bf16.msra.mxu0 0
        %3864 = vmatprep.subr.bf16.mxu0 0
        %3865 = vmatpush1.bf16.msra.mxu0 0
        %3866 = vmatprep.subr.bf16.mxu0 0
        %3867 = vmatpush1.bf16.msra.mxu0 0
        %3868 = vmatprep.subr.bf16.mxu0 0
        %3869 = vmatpush1.bf16.msra.mxu0 0
        %3870 = vmatprep.mubr.bf16.mxu0 0
        %3871 = vmatmul.mubr.bf16.gmra.mrb[0].mxu0 %v3348
        %v3872 = vpop.f32.mrb[0].mxu0
        %v3873 = vadd.f32 %v3481, %v3872
        %v3874 = vpop.f32.mrb[0].mxu0
        %v3875 = vadd.f32 %v3485, %v3874
        %v3876 = vpop.f32.mrb[0].mxu0
        %v3877 = vadd.f32 %v3481, %v3876
        %v3878 = vpop.f32.mrb[0].mxu0
        %v3879 = vadd.f32 %v3485, %v3878
        %3880 = vmatprep.mubr.bf16.mxu0 0
        %3881 = vmatmul.mubr.bf16.gmra.mrb[0].mxu0 %v3349
        %v3882 = vpop.f32.mrb[0].mxu0
        %v3883 = vadd.f32 %v3481, %v3882
        %v3884 = vpop.f32.mrb[0].mxu0
        %v3885 = vadd.f32 %v3485, %v3884
        %v3886 = vpop.f32.mrb[0].mxu0
        %v3887 = vadd.f32 %v3481, %v3886
        %v3888 = vpop.f32.mrb[0].mxu0
        %v3889 = vadd.f32 %v3485, %v3888
        %3890 = vmatprep.mubr.bf16.mxu0 0
        %3891 = vmatmul.mubr.bf16.gmra.mrb[0].mxu0 %v3350
        %v3892 = vpop.f32.mrb[0].mxu0
        %v3893 = vadd.f32 %v3481, %v3892
        %v3894 = vpop.f32.mrb[0].mxu0
        %v3895 = vadd.f32 %v3485, %v3894
        %v3896 = vpop.f32.mrb[0].mxu0
        %v3897 = vadd.f32 %v3481, %v3896
        %v3898 = vpop.f32.mrb[0].mxu0
        %v3899 = vadd.f32 %v3485, %v3898
        %3900 = vmatprep.mubr.bf16.mxu0 0
        %3901 = vmatmul.mubr.bf16.gmra.mrb[0].mxu0 %v3351
        %v3902 = vpop.f32.mrb[0].mxu0
        %v3903 = vadd.f32 %v3481, %v3902
        %v3904 = vpop.f32.mrb[0].mxu0
        %v3905 = vadd.f32 %v3485, %v3904
        %v3906 = vpop.f32.mrb[0].mxu0
        %v3907 = vadd.f32 %v3481, %v3906
        %v3908 = vpop.f32.mrb[0].mxu0
        %v3909 = vadd.f32 %v3485, %v3908
        %3910 = vmatprep.mubr.bf16.mxu0 0
        %3911 = vmatmul.mubr.bf16.gmra.mrb[0].mxu0 %v3352
        %v3912 = vpop.f32.mrb[0].mxu0
        %v3913 = vadd.f32 %v3481, %v3912
        %v3914 = vpop.f32.mrb[0].mxu0
        %v3915 = vadd.f32 %v3485, %v3914
        %v3916 = vpop.f32.mrb[0].mxu0
        %v3917 = vadd.f32 %v3481, %v3916
        %v3918 = vpop.f32.mrb[0].mxu0
        %v3919 = vadd.f32 %v3485, %v3918
        %3920 = vmatprep.mubr.bf16.mxu0 0
        %3921 = vmatmul.mubr.bf16.gmra.mrb[0].mxu0 %v3353
        %v3922 = vpop.f32.mrb[0].mxu0
        %v3923 = vadd.f32 %v3481, %v3922
        %v3924 = vpop.f32.mrb[0].mxu0
        %v3925 = vadd.f32 %v3485, %v3924
        %v3926 = vpop.f32.mrb[0].mxu0
        %v3927 = vadd.f32 %v3481, %v3926
        %v3928 = vpop.f32.mrb[0].mxu0
        %v3929 = vadd.f32 %v3485, %v3928
        %3930 = vmatprep.mubr.bf16.mxu0 0
        %3931 = vmatmul.mubr.bf16.gmra.mrb[0].mxu0 %v3354
        %v3932 = vpop.f32.mrb[0].mxu0
        %v3933 = vadd.f32 %v3481, %v3932
        %v3934 = vpop.f32.mrb[0].mxu0
        %v3935 = vadd.f32 %v3485, %v3934
        %v3936 = vpop.f32.mrb[0].mxu0
        %v3937 = vadd.f32 %v3481, %v3936
        %v3938 = vpop.f32.mrb[0].mxu0
        %v3939 = vadd.f32 %v3485, %v3938
        %3940 = vmatprep.mubr.bf16.mxu0 0
        %3941 = vmatmul.mubr.bf16.gmra.mrb[0].mxu0 %v3355
        %v3942 = vpop.f32.mrb[0].mxu0
        %v3943 = vadd.f32 %v3481, %v3942
        %v3944 = vpop.f32.mrb[0].mxu0
        %v3945 = vadd.f32 %v3485, %v3944
        %v3946 = vpop.f32.mrb[0].mxu0
        %v3947 = vadd.f32 %v3481, %v3946
        %v3948 = vpop.f32.mrb[0].mxu0
        %v3949 = vadd.f32 %v3485, %v3948
        %3950 = vmatprep.mubr.bf16.mxu0 0
        %3951 = vmatmul.mubr.bf16.gmra.mrb[0].mxu0 %v3356
        %v3952 = vpop.f32.mrb[0].mxu0
        %v3953 = vadd.f32 %v3481, %v3952
        %v3954 = vpop.f32.mrb[0].mxu0
        %v3955 = vadd.f32 %v3485, %v3954
        %v3956 = vpop.f32.mrb[0].mxu0
        %v3957 = vadd.f32 %v3481, %v3956
        %v3958 = vpop.f32.mrb[0].mxu0
        %v3959 = vadd.f32 %v3485, %v3958
        %3960 = vmatprep.mubr.bf16.mxu0 0
        %3961 = vmatmul.mubr.bf16.gmra.mrb[0].mxu0 %v3357
        %v3962 = vpop.f32.mrb[0].mxu0
        %v3963 = vadd.f32 %v3481, %v3962
        %v3964 = vpop.f32.mrb[0].mxu0
        %v3965 = vadd.f32 %v3485, %v3964
        %v3966 = vpop.f32.mrb[0].mxu0
        %v3967 = vadd.f32 %v3481, %v3966
        %v3968 = vpop.f32.mrb[0].mxu0
        %v3969 = vadd.f32 %v3485, %v3968
        %3970 = vmatprep.mubr.bf16.mxu0 0
        %3971 = vmatmul.mubr.bf16.gmra.mrb[0].mxu0 %v3358
        %v3972 = vpop.f32.mrb[0].mxu0
        %v3973 = vadd.f32 %v3481, %v3972
        %v3974 = vpop.f32.mrb[0].mxu0
        %v3975 = vadd.f32 %v3485, %v3974
        %v3976 = vpop.f32.mrb[0].mxu0
        %v3977 = vadd.f32 %v3481, %v3976
        %v3978 = vpop.f32.mrb[0].mxu0
        %v3979 = vadd.f32 %v3485, %v3978
        %3980 = vmatprep.mubr.bf16.mxu0 0
        %3981 = vmatmul.mubr.bf16.gmra.mrb[0].mxu0 %v3359
        %v3982 = vpop.f32.mrb[0].mxu0
        %v3983 = vadd.f32 %v3481, %v3982
        %v3984 = vpop.f32.mrb[0].mxu0
        %v3985 = vadd.f32 %v3485, %v3984
        %v3986 = vpop.f32.mrb[0].mxu0
        %v3987 = vadd.f32 %v3481, %v3986
        %v3988 = vpop.f32.mrb[0].mxu0
        %v3989 = vadd.f32 %v3485, %v3988
        %3990 = vmatprep.mubr.bf16.mxu0 0
        %3991 = vmatmul.mubr.bf16.gmra.mrb[0].mxu0 %v3360
        %v3992 = vpop.f32.mrb[0].mxu0
        %v3993 = vadd.f32 %v3481, %v3992
        %v3994 = vpop.f32.mrb[0].mxu0
        %v3995 = vadd.f32 %v3485, %v3994
        %v3996 = vpop.f32.mrb[0].mxu0
        %v3997 = vadd.f32 %v3481, %v3996
        %v3998 = vpop.f32.mrb[0].mxu0
        %v3999 = vadd.f32 %v3485, %v3998
        %4000 = vmatprep.mubr.bf16.mxu0 0
        %4001 = vmatmul.mubr.bf16.gmra.mrb[0].mxu0 %v3361
        %v4002 = vpop.f32.mrb[0].mxu0
        %v4003 = vadd.f32 %v3481, %v4002
        %v4004 = vpop.f32.mrb[0].mxu0
        %v4005 = vadd.f32 %v3485, %v4004
        %v4006 = vpop.f32.mrb[0].mxu0
        %v4007 = vadd.f32 %v3481, %v4006
        %v4008 = vpop.f32.mrb[0].mxu0
        %v4009 = vadd.f32 %v3485, %v4008
        %4010 = vmatprep.mubr.bf16.mxu0 0
        %4011 = vmatmul.mubr.bf16.gmra.mrb[0].mxu0 %v3362
        %v4012 = vpop.f32.mrb[0].mxu0
        %v4013 = vadd.f32 %v3481, %v4012
        %v4014 = vpop.f32.mrb[0].mxu0
        %v4015 = vadd.f32 %v3485, %v4014
        %v4016 = vpop.f32.mrb[0].mxu0
        %v4017 = vadd.f32 %v3481, %v4016
        %v4018 = vpop.f32.mrb[0].mxu0
        %v4019 = vadd.f32 %v3485, %v4018
        %4020 = vmatprep.mubr.bf16.mxu0 0
        %4021 = vmatmul.mubr.bf16.gmra.mrb[0].mxu0 %v3363
        %v4022 = vpop.f32.mrb[0].mxu0
        %v4023 = vadd.f32 %v3481, %v4022
        %v4024 = vpop.f32.mrb[0].mxu0
        %v4025 = vadd.f32 %v3485, %v4024
        %v4026 = vpop.f32.mrb[0].mxu0
        %v4027 = vadd.f32 %v3481, %v4026
        %v4028 = vpop.f32.mrb[0].mxu0
        %v4029 = vadd.f32 %v3485, %v4028
        %4030 = vmatprep.mubr.bf16.mxu0 0
        %4031 = vmatmul.mubr.bf16.gmra.mrb[0].mxu0 %v3364
        %v4032 = vpop.f32.mrb[0].mxu0
        %v4033 = vadd.f32 %v3481, %v4032
        %v4034 = vpop.f32.mrb[0].mxu0
        %v4035 = vadd.f32 %v3485, %v4034
        %v4036 = vpop.f32.mrb[0].mxu0
        %v4037 = vadd.f32 %v3481, %v4036
        %v4038 = vpop.f32.mrb[0].mxu0
        %v4039 = vadd.f32 %v3485, %v4038
        %4040 = vmatprep.mubr.bf16.mxu0 0
        %4041 = vmatmul.mubr.bf16.gmra.mrb[0].mxu0 %v3365
        %v4042 = vpop.f32.mrb[0].mxu0
        %v4043 = vadd.f32 %v3481, %v4042
        %v4044 = vpop.f32.mrb[0].mxu0
        %v4045 = vadd.f32 %v3485, %v4044
        %v4046 = vpop.f32.mrb[0].mxu0
        %v4047 = vadd.f32 %v3481, %v4046
        %v4048 = vpop.f32.mrb[0].mxu0
        %v4049 = vadd.f32 %v3485, %v4048
        %4050 = vmatprep.mubr.bf16.mxu0 0
        %4051 = vmatmul.mubr.bf16.gmra.mrb[0].mxu0 %v3366
        %v4052 = vpop.f32.mrb[0].mxu0
        %v4053 = vadd.f32 %v3481, %v4052
        %v4054 = vpop.f32.mrb[0].mxu0
        %v4055 = vadd.f32 %v3485, %v4054
        %v4056 = vpop.f32.mrb[0].mxu0
        %v4057 = vadd.f32 %v3481, %v4056
        %v4058 = vpop.f32.mrb[0].mxu0
        %v4059 = vadd.f32 %v3485, %v4058
        %4060 = vmatprep.mubr.bf16.mxu0 0
        %4061 = vmatmul.mubr.bf16.gmra.mrb[0].mxu0 %v3367
        %v4062 = vpop.f32.mrb[0].mxu0
        %v4063 = vadd.f32 %v3481, %v4062
        %v4064 = vpop.f32.mrb[0].mxu0
        %v4065 = vadd.f32 %v3485, %v4064
        %v4066 = vpop.f32.mrb[0].mxu0
        %v4067 = vadd.f32 %v3481, %v4066
        %v4068 = vpop.f32.mrb[0].mxu0
        %v4069 = vadd.f32 %v3485, %v4068
        %4070 = vmatprep.mubr.bf16.mxu0 0
        %4071 = vmatmul.mubr.bf16.gmra.mrb[0].mxu0 %v3368
        %v4072 = vpop.f32.mrb[0].mxu0
        %v4073 = vadd.f32 %v3481, %v4072
        %v4074 = vpop.f32.mrb[0].mxu0
        %v4075 = vadd.f32 %v3485, %v4074
        %v4076 = vpop.f32.mrb[0].mxu0
        %v4077 = vadd.f32 %v3481, %v4076
        %v4078 = vpop.f32.mrb[0].mxu0
        %v4079 = vadd.f32 %v3485, %v4078
        %4080 = vmatprep.mubr.bf16.mxu0 0
        %4081 = vmatmul.mubr.bf16.gmra.mrb[0].mxu0 %v3369
        %v4082 = vpop.f32.mrb[0].mxu0
        %v4083 = vadd.f32 %v3481, %v4082
        %v4084 = vpop.f32.mrb[0].mxu0
        %v4085 = vadd.f32 %v3485, %v4084
        %v4086 = vpop.f32.mrb[0].mxu0
        %v4087 = vadd.f32 %v3481, %v4086
        %v4088 = vpop.f32.mrb[0].mxu0
        %v4089 = vadd.f32 %v3485, %v4088
        %4090 = vmatprep.mubr.bf16.mxu0 0
        %4091 = vmatmul.mubr.bf16.gmra.mrb[0].mxu0 %v3370
        %v4092 = vpop.f32.mrb[0].mxu0
        %v4093 = vadd.f32 %v3481, %v4092
        %v4094 = vpop.f32.mrb[0].mxu0
        %v4095 = vadd.f32 %v3485, %v4094
        %v4096 = vpop.f32.mrb[0].mxu0
        %v4097 = vadd.f32 %v3481, %v4096
        %v4098 = vpop.f32.mrb[0].mxu0
        %v4099 = vadd.f32 %v3485, %v4098
        %4100 = vmatprep.mubr.bf16.mxu0 0
        %4101 = vmatmul.mubr.bf16.gmra.mrb[0].mxu0 %v3371
        %v4102 = vpop.f32.mrb[0].mxu0
        %v4103 = vadd.f32 %v3481, %v4102
        %v4104 = vpop.f32.mrb[0].mxu0
        %v4105 = vadd.f32 %v3485, %v4104
        %v4106 = vpop.f32.mrb[0].mxu0
        %v4107 = vadd.f32 %v3481, %v4106
        %v4108 = vpop.f32.mrb[0].mxu0
        %v4109 = vadd.f32 %v3485, %v4108
        %4110 = vmatprep.mubr.bf16.mxu0 0
        %4111 = vmatmul.mubr.bf16.gmra.mrb[0].mxu0 %v3372
        %v4112 = vpop.f32.mrb[0].mxu0
        %v4113 = vadd.f32 %v3481, %v4112
        %v4114 = vpop.f32.mrb[0].mxu0
        %v4115 = vadd.f32 %v3485, %v4114
        %v4116 = vpop.f32.mrb[0].mxu0
        %v4117 = vadd.f32 %v3481, %v4116
        %v4118 = vpop.f32.mrb[0].mxu0
        %v4119 = vadd.f32 %v3485, %v4118
        %4120 = vmatprep.mubr.bf16.mxu0 0
        %4121 = vmatmul.mubr.bf16.gmra.mrb[0].mxu0 %v3373
        %v4122 = vpop.f32.mrb[0].mxu0
        %v4123 = vadd.f32 %v3481, %v4122
        %v4124 = vpop.f32.mrb[0].mxu0
        %v4125 = vadd.f32 %v3485, %v4124
        %v4126 = vpop.f32.mrb[0].mxu0
        %v4127 = vadd.f32 %v3481, %v4126
        %v4128 = vpop.f32.mrb[0].mxu0
        %v4129 = vadd.f32 %v3485, %v4128
        %4130 = vmatprep.mubr.bf16.mxu0 0
        %4131 = vmatmul.mubr.bf16.gmra.mrb[0].mxu0 %v3374
        %v4132 = vpop.f32.mrb[0].mxu0
        %v4133 = vadd.f32 %v3481, %v4132
        %v4134 = vpop.f32.mrb[0].mxu0
        %v4135 = vadd.f32 %v3485, %v4134
        %v4136 = vpop.f32.mrb[0].mxu0
        %v4137 = vadd.f32 %v3481, %v4136
        %v4138 = vpop.f32.mrb[0].mxu0
        %v4139 = vadd.f32 %v3485, %v4138
        %4140 = vmatprep.mubr.bf16.mxu0 0
        %4141 = vmatmul.mubr.bf16.gmra.mrb[0].mxu0 %v3375
        %v4142 = vpop.f32.mrb[0].mxu0
        %v4143 = vadd.f32 %v3481, %v4142
        %v4144 = vpop.f32.mrb[0].mxu0
        %v4145 = vadd.f32 %v3485, %v4144
        %v4146 = vpop.f32.mrb[0].mxu0
        %v4147 = vadd.f32 %v3481, %v4146
        %v4148 = vpop.f32.mrb[0].mxu0
        %v4149 = vadd.f32 %v3485, %v4148
        %4150 = vmatprep.mubr.bf16.mxu0 0
        %4151 = vmatmul.mubr.bf16.gmra.mrb[0].mxu0 %v3376
        %v4152 = vpop.f32.mrb[0].mxu0
        %v4153 = vadd.f32 %v3481, %v4152
        %v4154 = vpop.f32.mrb[0].mxu0
        %v4155 = vadd.f32 %v3485, %v4154
        %v4156 = vpop.f32.mrb[0].mxu0
        %v4157 = vadd.f32 %v3481, %v4156
        %v4158 = vpop.f32.mrb[0].mxu0
        %v4159 = vadd.f32 %v3485, %v4158
        %4160 = vmatprep.mubr.bf16.mxu0 0
        %4161 = vmatmul.mubr.bf16.gmra.mrb[0].mxu0 %v3377
        %v4162 = vpop.f32.mrb[0].mxu0
        %v4163 = vadd.f32 %v3481, %v4162
        %v4164 = vpop.f32.mrb[0].mxu0
        %v4165 = vadd.f32 %v3485, %v4164
        %v4166 = vpop.f32.mrb[0].mxu0
        %v4167 = vadd.f32 %v3481, %v4166
        %v4168 = vpop.f32.mrb[0].mxu0
        %v4169 = vadd.f32 %v3485, %v4168
        %4170 = vmatprep.mubr.bf16.mxu0 0
        %4171 = vmatmul.mubr.bf16.gmra.mrb[0].mxu0 %v3378
        %v4172 = vpop.f32.mrb[0].mxu0
        %v4173 = vadd.f32 %v3481, %v4172
        %v4174 = vpop.f32.mrb[0].mxu0
        %v4175 = vadd.f32 %v3485, %v4174
        %v4176 = vpop.f32.mrb[0].mxu0
        %v4177 = vadd.f32 %v3481, %v4176
        %v4178 = vpop.f32.mrb[0].mxu0
        %v4179 = vadd.f32 %v3485, %v4178
        %4180 = vmatprep.mubr.bf16.mxu0 0
        %4181 = vmatmul.mubr.bf16.gmra.mrb[0].mxu0 %v3379
        %v4182 = vpop.f32.mrb[0].mxu0
        %v4183 = vadd.f32 %v3481, %v4182
        %v4184 = vpop.f32.mrb[0].mxu0
        %v4185 = vadd.f32 %v3485, %v4184
        %v4186 = vpop.f32.mrb[0].mxu0
        %v4187 = vadd.f32 %v3481, %v4186
        %v4188 = vpop.f32.mrb[0].mxu0
        %v4189 = vadd.f32 %v3485, %v4188
        %4190 = vmatprep.mubr.bf16.mxu0 0
        %4191 = vmatmul.mubr.bf16.gmra.mrb[0].mxu0 %v3380
        %v4192 = vpop.f32.mrb[0].mxu0
        %v4193 = vadd.f32 %v3481, %v4192
        %v4194 = vpop.f32.mrb[0].mxu0
        %v4195 = vadd.f32 %v3485, %v4194
        %v4196 = vpop.f32.mrb[0].mxu0
        %v4197 = vadd.f32 %v3481, %v4196
        %v4198 = vpop.f32.mrb[0].mxu0
        %v4199 = vadd.f32 %v3485, %v4198
        %4200 = vmatprep.mubr.bf16.mxu0 0
        %4201 = vmatmul.mubr.bf16.gmra.mrb[0].mxu0 %v3381
        %v4202 = vpop.f32.mrb[0].mxu0
        %v4203 = vadd.f32 %v3481, %v4202
        %v4204 = vpop.f32.mrb[0].mxu0
        %v4205 = vadd.f32 %v3485, %v4204
        %v4206 = vpop.f32.mrb[0].mxu0
        %v4207 = vadd.f32 %v3481, %v4206
        %v4208 = vpop.f32.mrb[0].mxu0
        %v4209 = vadd.f32 %v3485, %v4208
        %4210 = vmatprep.mubr.bf16.mxu0 0
        %4211 = vmatmul.mubr.bf16.gmra.mrb[0].mxu0 %v3382
        %v4212 = vpop.f32.mrb[0].mxu0
        %v4213 = vadd.f32 %v3481, %v4212
        %v4214 = vpop.f32.mrb[0].mxu0
        %v4215 = vadd.f32 %v3485, %v4214
        %v4216 = vpop.f32.mrb[0].mxu0
        %v4217 = vadd.f32 %v3481, %v4216
        %v4218 = vpop.f32.mrb[0].mxu0
        %v4219 = vadd.f32 %v3485, %v4218
        %4220 = vmatprep.mubr.bf16.mxu0 0
        %4221 = vmatmul.mubr.bf16.gmra.mrb[0].mxu0 %v3383
        %v4222 = vpop.f32.mrb[0].mxu0
        %v4223 = vadd.f32 %v3481, %v4222
        %v4224 = vpop.f32.mrb[0].mxu0
        %v4225 = vadd.f32 %v3485, %v4224
        %v4226 = vpop.f32.mrb[0].mxu0
        %v4227 = vadd.f32 %v3481, %v4226
        %v4228 = vpop.f32.mrb[0].mxu0
        %v4229 = vadd.f32 %v3485, %v4228
        %4230 = vmatprep.mubr.bf16.mxu0 0
        %4231 = vmatmul.mubr.bf16.gmra.mrb[0].mxu0 %v3384
        %v4232 = vpop.f32.mrb[0].mxu0
        %v4233 = vadd.f32 %v3481, %v4232
        %v4234 = vpop.f32.mrb[0].mxu0
        %v4235 = vadd.f32 %v3485, %v4234
        %v4236 = vpop.f32.mrb[0].mxu0
        %v4237 = vadd.f32 %v3481, %v4236
        %v4238 = vpop.f32.mrb[0].mxu0
        %v4239 = vadd.f32 %v3485, %v4238
        %4240 = vmatprep.mubr.bf16.mxu0 0
        %4241 = vmatmul.mubr.bf16.gmra.mrb[0].mxu0 %v3385
        %v4242 = vpop.f32.mrb[0].mxu0
        %v4243 = vadd.f32 %v3481, %v4242
        %v4244 = vpop.f32.mrb[0].mxu0
        %v4245 = vadd.f32 %v3485, %v4244
        %v4246 = vpop.f32.mrb[0].mxu0
        %v4247 = vadd.f32 %v3481, %v4246
        %v4248 = vpop.f32.mrb[0].mxu0
        %v4249 = vadd.f32 %v3485, %v4248
        %4250 = vmatprep.mubr.bf16.mxu0 0
        %4251 = vmatmul.mubr.bf16.gmra.mrb[0].mxu0 %v3386
        %v4252 = vpop.f32.mrb[0].mxu0
        %v4253 = vadd.f32 %v3481, %v4252
        %v4254 = vpop.f32.mrb[0].mxu0
        %v4255 = vadd.f32 %v3485, %v4254
        %v4256 = vpop.f32.mrb[0].mxu0
        %v4257 = vadd.f32 %v3481, %v4256
        %v4258 = vpop.f32.mrb[0].mxu0
        %v4259 = vadd.f32 %v3485, %v4258
        %4260 = vmatprep.mubr.bf16.mxu0 0
        %4261 = vmatmul.mubr.bf16.gmra.mrb[0].mxu0 %v3387
        %v4262 = vpop.f32.mrb[0].mxu0
        %v4263 = vadd.f32 %v3481, %v4262
        %v4264 = vpop.f32.mrb[0].mxu0
        %v4265 = vadd.f32 %v3485, %v4264
        %v4266 = vpop.f32.mrb[0].mxu0
        %v4267 = vadd.f32 %v3481, %v4266
        %v4268 = vpop.f32.mrb[0].mxu0
        %v4269 = vadd.f32 %v3485, %v4268
        %4270 = vmatprep.mubr.bf16.mxu0 0
        %4271 = vmatmul.mubr.bf16.gmra.mrb[0].mxu0 %v3388
        %v4272 = vpop.f32.mrb[0].mxu0
        %v4273 = vadd.f32 %v3481, %v4272
        %v4274 = vpop.f32.mrb[0].mxu0
        %v4275 = vadd.f32 %v3485, %v4274
        %v4276 = vpop.f32.mrb[0].mxu0
        %v4277 = vadd.f32 %v3481, %v4276
        %v4278 = vpop.f32.mrb[0].mxu0
        %v4279 = vadd.f32 %v3485, %v4278
        %4280 = vmatprep.mubr.bf16.mxu0 0
        %4281 = vmatmul.mubr.bf16.gmra.mrb[0].mxu0 %v3389
        %v4282 = vpop.f32.mrb[0].mxu0
        %v4283 = vadd.f32 %v3481, %v4282
        %v4284 = vpop.f32.mrb[0].mxu0
        %v4285 = vadd.f32 %v3485, %v4284
        %v4286 = vpop.f32.mrb[0].mxu0
        %v4287 = vadd.f32 %v3481, %v4286
        %v4288 = vpop.f32.mrb[0].mxu0
        %v4289 = vadd.f32 %v3485, %v4288
        %4290 = vmatprep.mubr.bf16.mxu0 0
        %4291 = vmatmul.mubr.bf16.gmra.mrb[0].mxu0 %v3390
        %v4292 = vpop.f32.mrb[0].mxu0
        %v4293 = vadd.f32 %v3481, %v4292
        %v4294 = vpop.f32.mrb[0].mxu0
        %v4295 = vadd.f32 %v3485, %v4294
        %v4296 = vpop.f32.mrb[0].mxu0
        %v4297 = vadd.f32 %v3481, %v4296
        %v4298 = vpop.f32.mrb[0].mxu0
        %v4299 = vadd.f32 %v3485, %v4298
        %4300 = vmatprep.mubr.bf16.mxu0 0
        %4301 = vmatmul.mubr.bf16.gmra.mrb[0].mxu0 %v3391
        %v4302 = vpop.f32.mrb[0].mxu0
        %v4303 = vadd.f32 %v3481, %v4302
        %v4304 = vpop.f32.mrb[0].mxu0
        %v4305 = vadd.f32 %v3485, %v4304
        %v4306 = vpop.f32.mrb[0].mxu0
        %v4307 = vadd.f32 %v3481, %v4306
        %v4308 = vpop.f32.mrb[0].mxu0
        %v4309 = vadd.f32 %v3485, %v4308
        %4310 = vmatprep.mubr.bf16.mxu0 0
        %4311 = vmatmul.mubr.bf16.gmra.mrb[0].mxu0 %v3392
        %v4312 = vpop.f32.mrb[0].mxu0
        %v4313 = vadd.f32 %v3481, %v4312
        %v4314 = vpop.f32.mrb[0].mxu0
        %v4315 = vadd.f32 %v3485, %v4314
        %v4316 = vpop.f32.mrb[0].mxu0
        %v4317 = vadd.f32 %v3481, %v4316
        %v4318 = vpop.f32.mrb[0].mxu0
        %v4319 = vadd.f32 %v3485, %v4318
        %4320 = vmatprep.mubr.bf16.mxu0 0
        %4321 = vmatmul.mubr.bf16.gmra.mrb[0].mxu0 %v3393
        %v4322 = vpop.f32.mrb[0].mxu0
        %v4323 = vadd.f32 %v3481, %v4322
        %v4324 = vpop.f32.mrb[0].mxu0
        %v4325 = vadd.f32 %v3485, %v4324
        %v4326 = vpop.f32.mrb[0].mxu0
        %v4327 = vadd.f32 %v3481, %v4326
        %v4328 = vpop.f32.mrb[0].mxu0
        %v4329 = vadd.f32 %v3485, %v4328
        %4330 = vmatprep.mubr.bf16.mxu0 0
        %4331 = vmatmul.mubr.bf16.gmra.mrb[0].mxu0 %v3394
        %v4332 = vpop.f32.mrb[0].mxu0
        %v4333 = vadd.f32 %v3481, %v4332
        %v4334 = vpop.f32.mrb[0].mxu0
        %v4335 = vadd.f32 %v3485, %v4334
        %v4336 = vpop.f32.mrb[0].mxu0
        %v4337 = vadd.f32 %v3481, %v4336
        %v4338 = vpop.f32.mrb[0].mxu0
        %v4339 = vadd.f32 %v3485, %v4338
        %4340 = vmatprep.mubr.bf16.mxu0 0
        %4341 = vmatmul.mubr.bf16.gmra.mrb[0].mxu0 %v3395
        %v4342 = vpop.f32.mrb[0].mxu0
        %v4343 = vadd.f32 %v3481, %v4342
        %v4344 = vpop.f32.mrb[0].mxu0
        %v4345 = vadd.f32 %v3485, %v4344
        %v4346 = vpop.f32.mrb[0].mxu0
        %v4347 = vadd.f32 %v3481, %v4346
        %v4348 = vpop.f32.mrb[0].mxu0
        %v4349 = vadd.f32 %v3485, %v4348
        %4350 = vmatprep.mubr.bf16.mxu0 0
        %4351 = vmatmul.mubr.bf16.gmra.mrb[0].mxu0 %v3396
        %v4352 = vpop.f32.mrb[0].mxu0
        %v4353 = vadd.f32 %v3481, %v4352
        %v4354 = vpop.f32.mrb[0].mxu0
        %v4355 = vadd.f32 %v3485, %v4354
        %v4356 = vpop.f32.mrb[0].mxu0
        %v4357 = vadd.f32 %v3481, %v4356
        %v4358 = vpop.f32.mrb[0].mxu0
        %v4359 = vadd.f32 %v3485, %v4358
        %4360 = vmatprep.mubr.bf16.mxu0 0
        %4361 = vmatmul.mubr.bf16.gmra.mrb[0].mxu0 %v3397
        %v4362 = vpop.f32.mrb[0].mxu0
        %v4363 = vadd.f32 %v3481, %v4362
        %v4364 = vpop.f32.mrb[0].mxu0
        %v4365 = vadd.f32 %v3485, %v4364
        %v4366 = vpop.f32.mrb[0].mxu0
        %v4367 = vadd.f32 %v3481, %v4366
        %v4368 = vpop.f32.mrb[0].mxu0
        %v4369 = vadd.f32 %v3485, %v4368
        %4370 = vmatprep.mubr.bf16.mxu0 0
        %4371 = vmatmul.mubr.bf16.gmra.mrb[0].mxu0 %v3398
        %v4372 = vpop.f32.mrb[0].mxu0
        %v4373 = vadd.f32 %v3481, %v4372
        %v4374 = vpop.f32.mrb[0].mxu0
        %v4375 = vadd.f32 %v3485, %v4374
        %v4376 = vpop.f32.mrb[0].mxu0
        %v4377 = vadd.f32 %v3481, %v4376
        %v4378 = vpop.f32.mrb[0].mxu0
        %v4379 = vadd.f32 %v3485, %v4378
        %4380 = vmatprep.mubr.bf16.mxu0 0
        %4381 = vmatmul.mubr.bf16.gmra.mrb[0].mxu0 %v3399
        %v4382 = vpop.f32.mrb[0].mxu0
        %v4383 = vadd.f32 %v3481, %v4382
        %v4384 = vpop.f32.mrb[0].mxu0
        %v4385 = vadd.f32 %v3485, %v4384
        %v4386 = vpop.f32.mrb[0].mxu0
        %v4387 = vadd.f32 %v3481, %v4386
        %v4388 = vpop.f32.mrb[0].mxu0
        %v4389 = vadd.f32 %v3485, %v4388
        %4390 = vmatprep.mubr.bf16.mxu0 0
        %4391 = vmatmul.mubr.bf16.gmra.mrb[0].mxu0 %v3400
        %v4392 = vpop.f32.mrb[0].mxu0
        %v4393 = vadd.f32 %v3481, %v4392
        %v4394 = vpop.f32.mrb[0].mxu0
        %v4395 = vadd.f32 %v3485, %v4394
        %v4396 = vpop.f32.mrb[0].mxu0
        %v4397 = vadd.f32 %v3481, %v4396
        %v4398 = vpop.f32.mrb[0].mxu0
        %v4399 = vadd.f32 %v3485, %v4398
        %4400 = vmatprep.mubr.bf16.mxu0 0
        %4401 = vmatmul.mubr.bf16.gmra.mrb[0].mxu0 %v3401
        %v4402 = vpop.f32.mrb[0].mxu0
        %v4403 = vadd.f32 %v3481, %v4402
        %v4404 = vpop.f32.mrb[0].mxu0
        %v4405 = vadd.f32 %v3485, %v4404
        %v4406 = vpop.f32.mrb[0].mxu0
        %v4407 = vadd.f32 %v3481, %v4406
        %v4408 = vpop.f32.mrb[0].mxu0
        %v4409 = vadd.f32 %v3485, %v4408
        %4410 = vmatprep.mubr.bf16.mxu0 0
        %4411 = vmatmul.mubr.bf16.gmra.mrb[0].mxu0 %v3402
        %v4412 = vpop.f32.mrb[0].mxu0
        %v4413 = vadd.f32 %v3481, %v4412
        %v4414 = vpop.f32.mrb[0].mxu0
        %v4415 = vadd.f32 %v3485, %v4414
        %v4416 = vpop.f32.mrb[0].mxu0
        %v4417 = vadd.f32 %v3481, %v4416
        %v4418 = vpop.f32.mrb[0].mxu0
        %v4419 = vadd.f32 %v3485, %v4418
        %4420 = vmatprep.mubr.bf16.mxu0 0
        %4421 = vmatmul.mubr.bf16.gmra.mrb[0].mxu0 %v3403
        %v4422 = vpop.f32.mrb[0].mxu0
        %v4423 = vadd.f32 %v3481, %v4422
        %v4424 = vpop.f32.mrb[0].mxu0
        %v4425 = vadd.f32 %v3485, %v4424
        %v4426 = vpop.f32.mrb[0].mxu0
        %v4427 = vadd.f32 %v3481, %v4426
        %v4428 = vpop.f32.mrb[0].mxu0
        %v4429 = vadd.f32 %v3485, %v4428
        %4430 = vmatprep.mubr.bf16.mxu0 0
        %4431 = vmatmul.mubr.bf16.gmra.mrb[0].mxu0 %v3404
        %v4432 = vpop.f32.mrb[0].mxu0
        %v4433 = vadd.f32 %v3481, %v4432
        %v4434 = vpop.f32.mrb[0].mxu0
        %v4435 = vadd.f32 %v3485, %v4434
        %v4436 = vpop.f32.mrb[0].mxu0
        %v4437 = vadd.f32 %v3481, %v4436
        %v4438 = vpop.f32.mrb[0].mxu0
        %v4439 = vadd.f32 %v3485, %v4438
        %4440 = vmatprep.mubr.bf16.mxu0 0
        %4441 = vmatmul.mubr.bf16.gmra.mrb[0].mxu0 %v3405
        %v4442 = vpop.f32.mrb[0].mxu0
        %v4443 = vadd.f32 %v3481, %v4442
        %v4444 = vpop.f32.mrb[0].mxu0
        %v4445 = vadd.f32 %v3485, %v4444
        %v4446 = vpop.f32.mrb[0].mxu0
        %v4447 = vadd.f32 %v3481, %v4446
        %v4448 = vpop.f32.mrb[0].mxu0
        %v4449 = vadd.f32 %v3485, %v4448
        %4450 = vmatprep.mubr.bf16.mxu0 0
        %4451 = vmatmul.mubr.bf16.gmra.mrb[0].mxu0 %v3406
        %v4452 = vpop.f32.mrb[0].mxu0
        %v4453 = vadd.f32 %v3481, %v4452
        %v4454 = vpop.f32.mrb[0].mxu0
        %v4455 = vadd.f32 %v3485, %v4454
        %v4456 = vpop.f32.mrb[0].mxu0
        %v4457 = vadd.f32 %v3481, %v4456
        %v4458 = vpop.f32.mrb[0].mxu0
        %v4459 = vadd.f32 %v3485, %v4458
        %4460 = vmatprep.mubr.bf16.mxu0 0
        %4461 = vmatmul.mubr.bf16.gmra.mrb[0].mxu0 %v3407
        %v4462 = vpop.f32.mrb[0].mxu0
        %v4463 = vadd.f32 %v3481, %v4462
        %v4464 = vpop.f32.mrb[0].mxu0
        %v4465 = vadd.f32 %v3485, %v4464
        %v4466 = vpop.f32.mrb[0].mxu0
        %v4467 = vadd.f32 %v3481, %v4466
        %v4468 = vpop.f32.mrb[0].mxu0
        %v4469 = vadd.f32 %v3485, %v4468
        %4470 = vmatprep.mubr.bf16.mxu0 0
        %4471 = vmatmul.mubr.bf16.gmra.mrb[0].mxu0 %v3408
        %v4472 = vpop.f32.mrb[0].mxu0
        %v4473 = vadd.f32 %v3481, %v4472
        %v4474 = vpop.f32.mrb[0].mxu0
        %v4475 = vadd.f32 %v3485, %v4474
        %v4476 = vpop.f32.mrb[0].mxu0
        %v4477 = vadd.f32 %v3481, %v4476
        %v4478 = vpop.f32.mrb[0].mxu0
        %v4479 = vadd.f32 %v3485, %v4478
        %4480 = vmatprep.mubr.bf16.mxu0 0
        %4481 = vmatmul.mubr.bf16.gmra.mrb[0].mxu0 %v3409
        %v4482 = vpop.f32.mrb[0].mxu0
        %v4483 = vadd.f32 %v3481, %v4482
        %v4484 = vpop.f32.mrb[0].mxu0
        %v4485 = vadd.f32 %v3485, %v4484
        %v4486 = vpop.f32.mrb[0].mxu0
        %v4487 = vadd.f32 %v3481, %v4486
        %v4488 = vpop.f32.mrb[0].mxu0
        %v4489 = vadd.f32 %v3485, %v4488
        %4490 = vmatprep.mubr.bf16.mxu0 0
        %4491 = vmatmul.mubr.bf16.gmra.mrb[0].mxu0 %v3410
        %v4492 = vpop.f32.mrb[0].mxu0
        %v4493 = vadd.f32 %v3481, %v4492
        %v4494 = vpop.f32.mrb[0].mxu0
        %v4495 = vadd.f32 %v3485, %v4494
        %v4496 = vpop.f32.mrb[0].mxu0
        %v4497 = vadd.f32 %v3481, %v4496
        %v4498 = vpop.f32.mrb[0].mxu0
        %v4499 = vadd.f32 %v3485, %v4498
        %4500 = vmatprep.mubr.bf16.mxu0 0
        %4501 = vmatmul.mubr.bf16.gmra.mrb[0].mxu0 %v3411
        %v4502 = vpop.f32.mrb[0].mxu0
        %v4503 = vadd.f32 %v3481, %v4502
        %v4504 = vpop.f32.mrb[0].mxu0
        %v4505 = vadd.f32 %v3485, %v4504
        %v4506 = vpop.f32.mrb[0].mxu0
        %v4507 = vadd.f32 %v3481, %v4506
        %v4508 = vpop.f32.mrb[0].mxu0
        %v4509 = vadd.f32 %v3485, %v4508
        %4510 = vdwg.mxu0
        %4511 = vmatprep.subr.bf16.mxu0 %v3713
        %4512 = vmatpush1.bf16.msra.mxu0 %v3712
        %4513 = vmatprep.subr.bf16.mxu0 %v3721
        %4514 = vmatpush1.bf16.msra.mxu0 %v3720
        %4515 = vmatprep.subr.bf16.mxu0 %v3729
        %4516 = vmatpush1.bf16.msra.mxu0 %v3728
        %4517 = vmatprep.subr.bf16.mxu0 %v3737
        %4518 = vmatpush1.bf16.msra.mxu0 %v3736
        %4519 = vmatprep.subr.bf16.mxu0 %v3745
        %4520 = vmatpush1.bf16.msra.mxu0 %v3744
        %4521 = vmatprep.subr.bf16.mxu0 %v3753
        %4522 = vmatpush1.bf16.msra.mxu0 %v3752
        %4523 = vmatprep.subr.bf16.mxu0 %v3761
        %4524 = vmatpush1.bf16.msra.mxu0 %v3760
        %4525 = vmatprep.subr.bf16.mxu0 %v3769
        %4526 = vmatpush1.bf16.msra.mxu0 %v3768
        %4527 = vmatprep.subr.bf16.mxu0 0
        %4528 = vmatpush1.bf16.msra.mxu0 0
        %4529 = vmatprep.subr.bf16.mxu0 0
        %4530 = vmatpush1.bf16.msra.mxu0 0
        %4531 = vmatprep.subr.bf16.mxu0 0
        %4532 = vmatpush1.bf16.msra.mxu0 0
        %4533 = vmatprep.subr.bf16.mxu0 0
        %4534 = vmatpush1.bf16.msra.mxu0 0
        %4535 = vmatprep.subr.bf16.mxu0 0
        %4536 = vmatpush1.bf16.msra.mxu0 0
        %4537 = vmatprep.subr.bf16.mxu0 0
        %4538 = vmatpush1.bf16.msra.mxu0 0
        %4539 = vmatprep.subr.bf16.mxu0 0
        %4540 = vmatpush1.bf16.msra.mxu0 0
        %4541 = vmatprep.subr.bf16.mxu0 0
        %4542 = vmatpush1.bf16.msra.mxu0 0
        %4543 = vmatprep.mubr.bf16.mxu0 0
        %4544 = vmatmul.mubr.bf16.gmra.mrb[0].mxu0 %v3348
        %v4545 = vpop.f32.mrb[0].mxu0
        %v4546 = vadd.f32 %v3489, %v4545
        %v4547 = vpop.f32.mrb[0].mxu0
        %v4548 = vadd.f32 %v3493, %v4547
        %v4549 = vpop.f32.mrb[0].mxu0
        %v4550 = vadd.f32 %v3489, %v4549
        %v4551 = vpop.f32.mrb[0].mxu0
        %v4552 = vadd.f32 %v3493, %v4551
        %4553 = vmatprep.mubr.bf16.mxu0 0
        %4554 = vmatmul.mubr.bf16.gmra.mrb[0].mxu0 %v3349
        %v4555 = vpop.f32.mrb[0].mxu0
        %v4556 = vadd.f32 %v3489, %v4555
        %v4557 = vpop.f32.mrb[0].mxu0
        %v4558 = vadd.f32 %v3493, %v4557
        %v4559 = vpop.f32.mrb[0].mxu0
        %v4560 = vadd.f32 %v3489, %v4559
        %v4561 = vpop.f32.mrb[0].mxu0
        %v4562 = vadd.f32 %v3493, %v4561
        %4563 = vmatprep.mubr.bf16.mxu0 0
        %4564 = vmatmul.mubr.bf16.gmra.mrb[0].mxu0 %v3350
        %v4565 = vpop.f32.mrb[0].mxu0
        %v4566 = vadd.f32 %v3489, %v4565
        %v4567 = vpop.f32.mrb[0].mxu0
        %v4568 = vadd.f32 %v3493, %v4567
        %v4569 = vpop.f32.mrb[0].mxu0
        %v4570 = vadd.f32 %v3489, %v4569
        %v4571 = vpop.f32.mrb[0].mxu0
        %v4572 = vadd.f32 %v3493, %v4571
        %4573 = vmatprep.mubr.bf16.mxu0 0
        %4574 = vmatmul.mubr.bf16.gmra.mrb[0].mxu0 %v3351
        %v4575 = vpop.f32.mrb[0].mxu0
        %v4576 = vadd.f32 %v3489, %v4575
        %v4577 = vpop.f32.mrb[0].mxu0
        %v4578 = vadd.f32 %v3493, %v4577
        %v4579 = vpop.f32.mrb[0].mxu0
        %v4580 = vadd.f32 %v3489, %v4579
        %v4581 = vpop.f32.mrb[0].mxu0
        %v4582 = vadd.f32 %v3493, %v4581
        %4583 = vmatprep.mubr.bf16.mxu0 0
        %4584 = vmatmul.mubr.bf16.gmra.mrb[0].mxu0 %v3352
        %v4585 = vpop.f32.mrb[0].mxu0
        %v4586 = vadd.f32 %v3489, %v4585
        %v4587 = vpop.f32.mrb[0].mxu0
        %v4588 = vadd.f32 %v3493, %v4587
        %v4589 = vpop.f32.mrb[0].mxu0
        %v4590 = vadd.f32 %v3489, %v4589
        %v4591 = vpop.f32.mrb[0].mxu0
        %v4592 = vadd.f32 %v3493, %v4591
        %4593 = vmatprep.mubr.bf16.mxu0 0
        %4594 = vmatmul.mubr.bf16.gmra.mrb[0].mxu0 %v3353
        %v4595 = vpop.f32.mrb[0].mxu0
        %v4596 = vadd.f32 %v3489, %v4595
        %v4597 = vpop.f32.mrb[0].mxu0
        %v4598 = vadd.f32 %v3493, %v4597
        %v4599 = vpop.f32.mrb[0].mxu0
        %v4600 = vadd.f32 %v3489, %v4599
        %v4601 = vpop.f32.mrb[0].mxu0
        %v4602 = vadd.f32 %v3493, %v4601
        %4603 = vmatprep.mubr.bf16.mxu0 0
        %4604 = vmatmul.mubr.bf16.gmra.mrb[0].mxu0 %v3354
        %v4605 = vpop.f32.mrb[0].mxu0
        %v4606 = vadd.f32 %v3489, %v4605
        %v4607 = vpop.f32.mrb[0].mxu0
        %v4608 = vadd.f32 %v3493, %v4607
        %v4609 = vpop.f32.mrb[0].mxu0
        %v4610 = vadd.f32 %v3489, %v4609
        %v4611 = vpop.f32.mrb[0].mxu0
        %v4612 = vadd.f32 %v3493, %v4611
        %4613 = vmatprep.mubr.bf16.mxu0 0
        %4614 = vmatmul.mubr.bf16.gmra.mrb[0].mxu0 %v3355
        %v4615 = vpop.f32.mrb[0].mxu0
        %v4616 = vadd.f32 %v3489, %v4615
        %v4617 = vpop.f32.mrb[0].mxu0
        %v4618 = vadd.f32 %v3493, %v4617
        %v4619 = vpop.f32.mrb[0].mxu0
        %v4620 = vadd.f32 %v3489, %v4619
        %v4621 = vpop.f32.mrb[0].mxu0
        %v4622 = vadd.f32 %v3493, %v4621
        %4623 = vmatprep.mubr.bf16.mxu0 0
        %4624 = vmatmul.mubr.bf16.gmra.mrb[0].mxu0 %v3356
        %v4625 = vpop.f32.mrb[0].mxu0
        %v4626 = vadd.f32 %v3489, %v4625
        %v4627 = vpop.f32.mrb[0].mxu0
        %v4628 = vadd.f32 %v3493, %v4627
        %v4629 = vpop.f32.mrb[0].mxu0
        %v4630 = vadd.f32 %v3489, %v4629
        %v4631 = vpop.f32.mrb[0].mxu0
        %v4632 = vadd.f32 %v3493, %v4631
        %4633 = vmatprep.mubr.bf16.mxu0 0
        %4634 = vmatmul.mubr.bf16.gmra.mrb[0].mxu0 %v3357
        %v4635 = vpop.f32.mrb[0].mxu0
        %v4636 = vadd.f32 %v3489, %v4635
        %v4637 = vpop.f32.mrb[0].mxu0
        %v4638 = vadd.f32 %v3493, %v4637
        %v4639 = vpop.f32.mrb[0].mxu0
        %v4640 = vadd.f32 %v3489, %v4639
        %v4641 = vpop.f32.mrb[0].mxu0
        %v4642 = vadd.f32 %v3493, %v4641
        %4643 = vmatprep.mubr.bf16.mxu0 0
        %4644 = vmatmul.mubr.bf16.gmra.mrb[0].mxu0 %v3358
        %v4645 = vpop.f32.mrb[0].mxu0
        %v4646 = vadd.f32 %v3489, %v4645
        %v4647 = vpop.f32.mrb[0].mxu0
        %v4648 = vadd.f32 %v3493, %v4647
        %v4649 = vpop.f32.mrb[0].mxu0
        %v4650 = vadd.f32 %v3489, %v4649
        %v4651 = vpop.f32.mrb[0].mxu0
        %v4652 = vadd.f32 %v3493, %v4651
        %4653 = vmatprep.mubr.bf16.mxu0 0
        %4654 = vmatmul.mubr.bf16.gmra.mrb[0].mxu0 %v3359
        %v4655 = vpop.f32.mrb[0].mxu0
        %v4656 = vadd.f32 %v3489, %v4655
        %v4657 = vpop.f32.mrb[0].mxu0
        %v4658 = vadd.f32 %v3493, %v4657
        %v4659 = vpop.f32.mrb[0].mxu0
        %v4660 = vadd.f32 %v3489, %v4659
        %v4661 = vpop.f32.mrb[0].mxu0
        %v4662 = vadd.f32 %v3493, %v4661
        %4663 = vmatprep.mubr.bf16.mxu0 0
        %4664 = vmatmul.mubr.bf16.gmra.mrb[0].mxu0 %v3360
        %v4665 = vpop.f32.mrb[0].mxu0
        %v4666 = vadd.f32 %v3489, %v4665
        %v4667 = vpop.f32.mrb[0].mxu0
        %v4668 = vadd.f32 %v3493, %v4667
        %v4669 = vpop.f32.mrb[0].mxu0
        %v4670 = vadd.f32 %v3489, %v4669
        %v4671 = vpop.f32.mrb[0].mxu0
        %v4672 = vadd.f32 %v3493, %v4671
        %4673 = vmatprep.mubr.bf16.mxu0 0
        %4674 = vmatmul.mubr.bf16.gmra.mrb[0].mxu0 %v3361
        %v4675 = vpop.f32.mrb[0].mxu0
        %v4676 = vadd.f32 %v3489, %v4675
        %v4677 = vpop.f32.mrb[0].mxu0
        %v4678 = vadd.f32 %v3493, %v4677
        %v4679 = vpop.f32.mrb[0].mxu0
        %v4680 = vadd.f32 %v3489, %v4679
        %v4681 = vpop.f32.mrb[0].mxu0
        %v4682 = vadd.f32 %v3493, %v4681
        %4683 = vmatprep.mubr.bf16.mxu0 0
        %4684 = vmatmul.mubr.bf16.gmra.mrb[0].mxu0 %v3362
        %v4685 = vpop.f32.mrb[0].mxu0
        %v4686 = vadd.f32 %v3489, %v4685
        %v4687 = vpop.f32.mrb[0].mxu0
        %v4688 = vadd.f32 %v3493, %v4687
        %v4689 = vpop.f32.mrb[0].mxu0
        %v4690 = vadd.f32 %v3489, %v4689
        %v4691 = vpop.f32.mrb[0].mxu0
        %v4692 = vadd.f32 %v3493, %v4691
        %4693 = vmatprep.mubr.bf16.mxu0 0
        %4694 = vmatmul.mubr.bf16.gmra.mrb[0].mxu0 %v3363
        %v4695 = vpop.f32.mrb[0].mxu0
        %v4696 = vadd.f32 %v3489, %v4695
        %v4697 = vpop.f32.mrb[0].mxu0
        %v4698 = vadd.f32 %v3493, %v4697
        %v4699 = vpop.f32.mrb[0].mxu0
        %v4700 = vadd.f32 %v3489, %v4699
        %v4701 = vpop.f32.mrb[0].mxu0
        %v4702 = vadd.f32 %v3493, %v4701
        %4703 = vmatprep.mubr.bf16.mxu0 0
        %4704 = vmatmul.mubr.bf16.gmra.mrb[0].mxu0 %v3364
        %v4705 = vpop.f32.mrb[0].mxu0
        %v4706 = vadd.f32 %v3489, %v4705
        %v4707 = vpop.f32.mrb[0].mxu0
        %v4708 = vadd.f32 %v3493, %v4707
        %v4709 = vpop.f32.mrb[0].mxu0
        %v4710 = vadd.f32 %v3489, %v4709
        %v4711 = vpop.f32.mrb[0].mxu0
        %v4712 = vadd.f32 %v3493, %v4711
        %4713 = vmatprep.mubr.bf16.mxu0 0
        %4714 = vmatmul.mubr.bf16.gmra.mrb[0].mxu0 %v3365
        %v4715 = vpop.f32.mrb[0].mxu0
        %v4716 = vadd.f32 %v3489, %v4715
        %v4717 = vpop.f32.mrb[0].mxu0
        %v4718 = vadd.f32 %v3493, %v4717
        %v4719 = vpop.f32.mrb[0].mxu0
        %v4720 = vadd.f32 %v3489, %v4719
        %v4721 = vpop.f32.mrb[0].mxu0
        %v4722 = vadd.f32 %v3493, %v4721
        %4723 = vmatprep.mubr.bf16.mxu0 0
        %4724 = vmatmul.mubr.bf16.gmra.mrb[0].mxu0 %v3366
        %v4725 = vpop.f32.mrb[0].mxu0
        %v4726 = vadd.f32 %v3489, %v4725
        %v4727 = vpop.f32.mrb[0].mxu0
        %v4728 = vadd.f32 %v3493, %v4727
        %v4729 = vpop.f32.mrb[0].mxu0
        %v4730 = vadd.f32 %v3489, %v4729
        %v4731 = vpop.f32.mrb[0].mxu0
        %v4732 = vadd.f32 %v3493, %v4731
        %4733 = vmatprep.mubr.bf16.mxu0 0
        %4734 = vmatmul.mubr.bf16.gmra.mrb[0].mxu0 %v3367
        %v4735 = vpop.f32.mrb[0].mxu0
        %v4736 = vadd.f32 %v3489, %v4735
        %v4737 = vpop.f32.mrb[0].mxu0
        %v4738 = vadd.f32 %v3493, %v4737
        %v4739 = vpop.f32.mrb[0].mxu0
        %v4740 = vadd.f32 %v3489, %v4739
        %v4741 = vpop.f32.mrb[0].mxu0
        %v4742 = vadd.f32 %v3493, %v4741
        %4743 = vmatprep.mubr.bf16.mxu0 0
        %4744 = vmatmul.mubr.bf16.gmra.mrb[0].mxu0 %v3368
        %v4745 = vpop.f32.mrb[0].mxu0
        %v4746 = vadd.f32 %v3489, %v4745
        %v4747 = vpop.f32.mrb[0].mxu0
        %v4748 = vadd.f32 %v3493, %v4747
        %v4749 = vpop.f32.mrb[0].mxu0
        %v4750 = vadd.f32 %v3489, %v4749
        %v4751 = vpop.f32.mrb[0].mxu0
        %v4752 = vadd.f32 %v3493, %v4751
        %4753 = vmatprep.mubr.bf16.mxu0 0
        %4754 = vmatmul.mubr.bf16.gmra.mrb[0].mxu0 %v3369
        %v4755 = vpop.f32.mrb[0].mxu0
        %v4756 = vadd.f32 %v3489, %v4755
        %v4757 = vpop.f32.mrb[0].mxu0
        %v4758 = vadd.f32 %v3493, %v4757
        %v4759 = vpop.f32.mrb[0].mxu0
        %v4760 = vadd.f32 %v3489, %v4759
        %v4761 = vpop.f32.mrb[0].mxu0
        %v4762 = vadd.f32 %v3493, %v4761
        %4763 = vmatprep.mubr.bf16.mxu0 0
        %4764 = vmatmul.mubr.bf16.gmra.mrb[0].mxu0 %v3370
        %v4765 = vpop.f32.mrb[0].mxu0
        %v4766 = vadd.f32 %v3489, %v4765
        %v4767 = vpop.f32.mrb[0].mxu0
        %v4768 = vadd.f32 %v3493, %v4767
        %v4769 = vpop.f32.mrb[0].mxu0
        %v4770 = vadd.f32 %v3489, %v4769
        %v4771 = vpop.f32.mrb[0].mxu0
        %v4772 = vadd.f32 %v3493, %v4771
        %4773 = vmatprep.mubr.bf16.mxu0 0
        %4774 = vmatmul.mubr.bf16.gmra.mrb[0].mxu0 %v3371
        %v4775 = vpop.f32.mrb[0].mxu0
        %v4776 = vadd.f32 %v3489, %v4775
        %v4777 = vpop.f32.mrb[0].mxu0
        %v4778 = vadd.f32 %v3493, %v4777
        %v4779 = vpop.f32.mrb[0].mxu0
        %v4780 = vadd.f32 %v3489, %v4779
        %v4781 = vpop.f32.mrb[0].mxu0
        %v4782 = vadd.f32 %v3493, %v4781
        %4783 = vmatprep.mubr.bf16.mxu0 0
        %4784 = vmatmul.mubr.bf16.gmra.mrb[0].mxu0 %v3372
        %v4785 = vpop.f32.mrb[0].mxu0
        %v4786 = vadd.f32 %v3489, %v4785
        %v4787 = vpop.f32.mrb[0].mxu0
        %v4788 = vadd.f32 %v3493, %v4787
        %v4789 = vpop.f32.mrb[0].mxu0
        %v4790 = vadd.f32 %v3489, %v4789
        %v4791 = vpop.f32.mrb[0].mxu0
        %v4792 = vadd.f32 %v3493, %v4791
        %4793 = vmatprep.mubr.bf16.mxu0 0
        %4794 = vmatmul.mubr.bf16.gmra.mrb[0].mxu0 %v3373
        %v4795 = vpop.f32.mrb[0].mxu0
        %v4796 = vadd.f32 %v3489, %v4795
        %v4797 = vpop.f32.mrb[0].mxu0
        %v4798 = vadd.f32 %v3493, %v4797
        %v4799 = vpop.f32.mrb[0].mxu0
        %v4800 = vadd.f32 %v3489, %v4799
        %v4801 = vpop.f32.mrb[0].mxu0
        %v4802 = vadd.f32 %v3493, %v4801
        %4803 = vmatprep.mubr.bf16.mxu0 0
        %4804 = vmatmul.mubr.bf16.gmra.mrb[0].mxu0 %v3374
        %v4805 = vpop.f32.mrb[0].mxu0
        %v4806 = vadd.f32 %v3489, %v4805
        %v4807 = vpop.f32.mrb[0].mxu0
        %v4808 = vadd.f32 %v3493, %v4807
        %v4809 = vpop.f32.mrb[0].mxu0
        %v4810 = vadd.f32 %v3489, %v4809
        %v4811 = vpop.f32.mrb[0].mxu0
        %v4812 = vadd.f32 %v3493, %v4811
        %4813 = vmatprep.mubr.bf16.mxu0 0
        %4814 = vmatmul.mubr.bf16.gmra.mrb[0].mxu0 %v3375
        %v4815 = vpop.f32.mrb[0].mxu0
        %v4816 = vadd.f32 %v3489, %v4815
        %v4817 = vpop.f32.mrb[0].mxu0
        %v4818 = vadd.f32 %v3493, %v4817
        %v4819 = vpop.f32.mrb[0].mxu0
        %v4820 = vadd.f32 %v3489, %v4819
        %v4821 = vpop.f32.mrb[0].mxu0
        %v4822 = vadd.f32 %v3493, %v4821
        %4823 = vmatprep.mubr.bf16.mxu0 0
        %4824 = vmatmul.mubr.bf16.gmra.mrb[0].mxu0 %v3376
        %v4825 = vpop.f32.mrb[0].mxu0
        %v4826 = vadd.f32 %v3489, %v4825
        %v4827 = vpop.f32.mrb[0].mxu0
        %v4828 = vadd.f32 %v3493, %v4827
        %v4829 = vpop.f32.mrb[0].mxu0
        %v4830 = vadd.f32 %v3489, %v4829
        %v4831 = vpop.f32.mrb[0].mxu0
        %v4832 = vadd.f32 %v3493, %v4831
        %4833 = vmatprep.mubr.bf16.mxu0 0
        %4834 = vmatmul.mubr.bf16.gmra.mrb[0].mxu0 %v3377
        %v4835 = vpop.f32.mrb[0].mxu0
        %v4836 = vadd.f32 %v3489, %v4835
        %v4837 = vpop.f32.mrb[0].mxu0
        %v4838 = vadd.f32 %v3493, %v4837
        %v4839 = vpop.f32.mrb[0].mxu0
        %v4840 = vadd.f32 %v3489, %v4839
        %v4841 = vpop.f32.mrb[0].mxu0
        %v4842 = vadd.f32 %v3493, %v4841
        %4843 = vmatprep.mubr.bf16.mxu0 0
        %4844 = vmatmul.mubr.bf16.gmra.mrb[0].mxu0 %v3378
        %v4845 = vpop.f32.mrb[0].mxu0
        %v4846 = vadd.f32 %v3489, %v4845
        %v4847 = vpop.f32.mrb[0].mxu0
        %v4848 = vadd.f32 %v3493, %v4847
        %v4849 = vpop.f32.mrb[0].mxu0
        %v4850 = vadd.f32 %v3489, %v4849
        %v4851 = vpop.f32.mrb[0].mxu0
        %v4852 = vadd.f32 %v3493, %v4851
        %4853 = vmatprep.mubr.bf16.mxu0 0
        %4854 = vmatmul.mubr.bf16.gmra.mrb[0].mxu0 %v3379
        %v4855 = vpop.f32.mrb[0].mxu0
        %v4856 = vadd.f32 %v3489, %v4855
        %v4857 = vpop.f32.mrb[0].mxu0
        %v4858 = vadd.f32 %v3493, %v4857
        %v4859 = vpop.f32.mrb[0].mxu0
        %v4860 = vadd.f32 %v3489, %v4859
        %v4861 = vpop.f32.mrb[0].mxu0
        %v4862 = vadd.f32 %v3493, %v4861
        %4863 = vmatprep.mubr.bf16.mxu0 0
        %4864 = vmatmul.mubr.bf16.gmra.mrb[0].mxu0 %v3380
        %v4865 = vpop.f32.mrb[0].mxu0
        %v4866 = vadd.f32 %v3489, %v4865
        %v4867 = vpop.f32.mrb[0].mxu0
        %v4868 = vadd.f32 %v3493, %v4867
        %v4869 = vpop.f32.mrb[0].mxu0
        %v4870 = vadd.f32 %v3489, %v4869
        %v4871 = vpop.f32.mrb[0].mxu0
        %v4872 = vadd.f32 %v3493, %v4871
        %4873 = vmatprep.mubr.bf16.mxu0 0
        %4874 = vmatmul.mubr.bf16.gmra.mrb[0].mxu0 %v3381
        %v4875 = vpop.f32.mrb[0].mxu0
        %v4876 = vadd.f32 %v3489, %v4875
        %v4877 = vpop.f32.mrb[0].mxu0
        %v4878 = vadd.f32 %v3493, %v4877
        %v4879 = vpop.f32.mrb[0].mxu0
        %v4880 = vadd.f32 %v3489, %v4879
        %v4881 = vpop.f32.mrb[0].mxu0
        %v4882 = vadd.f32 %v3493, %v4881
        %4883 = vmatprep.mubr.bf16.mxu0 0
        %4884 = vmatmul.mubr.bf16.gmra.mrb[0].mxu0 %v3382
        %v4885 = vpop.f32.mrb[0].mxu0
        %v4886 = vadd.f32 %v3489, %v4885
        %v4887 = vpop.f32.mrb[0].mxu0
        %v4888 = vadd.f32 %v3493, %v4887
        %v4889 = vpop.f32.mrb[0].mxu0
        %v4890 = vadd.f32 %v3489, %v4889
        %v4891 = vpop.f32.mrb[0].mxu0
        %v4892 = vadd.f32 %v3493, %v4891
        %4893 = vmatprep.mubr.bf16.mxu0 0
        %4894 = vmatmul.mubr.bf16.gmra.mrb[0].mxu0 %v3383
        %v4895 = vpop.f32.mrb[0].mxu0
        %v4896 = vadd.f32 %v3489, %v4895
        %v4897 = vpop.f32.mrb[0].mxu0
        %v4898 = vadd.f32 %v3493, %v4897
        %v4899 = vpop.f32.mrb[0].mxu0
        %v4900 = vadd.f32 %v3489, %v4899
        %v4901 = vpop.f32.mrb[0].mxu0
        %v4902 = vadd.f32 %v3493, %v4901
        %4903 = vmatprep.mubr.bf16.mxu0 0
        %4904 = vmatmul.mubr.bf16.gmra.mrb[0].mxu0 %v3384
        %v4905 = vpop.f32.mrb[0].mxu0
        %v4906 = vadd.f32 %v3489, %v4905
        %v4907 = vpop.f32.mrb[0].mxu0
        %v4908 = vadd.f32 %v3493, %v4907
        %v4909 = vpop.f32.mrb[0].mxu0
        %v4910 = vadd.f32 %v3489, %v4909
        %v4911 = vpop.f32.mrb[0].mxu0
        %v4912 = vadd.f32 %v3493, %v4911
        %4913 = vmatprep.mubr.bf16.mxu0 0
        %4914 = vmatmul.mubr.bf16.gmra.mrb[0].mxu0 %v3385
        %v4915 = vpop.f32.mrb[0].mxu0
        %v4916 = vadd.f32 %v3489, %v4915
        %v4917 = vpop.f32.mrb[0].mxu0
        %v4918 = vadd.f32 %v3493, %v4917
        %v4919 = vpop.f32.mrb[0].mxu0
        %v4920 = vadd.f32 %v3489, %v4919
        %v4921 = vpop.f32.mrb[0].mxu0
        %v4922 = vadd.f32 %v3493, %v4921
        %4923 = vmatprep.mubr.bf16.mxu0 0
        %4924 = vmatmul.mubr.bf16.gmra.mrb[0].mxu0 %v3386
        %v4925 = vpop.f32.mrb[0].mxu0
        %v4926 = vadd.f32 %v3489, %v4925
        %v4927 = vpop.f32.mrb[0].mxu0
        %v4928 = vadd.f32 %v3493, %v4927
        %v4929 = vpop.f32.mrb[0].mxu0
        %v4930 = vadd.f32 %v3489, %v4929
        %v4931 = vpop.f32.mrb[0].mxu0
        %v4932 = vadd.f32 %v3493, %v4931
        %4933 = vmatprep.mubr.bf16.mxu0 0
        %4934 = vmatmul.mubr.bf16.gmra.mrb[0].mxu0 %v3387
        %v4935 = vpop.f32.mrb[0].mxu0
        %v4936 = vadd.f32 %v3489, %v4935
        %v4937 = vpop.f32.mrb[0].mxu0
        %v4938 = vadd.f32 %v3493, %v4937
        %v4939 = vpop.f32.mrb[0].mxu0
        %v4940 = vadd.f32 %v3489, %v4939
        %v4941 = vpop.f32.mrb[0].mxu0
        %v4942 = vadd.f32 %v3493, %v4941
        %4943 = vmatprep.mubr.bf16.mxu0 0
        %4944 = vmatmul.mubr.bf16.gmra.mrb[0].mxu0 %v3388
        %v4945 = vpop.f32.mrb[0].mxu0
        %v4946 = vadd.f32 %v3489, %v4945
        %v4947 = vpop.f32.mrb[0].mxu0
        %v4948 = vadd.f32 %v3493, %v4947
        %v4949 = vpop.f32.mrb[0].mxu0
        %v4950 = vadd.f32 %v3489, %v4949
        %v4951 = vpop.f32.mrb[0].mxu0
        %v4952 = vadd.f32 %v3493, %v4951
        %4953 = vmatprep.mubr.bf16.mxu0 0
        %4954 = vmatmul.mubr.bf16.gmra.mrb[0].mxu0 %v3389
        %v4955 = vpop.f32.mrb[0].mxu0
        %v4956 = vadd.f32 %v3489, %v4955
        %v4957 = vpop.f32.mrb[0].mxu0
        %v4958 = vadd.f32 %v3493, %v4957
        %v4959 = vpop.f32.mrb[0].mxu0
        %v4960 = vadd.f32 %v3489, %v4959
        %v4961 = vpop.f32.mrb[0].mxu0
        %v4962 = vadd.f32 %v3493, %v4961
        %4963 = vmatprep.mubr.bf16.mxu0 0
        %4964 = vmatmul.mubr.bf16.gmra.mrb[0].mxu0 %v3390
        %v4965 = vpop.f32.mrb[0].mxu0
        %v4966 = vadd.f32 %v3489, %v4965
        %v4967 = vpop.f32.mrb[0].mxu0
        %v4968 = vadd.f32 %v3493, %v4967
        %v4969 = vpop.f32.mrb[0].mxu0
        %v4970 = vadd.f32 %v3489, %v4969
        %v4971 = vpop.f32.mrb[0].mxu0
        %v4972 = vadd.f32 %v3493, %v4971
        %4973 = vmatprep.mubr.bf16.mxu0 0
        %4974 = vmatmul.mubr.bf16.gmra.mrb[0].mxu0 %v3391
        %v4975 = vpop.f32.mrb[0].mxu0
        %v4976 = vadd.f32 %v3489, %v4975
        %v4977 = vpop.f32.mrb[0].mxu0
        %v4978 = vadd.f32 %v3493, %v4977
        %v4979 = vpop.f32.mrb[0].mxu0
        %v4980 = vadd.f32 %v3489, %v4979
        %v4981 = vpop.f32.mrb[0].mxu0
        %v4982 = vadd.f32 %v3493, %v4981
        %4983 = vmatprep.mubr.bf16.mxu0 0
        %4984 = vmatmul.mubr.bf16.gmra.mrb[0].mxu0 %v3392
        %v4985 = vpop.f32.mrb[0].mxu0
        %v4986 = vadd.f32 %v3489, %v4985
        %v4987 = vpop.f32.mrb[0].mxu0
        %v4988 = vadd.f32 %v3493, %v4987
        %v4989 = vpop.f32.mrb[0].mxu0
        %v4990 = vadd.f32 %v3489, %v4989
        %v4991 = vpop.f32.mrb[0].mxu0
        %v4992 = vadd.f32 %v3493, %v4991
        %4993 = vmatprep.mubr.bf16.mxu0 0
        %4994 = vmatmul.mubr.bf16.gmra.mrb[0].mxu0 %v3393
        %v4995 = vpop.f32.mrb[0].mxu0
        %v4996 = vadd.f32 %v3489, %v4995
        %v4997 = vpop.f32.mrb[0].mxu0
        %v4998 = vadd.f32 %v3493, %v4997
        %v4999 = vpop.f32.mrb[0].mxu0
        %v5000 = vadd.f32 %v3489, %v4999
        %v5001 = vpop.f32.mrb[0].mxu0
        %v5002 = vadd.f32 %v3493, %v5001
        %5003 = vmatprep.mubr.bf16.mxu0 0
        %5004 = vmatmul.mubr.bf16.gmra.mrb[0].mxu0 %v3394
        %v5005 = vpop.f32.mrb[0].mxu0
        %v5006 = vadd.f32 %v3489, %v5005
        %v5007 = vpop.f32.mrb[0].mxu0
        %v5008 = vadd.f32 %v3493, %v5007
        %v5009 = vpop.f32.mrb[0].mxu0
        %v5010 = vadd.f32 %v3489, %v5009
        %v5011 = vpop.f32.mrb[0].mxu0
        %v5012 = vadd.f32 %v3493, %v5011
        %5013 = vmatprep.mubr.bf16.mxu0 0
        %5014 = vmatmul.mubr.bf16.gmra.mrb[0].mxu0 %v3395
        %v5015 = vpop.f32.mrb[0].mxu0
        %v5016 = vadd.f32 %v3489, %v5015
        %v5017 = vpop.f32.mrb[0].mxu0
        %v5018 = vadd.f32 %v3493, %v5017
        %v5019 = vpop.f32.mrb[0].mxu0
        %v5020 = vadd.f32 %v3489, %v5019
        %v5021 = vpop.f32.mrb[0].mxu0
        %v5022 = vadd.f32 %v3493, %v5021
        %5023 = vmatprep.mubr.bf16.mxu0 0
        %5024 = vmatmul.mubr.bf16.gmra.mrb[0].mxu0 %v3396
        %v5025 = vpop.f32.mrb[0].mxu0
        %v5026 = vadd.f32 %v3489, %v5025
        %v5027 = vpop.f32.mrb[0].mxu0
        %v5028 = vadd.f32 %v3493, %v5027
        %v5029 = vpop.f32.mrb[0].mxu0
        %v5030 = vadd.f32 %v3489, %v5029
        %v5031 = vpop.f32.mrb[0].mxu0
        %v5032 = vadd.f32 %v3493, %v5031
        %5033 = vmatprep.mubr.bf16.mxu0 0
        %5034 = vmatmul.mubr.bf16.gmra.mrb[0].mxu0 %v3397
        %v5035 = vpop.f32.mrb[0].mxu0
        %v5036 = vadd.f32 %v3489, %v5035
        %v5037 = vpop.f32.mrb[0].mxu0
        %v5038 = vadd.f32 %v3493, %v5037
        %v5039 = vpop.f32.mrb[0].mxu0
        %v5040 = vadd.f32 %v3489, %v5039
        %v5041 = vpop.f32.mrb[0].mxu0
        %v5042 = vadd.f32 %v3493, %v5041
        %5043 = vmatprep.mubr.bf16.mxu0 0
        %5044 = vmatmul.mubr.bf16.gmra.mrb[0].mxu0 %v3398
        %v5045 = vpop.f32.mrb[0].mxu0
        %v5046 = vadd.f32 %v3489, %v5045
        %v5047 = vpop.f32.mrb[0].mxu0
        %v5048 = vadd.f32 %v3493, %v5047
        %v5049 = vpop.f32.mrb[0].mxu0
        %v5050 = vadd.f32 %v3489, %v5049
        %v5051 = vpop.f32.mrb[0].mxu0
        %v5052 = vadd.f32 %v3493, %v5051
        %5053 = vmatprep.mubr.bf16.mxu0 0
        %5054 = vmatmul.mubr.bf16.gmra.mrb[0].mxu0 %v3399
        %v5055 = vpop.f32.mrb[0].mxu0
        %v5056 = vadd.f32 %v3489, %v5055
        %v5057 = vpop.f32.mrb[0].mxu0
        %v5058 = vadd.f32 %v3493, %v5057
        %v5059 = vpop.f32.mrb[0].mxu0
        %v5060 = vadd.f32 %v3489, %v5059
        %v5061 = vpop.f32.mrb[0].mxu0
        %v5062 = vadd.f32 %v3493, %v5061
        %5063 = vmatprep.mubr.bf16.mxu0 0
        %5064 = vmatmul.mubr.bf16.gmra.mrb[0].mxu0 %v3400
        %v5065 = vpop.f32.mrb[0].mxu0
        %v5066 = vadd.f32 %v3489, %v5065
        %v5067 = vpop.f32.mrb[0].mxu0
        %v5068 = vadd.f32 %v3493, %v5067
        %v5069 = vpop.f32.mrb[0].mxu0
        %v5070 = vadd.f32 %v3489, %v5069
        %v5071 = vpop.f32.mrb[0].mxu0
        %v5072 = vadd.f32 %v3493, %v5071
        %5073 = vmatprep.mubr.bf16.mxu0 0
        %5074 = vmatmul.mubr.bf16.gmra.mrb[0].mxu0 %v3401
        %v5075 = vpop.f32.mrb[0].mxu0
        %v5076 = vadd.f32 %v3489, %v5075
        %v5077 = vpop.f32.mrb[0].mxu0
        %v5078 = vadd.f32 %v3493, %v5077
        %v5079 = vpop.f32.mrb[0].mxu0
        %v5080 = vadd.f32 %v3489, %v5079
        %v5081 = vpop.f32.mrb[0].mxu0
        %v5082 = vadd.f32 %v3493, %v5081
        %5083 = vmatprep.mubr.bf16.mxu0 0
        %5084 = vmatmul.mubr.bf16.gmra.mrb[0].mxu0 %v3402
        %v5085 = vpop.f32.mrb[0].mxu0
        %v5086 = vadd.f32 %v3489, %v5085
        %v5087 = vpop.f32.mrb[0].mxu0
        %v5088 = vadd.f32 %v3493, %v5087
        %v5089 = vpop.f32.mrb[0].mxu0
        %v5090 = vadd.f32 %v3489, %v5089
        %v5091 = vpop.f32.mrb[0].mxu0
        %v5092 = vadd.f32 %v3493, %v5091
        %5093 = vmatprep.mubr.bf16.mxu0 0
        %5094 = vmatmul.mubr.bf16.gmra.mrb[0].mxu0 %v3403
        %v5095 = vpop.f32.mrb[0].mxu0
        %v5096 = vadd.f32 %v3489, %v5095
        %v5097 = vpop.f32.mrb[0].mxu0
        %v5098 = vadd.f32 %v3493, %v5097
        %v5099 = vpop.f32.mrb[0].mxu0
        %v5100 = vadd.f32 %v3489, %v5099
        %v5101 = vpop.f32.mrb[0].mxu0
        %v5102 = vadd.f32 %v3493, %v5101
        %5103 = vmatprep.mubr.bf16.mxu0 0
        %5104 = vmatmul.mubr.bf16.gmra.mrb[0].mxu0 %v3404
        %v5105 = vpop.f32.mrb[0].mxu0
        %v5106 = vadd.f32 %v3489, %v5105
        %v5107 = vpop.f32.mrb[0].mxu0
        %v5108 = vadd.f32 %v3493, %v5107
        %v5109 = vpop.f32.mrb[0].mxu0
        %v5110 = vadd.f32 %v3489, %v5109
        %v5111 = vpop.f32.mrb[0].mxu0
        %v5112 = vadd.f32 %v3493, %v5111
        %5113 = vmatprep.mubr.bf16.mxu0 0
        %5114 = vmatmul.mubr.bf16.gmra.mrb[0].mxu0 %v3405
        %v5115 = vpop.f32.mrb[0].mxu0
        %v5116 = vadd.f32 %v3489, %v5115
        %v5117 = vpop.f32.mrb[0].mxu0
        %v5118 = vadd.f32 %v3493, %v5117
        %v5119 = vpop.f32.mrb[0].mxu0
        %v5120 = vadd.f32 %v3489, %v5119
        %v5121 = vpop.f32.mrb[0].mxu0
        %v5122 = vadd.f32 %v3493, %v5121
        %5123 = vmatprep.mubr.bf16.mxu0 0
        %5124 = vmatmul.mubr.bf16.gmra.mrb[0].mxu0 %v3406
        %v5125 = vpop.f32.mrb[0].mxu0
        %v5126 = vadd.f32 %v3489, %v5125
        %v5127 = vpop.f32.mrb[0].mxu0
        %v5128 = vadd.f32 %v3493, %v5127
        %v5129 = vpop.f32.mrb[0].mxu0
        %v5130 = vadd.f32 %v3489, %v5129
        %v5131 = vpop.f32.mrb[0].mxu0
        %v5132 = vadd.f32 %v3493, %v5131
        %5133 = vmatprep.mubr.bf16.mxu0 0
        %5134 = vmatmul.mubr.bf16.gmra.mrb[0].mxu0 %v3407
        %v5135 = vpop.f32.mrb[0].mxu0
        %v5136 = vadd.f32 %v3489, %v5135
        %v5137 = vpop.f32.mrb[0].mxu0
        %v5138 = vadd.f32 %v3493, %v5137
        %v5139 = vpop.f32.mrb[0].mxu0
        %v5140 = vadd.f32 %v3489, %v5139
        %v5141 = vpop.f32.mrb[0].mxu0
        %v5142 = vadd.f32 %v3493, %v5141
        %5143 = vmatprep.mubr.bf16.mxu0 0
        %5144 = vmatmul.mubr.bf16.gmra.mrb[0].mxu0 %v3408
        %v5145 = vpop.f32.mrb[0].mxu0
        %v5146 = vadd.f32 %v3489, %v5145
        %v5147 = vpop.f32.mrb[0].mxu0
        %v5148 = vadd.f32 %v3493, %v5147
        %v5149 = vpop.f32.mrb[0].mxu0
        %v5150 = vadd.f32 %v3489, %v5149
        %v5151 = vpop.f32.mrb[0].mxu0
        %v5152 = vadd.f32 %v3493, %v5151
        %5153 = vmatprep.mubr.bf16.mxu0 0
        %5154 = vmatmul.mubr.bf16.gmra.mrb[0].mxu0 %v3409
        %v5155 = vpop.f32.mrb[0].mxu0
        %v5156 = vadd.f32 %v3489, %v5155
        %v5157 = vpop.f32.mrb[0].mxu0
        %v5158 = vadd.f32 %v3493, %v5157
        %v5159 = vpop.f32.mrb[0].mxu0
        %v5160 = vadd.f32 %v3489, %v5159
        %v5161 = vpop.f32.mrb[0].mxu0
        %v5162 = vadd.f32 %v3493, %v5161
        %5163 = vmatprep.mubr.bf16.mxu0 0
        %5164 = vmatmul.mubr.bf16.gmra.mrb[0].mxu0 %v3410
        %v5165 = vpop.f32.mrb[0].mxu0
        %v5166 = vadd.f32 %v3489, %v5165
        %v5167 = vpop.f32.mrb[0].mxu0
        %v5168 = vadd.f32 %v3493, %v5167
        %v5169 = vpop.f32.mrb[0].mxu0
        %v5170 = vadd.f32 %v3489, %v5169
        %v5171 = vpop.f32.mrb[0].mxu0
        %v5172 = vadd.f32 %v3493, %v5171
        %5173 = vmatprep.mubr.bf16.mxu0 0
        %5174 = vmatmul.mubr.bf16.gmra.mrb[0].mxu0 %v3411
        %v5175 = vpop.f32.mrb[0].mxu0
        %v5176 = vadd.f32 %v3489, %v5175
        %v5177 = vpop.f32.mrb[0].mxu0
        %v5178 = vadd.f32 %v3493, %v5177
        %v5179 = vpop.f32.mrb[0].mxu0
        %v5180 = vadd.f32 %v3489, %v5179
        %v5181 = vpop.f32.mrb[0].mxu0
        %v5182 = vadd.f32 %v3493, %v5181
        %5183 = vdwg.mxu0
        %5184 = vmatprep.subr.bf16.mxu0 %v3715
        %5185 = vmatpush1.bf16.msra.mxu0 %v3714
        %5186 = vmatprep.subr.bf16.mxu0 %v3723
        %5187 = vmatpush1.bf16.msra.mxu0 %v3722
        %5188 = vmatprep.subr.bf16.mxu0 %v3731
        %5189 = vmatpush1.bf16.msra.mxu0 %v3730
        %5190 = vmatprep.subr.bf16.mxu0 %v3739
        %5191 = vmatpush1.bf16.msra.mxu0 %v3738
        %5192 = vmatprep.subr.bf16.mxu0 %v3747
        %5193 = vmatpush1.bf16.msra.mxu0 %v3746
        %5194 = vmatprep.subr.bf16.mxu0 %v3755
        %5195 = vmatpush1.bf16.msra.mxu0 %v3754
        %5196 = vmatprep.subr.bf16.mxu0 %v3763
        %5197 = vmatpush1.bf16.msra.mxu0 %v3762
        %5198 = vmatprep.subr.bf16.mxu0 %v3771
        %5199 = vmatpush1.bf16.msra.mxu0 %v3770
        %5200 = vmatprep.subr.bf16.mxu0 0
        %5201 = vmatpush1.bf16.msra.mxu0 0
        %5202 = vmatprep.subr.bf16.mxu0 0
        %5203 = vmatpush1.bf16.msra.mxu0 0
        %5204 = vmatprep.subr.bf16.mxu0 0
        %5205 = vmatpush1.bf16.msra.mxu0 0
        %5206 = vmatprep.subr.bf16.mxu0 0
        %5207 = vmatpush1.bf16.msra.mxu0 0
        %5208 = vmatprep.subr.bf16.mxu0 0
        %5209 = vmatpush1.bf16.msra.mxu0 0
        %5210 = vmatprep.subr.bf16.mxu0 0
        %5211 = vmatpush1.bf16.msra.mxu0 0
        %5212 = vmatprep.subr.bf16.mxu0 0
        %5213 = vmatpush1.bf16.msra.mxu0 0
        %5214 = vmatprep.subr.bf16.mxu0 0
        %5215 = vmatpush1.bf16.msra.mxu0 0
        %5216 = vmatprep.mubr.bf16.mxu0 0
        %5217 = vmatmul.mubr.bf16.gmra.mrb[0].mxu0 %v3348
        %v5218 = vpop.f32.mrb[0].mxu0
        %v5219 = vadd.f32 %v3497, %v5218
        %v5220 = vpop.f32.mrb[0].mxu0
        %v5221 = vadd.f32 %v3501, %v5220
        %v5222 = vpop.f32.mrb[0].mxu0
        %v5223 = vadd.f32 %v3497, %v5222
        %v5224 = vpop.f32.mrb[0].mxu0
        %v5225 = vadd.f32 %v3501, %v5224
        %5226 = vmatprep.mubr.bf16.mxu0 0
        %5227 = vmatmul.mubr.bf16.gmra.mrb[0].mxu0 %v3349
        %v5228 = vpop.f32.mrb[0].mxu0
        %v5229 = vadd.f32 %v3497, %v5228
        %v5230 = vpop.f32.mrb[0].mxu0
        %v5231 = vadd.f32 %v3501, %v5230
        %v5232 = vpop.f32.mrb[0].mxu0
        %v5233 = vadd.f32 %v3497, %v5232
        %v5234 = vpop.f32.mrb[0].mxu0
        %v5235 = vadd.f32 %v3501, %v5234
        %5236 = vmatprep.mubr.bf16.mxu0 0
        %5237 = vmatmul.mubr.bf16.gmra.mrb[0].mxu0 %v3350
        %v5238 = vpop.f32.mrb[0].mxu0
        %v5239 = vadd.f32 %v3497, %v5238
        %v5240 = vpop.f32.mrb[0].mxu0
        %v5241 = vadd.f32 %v3501, %v5240
        %v5242 = vpop.f32.mrb[0].mxu0
        %v5243 = vadd.f32 %v3497, %v5242
        %v5244 = vpop.f32.mrb[0].mxu0
        %v5245 = vadd.f32 %v3501, %v5244
        %5246 = vmatprep.mubr.bf16.mxu0 0
        %5247 = vmatmul.mubr.bf16.gmra.mrb[0].mxu0 %v3351
        %v5248 = vpop.f32.mrb[0].mxu0
        %v5249 = vadd.f32 %v3497, %v5248
        %v5250 = vpop.f32.mrb[0].mxu0
        %v5251 = vadd.f32 %v3501, %v5250
        %v5252 = vpop.f32.mrb[0].mxu0
        %v5253 = vadd.f32 %v3497, %v5252
        %v5254 = vpop.f32.mrb[0].mxu0
        %v5255 = vadd.f32 %v3501, %v5254
        %5256 = vmatprep.mubr.bf16.mxu0 0
        %5257 = vmatmul.mubr.bf16.gmra.mrb[0].mxu0 %v3352
        %v5258 = vpop.f32.mrb[0].mxu0
        %v5259 = vadd.f32 %v3497, %v5258
        %v5260 = vpop.f32.mrb[0].mxu0
        %v5261 = vadd.f32 %v3501, %v5260
        %v5262 = vpop.f32.mrb[0].mxu0
        %v5263 = vadd.f32 %v3497, %v5262
        %v5264 = vpop.f32.mrb[0].mxu0
        %v5265 = vadd.f32 %v3501, %v5264
        %5266 = vmatprep.mubr.bf16.mxu0 0
        %5267 = vmatmul.mubr.bf16.gmra.mrb[0].mxu0 %v3353
        %v5268 = vpop.f32.mrb[0].mxu0
        %v5269 = vadd.f32 %v3497, %v5268
        %v5270 = vpop.f32.mrb[0].mxu0
        %v5271 = vadd.f32 %v3501, %v5270
        %v5272 = vpop.f32.mrb[0].mxu0
        %v5273 = vadd.f32 %v3497, %v5272
        %v5274 = vpop.f32.mrb[0].mxu0
        %v5275 = vadd.f32 %v3501, %v5274
        %5276 = vmatprep.mubr.bf16.mxu0 0
        %5277 = vmatmul.mubr.bf16.gmra.mrb[0].mxu0 %v3354
        %v5278 = vpop.f32.mrb[0].mxu0
        %v5279 = vadd.f32 %v3497, %v5278
        %v5280 = vpop.f32.mrb[0].mxu0
        %v5281 = vadd.f32 %v3501, %v5280
        %v5282 = vpop.f32.mrb[0].mxu0
        %v5283 = vadd.f32 %v3497, %v5282
        %v5284 = vpop.f32.mrb[0].mxu0
        %v5285 = vadd.f32 %v3501, %v5284
        %5286 = vmatprep.mubr.bf16.mxu0 0
        %5287 = vmatmul.mubr.bf16.gmra.mrb[0].mxu0 %v3355
        %v5288 = vpop.f32.mrb[0].mxu0
        %v5289 = vadd.f32 %v3497, %v5288
        %v5290 = vpop.f32.mrb[0].mxu0
        %v5291 = vadd.f32 %v3501, %v5290
        %v5292 = vpop.f32.mrb[0].mxu0
        %v5293 = vadd.f32 %v3497, %v5292
        %v5294 = vpop.f32.mrb[0].mxu0
        %v5295 = vadd.f32 %v3501, %v5294
        %5296 = vmatprep.mubr.bf16.mxu0 0
        %5297 = vmatmul.mubr.bf16.gmra.mrb[0].mxu0 %v3356
        %v5298 = vpop.f32.mrb[0].mxu0
        %v5299 = vadd.f32 %v3497, %v5298
        %v5300 = vpop.f32.mrb[0].mxu0
        %v5301 = vadd.f32 %v3501, %v5300
        %v5302 = vpop.f32.mrb[0].mxu0
        %v5303 = vadd.f32 %v3497, %v5302
        %v5304 = vpop.f32.mrb[0].mxu0
        %v5305 = vadd.f32 %v3501, %v5304
        %5306 = vmatprep.mubr.bf16.mxu0 0
        %5307 = vmatmul.mubr.bf16.gmra.mrb[0].mxu0 %v3357
        %v5308 = vpop.f32.mrb[0].mxu0
        %v5309 = vadd.f32 %v3497, %v5308
        %v5310 = vpop.f32.mrb[0].mxu0
        %v5311 = vadd.f32 %v3501, %v5310
        %v5312 = vpop.f32.mrb[0].mxu0
        %v5313 = vadd.f32 %v3497, %v5312
        %v5314 = vpop.f32.mrb[0].mxu0
        %v5315 = vadd.f32 %v3501, %v5314
        %5316 = vmatprep.mubr.bf16.mxu0 0
        %5317 = vmatmul.mubr.bf16.gmra.mrb[0].mxu0 %v3358
        %v5318 = vpop.f32.mrb[0].mxu0
        %v5319 = vadd.f32 %v3497, %v5318
        %v5320 = vpop.f32.mrb[0].mxu0
        %v5321 = vadd.f32 %v3501, %v5320
        %v5322 = vpop.f32.mrb[0].mxu0
        %v5323 = vadd.f32 %v3497, %v5322
        %v5324 = vpop.f32.mrb[0].mxu0
        %v5325 = vadd.f32 %v3501, %v5324
        %5326 = vmatprep.mubr.bf16.mxu0 0
        %5327 = vmatmul.mubr.bf16.gmra.mrb[0].mxu0 %v3359
        %v5328 = vpop.f32.mrb[0].mxu0
        %v5329 = vadd.f32 %v3497, %v5328
        %v5330 = vpop.f32.mrb[0].mxu0
        %v5331 = vadd.f32 %v3501, %v5330
        %v5332 = vpop.f32.mrb[0].mxu0
        %v5333 = vadd.f32 %v3497, %v5332
        %v5334 = vpop.f32.mrb[0].mxu0
        %v5335 = vadd.f32 %v3501, %v5334
        %5336 = vmatprep.mubr.bf16.mxu0 0
        %5337 = vmatmul.mubr.bf16.gmra.mrb[0].mxu0 %v3360
        %v5338 = vpop.f32.mrb[0].mxu0
        %v5339 = vadd.f32 %v3497, %v5338
        %v5340 = vpop.f32.mrb[0].mxu0
        %v5341 = vadd.f32 %v3501, %v5340
        %v5342 = vpop.f32.mrb[0].mxu0
        %v5343 = vadd.f32 %v3497, %v5342
        %v5344 = vpop.f32.mrb[0].mxu0
        %v5345 = vadd.f32 %v3501, %v5344
        %5346 = vmatprep.mubr.bf16.mxu0 0
        %5347 = vmatmul.mubr.bf16.gmra.mrb[0].mxu0 %v3361
        %v5348 = vpop.f32.mrb[0].mxu0
        %v5349 = vadd.f32 %v3497, %v5348
        %v5350 = vpop.f32.mrb[0].mxu0
        %v5351 = vadd.f32 %v3501, %v5350
        %v5352 = vpop.f32.mrb[0].mxu0
        %v5353 = vadd.f32 %v3497, %v5352
        %v5354 = vpop.f32.mrb[0].mxu0
        %v5355 = vadd.f32 %v3501, %v5354
        %5356 = vmatprep.mubr.bf16.mxu0 0
        %5357 = vmatmul.mubr.bf16.gmra.mrb[0].mxu0 %v3362
        %v5358 = vpop.f32.mrb[0].mxu0
        %v5359 = vadd.f32 %v3497, %v5358
        %v5360 = vpop.f32.mrb[0].mxu0
        %v5361 = vadd.f32 %v3501, %v5360
        %v5362 = vpop.f32.mrb[0].mxu0
        %v5363 = vadd.f32 %v3497, %v5362
        %v5364 = vpop.f32.mrb[0].mxu0
        %v5365 = vadd.f32 %v3501, %v5364
        %5366 = vmatprep.mubr.bf16.mxu0 0
        %5367 = vmatmul.mubr.bf16.gmra.mrb[0].mxu0 %v3363
        %v5368 = vpop.f32.mrb[0].mxu0
        %v5369 = vadd.f32 %v3497, %v5368
        %v5370 = vpop.f32.mrb[0].mxu0
        %v5371 = vadd.f32 %v3501, %v5370
        %v5372 = vpop.f32.mrb[0].mxu0
        %v5373 = vadd.f32 %v3497, %v5372
        %v5374 = vpop.f32.mrb[0].mxu0
        %v5375 = vadd.f32 %v3501, %v5374
        %5376 = vmatprep.mubr.bf16.mxu0 0
        %5377 = vmatmul.mubr.bf16.gmra.mrb[0].mxu0 %v3364
        %v5378 = vpop.f32.mrb[0].mxu0
        %v5379 = vadd.f32 %v3497, %v5378
        %v5380 = vpop.f32.mrb[0].mxu0
        %v5381 = vadd.f32 %v3501, %v5380
        %v5382 = vpop.f32.mrb[0].mxu0
        %v5383 = vadd.f32 %v3497, %v5382
        %v5384 = vpop.f32.mrb[0].mxu0
        %v5385 = vadd.f32 %v3501, %v5384
        %5386 = vmatprep.mubr.bf16.mxu0 0
        %5387 = vmatmul.mubr.bf16.gmra.mrb[0].mxu0 %v3365
        %v5388 = vpop.f32.mrb[0].mxu0
        %v5389 = vadd.f32 %v3497, %v5388
        %v5390 = vpop.f32.mrb[0].mxu0
        %v5391 = vadd.f32 %v3501, %v5390
        %v5392 = vpop.f32.mrb[0].mxu0
        %v5393 = vadd.f32 %v3497, %v5392
        %v5394 = vpop.f32.mrb[0].mxu0
        %v5395 = vadd.f32 %v3501, %v5394
        %5396 = vmatprep.mubr.bf16.mxu0 0
        %5397 = vmatmul.mubr.bf16.gmra.mrb[0].mxu0 %v3366
        %v5398 = vpop.f32.mrb[0].mxu0
        %v5399 = vadd.f32 %v3497, %v5398
        %v5400 = vpop.f32.mrb[0].mxu0
        %v5401 = vadd.f32 %v3501, %v5400
        %v5402 = vpop.f32.mrb[0].mxu0
        %v5403 = vadd.f32 %v3497, %v5402
        %v5404 = vpop.f32.mrb[0].mxu0
        %v5405 = vadd.f32 %v3501, %v5404
        %5406 = vmatprep.mubr.bf16.mxu0 0
        %5407 = vmatmul.mubr.bf16.gmra.mrb[0].mxu0 %v3367
        %v5408 = vpop.f32.mrb[0].mxu0
        %v5409 = vadd.f32 %v3497, %v5408
        %v5410 = vpop.f32.mrb[0].mxu0
        %v5411 = vadd.f32 %v3501, %v5410
        %v5412 = vpop.f32.mrb[0].mxu0
        %v5413 = vadd.f32 %v3497, %v5412
        %v5414 = vpop.f32.mrb[0].mxu0
        %v5415 = vadd.f32 %v3501, %v5414
        %5416 = vmatprep.mubr.bf16.mxu0 0
        %5417 = vmatmul.mubr.bf16.gmra.mrb[0].mxu0 %v3368
        %v5418 = vpop.f32.mrb[0].mxu0
        %v5419 = vadd.f32 %v3497, %v5418
        %v5420 = vpop.f32.mrb[0].mxu0
        %v5421 = vadd.f32 %v3501, %v5420
        %v5422 = vpop.f32.mrb[0].mxu0
        %v5423 = vadd.f32 %v3497, %v5422
        %v5424 = vpop.f32.mrb[0].mxu0
        %v5425 = vadd.f32 %v3501, %v5424
        %5426 = vmatprep.mubr.bf16.mxu0 0
        %5427 = vmatmul.mubr.bf16.gmra.mrb[0].mxu0 %v3369
        %v5428 = vpop.f32.mrb[0].mxu0
        %v5429 = vadd.f32 %v3497, %v5428
        %v5430 = vpop.f32.mrb[0].mxu0
        %v5431 = vadd.f32 %v3501, %v5430
        %v5432 = vpop.f32.mrb[0].mxu0
        %v5433 = vadd.f32 %v3497, %v5432
        %v5434 = vpop.f32.mrb[0].mxu0
        %v5435 = vadd.f32 %v3501, %v5434
        %5436 = vmatprep.mubr.bf16.mxu0 0
        %5437 = vmatmul.mubr.bf16.gmra.mrb[0].mxu0 %v3370
        %v5438 = vpop.f32.mrb[0].mxu0
        %v5439 = vadd.f32 %v3497, %v5438
        %v5440 = vpop.f32.mrb[0].mxu0
        %v5441 = vadd.f32 %v3501, %v5440
        %v5442 = vpop.f32.mrb[0].mxu0
        %v5443 = vadd.f32 %v3497, %v5442
        %v5444 = vpop.f32.mrb[0].mxu0
        %v5445 = vadd.f32 %v3501, %v5444
        %5446 = vmatprep.mubr.bf16.mxu0 0
        %5447 = vmatmul.mubr.bf16.gmra.mrb[0].mxu0 %v3371
        %v5448 = vpop.f32.mrb[0].mxu0
        %v5449 = vadd.f32 %v3497, %v5448
        %v5450 = vpop.f32.mrb[0].mxu0
        %v5451 = vadd.f32 %v3501, %v5450
        %v5452 = vpop.f32.mrb[0].mxu0
        %v5453 = vadd.f32 %v3497, %v5452
        %v5454 = vpop.f32.mrb[0].mxu0
        %v5455 = vadd.f32 %v3501, %v5454
        %5456 = vmatprep.mubr.bf16.mxu0 0
        %5457 = vmatmul.mubr.bf16.gmra.mrb[0].mxu0 %v3372
        %v5458 = vpop.f32.mrb[0].mxu0
        %v5459 = vadd.f32 %v3497, %v5458
        %v5460 = vpop.f32.mrb[0].mxu0
        %v5461 = vadd.f32 %v3501, %v5460
        %v5462 = vpop.f32.mrb[0].mxu0
        %v5463 = vadd.f32 %v3497, %v5462
        %v5464 = vpop.f32.mrb[0].mxu0
        %v5465 = vadd.f32 %v3501, %v5464
        %5466 = vmatprep.mubr.bf16.mxu0 0
        %5467 = vmatmul.mubr.bf16.gmra.mrb[0].mxu0 %v3373
        %v5468 = vpop.f32.mrb[0].mxu0
        %v5469 = vadd.f32 %v3497, %v5468
        %v5470 = vpop.f32.mrb[0].mxu0
        %v5471 = vadd.f32 %v3501, %v5470
        %v5472 = vpop.f32.mrb[0].mxu0
        %v5473 = vadd.f32 %v3497, %v5472
        %v5474 = vpop.f32.mrb[0].mxu0
        %v5475 = vadd.f32 %v3501, %v5474
        %5476 = vmatprep.mubr.bf16.mxu0 0
        %5477 = vmatmul.mubr.bf16.gmra.mrb[0].mxu0 %v3374
        %v5478 = vpop.f32.mrb[0].mxu0
        %v5479 = vadd.f32 %v3497, %v5478
        %v5480 = vpop.f32.mrb[0].mxu0
        %v5481 = vadd.f32 %v3501, %v5480
        %v5482 = vpop.f32.mrb[0].mxu0
        %v5483 = vadd.f32 %v3497, %v5482
        %v5484 = vpop.f32.mrb[0].mxu0
        %v5485 = vadd.f32 %v3501, %v5484
        %5486 = vmatprep.mubr.bf16.mxu0 0
        %5487 = vmatmul.mubr.bf16.gmra.mrb[0].mxu0 %v3375
        %v5488 = vpop.f32.mrb[0].mxu0
        %v5489 = vadd.f32 %v3497, %v5488
        %v5490 = vpop.f32.mrb[0].mxu0
        %v5491 = vadd.f32 %v3501, %v5490
        %v5492 = vpop.f32.mrb[0].mxu0
        %v5493 = vadd.f32 %v3497, %v5492
        %v5494 = vpop.f32.mrb[0].mxu0
        %v5495 = vadd.f32 %v3501, %v5494
        %5496 = vmatprep.mubr.bf16.mxu0 0
        %5497 = vmatmul.mubr.bf16.gmra.mrb[0].mxu0 %v3376
        %v5498 = vpop.f32.mrb[0].mxu0
        %v5499 = vadd.f32 %v3497, %v5498
        %v5500 = vpop.f32.mrb[0].mxu0
        %v5501 = vadd.f32 %v3501, %v5500
        %v5502 = vpop.f32.mrb[0].mxu0
        %v5503 = vadd.f32 %v3497, %v5502
        %v5504 = vpop.f32.mrb[0].mxu0
        %v5505 = vadd.f32 %v3501, %v5504
        %5506 = vmatprep.mubr.bf16.mxu0 0
        %5507 = vmatmul.mubr.bf16.gmra.mrb[0].mxu0 %v3377
        %v5508 = vpop.f32.mrb[0].mxu0
        %v5509 = vadd.f32 %v3497, %v5508
        %v5510 = vpop.f32.mrb[0].mxu0
        %v5511 = vadd.f32 %v3501, %v5510
        %v5512 = vpop.f32.mrb[0].mxu0
        %v5513 = vadd.f32 %v3497, %v5512
        %v5514 = vpop.f32.mrb[0].mxu0
        %v5515 = vadd.f32 %v3501, %v5514
        %5516 = vmatprep.mubr.bf16.mxu0 0
        %5517 = vmatmul.mubr.bf16.gmra.mrb[0].mxu0 %v3378
        %v5518 = vpop.f32.mrb[0].mxu0
        %v5519 = vadd.f32 %v3497, %v5518
        %v5520 = vpop.f32.mrb[0].mxu0
        %v5521 = vadd.f32 %v3501, %v5520
        %v5522 = vpop.f32.mrb[0].mxu0
        %v5523 = vadd.f32 %v3497, %v5522
        %v5524 = vpop.f32.mrb[0].mxu0
        %v5525 = vadd.f32 %v3501, %v5524
        %5526 = vmatprep.mubr.bf16.mxu0 0
        %5527 = vmatmul.mubr.bf16.gmra.mrb[0].mxu0 %v3379
        %v5528 = vpop.f32.mrb[0].mxu0
        %v5529 = vadd.f32 %v3497, %v5528
        %v5530 = vpop.f32.mrb[0].mxu0
        %v5531 = vadd.f32 %v3501, %v5530
        %v5532 = vpop.f32.mrb[0].mxu0
        %v5533 = vadd.f32 %v3497, %v5532
        %v5534 = vpop.f32.mrb[0].mxu0
        %v5535 = vadd.f32 %v3501, %v5534
        %5536 = vmatprep.mubr.bf16.mxu0 0
        %5537 = vmatmul.mubr.bf16.gmra.mrb[0].mxu0 %v3380
        %v5538 = vpop.f32.mrb[0].mxu0
        %v5539 = vadd.f32 %v3497, %v5538
        %v5540 = vpop.f32.mrb[0].mxu0
        %v5541 = vadd.f32 %v3501, %v5540
        %v5542 = vpop.f32.mrb[0].mxu0
        %v5543 = vadd.f32 %v3497, %v5542
        %v5544 = vpop.f32.mrb[0].mxu0
        %v5545 = vadd.f32 %v3501, %v5544
        %5546 = vmatprep.mubr.bf16.mxu0 0
        %5547 = vmatmul.mubr.bf16.gmra.mrb[0].mxu0 %v3381
        %v5548 = vpop.f32.mrb[0].mxu0
        %v5549 = vadd.f32 %v3497, %v5548
        %v5550 = vpop.f32.mrb[0].mxu0
        %v5551 = vadd.f32 %v3501, %v5550
        %v5552 = vpop.f32.mrb[0].mxu0
        %v5553 = vadd.f32 %v3497, %v5552
        %v5554 = vpop.f32.mrb[0].mxu0
        %v5555 = vadd.f32 %v3501, %v5554
        %5556 = vmatprep.mubr.bf16.mxu0 0
        %5557 = vmatmul.mubr.bf16.gmra.mrb[0].mxu0 %v3382
        %v5558 = vpop.f32.mrb[0].mxu0
        %v5559 = vadd.f32 %v3497, %v5558
        %v5560 = vpop.f32.mrb[0].mxu0
        %v5561 = vadd.f32 %v3501, %v5560
        %v5562 = vpop.f32.mrb[0].mxu0
        %v5563 = vadd.f32 %v3497, %v5562
        %v5564 = vpop.f32.mrb[0].mxu0
        %v5565 = vadd.f32 %v3501, %v5564
        %5566 = vmatprep.mubr.bf16.mxu0 0
        %5567 = vmatmul.mubr.bf16.gmra.mrb[0].mxu0 %v3383
        %v5568 = vpop.f32.mrb[0].mxu0
        %v5569 = vadd.f32 %v3497, %v5568
        %v5570 = vpop.f32.mrb[0].mxu0
        %v5571 = vadd.f32 %v3501, %v5570
        %v5572 = vpop.f32.mrb[0].mxu0
        %v5573 = vadd.f32 %v3497, %v5572
        %v5574 = vpop.f32.mrb[0].mxu0
        %v5575 = vadd.f32 %v3501, %v5574
        %5576 = vmatprep.mubr.bf16.mxu0 0
        %5577 = vmatmul.mubr.bf16.gmra.mrb[0].mxu0 %v3384
        %v5578 = vpop.f32.mrb[0].mxu0
        %v5579 = vadd.f32 %v3497, %v5578
        %v5580 = vpop.f32.mrb[0].mxu0
        %v5581 = vadd.f32 %v3501, %v5580
        %v5582 = vpop.f32.mrb[0].mxu0
        %v5583 = vadd.f32 %v3497, %v5582
        %v5584 = vpop.f32.mrb[0].mxu0
        %v5585 = vadd.f32 %v3501, %v5584
        %5586 = vmatprep.mubr.bf16.mxu0 0
        %5587 = vmatmul.mubr.bf16.gmra.mrb[0].mxu0 %v3385
        %v5588 = vpop.f32.mrb[0].mxu0
        %v5589 = vadd.f32 %v3497, %v5588
        %v5590 = vpop.f32.mrb[0].mxu0
        %v5591 = vadd.f32 %v3501, %v5590
        %v5592 = vpop.f32.mrb[0].mxu0
        %v5593 = vadd.f32 %v3497, %v5592
        %v5594 = vpop.f32.mrb[0].mxu0
        %v5595 = vadd.f32 %v3501, %v5594
        %5596 = vmatprep.mubr.bf16.mxu0 0
        %5597 = vmatmul.mubr.bf16.gmra.mrb[0].mxu0 %v3386
        %v5598 = vpop.f32.mrb[0].mxu0
        %v5599 = vadd.f32 %v3497, %v5598
        %v5600 = vpop.f32.mrb[0].mxu0
        %v5601 = vadd.f32 %v3501, %v5600
        %v5602 = vpop.f32.mrb[0].mxu0
        %v5603 = vadd.f32 %v3497, %v5602
        %v5604 = vpop.f32.mrb[0].mxu0
        %v5605 = vadd.f32 %v3501, %v5604
        %5606 = vmatprep.mubr.bf16.mxu0 0
        %5607 = vmatmul.mubr.bf16.gmra.mrb[0].mxu0 %v3387
        %v5608 = vpop.f32.mrb[0].mxu0
        %v5609 = vadd.f32 %v3497, %v5608
        %v5610 = vpop.f32.mrb[0].mxu0
        %v5611 = vadd.f32 %v3501, %v5610
        %v5612 = vpop.f32.mrb[0].mxu0
        %v5613 = vadd.f32 %v3497, %v5612
        %v5614 = vpop.f32.mrb[0].mxu0
        %v5615 = vadd.f32 %v3501, %v5614
        %5616 = vmatprep.mubr.bf16.mxu0 0
        %5617 = vmatmul.mubr.bf16.gmra.mrb[0].mxu0 %v3388
        %v5618 = vpop.f32.mrb[0].mxu0
        %v5619 = vadd.f32 %v3497, %v5618
        %v5620 = vpop.f32.mrb[0].mxu0
        %v5621 = vadd.f32 %v3501, %v5620
        %v5622 = vpop.f32.mrb[0].mxu0
        %v5623 = vadd.f32 %v3497, %v5622
        %v5624 = vpop.f32.mrb[0].mxu0
        %v5625 = vadd.f32 %v3501, %v5624
        %5626 = vmatprep.mubr.bf16.mxu0 0
        %5627 = vmatmul.mubr.bf16.gmra.mrb[0].mxu0 %v3389
        %v5628 = vpop.f32.mrb[0].mxu0
        %v5629 = vadd.f32 %v3497, %v5628
        %v5630 = vpop.f32.mrb[0].mxu0
        %v5631 = vadd.f32 %v3501, %v5630
        %v5632 = vpop.f32.mrb[0].mxu0
        %v5633 = vadd.f32 %v3497, %v5632
        %v5634 = vpop.f32.mrb[0].mxu0
        %v5635 = vadd.f32 %v3501, %v5634
        %5636 = vmatprep.mubr.bf16.mxu0 0
        %5637 = vmatmul.mubr.bf16.gmra.mrb[0].mxu0 %v3390
        %v5638 = vpop.f32.mrb[0].mxu0
        %v5639 = vadd.f32 %v3497, %v5638
        %v5640 = vpop.f32.mrb[0].mxu0
        %v5641 = vadd.f32 %v3501, %v5640
        %v5642 = vpop.f32.mrb[0].mxu0
        %v5643 = vadd.f32 %v3497, %v5642
        %v5644 = vpop.f32.mrb[0].mxu0
        %v5645 = vadd.f32 %v3501, %v5644
        %5646 = vmatprep.mubr.bf16.mxu0 0
        %5647 = vmatmul.mubr.bf16.gmra.mrb[0].mxu0 %v3391
        %v5648 = vpop.f32.mrb[0].mxu0
        %v5649 = vadd.f32 %v3497, %v5648
        %v5650 = vpop.f32.mrb[0].mxu0
        %v5651 = vadd.f32 %v3501, %v5650
        %v5652 = vpop.f32.mrb[0].mxu0
        %v5653 = vadd.f32 %v3497, %v5652
        %v5654 = vpop.f32.mrb[0].mxu0
        %v5655 = vadd.f32 %v3501, %v5654
        %5656 = vmatprep.mubr.bf16.mxu0 0
        %5657 = vmatmul.mubr.bf16.gmra.mrb[0].mxu0 %v3392
        %v5658 = vpop.f32.mrb[0].mxu0
        %v5659 = vadd.f32 %v3497, %v5658
        %v5660 = vpop.f32.mrb[0].mxu0
        %v5661 = vadd.f32 %v3501, %v5660
        %v5662 = vpop.f32.mrb[0].mxu0
        %v5663 = vadd.f32 %v3497, %v5662
        %v5664 = vpop.f32.mrb[0].mxu0
        %v5665 = vadd.f32 %v3501, %v5664
        %5666 = vmatprep.mubr.bf16.mxu0 0
        %5667 = vmatmul.mubr.bf16.gmra.mrb[0].mxu0 %v3393
        %v5668 = vpop.f32.mrb[0].mxu0
        %v5669 = vadd.f32 %v3497, %v5668
        %v5670 = vpop.f32.mrb[0].mxu0
        %v5671 = vadd.f32 %v3501, %v5670
        %v5672 = vpop.f32.mrb[0].mxu0
        %v5673 = vadd.f32 %v3497, %v5672
        %v5674 = vpop.f32.mrb[0].mxu0
        %v5675 = vadd.f32 %v3501, %v5674
        %5676 = vmatprep.mubr.bf16.mxu0 0
        %5677 = vmatmul.mubr.bf16.gmra.mrb[0].mxu0 %v3394
        %v5678 = vpop.f32.mrb[0].mxu0
        %v5679 = vadd.f32 %v3497, %v5678
        %v5680 = vpop.f32.mrb[0].mxu0
        %v5681 = vadd.f32 %v3501, %v5680
        %v5682 = vpop.f32.mrb[0].mxu0
        %v5683 = vadd.f32 %v3497, %v5682
        %v5684 = vpop.f32.mrb[0].mxu0
        %v5685 = vadd.f32 %v3501, %v5684
        %5686 = vmatprep.mubr.bf16.mxu0 0
        %5687 = vmatmul.mubr.bf16.gmra.mrb[0].mxu0 %v3395
        %v5688 = vpop.f32.mrb[0].mxu0
        %v5689 = vadd.f32 %v3497, %v5688
        %v5690 = vpop.f32.mrb[0].mxu0
        %v5691 = vadd.f32 %v3501, %v5690
        %v5692 = vpop.f32.mrb[0].mxu0
        %v5693 = vadd.f32 %v3497, %v5692
        %v5694 = vpop.f32.mrb[0].mxu0
        %v5695 = vadd.f32 %v3501, %v5694
        %5696 = vmatprep.mubr.bf16.mxu0 0
        %5697 = vmatmul.mubr.bf16.gmra.mrb[0].mxu0 %v3396
        %v5698 = vpop.f32.mrb[0].mxu0
        %v5699 = vadd.f32 %v3497, %v5698
        %v5700 = vpop.f32.mrb[0].mxu0
        %v5701 = vadd.f32 %v3501, %v5700
        %v5702 = vpop.f32.mrb[0].mxu0
        %v5703 = vadd.f32 %v3497, %v5702
        %v5704 = vpop.f32.mrb[0].mxu0
        %v5705 = vadd.f32 %v3501, %v5704
        %5706 = vmatprep.mubr.bf16.mxu0 0
        %5707 = vmatmul.mubr.bf16.gmra.mrb[0].mxu0 %v3397
        %v5708 = vpop.f32.mrb[0].mxu0
        %v5709 = vadd.f32 %v3497, %v5708
        %v5710 = vpop.f32.mrb[0].mxu0
        %v5711 = vadd.f32 %v3501, %v5710
        %v5712 = vpop.f32.mrb[0].mxu0
        %v5713 = vadd.f32 %v3497, %v5712
        %v5714 = vpop.f32.mrb[0].mxu0
        %v5715 = vadd.f32 %v3501, %v5714
        %5716 = vmatprep.mubr.bf16.mxu0 0
        %5717 = vmatmul.mubr.bf16.gmra.mrb[0].mxu0 %v3398
        %v5718 = vpop.f32.mrb[0].mxu0
        %v5719 = vadd.f32 %v3497, %v5718
        %v5720 = vpop.f32.mrb[0].mxu0
        %v5721 = vadd.f32 %v3501, %v5720
        %v5722 = vpop.f32.mrb[0].mxu0
        %v5723 = vadd.f32 %v3497, %v5722
        %v5724 = vpop.f32.mrb[0].mxu0
        %v5725 = vadd.f32 %v3501, %v5724
        %5726 = vmatprep.mubr.bf16.mxu0 0
        %5727 = vmatmul.mubr.bf16.gmra.mrb[0].mxu0 %v3399
        %v5728 = vpop.f32.mrb[0].mxu0
        %v5729 = vadd.f32 %v3497, %v5728
        %v5730 = vpop.f32.mrb[0].mxu0
        %v5731 = vadd.f32 %v3501, %v5730
        %v5732 = vpop.f32.mrb[0].mxu0
        %v5733 = vadd.f32 %v3497, %v5732
        %v5734 = vpop.f32.mrb[0].mxu0
        %v5735 = vadd.f32 %v3501, %v5734
        %5736 = vmatprep.mubr.bf16.mxu0 0
        %5737 = vmatmul.mubr.bf16.gmra.mrb[0].mxu0 %v3400
        %v5738 = vpop.f32.mrb[0].mxu0
        %v5739 = vadd.f32 %v3497, %v5738
        %v5740 = vpop.f32.mrb[0].mxu0
        %v5741 = vadd.f32 %v3501, %v5740
        %v5742 = vpop.f32.mrb[0].mxu0
        %v5743 = vadd.f32 %v3497, %v5742
        %v5744 = vpop.f32.mrb[0].mxu0
        %v5745 = vadd.f32 %v3501, %v5744
        %5746 = vmatprep.mubr.bf16.mxu0 0
        %5747 = vmatmul.mubr.bf16.gmra.mrb[0].mxu0 %v3401
        %v5748 = vpop.f32.mrb[0].mxu0
        %v5749 = vadd.f32 %v3497, %v5748
        %v5750 = vpop.f32.mrb[0].mxu0
        %v5751 = vadd.f32 %v3501, %v5750
        %v5752 = vpop.f32.mrb[0].mxu0
        %v5753 = vadd.f32 %v3497, %v5752
        %v5754 = vpop.f32.mrb[0].mxu0
        %v5755 = vadd.f32 %v3501, %v5754
        %5756 = vmatprep.mubr.bf16.mxu0 0
        %5757 = vmatmul.mubr.bf16.gmra.mrb[0].mxu0 %v3402
        %v5758 = vpop.f32.mrb[0].mxu0
        %v5759 = vadd.f32 %v3497, %v5758
        %v5760 = vpop.f32.mrb[0].mxu0
        %v5761 = vadd.f32 %v3501, %v5760
        %v5762 = vpop.f32.mrb[0].mxu0
        %v5763 = vadd.f32 %v3497, %v5762
        %v5764 = vpop.f32.mrb[0].mxu0
        %v5765 = vadd.f32 %v3501, %v5764
        %5766 = vmatprep.mubr.bf16.mxu0 0
        %5767 = vmatmul.mubr.bf16.gmra.mrb[0].mxu0 %v3403
        %v5768 = vpop.f32.mrb[0].mxu0
        %v5769 = vadd.f32 %v3497, %v5768
        %v5770 = vpop.f32.mrb[0].mxu0
        %v5771 = vadd.f32 %v3501, %v5770
        %v5772 = vpop.f32.mrb[0].mxu0
        %v5773 = vadd.f32 %v3497, %v5772
        %v5774 = vpop.f32.mrb[0].mxu0
        %v5775 = vadd.f32 %v3501, %v5774
        %5776 = vmatprep.mubr.bf16.mxu0 0
        %5777 = vmatmul.mubr.bf16.gmra.mrb[0].mxu0 %v3404
        %v5778 = vpop.f32.mrb[0].mxu0
        %v5779 = vadd.f32 %v3497, %v5778
        %v5780 = vpop.f32.mrb[0].mxu0
        %v5781 = vadd.f32 %v3501, %v5780
        %v5782 = vpop.f32.mrb[0].mxu0
        %v5783 = vadd.f32 %v3497, %v5782
        %v5784 = vpop.f32.mrb[0].mxu0
        %v5785 = vadd.f32 %v3501, %v5784
        %5786 = vmatprep.mubr.bf16.mxu0 0
        %5787 = vmatmul.mubr.bf16.gmra.mrb[0].mxu0 %v3405
        %v5788 = vpop.f32.mrb[0].mxu0
        %v5789 = vadd.f32 %v3497, %v5788
        %v5790 = vpop.f32.mrb[0].mxu0
        %v5791 = vadd.f32 %v3501, %v5790
        %v5792 = vpop.f32.mrb[0].mxu0
        %v5793 = vadd.f32 %v3497, %v5792
        %v5794 = vpop.f32.mrb[0].mxu0
        %v5795 = vadd.f32 %v3501, %v5794
        %5796 = vmatprep.mubr.bf16.mxu0 0
        %5797 = vmatmul.mubr.bf16.gmra.mrb[0].mxu0 %v3406
        %v5798 = vpop.f32.mrb[0].mxu0
        %v5799 = vadd.f32 %v3497, %v5798
        %v5800 = vpop.f32.mrb[0].mxu0
        %v5801 = vadd.f32 %v3501, %v5800
        %v5802 = vpop.f32.mrb[0].mxu0
        %v5803 = vadd.f32 %v3497, %v5802
        %v5804 = vpop.f32.mrb[0].mxu0
        %v5805 = vadd.f32 %v3501, %v5804
        %5806 = vmatprep.mubr.bf16.mxu0 0
        %5807 = vmatmul.mubr.bf16.gmra.mrb[0].mxu0 %v3407
        %v5808 = vpop.f32.mrb[0].mxu0
        %v5809 = vadd.f32 %v3497, %v5808
        %v5810 = vpop.f32.mrb[0].mxu0
        %v5811 = vadd.f32 %v3501, %v5810
        %v5812 = vpop.f32.mrb[0].mxu0
        %v5813 = vadd.f32 %v3497, %v5812
        %v5814 = vpop.f32.mrb[0].mxu0
        %v5815 = vadd.f32 %v3501, %v5814
        %5816 = vmatprep.mubr.bf16.mxu0 0
        %5817 = vmatmul.mubr.bf16.gmra.mrb[0].mxu0 %v3408
        %v5818 = vpop.f32.mrb[0].mxu0
        %v5819 = vadd.f32 %v3497, %v5818
        %v5820 = vpop.f32.mrb[0].mxu0
        %v5821 = vadd.f32 %v3501, %v5820
        %v5822 = vpop.f32.mrb[0].mxu0
        %v5823 = vadd.f32 %v3497, %v5822
        %v5824 = vpop.f32.mrb[0].mxu0
        %v5825 = vadd.f32 %v3501, %v5824
        %5826 = vmatprep.mubr.bf16.mxu0 0
        %5827 = vmatmul.mubr.bf16.gmra.mrb[0].mxu0 %v3409
        %v5828 = vpop.f32.mrb[0].mxu0
        %v5829 = vadd.f32 %v3497, %v5828
        %v5830 = vpop.f32.mrb[0].mxu0
        %v5831 = vadd.f32 %v3501, %v5830
        %v5832 = vpop.f32.mrb[0].mxu0
        %v5833 = vadd.f32 %v3497, %v5832
        %v5834 = vpop.f32.mrb[0].mxu0
        %v5835 = vadd.f32 %v3501, %v5834
        %5836 = vmatprep.mubr.bf16.mxu0 0
        %5837 = vmatmul.mubr.bf16.gmra.mrb[0].mxu0 %v3410
        %v5838 = vpop.f32.mrb[0].mxu0
        %v5839 = vadd.f32 %v3497, %v5838
        %v5840 = vpop.f32.mrb[0].mxu0
        %v5841 = vadd.f32 %v3501, %v5840
        %v5842 = vpop.f32.mrb[0].mxu0
        %v5843 = vadd.f32 %v3497, %v5842
        %v5844 = vpop.f32.mrb[0].mxu0
        %v5845 = vadd.f32 %v3501, %v5844
        %5846 = vmatprep.mubr.bf16.mxu0 0
        %5847 = vmatmul.mubr.bf16.gmra.mrb[0].mxu0 %v3411
        %v5848 = vpop.f32.mrb[0].mxu0
        %v5849 = vadd.f32 %v3497, %v5848
        %v5850 = vpop.f32.mrb[0].mxu0
        %v5851 = vadd.f32 %v3501, %v5850
        %v5852 = vpop.f32.mrb[0].mxu0
        %v5853 = vadd.f32 %v3497, %v5852
        %v5854 = vpop.f32.mrb[0].mxu0
        %v5855 = vadd.f32 %v3501, %v5854
        %5856 = vdwg.mxu0
        %5857 = vmatprep.subr.bf16.mxu0 %v3717
        %5858 = vmatpush1.bf16.msra.mxu0 %v3716
        %5859 = vmatprep.subr.bf16.mxu0 %v3725
        %5860 = vmatpush1.bf16.msra.mxu0 %v3724
        %5861 = vmatprep.subr.bf16.mxu0 %v3733
        %5862 = vmatpush1.bf16.msra.mxu0 %v3732
        %5863 = vmatprep.subr.bf16.mxu0 %v3741
        %5864 = vmatpush1.bf16.msra.mxu0 %v3740
        %5865 = vmatprep.subr.bf16.mxu0 %v3749
        %5866 = vmatpush1.bf16.msra.mxu0 %v3748
        %5867 = vmatprep.subr.bf16.mxu0 %v3757
        %5868 = vmatpush1.bf16.msra.mxu0 %v3756
        %5869 = vmatprep.subr.bf16.mxu0 %v3765
        %5870 = vmatpush1.bf16.msra.mxu0 %v3764
        %5871 = vmatprep.subr.bf16.mxu0 %v3773
        %5872 = vmatpush1.bf16.msra.mxu0 %v3772
        %5873 = vmatprep.subr.bf16.mxu0 0
        %5874 = vmatpush1.bf16.msra.mxu0 0
        %5875 = vmatprep.subr.bf16.mxu0 0
        %5876 = vmatpush1.bf16.msra.mxu0 0
        %5877 = vmatprep.subr.bf16.mxu0 0
        %5878 = vmatpush1.bf16.msra.mxu0 0
        %5879 = vmatprep.subr.bf16.mxu0 0
        %5880 = vmatpush1.bf16.msra.mxu0 0
        %5881 = vmatprep.subr.bf16.mxu0 0
        %5882 = vmatpush1.bf16.msra.mxu0 0
        %5883 = vmatprep.subr.bf16.mxu0 0
        %5884 = vmatpush1.bf16.msra.mxu0 0
        %5885 = vmatprep.subr.bf16.mxu0 0
        %5886 = vmatpush1.bf16.msra.mxu0 0
        %5887 = vmatprep.subr.bf16.mxu0 0
        %5888 = vmatpush1.bf16.msra.mxu0 0
        %5889 = vmatprep.mubr.bf16.mxu0 0
        %5890 = vmatmul.mubr.bf16.gmra.mrb[0].mxu0 %v3348
        %v5891 = vpop.f32.mrb[0].mxu0
        %v5892 = vadd.f32 %v3505, %v5891
        %v5893 = vpop.f32.mrb[0].mxu0
        %v5894 = vadd.f32 %v3509, %v5893
        %v5895 = vpop.f32.mrb[0].mxu0
        %v5896 = vadd.f32 %v3505, %v5895
        %v5897 = vpop.f32.mrb[0].mxu0
        %v5898 = vadd.f32 %v3509, %v5897
        %5899 = vmatprep.mubr.bf16.mxu0 0
        %5900 = vmatmul.mubr.bf16.gmra.mrb[0].mxu0 %v3349
        %v5901 = vpop.f32.mrb[0].mxu0
        %v5902 = vadd.f32 %v3505, %v5901
        %v5903 = vpop.f32.mrb[0].mxu0
        %v5904 = vadd.f32 %v3509, %v5903
        %v5905 = vpop.f32.mrb[0].mxu0
        %v5906 = vadd.f32 %v3505, %v5905
        %v5907 = vpop.f32.mrb[0].mxu0
        %v5908 = vadd.f32 %v3509, %v5907
        %5909 = vmatprep.mubr.bf16.mxu0 0
        %5910 = vmatmul.mubr.bf16.gmra.mrb[0].mxu0 %v3350
        %v5911 = vpop.f32.mrb[0].mxu0
        %v5912 = vadd.f32 %v3505, %v5911
        %v5913 = vpop.f32.mrb[0].mxu0
        %v5914 = vadd.f32 %v3509, %v5913
        %v5915 = vpop.f32.mrb[0].mxu0
        %v5916 = vadd.f32 %v3505, %v5915
        %v5917 = vpop.f32.mrb[0].mxu0
        %v5918 = vadd.f32 %v3509, %v5917
        %5919 = vmatprep.mubr.bf16.mxu0 0
        %5920 = vmatmul.mubr.bf16.gmra.mrb[0].mxu0 %v3351
        %v5921 = vpop.f32.mrb[0].mxu0
        %v5922 = vadd.f32 %v3505, %v5921
        %v5923 = vpop.f32.mrb[0].mxu0
        %v5924 = vadd.f32 %v3509, %v5923
        %v5925 = vpop.f32.mrb[0].mxu0
        %v5926 = vadd.f32 %v3505, %v5925
        %v5927 = vpop.f32.mrb[0].mxu0
        %v5928 = vadd.f32 %v3509, %v5927
        %5929 = vmatprep.mubr.bf16.mxu0 0
        %5930 = vmatmul.mubr.bf16.gmra.mrb[0].mxu0 %v3352
        %v5931 = vpop.f32.mrb[0].mxu0
        %v5932 = vadd.f32 %v3505, %v5931
        %v5933 = vpop.f32.mrb[0].mxu0
        %v5934 = vadd.f32 %v3509, %v5933
        %v5935 = vpop.f32.mrb[0].mxu0
        %v5936 = vadd.f32 %v3505, %v5935
        %v5937 = vpop.f32.mrb[0].mxu0
        %v5938 = vadd.f32 %v3509, %v5937
        %5939 = vmatprep.mubr.bf16.mxu0 0
        %5940 = vmatmul.mubr.bf16.gmra.mrb[0].mxu0 %v3353
        %v5941 = vpop.f32.mrb[0].mxu0
        %v5942 = vadd.f32 %v3505, %v5941
        %v5943 = vpop.f32.mrb[0].mxu0
        %v5944 = vadd.f32 %v3509, %v5943
        %v5945 = vpop.f32.mrb[0].mxu0
        %v5946 = vadd.f32 %v3505, %v5945
        %v5947 = vpop.f32.mrb[0].mxu0
        %v5948 = vadd.f32 %v3509, %v5947
        %5949 = vmatprep.mubr.bf16.mxu0 0
        %5950 = vmatmul.mubr.bf16.gmra.mrb[0].mxu0 %v3354
        %v5951 = vpop.f32.mrb[0].mxu0
        %v5952 = vadd.f32 %v3505, %v5951
        %v5953 = vpop.f32.mrb[0].mxu0
        %v5954 = vadd.f32 %v3509, %v5953
        %v5955 = vpop.f32.mrb[0].mxu0
        %v5956 = vadd.f32 %v3505, %v5955
        %v5957 = vpop.f32.mrb[0].mxu0
        %v5958 = vadd.f32 %v3509, %v5957
        %5959 = vmatprep.mubr.bf16.mxu0 0
        %5960 = vmatmul.mubr.bf16.gmra.mrb[0].mxu0 %v3355
        %v5961 = vpop.f32.mrb[0].mxu0
        %v5962 = vadd.f32 %v3505, %v5961
        %v5963 = vpop.f32.mrb[0].mxu0
        %v5964 = vadd.f32 %v3509, %v5963
        %v5965 = vpop.f32.mrb[0].mxu0
        %v5966 = vadd.f32 %v3505, %v5965
        %v5967 = vpop.f32.mrb[0].mxu0
        %v5968 = vadd.f32 %v3509, %v5967
        %5969 = vmatprep.mubr.bf16.mxu0 0
        %5970 = vmatmul.mubr.bf16.gmra.mrb[0].mxu0 %v3356
        %v5971 = vpop.f32.mrb[0].mxu0
        %v5972 = vadd.f32 %v3505, %v5971
        %v5973 = vpop.f32.mrb[0].mxu0
        %v5974 = vadd.f32 %v3509, %v5973
        %v5975 = vpop.f32.mrb[0].mxu0
        %v5976 = vadd.f32 %v3505, %v5975
        %v5977 = vpop.f32.mrb[0].mxu0
        %v5978 = vadd.f32 %v3509, %v5977
        %5979 = vmatprep.mubr.bf16.mxu0 0
        %5980 = vmatmul.mubr.bf16.gmra.mrb[0].mxu0 %v3357
        %v5981 = vpop.f32.mrb[0].mxu0
        %v5982 = vadd.f32 %v3505, %v5981
        %v5983 = vpop.f32.mrb[0].mxu0
        %v5984 = vadd.f32 %v3509, %v5983
        %v5985 = vpop.f32.mrb[0].mxu0
        %v5986 = vadd.f32 %v3505, %v5985
        %v5987 = vpop.f32.mrb[0].mxu0
        %v5988 = vadd.f32 %v3509, %v5987
        %5989 = vmatprep.mubr.bf16.mxu0 0
        %5990 = vmatmul.mubr.bf16.gmra.mrb[0].mxu0 %v3358
        %v5991 = vpop.f32.mrb[0].mxu0
        %v5992 = vadd.f32 %v3505, %v5991
        %v5993 = vpop.f32.mrb[0].mxu0
        %v5994 = vadd.f32 %v3509, %v5993
        %v5995 = vpop.f32.mrb[0].mxu0
        %v5996 = vadd.f32 %v3505, %v5995
        %v5997 = vpop.f32.mrb[0].mxu0
        %v5998 = vadd.f32 %v3509, %v5997
        %5999 = vmatprep.mubr.bf16.mxu0 0
        %6000 = vmatmul.mubr.bf16.gmra.mrb[0].mxu0 %v3359
        %v6001 = vpop.f32.mrb[0].mxu0
        %v6002 = vadd.f32 %v3505, %v6001
        %v6003 = vpop.f32.mrb[0].mxu0
        %v6004 = vadd.f32 %v3509, %v6003
        %v6005 = vpop.f32.mrb[0].mxu0
        %v6006 = vadd.f32 %v3505, %v6005
        %v6007 = vpop.f32.mrb[0].mxu0
        %v6008 = vadd.f32 %v3509, %v6007
        %6009 = vmatprep.mubr.bf16.mxu0 0
        %6010 = vmatmul.mubr.bf16.gmra.mrb[0].mxu0 %v3360
        %v6011 = vpop.f32.mrb[0].mxu0
        %v6012 = vadd.f32 %v3505, %v6011
        %v6013 = vpop.f32.mrb[0].mxu0
        %v6014 = vadd.f32 %v3509, %v6013
        %v6015 = vpop.f32.mrb[0].mxu0
        %v6016 = vadd.f32 %v3505, %v6015
        %v6017 = vpop.f32.mrb[0].mxu0
        %v6018 = vadd.f32 %v3509, %v6017
        %6019 = vmatprep.mubr.bf16.mxu0 0
        %6020 = vmatmul.mubr.bf16.gmra.mrb[0].mxu0 %v3361
        %v6021 = vpop.f32.mrb[0].mxu0
        %v6022 = vadd.f32 %v3505, %v6021
        %v6023 = vpop.f32.mrb[0].mxu0
        %v6024 = vadd.f32 %v3509, %v6023
        %v6025 = vpop.f32.mrb[0].mxu0
        %v6026 = vadd.f32 %v3505, %v6025
        %v6027 = vpop.f32.mrb[0].mxu0
        %v6028 = vadd.f32 %v3509, %v6027
        %6029 = vmatprep.mubr.bf16.mxu0 0
        %6030 = vmatmul.mubr.bf16.gmra.mrb[0].mxu0 %v3362
        %v6031 = vpop.f32.mrb[0].mxu0
        %v6032 = vadd.f32 %v3505, %v6031
        %v6033 = vpop.f32.mrb[0].mxu0
        %v6034 = vadd.f32 %v3509, %v6033
        %v6035 = vpop.f32.mrb[0].mxu0
        %v6036 = vadd.f32 %v3505, %v6035
        %v6037 = vpop.f32.mrb[0].mxu0
        %v6038 = vadd.f32 %v3509, %v6037
        %6039 = vmatprep.mubr.bf16.mxu0 0
        %6040 = vmatmul.mubr.bf16.gmra.mrb[0].mxu0 %v3363
        %v6041 = vpop.f32.mrb[0].mxu0
        %v6042 = vadd.f32 %v3505, %v6041
        %v6043 = vpop.f32.mrb[0].mxu0
        %v6044 = vadd.f32 %v3509, %v6043
        %v6045 = vpop.f32.mrb[0].mxu0
        %v6046 = vadd.f32 %v3505, %v6045
        %v6047 = vpop.f32.mrb[0].mxu0
        %v6048 = vadd.f32 %v3509, %v6047
        %6049 = vmatprep.mubr.bf16.mxu0 0
        %6050 = vmatmul.mubr.bf16.gmra.mrb[0].mxu0 %v3364
        %v6051 = vpop.f32.mrb[0].mxu0
        %v6052 = vadd.f32 %v3505, %v6051
        %v6053 = vpop.f32.mrb[0].mxu0
        %v6054 = vadd.f32 %v3509, %v6053
        %v6055 = vpop.f32.mrb[0].mxu0
        %v6056 = vadd.f32 %v3505, %v6055
        %v6057 = vpop.f32.mrb[0].mxu0
        %v6058 = vadd.f32 %v3509, %v6057
        %6059 = vmatprep.mubr.bf16.mxu0 0
        %6060 = vmatmul.mubr.bf16.gmra.mrb[0].mxu0 %v3365
        %v6061 = vpop.f32.mrb[0].mxu0
        %v6062 = vadd.f32 %v3505, %v6061
        %v6063 = vpop.f32.mrb[0].mxu0
        %v6064 = vadd.f32 %v3509, %v6063
        %v6065 = vpop.f32.mrb[0].mxu0
        %v6066 = vadd.f32 %v3505, %v6065
        %v6067 = vpop.f32.mrb[0].mxu0
        %v6068 = vadd.f32 %v3509, %v6067
        %6069 = vmatprep.mubr.bf16.mxu0 0
        %6070 = vmatmul.mubr.bf16.gmra.mrb[0].mxu0 %v3366
        %v6071 = vpop.f32.mrb[0].mxu0
        %v6072 = vadd.f32 %v3505, %v6071
        %v6073 = vpop.f32.mrb[0].mxu0
        %v6074 = vadd.f32 %v3509, %v6073
        %v6075 = vpop.f32.mrb[0].mxu0
        %v6076 = vadd.f32 %v3505, %v6075
        %v6077 = vpop.f32.mrb[0].mxu0
        %v6078 = vadd.f32 %v3509, %v6077
        %6079 = vmatprep.mubr.bf16.mxu0 0
        %6080 = vmatmul.mubr.bf16.gmra.mrb[0].mxu0 %v3367
        %v6081 = vpop.f32.mrb[0].mxu0
        %v6082 = vadd.f32 %v3505, %v6081
        %v6083 = vpop.f32.mrb[0].mxu0
        %v6084 = vadd.f32 %v3509, %v6083
        %v6085 = vpop.f32.mrb[0].mxu0
        %v6086 = vadd.f32 %v3505, %v6085
        %v6087 = vpop.f32.mrb[0].mxu0
        %v6088 = vadd.f32 %v3509, %v6087
        %6089 = vmatprep.mubr.bf16.mxu0 0
        %6090 = vmatmul.mubr.bf16.gmra.mrb[0].mxu0 %v3368
        %v6091 = vpop.f32.mrb[0].mxu0
        %v6092 = vadd.f32 %v3505, %v6091
        %v6093 = vpop.f32.mrb[0].mxu0
        %v6094 = vadd.f32 %v3509, %v6093
        %v6095 = vpop.f32.mrb[0].mxu0
        %v6096 = vadd.f32 %v3505, %v6095
        %v6097 = vpop.f32.mrb[0].mxu0
        %v6098 = vadd.f32 %v3509, %v6097
        %6099 = vmatprep.mubr.bf16.mxu0 0
        %6100 = vmatmul.mubr.bf16.gmra.mrb[0].mxu0 %v3369
        %v6101 = vpop.f32.mrb[0].mxu0
        %v6102 = vadd.f32 %v3505, %v6101
        %v6103 = vpop.f32.mrb[0].mxu0
        %v6104 = vadd.f32 %v3509, %v6103
        %v6105 = vpop.f32.mrb[0].mxu0
        %v6106 = vadd.f32 %v3505, %v6105
        %v6107 = vpop.f32.mrb[0].mxu0
        %v6108 = vadd.f32 %v3509, %v6107
        %6109 = vmatprep.mubr.bf16.mxu0 0
        %6110 = vmatmul.mubr.bf16.gmra.mrb[0].mxu0 %v3370
        %v6111 = vpop.f32.mrb[0].mxu0
        %v6112 = vadd.f32 %v3505, %v6111
        %v6113 = vpop.f32.mrb[0].mxu0
        %v6114 = vadd.f32 %v3509, %v6113
        %v6115 = vpop.f32.mrb[0].mxu0
        %v6116 = vadd.f32 %v3505, %v6115
        %v6117 = vpop.f32.mrb[0].mxu0
        %v6118 = vadd.f32 %v3509, %v6117
        %6119 = vmatprep.mubr.bf16.mxu0 0
        %6120 = vmatmul.mubr.bf16.gmra.mrb[0].mxu0 %v3371
        %v6121 = vpop.f32.mrb[0].mxu0
        %v6122 = vadd.f32 %v3505, %v6121
        %v6123 = vpop.f32.mrb[0].mxu0
        %v6124 = vadd.f32 %v3509, %v6123
        %v6125 = vpop.f32.mrb[0].mxu0
        %v6126 = vadd.f32 %v3505, %v6125
        %v6127 = vpop.f32.mrb[0].mxu0
        %v6128 = vadd.f32 %v3509, %v6127
        %6129 = vmatprep.mubr.bf16.mxu0 0
        %6130 = vmatmul.mubr.bf16.gmra.mrb[0].mxu0 %v3372
        %v6131 = vpop.f32.mrb[0].mxu0
        %v6132 = vadd.f32 %v3505, %v6131
        %v6133 = vpop.f32.mrb[0].mxu0
        %v6134 = vadd.f32 %v3509, %v6133
        %v6135 = vpop.f32.mrb[0].mxu0
        %v6136 = vadd.f32 %v3505, %v6135
        %v6137 = vpop.f32.mrb[0].mxu0
        %v6138 = vadd.f32 %v3509, %v6137
        %6139 = vmatprep.mubr.bf16.mxu0 0
        %6140 = vmatmul.mubr.bf16.gmra.mrb[0].mxu0 %v3373
        %v6141 = vpop.f32.mrb[0].mxu0
        %v6142 = vadd.f32 %v3505, %v6141
        %v6143 = vpop.f32.mrb[0].mxu0
        %v6144 = vadd.f32 %v3509, %v6143
        %v6145 = vpop.f32.mrb[0].mxu0
        %v6146 = vadd.f32 %v3505, %v6145
        %v6147 = vpop.f32.mrb[0].mxu0
        %v6148 = vadd.f32 %v3509, %v6147
        %6149 = vmatprep.mubr.bf16.mxu0 0
        %6150 = vmatmul.mubr.bf16.gmra.mrb[0].mxu0 %v3374
        %v6151 = vpop.f32.mrb[0].mxu0
        %v6152 = vadd.f32 %v3505, %v6151
        %v6153 = vpop.f32.mrb[0].mxu0
        %v6154 = vadd.f32 %v3509, %v6153
        %v6155 = vpop.f32.mrb[0].mxu0
        %v6156 = vadd.f32 %v3505, %v6155
        %v6157 = vpop.f32.mrb[0].mxu0
        %v6158 = vadd.f32 %v3509, %v6157
        %6159 = vmatprep.mubr.bf16.mxu0 0
        %6160 = vmatmul.mubr.bf16.gmra.mrb[0].mxu0 %v3375
        %v6161 = vpop.f32.mrb[0].mxu0
        %v6162 = vadd.f32 %v3505, %v6161
        %v6163 = vpop.f32.mrb[0].mxu0
        %v6164 = vadd.f32 %v3509, %v6163
        %v6165 = vpop.f32.mrb[0].mxu0
        %v6166 = vadd.f32 %v3505, %v6165
        %v6167 = vpop.f32.mrb[0].mxu0
        %v6168 = vadd.f32 %v3509, %v6167
        %6169 = vmatprep.mubr.bf16.mxu0 0
        %6170 = vmatmul.mubr.bf16.gmra.mrb[0].mxu0 %v3376
        %v6171 = vpop.f32.mrb[0].mxu0
        %v6172 = vadd.f32 %v3505, %v6171
        %v6173 = vpop.f32.mrb[0].mxu0
        %v6174 = vadd.f32 %v3509, %v6173
        %v6175 = vpop.f32.mrb[0].mxu0
        %v6176 = vadd.f32 %v3505, %v6175
        %v6177 = vpop.f32.mrb[0].mxu0
        %v6178 = vadd.f32 %v3509, %v6177
        %6179 = vmatprep.mubr.bf16.mxu0 0
        %6180 = vmatmul.mubr.bf16.gmra.mrb[0].mxu0 %v3377
        %v6181 = vpop.f32.mrb[0].mxu0
        %v6182 = vadd.f32 %v3505, %v6181
        %v6183 = vpop.f32.mrb[0].mxu0
        %v6184 = vadd.f32 %v3509, %v6183
        %v6185 = vpop.f32.mrb[0].mxu0
        %v6186 = vadd.f32 %v3505, %v6185
        %v6187 = vpop.f32.mrb[0].mxu0
        %v6188 = vadd.f32 %v3509, %v6187
        %6189 = vmatprep.mubr.bf16.mxu0 0
        %6190 = vmatmul.mubr.bf16.gmra.mrb[0].mxu0 %v3378
        %v6191 = vpop.f32.mrb[0].mxu0
        %v6192 = vadd.f32 %v3505, %v6191
        %v6193 = vpop.f32.mrb[0].mxu0
        %v6194 = vadd.f32 %v3509, %v6193
        %v6195 = vpop.f32.mrb[0].mxu0
        %v6196 = vadd.f32 %v3505, %v6195
        %v6197 = vpop.f32.mrb[0].mxu0
        %v6198 = vadd.f32 %v3509, %v6197
        %6199 = vmatprep.mubr.bf16.mxu0 0
        %6200 = vmatmul.mubr.bf16.gmra.mrb[0].mxu0 %v3379
        %v6201 = vpop.f32.mrb[0].mxu0
        %v6202 = vadd.f32 %v3505, %v6201
        %v6203 = vpop.f32.mrb[0].mxu0
        %v6204 = vadd.f32 %v3509, %v6203
        %v6205 = vpop.f32.mrb[0].mxu0
        %v6206 = vadd.f32 %v3505, %v6205
        %v6207 = vpop.f32.mrb[0].mxu0
        %v6208 = vadd.f32 %v3509, %v6207
        %6209 = vmatprep.mubr.bf16.mxu0 0
        %6210 = vmatmul.mubr.bf16.gmra.mrb[0].mxu0 %v3380
        %v6211 = vpop.f32.mrb[0].mxu0
        %v6212 = vadd.f32 %v3505, %v6211
        %v6213 = vpop.f32.mrb[0].mxu0
        %v6214 = vadd.f32 %v3509, %v6213
        %v6215 = vpop.f32.mrb[0].mxu0
        %v6216 = vadd.f32 %v3505, %v6215
        %v6217 = vpop.f32.mrb[0].mxu0
        %v6218 = vadd.f32 %v3509, %v6217
        %6219 = vmatprep.mubr.bf16.mxu0 0
        %6220 = vmatmul.mubr.bf16.gmra.mrb[0].mxu0 %v3381
        %v6221 = vpop.f32.mrb[0].mxu0
        %v6222 = vadd.f32 %v3505, %v6221
        %v6223 = vpop.f32.mrb[0].mxu0
        %v6224 = vadd.f32 %v3509, %v6223
        %v6225 = vpop.f32.mrb[0].mxu0
        %v6226 = vadd.f32 %v3505, %v6225
        %v6227 = vpop.f32.mrb[0].mxu0
        %v6228 = vadd.f32 %v3509, %v6227
        %6229 = vmatprep.mubr.bf16.mxu0 0
        %6230 = vmatmul.mubr.bf16.gmra.mrb[0].mxu0 %v3382
        %v6231 = vpop.f32.mrb[0].mxu0
        %v6232 = vadd.f32 %v3505, %v6231
        %v6233 = vpop.f32.mrb[0].mxu0
        %v6234 = vadd.f32 %v3509, %v6233
        %v6235 = vpop.f32.mrb[0].mxu0
        %v6236 = vadd.f32 %v3505, %v6235
        %v6237 = vpop.f32.mrb[0].mxu0
        %v6238 = vadd.f32 %v3509, %v6237
        %6239 = vmatprep.mubr.bf16.mxu0 0
        %6240 = vmatmul.mubr.bf16.gmra.mrb[0].mxu0 %v3383
        %v6241 = vpop.f32.mrb[0].mxu0
        %v6242 = vadd.f32 %v3505, %v6241
        %v6243 = vpop.f32.mrb[0].mxu0
        %v6244 = vadd.f32 %v3509, %v6243
        %v6245 = vpop.f32.mrb[0].mxu0
        %v6246 = vadd.f32 %v3505, %v6245
        %v6247 = vpop.f32.mrb[0].mxu0
        %v6248 = vadd.f32 %v3509, %v6247
        %6249 = vmatprep.mubr.bf16.mxu0 0
        %6250 = vmatmul.mubr.bf16.gmra.mrb[0].mxu0 %v3384
        %v6251 = vpop.f32.mrb[0].mxu0
        %v6252 = vadd.f32 %v3505, %v6251
        %v6253 = vpop.f32.mrb[0].mxu0
        %v6254 = vadd.f32 %v3509, %v6253
        %v6255 = vpop.f32.mrb[0].mxu0
        %v6256 = vadd.f32 %v3505, %v6255
        %v6257 = vpop.f32.mrb[0].mxu0
        %v6258 = vadd.f32 %v3509, %v6257
        %6259 = vmatprep.mubr.bf16.mxu0 0
        %6260 = vmatmul.mubr.bf16.gmra.mrb[0].mxu0 %v3385
        %v6261 = vpop.f32.mrb[0].mxu0
        %v6262 = vadd.f32 %v3505, %v6261
        %v6263 = vpop.f32.mrb[0].mxu0
        %v6264 = vadd.f32 %v3509, %v6263
        %v6265 = vpop.f32.mrb[0].mxu0
        %v6266 = vadd.f32 %v3505, %v6265
        %v6267 = vpop.f32.mrb[0].mxu0
        %v6268 = vadd.f32 %v3509, %v6267
        %6269 = vmatprep.mubr.bf16.mxu0 0
        %6270 = vmatmul.mubr.bf16.gmra.mrb[0].mxu0 %v3386
        %v6271 = vpop.f32.mrb[0].mxu0
        %v6272 = vadd.f32 %v3505, %v6271
        %v6273 = vpop.f32.mrb[0].mxu0
        %v6274 = vadd.f32 %v3509, %v6273
        %v6275 = vpop.f32.mrb[0].mxu0
        %v6276 = vadd.f32 %v3505, %v6275
        %v6277 = vpop.f32.mrb[0].mxu0
        %v6278 = vadd.f32 %v3509, %v6277
        %6279 = vmatprep.mubr.bf16.mxu0 0
        %6280 = vmatmul.mubr.bf16.gmra.mrb[0].mxu0 %v3387
        %v6281 = vpop.f32.mrb[0].mxu0
        %v6282 = vadd.f32 %v3505, %v6281
        %v6283 = vpop.f32.mrb[0].mxu0
        %v6284 = vadd.f32 %v3509, %v6283
        %v6285 = vpop.f32.mrb[0].mxu0
        %v6286 = vadd.f32 %v3505, %v6285
        %v6287 = vpop.f32.mrb[0].mxu0
        %v6288 = vadd.f32 %v3509, %v6287
        %6289 = vmatprep.mubr.bf16.mxu0 0
        %6290 = vmatmul.mubr.bf16.gmra.mrb[0].mxu0 %v3388
        %v6291 = vpop.f32.mrb[0].mxu0
        %v6292 = vadd.f32 %v3505, %v6291
        %v6293 = vpop.f32.mrb[0].mxu0
        %v6294 = vadd.f32 %v3509, %v6293
        %v6295 = vpop.f32.mrb[0].mxu0
        %v6296 = vadd.f32 %v3505, %v6295
        %v6297 = vpop.f32.mrb[0].mxu0
        %v6298 = vadd.f32 %v3509, %v6297
        %6299 = vmatprep.mubr.bf16.mxu0 0
        %6300 = vmatmul.mubr.bf16.gmra.mrb[0].mxu0 %v3389
        %v6301 = vpop.f32.mrb[0].mxu0
        %v6302 = vadd.f32 %v3505, %v6301
        %v6303 = vpop.f32.mrb[0].mxu0
        %v6304 = vadd.f32 %v3509, %v6303
        %v6305 = vpop.f32.mrb[0].mxu0
        %v6306 = vadd.f32 %v3505, %v6305
        %v6307 = vpop.f32.mrb[0].mxu0
        %v6308 = vadd.f32 %v3509, %v6307
        %6309 = vmatprep.mubr.bf16.mxu0 0
        %6310 = vmatmul.mubr.bf16.gmra.mrb[0].mxu0 %v3390
        %v6311 = vpop.f32.mrb[0].mxu0
        %v6312 = vadd.f32 %v3505, %v6311
        %v6313 = vpop.f32.mrb[0].mxu0
        %v6314 = vadd.f32 %v3509, %v6313
        %v6315 = vpop.f32.mrb[0].mxu0
        %v6316 = vadd.f32 %v3505, %v6315
        %v6317 = vpop.f32.mrb[0].mxu0
        %v6318 = vadd.f32 %v3509, %v6317
        %6319 = vmatprep.mubr.bf16.mxu0 0
        %6320 = vmatmul.mubr.bf16.gmra.mrb[0].mxu0 %v3391
        %v6321 = vpop.f32.mrb[0].mxu0
        %v6322 = vadd.f32 %v3505, %v6321
        %v6323 = vpop.f32.mrb[0].mxu0
        %v6324 = vadd.f32 %v3509, %v6323
        %v6325 = vpop.f32.mrb[0].mxu0
        %v6326 = vadd.f32 %v3505, %v6325
        %v6327 = vpop.f32.mrb[0].mxu0
        %v6328 = vadd.f32 %v3509, %v6327
        %6329 = vmatprep.mubr.bf16.mxu0 0
        %6330 = vmatmul.mubr.bf16.gmra.mrb[0].mxu0 %v3392
        %v6331 = vpop.f32.mrb[0].mxu0
        %v6332 = vadd.f32 %v3505, %v6331
        %v6333 = vpop.f32.mrb[0].mxu0
        %v6334 = vadd.f32 %v3509, %v6333
        %v6335 = vpop.f32.mrb[0].mxu0
        %v6336 = vadd.f32 %v3505, %v6335
        %v6337 = vpop.f32.mrb[0].mxu0
        %v6338 = vadd.f32 %v3509, %v6337
        %6339 = vmatprep.mubr.bf16.mxu0 0
        %6340 = vmatmul.mubr.bf16.gmra.mrb[0].mxu0 %v3393
        %v6341 = vpop.f32.mrb[0].mxu0
        %v6342 = vadd.f32 %v3505, %v6341
        %v6343 = vpop.f32.mrb[0].mxu0
        %v6344 = vadd.f32 %v3509, %v6343
        %v6345 = vpop.f32.mrb[0].mxu0
        %v6346 = vadd.f32 %v3505, %v6345
        %v6347 = vpop.f32.mrb[0].mxu0
        %v6348 = vadd.f32 %v3509, %v6347
        %6349 = vmatprep.mubr.bf16.mxu0 0
        %6350 = vmatmul.mubr.bf16.gmra.mrb[0].mxu0 %v3394
        %v6351 = vpop.f32.mrb[0].mxu0
        %v6352 = vadd.f32 %v3505, %v6351
        %v6353 = vpop.f32.mrb[0].mxu0
        %v6354 = vadd.f32 %v3509, %v6353
        %v6355 = vpop.f32.mrb[0].mxu0
        %v6356 = vadd.f32 %v3505, %v6355
        %v6357 = vpop.f32.mrb[0].mxu0
        %v6358 = vadd.f32 %v3509, %v6357
        %6359 = vmatprep.mubr.bf16.mxu0 0
        %6360 = vmatmul.mubr.bf16.gmra.mrb[0].mxu0 %v3395
        %v6361 = vpop.f32.mrb[0].mxu0
        %v6362 = vadd.f32 %v3505, %v6361
        %v6363 = vpop.f32.mrb[0].mxu0
        %v6364 = vadd.f32 %v3509, %v6363
        %v6365 = vpop.f32.mrb[0].mxu0
        %v6366 = vadd.f32 %v3505, %v6365
        %v6367 = vpop.f32.mrb[0].mxu0
        %v6368 = vadd.f32 %v3509, %v6367
        %6369 = vmatprep.mubr.bf16.mxu0 0
        %6370 = vmatmul.mubr.bf16.gmra.mrb[0].mxu0 %v3396
        %v6371 = vpop.f32.mrb[0].mxu0
        %v6372 = vadd.f32 %v3505, %v6371
        %v6373 = vpop.f32.mrb[0].mxu0
        %v6374 = vadd.f32 %v3509, %v6373
        %v6375 = vpop.f32.mrb[0].mxu0
        %v6376 = vadd.f32 %v3505, %v6375
        %v6377 = vpop.f32.mrb[0].mxu0
        %v6378 = vadd.f32 %v3509, %v6377
        %6379 = vmatprep.mubr.bf16.mxu0 0
        %6380 = vmatmul.mubr.bf16.gmra.mrb[0].mxu0 %v3397
        %v6381 = vpop.f32.mrb[0].mxu0
        %v6382 = vadd.f32 %v3505, %v6381
        %v6383 = vpop.f32.mrb[0].mxu0
        %v6384 = vadd.f32 %v3509, %v6383
        %v6385 = vpop.f32.mrb[0].mxu0
        %v6386 = vadd.f32 %v3505, %v6385
        %v6387 = vpop.f32.mrb[0].mxu0
        %v6388 = vadd.f32 %v3509, %v6387
        %6389 = vmatprep.mubr.bf16.mxu0 0
        %6390 = vmatmul.mubr.bf16.gmra.mrb[0].mxu0 %v3398
        %v6391 = vpop.f32.mrb[0].mxu0
        %v6392 = vadd.f32 %v3505, %v6391
        %v6393 = vpop.f32.mrb[0].mxu0
        %v6394 = vadd.f32 %v3509, %v6393
        %v6395 = vpop.f32.mrb[0].mxu0
        %v6396 = vadd.f32 %v3505, %v6395
        %v6397 = vpop.f32.mrb[0].mxu0
        %v6398 = vadd.f32 %v3509, %v6397
        %6399 = vmatprep.mubr.bf16.mxu0 0
        %6400 = vmatmul.mubr.bf16.gmra.mrb[0].mxu0 %v3399
        %v6401 = vpop.f32.mrb[0].mxu0
        %v6402 = vadd.f32 %v3505, %v6401
        %v6403 = vpop.f32.mrb[0].mxu0
        %v6404 = vadd.f32 %v3509, %v6403
        %v6405 = vpop.f32.mrb[0].mxu0
        %v6406 = vadd.f32 %v3505, %v6405
        %v6407 = vpop.f32.mrb[0].mxu0
        %v6408 = vadd.f32 %v3509, %v6407
        %6409 = vmatprep.mubr.bf16.mxu0 0
        %6410 = vmatmul.mubr.bf16.gmra.mrb[0].mxu0 %v3400
        %v6411 = vpop.f32.mrb[0].mxu0
        %v6412 = vadd.f32 %v3505, %v6411
        %v6413 = vpop.f32.mrb[0].mxu0
        %v6414 = vadd.f32 %v3509, %v6413
        %v6415 = vpop.f32.mrb[0].mxu0
        %v6416 = vadd.f32 %v3505, %v6415
        %v6417 = vpop.f32.mrb[0].mxu0
        %v6418 = vadd.f32 %v3509, %v6417
        %6419 = vmatprep.mubr.bf16.mxu0 0
        %6420 = vmatmul.mubr.bf16.gmra.mrb[0].mxu0 %v3401
        %v6421 = vpop.f32.mrb[0].mxu0
        %v6422 = vadd.f32 %v3505, %v6421
        %v6423 = vpop.f32.mrb[0].mxu0
        %v6424 = vadd.f32 %v3509, %v6423
        %v6425 = vpop.f32.mrb[0].mxu0
        %v6426 = vadd.f32 %v3505, %v6425
        %v6427 = vpop.f32.mrb[0].mxu0
        %v6428 = vadd.f32 %v3509, %v6427
        %6429 = vmatprep.mubr.bf16.mxu0 0
        %6430 = vmatmul.mubr.bf16.gmra.mrb[0].mxu0 %v3402
        %v6431 = vpop.f32.mrb[0].mxu0
        %v6432 = vadd.f32 %v3505, %v6431
        %v6433 = vpop.f32.mrb[0].mxu0
        %v6434 = vadd.f32 %v3509, %v6433
        %v6435 = vpop.f32.mrb[0].mxu0
        %v6436 = vadd.f32 %v3505, %v6435
        %v6437 = vpop.f32.mrb[0].mxu0
        %v6438 = vadd.f32 %v3509, %v6437
        %6439 = vmatprep.mubr.bf16.mxu0 0
        %6440 = vmatmul.mubr.bf16.gmra.mrb[0].mxu0 %v3403
        %v6441 = vpop.f32.mrb[0].mxu0
        %v6442 = vadd.f32 %v3505, %v6441
        %v6443 = vpop.f32.mrb[0].mxu0
        %v6444 = vadd.f32 %v3509, %v6443
        %v6445 = vpop.f32.mrb[0].mxu0
        %v6446 = vadd.f32 %v3505, %v6445
        %v6447 = vpop.f32.mrb[0].mxu0
        %v6448 = vadd.f32 %v3509, %v6447
        %6449 = vmatprep.mubr.bf16.mxu0 0
        %6450 = vmatmul.mubr.bf16.gmra.mrb[0].mxu0 %v3404
        %v6451 = vpop.f32.mrb[0].mxu0
        %v6452 = vadd.f32 %v3505, %v6451
        %v6453 = vpop.f32.mrb[0].mxu0
        %v6454 = vadd.f32 %v3509, %v6453
        %v6455 = vpop.f32.mrb[0].mxu0
        %v6456 = vadd.f32 %v3505, %v6455
        %v6457 = vpop.f32.mrb[0].mxu0
        %v6458 = vadd.f32 %v3509, %v6457
        %6459 = vmatprep.mubr.bf16.mxu0 0
        %6460 = vmatmul.mubr.bf16.gmra.mrb[0].mxu0 %v3405
        %v6461 = vpop.f32.mrb[0].mxu0
        %v6462 = vadd.f32 %v3505, %v6461
        %v6463 = vpop.f32.mrb[0].mxu0
        %v6464 = vadd.f32 %v3509, %v6463
        %v6465 = vpop.f32.mrb[0].mxu0
        %v6466 = vadd.f32 %v3505, %v6465
        %v6467 = vpop.f32.mrb[0].mxu0
        %v6468 = vadd.f32 %v3509, %v6467
        %6469 = vmatprep.mubr.bf16.mxu0 0
        %6470 = vmatmul.mubr.bf16.gmra.mrb[0].mxu0 %v3406
        %v6471 = vpop.f32.mrb[0].mxu0
        %v6472 = vadd.f32 %v3505, %v6471
        %v6473 = vpop.f32.mrb[0].mxu0
        %v6474 = vadd.f32 %v3509, %v6473
        %v6475 = vpop.f32.mrb[0].mxu0
        %v6476 = vadd.f32 %v3505, %v6475
        %v6477 = vpop.f32.mrb[0].mxu0
        %v6478 = vadd.f32 %v3509, %v6477
        %6479 = vmatprep.mubr.bf16.mxu0 0
        %6480 = vmatmul.mubr.bf16.gmra.mrb[0].mxu0 %v3407
        %v6481 = vpop.f32.mrb[0].mxu0
        %v6482 = vadd.f32 %v3505, %v6481
        %v6483 = vpop.f32.mrb[0].mxu0
        %v6484 = vadd.f32 %v3509, %v6483
        %v6485 = vpop.f32.mrb[0].mxu0
        %v6486 = vadd.f32 %v3505, %v6485
        %v6487 = vpop.f32.mrb[0].mxu0
        %v6488 = vadd.f32 %v3509, %v6487
        %6489 = vmatprep.mubr.bf16.mxu0 0
        %6490 = vmatmul.mubr.bf16.gmra.mrb[0].mxu0 %v3408
        %v6491 = vpop.f32.mrb[0].mxu0
        %v6492 = vadd.f32 %v3505, %v6491
        %v6493 = vpop.f32.mrb[0].mxu0
        %v6494 = vadd.f32 %v3509, %v6493
        %v6495 = vpop.f32.mrb[0].mxu0
        %v6496 = vadd.f32 %v3505, %v6495
        %v6497 = vpop.f32.mrb[0].mxu0
        %v6498 = vadd.f32 %v3509, %v6497
        %6499 = vmatprep.mubr.bf16.mxu0 0
        %6500 = vmatmul.mubr.bf16.gmra.mrb[0].mxu0 %v3409
        %v6501 = vpop.f32.mrb[0].mxu0
        %v6502 = vadd.f32 %v3505, %v6501
        %v6503 = vpop.f32.mrb[0].mxu0
        %v6504 = vadd.f32 %v3509, %v6503
        %v6505 = vpop.f32.mrb[0].mxu0
        %v6506 = vadd.f32 %v3505, %v6505
        %v6507 = vpop.f32.mrb[0].mxu0
        %v6508 = vadd.f32 %v3509, %v6507
        %6509 = vmatprep.mubr.bf16.mxu0 0
        %6510 = vmatmul.mubr.bf16.gmra.mrb[0].mxu0 %v3410
        %v6511 = vpop.f32.mrb[0].mxu0
        %v6512 = vadd.f32 %v3505, %v6511
        %v6513 = vpop.f32.mrb[0].mxu0
        %v6514 = vadd.f32 %v3509, %v6513
        %v6515 = vpop.f32.mrb[0].mxu0
        %v6516 = vadd.f32 %v3505, %v6515
        %v6517 = vpop.f32.mrb[0].mxu0
        %v6518 = vadd.f32 %v3509, %v6517
        %6519 = vmatprep.mubr.bf16.mxu0 0
        %6520 = vmatmul.mubr.bf16.gmra.mrb[0].mxu0 %v3411
        %v6521 = vpop.f32.mrb[0].mxu0
        %v6522 = vadd.f32 %v3505, %v6521
        %v6523 = vpop.f32.mrb[0].mxu0
        %v6524 = vadd.f32 %v3509, %v6523
        %v6525 = vpop.f32.mrb[0].mxu0
        %v6526 = vadd.f32 %v3505, %v6525
        %v6527 = vpop.f32.mrb[0].mxu0
        %v6528 = vadd.f32 %v3509, %v6527
        %6529 = vdwg.mxu0
        %v6530 = vtanh.pop %v3873
        %v6531 = vtanh.pop %v3875
        %v6532 = vtanh.pop %v4546
        %v6533 = vtanh.pop %v4548
        %v6534 = vtanh.pop %v5219
        %v6535 = vtanh.pop %v5221
        %v6536 = vtanh.pop %v5892
        %v6537 = vtanh.pop %v5894
        %v6538 = vtanh.pop %v3877
        %v6539 = vtanh.pop %v3879
        %v6540 = vtanh.pop %v4550
        %v6541 = vtanh.pop %v4552
        %v6542 = vtanh.pop %v5223
        %v6543 = vtanh.pop %v5225
        %v6544 = vtanh.pop %v5896
        %v6545 = vtanh.pop %v5898
        %v6546 = vtanh.pop %v3883
        %v6547 = vtanh.pop %v3885
        %v6548 = vtanh.pop %v4556
        %v6549 = vtanh.pop %v4558
        %v6550 = vtanh.pop %v5229
        %v6551 = vtanh.pop %v5231
        %v6552 = vtanh.pop %v5902
        %v6553 = vtanh.pop %v5904
        %v6554 = vtanh.pop %v3887
        %v6555 = vtanh.pop %v3889
        %v6556 = vtanh.pop %v4560
        %v6557 = vtanh.pop %v4562
        %v6558 = vtanh.pop %v5233
        %v6559 = vtanh.pop %v5235
        %v6560 = vtanh.pop %v5906
        %v6561 = vtanh.pop %v5908
        %v6562 = vtanh.pop %v3893
        %v6563 = vtanh.pop %v3895
        %v6564 = vtanh.pop %v4566
        %v6565 = vtanh.pop %v4568
        %v6566 = vtanh.pop %v5239
        %v6567 = vtanh.pop %v5241
        %v6568 = vtanh.pop %v5912
        %v6569 = vtanh.pop %v5914
        %v6570 = vtanh.pop %v3897
        %v6571 = vtanh.pop %v3899
        %v6572 = vtanh.pop %v4570
        %v6573 = vtanh.pop %v4572
        %v6574 = vtanh.pop %v5243
        %v6575 = vtanh.pop %v5245
        %v6576 = vtanh.pop %v5916
        %v6577 = vtanh.pop %v5918
        %v6578 = vtanh.pop %v3903
        %v6579 = vtanh.pop %v3905
        %v6580 = vtanh.pop %v4576
        %v6581 = vtanh.pop %v4578
        %v6582 = vtanh.pop %v5249
        %v6583 = vtanh.pop %v5251
        %v6584 = vtanh.pop %v5922
        %v6585 = vtanh.pop %v5924
        %v6586 = vtanh.pop %v3907
        %v6587 = vtanh.pop %v3909
        %v6588 = vtanh.pop %v4580
        %v6589 = vtanh.pop %v4582
        %v6590 = vtanh.pop %v5253
        %v6591 = vtanh.pop %v5255
        %v6592 = vtanh.pop %v5926
        %v6593 = vtanh.pop %v5928
        %v6594 = vtanh.pop %v3913
        %v6595 = vtanh.pop %v3915
        %v6596 = vtanh.pop %v4586
        %v6597 = vtanh.pop %v4588
        %v6598 = vtanh.pop %v5259
        %v6599 = vtanh.pop %v5261
        %v6600 = vtanh.pop %v5932
        %v6601 = vtanh.pop %v5934
        %v6602 = vtanh.pop %v3917
        %v6603 = vtanh.pop %v3919
        %v6604 = vtanh.pop %v4590
        %v6605 = vtanh.pop %v4592
        %v6606 = vtanh.pop %v5263
        %v6607 = vtanh.pop %v5265
        %v6608 = vtanh.pop %v5936
        %v6609 = vtanh.pop %v5938
        %v6610 = vtanh.pop %v3923
        %v6611 = vtanh.pop %v3925
        %v6612 = vtanh.pop %v4596
        %v6613 = vtanh.pop %v4598
        %v6614 = vtanh.pop %v5269
        %v6615 = vtanh.pop %v5271
        %v6616 = vtanh.pop %v5942
        %v6617 = vtanh.pop %v5944
        %v6618 = vtanh.pop %v3927
        %v6619 = vtanh.pop %v3929
        %v6620 = vtanh.pop %v4600
        %v6621 = vtanh.pop %v4602
        %v6622 = vtanh.pop %v5273
        %v6623 = vtanh.pop %v5275
        %v6624 = vtanh.pop %v5946
        %v6625 = vtanh.pop %v5948
        %v6626 = vtanh.pop %v3933
        %v6627 = vtanh.pop %v3935
        %v6628 = vtanh.pop %v4606
        %v6629 = vtanh.pop %v4608
        %v6630 = vtanh.pop %v5279
        %v6631 = vtanh.pop %v5281
        %v6632 = vtanh.pop %v5952
        %v6633 = vtanh.pop %v5954
        %v6634 = vtanh.pop %v3937
        %v6635 = vtanh.pop %v3939
        %v6636 = vtanh.pop %v4610
        %v6637 = vtanh.pop %v4612
        %v6638 = vtanh.pop %v5283
        %v6639 = vtanh.pop %v5285
        %v6640 = vtanh.pop %v5956
        %v6641 = vtanh.pop %v5958
        %v6642 = vtanh.pop %v3943
        %v6643 = vtanh.pop %v3945
        %v6644 = vtanh.pop %v4616
        %v6645 = vtanh.pop %v4618
        %v6646 = vtanh.pop %v5289
        %v6647 = vtanh.pop %v5291
        %v6648 = vtanh.pop %v5962
        %v6649 = vtanh.pop %v5964
        %v6650 = vtanh.pop %v3947
        %v6651 = vtanh.pop %v3949
        %v6652 = vtanh.pop %v4620
        %v6653 = vtanh.pop %v4622
        %v6654 = vtanh.pop %v5293
        %v6655 = vtanh.pop %v5295
        %v6656 = vtanh.pop %v5966
        %v6657 = vtanh.pop %v5968
        %v6658 = vtanh.pop %v3953
        %v6659 = vtanh.pop %v3955
        %v6660 = vtanh.pop %v4626
        %v6661 = vtanh.pop %v4628
        %v6662 = vtanh.pop %v5299
        %v6663 = vtanh.pop %v5301
        %v6664 = vtanh.pop %v5972
        %v6665 = vtanh.pop %v5974
        %v6666 = vtanh.pop %v3957
        %v6667 = vtanh.pop %v3959
        %v6668 = vtanh.pop %v4630
        %v6669 = vtanh.pop %v4632
        %v6670 = vtanh.pop %v5303
        %v6671 = vtanh.pop %v5305
        %v6672 = vtanh.pop %v5976
        %v6673 = vtanh.pop %v5978
        %v6674 = vtanh.pop %v3963
        %v6675 = vtanh.pop %v3965
        %v6676 = vtanh.pop %v4636
        %v6677 = vtanh.pop %v4638
        %v6678 = vtanh.pop %v5309
        %v6679 = vtanh.pop %v5311
        %v6680 = vtanh.pop %v5982
        %v6681 = vtanh.pop %v5984
        %v6682 = vtanh.pop %v3967
        %v6683 = vtanh.pop %v3969
        %v6684 = vtanh.pop %v4640
        %v6685 = vtanh.pop %v4642
        %v6686 = vtanh.pop %v5313
        %v6687 = vtanh.pop %v5315
        %v6688 = vtanh.pop %v5986
        %v6689 = vtanh.pop %v5988
        %v6690 = vtanh.pop %v3973
        %v6691 = vtanh.pop %v3975
        %v6692 = vtanh.pop %v4646
        %v6693 = vtanh.pop %v4648
        %v6694 = vtanh.pop %v5319
        %v6695 = vtanh.pop %v5321
        %v6696 = vtanh.pop %v5992
        %v6697 = vtanh.pop %v5994
        %v6698 = vtanh.pop %v3977
        %v6699 = vtanh.pop %v3979
        %v6700 = vtanh.pop %v4650
        %v6701 = vtanh.pop %v4652
        %v6702 = vtanh.pop %v5323
        %v6703 = vtanh.pop %v5325
        %v6704 = vtanh.pop %v5996
        %v6705 = vtanh.pop %v5998
        %v6706 = vtanh.pop %v3983
        %v6707 = vtanh.pop %v3985
        %v6708 = vtanh.pop %v4656
        %v6709 = vtanh.pop %v4658
        %v6710 = vtanh.pop %v5329
        %v6711 = vtanh.pop %v5331
        %v6712 = vtanh.pop %v6002
        %v6713 = vtanh.pop %v6004
        %v6714 = vtanh.pop %v3987
        %v6715 = vtanh.pop %v3989
        %v6716 = vtanh.pop %v4660
        %v6717 = vtanh.pop %v4662
        %v6718 = vtanh.pop %v5333
        %v6719 = vtanh.pop %v5335
        %v6720 = vtanh.pop %v6006
        %v6721 = vtanh.pop %v6008
        %v6722 = vtanh.pop %v3993
        %v6723 = vtanh.pop %v3995
        %v6724 = vtanh.pop %v4666
        %v6725 = vtanh.pop %v4668
        %v6726 = vtanh.pop %v5339
        %v6727 = vtanh.pop %v5341
        %v6728 = vtanh.pop %v6012
        %v6729 = vtanh.pop %v6014
        %v6730 = vtanh.pop %v3997
        %v6731 = vtanh.pop %v3999
        %v6732 = vtanh.pop %v4670
        %v6733 = vtanh.pop %v4672
        %v6734 = vtanh.pop %v5343
        %v6735 = vtanh.pop %v5345
        %v6736 = vtanh.pop %v6016
        %v6737 = vtanh.pop %v6018
        %v6738 = vtanh.pop %v4003
        %v6739 = vtanh.pop %v4005
        %v6740 = vtanh.pop %v4676
        %v6741 = vtanh.pop %v4678
        %v6742 = vtanh.pop %v5349
        %v6743 = vtanh.pop %v5351
        %v6744 = vtanh.pop %v6022
        %v6745 = vtanh.pop %v6024
        %v6746 = vtanh.pop %v4007
        %v6747 = vtanh.pop %v4009
        %v6748 = vtanh.pop %v4680
        %v6749 = vtanh.pop %v4682
        %v6750 = vtanh.pop %v5353
        %v6751 = vtanh.pop %v5355
        %v6752 = vtanh.pop %v6026
        %v6753 = vtanh.pop %v6028
        %v6754 = vtanh.pop %v4013
        %v6755 = vtanh.pop %v4015
        %v6756 = vtanh.pop %v4686
        %v6757 = vtanh.pop %v4688
        %v6758 = vtanh.pop %v5359
        %v6759 = vtanh.pop %v5361
        %v6760 = vtanh.pop %v6032
        %v6761 = vtanh.pop %v6034
        %v6762 = vtanh.pop %v4017
        %v6763 = vtanh.pop %v4019
        %v6764 = vtanh.pop %v4690
        %v6765 = vtanh.pop %v4692
        %v6766 = vtanh.pop %v5363
        %v6767 = vtanh.pop %v5365
        %v6768 = vtanh.pop %v6036
        %v6769 = vtanh.pop %v6038
        %v6770 = vtanh.pop %v4023
        %v6771 = vtanh.pop %v4025
        %v6772 = vtanh.pop %v4696
        %v6773 = vtanh.pop %v4698
        %v6774 = vtanh.pop %v5369
        %v6775 = vtanh.pop %v5371
        %v6776 = vtanh.pop %v6042
        %v6777 = vtanh.pop %v6044
        %v6778 = vtanh.pop %v4027
        %v6779 = vtanh.pop %v4029
        %v6780 = vtanh.pop %v4700
        %v6781 = vtanh.pop %v4702
        %v6782 = vtanh.pop %v5373
        %v6783 = vtanh.pop %v5375
        %v6784 = vtanh.pop %v6046
        %v6785 = vtanh.pop %v6048
        %v6786 = vtanh.pop %v4033
        %v6787 = vtanh.pop %v4035
        %v6788 = vtanh.pop %v4706
        %v6789 = vtanh.pop %v4708
        %v6790 = vtanh.pop %v5379
        %v6791 = vtanh.pop %v5381
        %v6792 = vtanh.pop %v6052
        %v6793 = vtanh.pop %v6054
        %v6794 = vtanh.pop %v4037
        %v6795 = vtanh.pop %v4039
        %v6796 = vtanh.pop %v4710
        %v6797 = vtanh.pop %v4712
        %v6798 = vtanh.pop %v5383
        %v6799 = vtanh.pop %v5385
        %v6800 = vtanh.pop %v6056
        %v6801 = vtanh.pop %v6058
        %v6802 = vtanh.pop %v4043
        %v6803 = vtanh.pop %v4045
        %v6804 = vtanh.pop %v4716
        %v6805 = vtanh.pop %v4718
        %v6806 = vtanh.pop %v5389
        %v6807 = vtanh.pop %v5391
        %v6808 = vtanh.pop %v6062
        %v6809 = vtanh.pop %v6064
        %v6810 = vtanh.pop %v4047
        %v6811 = vtanh.pop %v4049
        %v6812 = vtanh.pop %v4720
        %v6813 = vtanh.pop %v4722
        %v6814 = vtanh.pop %v5393
        %v6815 = vtanh.pop %v5395
        %v6816 = vtanh.pop %v6066
        %v6817 = vtanh.pop %v6068
        %v6818 = vtanh.pop %v4053
        %v6819 = vtanh.pop %v4055
        %v6820 = vtanh.pop %v4726
        %v6821 = vtanh.pop %v4728
        %v6822 = vtanh.pop %v5399
        %v6823 = vtanh.pop %v5401
        %v6824 = vtanh.pop %v6072
        %v6825 = vtanh.pop %v6074
        %v6826 = vtanh.pop %v4057
        %v6827 = vtanh.pop %v4059
        %v6828 = vtanh.pop %v4730
        %v6829 = vtanh.pop %v4732
        %v6830 = vtanh.pop %v5403
        %v6831 = vtanh.pop %v5405
        %v6832 = vtanh.pop %v6076
        %v6833 = vtanh.pop %v6078
        %v6834 = vtanh.pop %v4063
        %v6835 = vtanh.pop %v4065
        %v6836 = vtanh.pop %v4736
        %v6837 = vtanh.pop %v4738
        %v6838 = vtanh.pop %v5409
        %v6839 = vtanh.pop %v5411
        %v6840 = vtanh.pop %v6082
        %v6841 = vtanh.pop %v6084
        %v6842 = vtanh.pop %v4067
        %v6843 = vtanh.pop %v4069
        %v6844 = vtanh.pop %v4740
        %v6845 = vtanh.pop %v4742
        %v6846 = vtanh.pop %v5413
        %v6847 = vtanh.pop %v5415
        %v6848 = vtanh.pop %v6086
        %v6849 = vtanh.pop %v6088
        %v6850 = vtanh.pop %v4073
        %v6851 = vtanh.pop %v4075
        %v6852 = vtanh.pop %v4746
        %v6853 = vtanh.pop %v4748
        %v6854 = vtanh.pop %v5419
        %v6855 = vtanh.pop %v5421
        %v6856 = vtanh.pop %v6092
        %v6857 = vtanh.pop %v6094
        %v6858 = vtanh.pop %v4077
        %v6859 = vtanh.pop %v4079
        %v6860 = vtanh.pop %v4750
        %v6861 = vtanh.pop %v4752
        %v6862 = vtanh.pop %v5423
        %v6863 = vtanh.pop %v5425
        %v6864 = vtanh.pop %v6096
        %v6865 = vtanh.pop %v6098
        %v6866 = vtanh.pop %v4083
        %v6867 = vtanh.pop %v4085
        %v6868 = vtanh.pop %v4756
        %v6869 = vtanh.pop %v4758
        %v6870 = vtanh.pop %v5429
        %v6871 = vtanh.pop %v5431
        %v6872 = vtanh.pop %v6102
        %v6873 = vtanh.pop %v6104
        %v6874 = vtanh.pop %v4087
        %v6875 = vtanh.pop %v4089
        %v6876 = vtanh.pop %v4760
        %v6877 = vtanh.pop %v4762
        %v6878 = vtanh.pop %v5433
        %v6879 = vtanh.pop %v5435
        %v6880 = vtanh.pop %v6106
        %v6881 = vtanh.pop %v6108
        %v6882 = vtanh.pop %v4093
        %v6883 = vtanh.pop %v4095
        %v6884 = vtanh.pop %v4766
        %v6885 = vtanh.pop %v4768
        %v6886 = vtanh.pop %v5439
        %v6887 = vtanh.pop %v5441
        %v6888 = vtanh.pop %v6112
        %v6889 = vtanh.pop %v6114
        %v6890 = vtanh.pop %v4097
        %v6891 = vtanh.pop %v4099
        %v6892 = vtanh.pop %v4770
        %v6893 = vtanh.pop %v4772
        %v6894 = vtanh.pop %v5443
        %v6895 = vtanh.pop %v5445
        %v6896 = vtanh.pop %v6116
        %v6897 = vtanh.pop %v6118
        %v6898 = vtanh.pop %v4103
        %v6899 = vtanh.pop %v4105
        %v6900 = vtanh.pop %v4776
        %v6901 = vtanh.pop %v4778
        %v6902 = vtanh.pop %v5449
        %v6903 = vtanh.pop %v5451
        %v6904 = vtanh.pop %v6122
        %v6905 = vtanh.pop %v6124
        %v6906 = vtanh.pop %v4107
        %v6907 = vtanh.pop %v4109
        %v6908 = vtanh.pop %v4780
        %v6909 = vtanh.pop %v4782
        %v6910 = vtanh.pop %v5453
        %v6911 = vtanh.pop %v5455
        %v6912 = vtanh.pop %v6126
        %v6913 = vtanh.pop %v6128
        %v6914 = vtanh.pop %v4113
        %v6915 = vtanh.pop %v4115
        %v6916 = vtanh.pop %v4786
        %v6917 = vtanh.pop %v4788
        %v6918 = vtanh.pop %v5459
        %v6919 = vtanh.pop %v5461
        %v6920 = vtanh.pop %v6132
        %v6921 = vtanh.pop %v6134
        %v6922 = vtanh.pop %v4117
        %v6923 = vtanh.pop %v4119
        %v6924 = vtanh.pop %v4790
        %v6925 = vtanh.pop %v4792
        %v6926 = vtanh.pop %v5463
        %v6927 = vtanh.pop %v5465
        %v6928 = vtanh.pop %v6136
        %v6929 = vtanh.pop %v6138
        %v6930 = vtanh.pop %v4123
        %v6931 = vtanh.pop %v4125
        %v6932 = vtanh.pop %v4796
        %v6933 = vtanh.pop %v4798
        %v6934 = vtanh.pop %v5469
        %v6935 = vtanh.pop %v5471
        %v6936 = vtanh.pop %v6142
        %v6937 = vtanh.pop %v6144
        %v6938 = vtanh.pop %v4127
        %v6939 = vtanh.pop %v4129
        %v6940 = vtanh.pop %v4800
        %v6941 = vtanh.pop %v4802
        %v6942 = vtanh.pop %v5473
        %v6943 = vtanh.pop %v5475
        %v6944 = vtanh.pop %v6146
        %v6945 = vtanh.pop %v6148
        %v6946 = vtanh.pop %v4133
        %v6947 = vtanh.pop %v4135
        %v6948 = vtanh.pop %v4806
        %v6949 = vtanh.pop %v4808
        %v6950 = vtanh.pop %v5479
        %v6951 = vtanh.pop %v5481
        %v6952 = vtanh.pop %v6152
        %v6953 = vtanh.pop %v6154
        %v6954 = vtanh.pop %v4137
        %v6955 = vtanh.pop %v4139
        %v6956 = vtanh.pop %v4810
        %v6957 = vtanh.pop %v4812
        %v6958 = vtanh.pop %v5483
        %v6959 = vtanh.pop %v5485
        %v6960 = vtanh.pop %v6156
        %v6961 = vtanh.pop %v6158
        %v6962 = vtanh.pop %v4143
        %v6963 = vtanh.pop %v4145
        %v6964 = vtanh.pop %v4816
        %v6965 = vtanh.pop %v4818
        %v6966 = vtanh.pop %v5489
        %v6967 = vtanh.pop %v5491
        %v6968 = vtanh.pop %v6162
        %v6969 = vtanh.pop %v6164
        %v6970 = vtanh.pop %v4147
        %v6971 = vtanh.pop %v4149
        %v6972 = vtanh.pop %v4820
        %v6973 = vtanh.pop %v4822
        %v6974 = vtanh.pop %v5493
        %v6975 = vtanh.pop %v5495
        %v6976 = vtanh.pop %v6166
        %v6977 = vtanh.pop %v6168
        %v6978 = vtanh.pop %v4153
        %v6979 = vtanh.pop %v4155
        %v6980 = vtanh.pop %v4826
        %v6981 = vtanh.pop %v4828
        %v6982 = vtanh.pop %v5499
        %v6983 = vtanh.pop %v5501
        %v6984 = vtanh.pop %v6172
        %v6985 = vtanh.pop %v6174
        %v6986 = vtanh.pop %v4157
        %v6987 = vtanh.pop %v4159
        %v6988 = vtanh.pop %v4830
        %v6989 = vtanh.pop %v4832
        %v6990 = vtanh.pop %v5503
        %v6991 = vtanh.pop %v5505
        %v6992 = vtanh.pop %v6176
        %v6993 = vtanh.pop %v6178
        %v6994 = vtanh.pop %v4163
        %v6995 = vtanh.pop %v4165
        %v6996 = vtanh.pop %v4836
        %v6997 = vtanh.pop %v4838
        %v6998 = vtanh.pop %v5509
        %v6999 = vtanh.pop %v5511
        %v7000 = vtanh.pop %v6182
        %v7001 = vtanh.pop %v6184
        %v7002 = vtanh.pop %v4167
        %v7003 = vtanh.pop %v4169
        %v7004 = vtanh.pop %v4840
        %v7005 = vtanh.pop %v4842
        %v7006 = vtanh.pop %v5513
        %v7007 = vtanh.pop %v5515
        %v7008 = vtanh.pop %v6186
        %v7009 = vtanh.pop %v6188
        %v7010 = vtanh.pop %v4173
        %v7011 = vtanh.pop %v4175
        %v7012 = vtanh.pop %v4846
        %v7013 = vtanh.pop %v4848
        %v7014 = vtanh.pop %v5519
        %v7015 = vtanh.pop %v5521
        %v7016 = vtanh.pop %v6192
        %v7017 = vtanh.pop %v6194
        %v7018 = vtanh.pop %v4177
        %v7019 = vtanh.pop %v4179
        %v7020 = vtanh.pop %v4850
        %v7021 = vtanh.pop %v4852
        %v7022 = vtanh.pop %v5523
        %v7023 = vtanh.pop %v5525
        %v7024 = vtanh.pop %v6196
        %v7025 = vtanh.pop %v6198
        %v7026 = vtanh.pop %v4183
        %v7027 = vtanh.pop %v4185
        %v7028 = vtanh.pop %v4856
        %v7029 = vtanh.pop %v4858
        %v7030 = vtanh.pop %v5529
        %v7031 = vtanh.pop %v5531
        %v7032 = vtanh.pop %v6202
        %v7033 = vtanh.pop %v6204
        %v7034 = vtanh.pop %v4187
        %v7035 = vtanh.pop %v4189
        %v7036 = vtanh.pop %v4860
        %v7037 = vtanh.pop %v4862
        %v7038 = vtanh.pop %v5533
        %v7039 = vtanh.pop %v5535
        %v7040 = vtanh.pop %v6206
        %v7041 = vtanh.pop %v6208
        %v7042 = vtanh.pop %v4193
        %v7043 = vtanh.pop %v4195
        %v7044 = vtanh.pop %v4866
        %v7045 = vtanh.pop %v4868
        %v7046 = vtanh.pop %v5539
        %v7047 = vtanh.pop %v5541
        %v7048 = vtanh.pop %v6212
        %v7049 = vtanh.pop %v6214
        %v7050 = vtanh.pop %v4197
        %v7051 = vtanh.pop %v4199
        %v7052 = vtanh.pop %v4870
        %v7053 = vtanh.pop %v4872
        %v7054 = vtanh.pop %v5543
        %v7055 = vtanh.pop %v5545
        %v7056 = vtanh.pop %v6216
        %v7057 = vtanh.pop %v6218
        %v7058 = vtanh.pop %v4203
        %v7059 = vtanh.pop %v4205
        %v7060 = vtanh.pop %v4876
        %v7061 = vtanh.pop %v4878
        %v7062 = vtanh.pop %v5549
        %v7063 = vtanh.pop %v5551
        %v7064 = vtanh.pop %v6222
        %v7065 = vtanh.pop %v6224
        %v7066 = vtanh.pop %v4207
        %v7067 = vtanh.pop %v4209
        %v7068 = vtanh.pop %v4880
        %v7069 = vtanh.pop %v4882
        %v7070 = vtanh.pop %v5553
        %v7071 = vtanh.pop %v5555
        %v7072 = vtanh.pop %v6226
        %v7073 = vtanh.pop %v6228
        %v7074 = vtanh.pop %v4213
        %v7075 = vtanh.pop %v4215
        %v7076 = vtanh.pop %v4886
        %v7077 = vtanh.pop %v4888
        %v7078 = vtanh.pop %v5559
        %v7079 = vtanh.pop %v5561
        %v7080 = vtanh.pop %v6232
        %v7081 = vtanh.pop %v6234
        %v7082 = vtanh.pop %v4217
        %v7083 = vtanh.pop %v4219
        %v7084 = vtanh.pop %v4890
        %v7085 = vtanh.pop %v4892
        %v7086 = vtanh.pop %v5563
        %v7087 = vtanh.pop %v5565
        %v7088 = vtanh.pop %v6236
        %v7089 = vtanh.pop %v6238
        %v7090 = vtanh.pop %v4223
        %v7091 = vtanh.pop %v4225
        %v7092 = vtanh.pop %v4896
        %v7093 = vtanh.pop %v4898
        %v7094 = vtanh.pop %v5569
        %v7095 = vtanh.pop %v5571
        %v7096 = vtanh.pop %v6242
        %v7097 = vtanh.pop %v6244
        %v7098 = vtanh.pop %v4227
        %v7099 = vtanh.pop %v4229
        %v7100 = vtanh.pop %v4900
        %v7101 = vtanh.pop %v4902
        %v7102 = vtanh.pop %v5573
        %v7103 = vtanh.pop %v5575
        %v7104 = vtanh.pop %v6246
        %v7105 = vtanh.pop %v6248
        %v7106 = vtanh.pop %v4233
        %v7107 = vtanh.pop %v4235
        %v7108 = vtanh.pop %v4906
        %v7109 = vtanh.pop %v4908
        %v7110 = vtanh.pop %v5579
        %v7111 = vtanh.pop %v5581
        %v7112 = vtanh.pop %v6252
        %v7113 = vtanh.pop %v6254
        %v7114 = vtanh.pop %v4237
        %v7115 = vtanh.pop %v4239
        %v7116 = vtanh.pop %v4910
        %v7117 = vtanh.pop %v4912
        %v7118 = vtanh.pop %v5583
        %v7119 = vtanh.pop %v5585
        %v7120 = vtanh.pop %v6256
        %v7121 = vtanh.pop %v6258
        %v7122 = vtanh.pop %v4243
        %v7123 = vtanh.pop %v4245
        %v7124 = vtanh.pop %v4916
        %v7125 = vtanh.pop %v4918
        %v7126 = vtanh.pop %v5589
        %v7127 = vtanh.pop %v5591
        %v7128 = vtanh.pop %v6262
        %v7129 = vtanh.pop %v6264
        %v7130 = vtanh.pop %v4247
        %v7131 = vtanh.pop %v4249
        %v7132 = vtanh.pop %v4920
        %v7133 = vtanh.pop %v4922
        %v7134 = vtanh.pop %v5593
        %v7135 = vtanh.pop %v5595
        %v7136 = vtanh.pop %v6266
        %v7137 = vtanh.pop %v6268
        %v7138 = vtanh.pop %v4253
        %v7139 = vtanh.pop %v4255
        %v7140 = vtanh.pop %v4926
        %v7141 = vtanh.pop %v4928
        %v7142 = vtanh.pop %v5599
        %v7143 = vtanh.pop %v5601
        %v7144 = vtanh.pop %v6272
        %v7145 = vtanh.pop %v6274
        %v7146 = vtanh.pop %v4257
        %v7147 = vtanh.pop %v4259
        %v7148 = vtanh.pop %v4930
        %v7149 = vtanh.pop %v4932
        %v7150 = vtanh.pop %v5603
        %v7151 = vtanh.pop %v5605
        %v7152 = vtanh.pop %v6276
        %v7153 = vtanh.pop %v6278
        %v7154 = vtanh.pop %v4263
        %v7155 = vtanh.pop %v4265
        %v7156 = vtanh.pop %v4936
        %v7157 = vtanh.pop %v4938
        %v7158 = vtanh.pop %v5609
        %v7159 = vtanh.pop %v5611
        %v7160 = vtanh.pop %v6282
        %v7161 = vtanh.pop %v6284
        %v7162 = vtanh.pop %v4267
        %v7163 = vtanh.pop %v4269
        %v7164 = vtanh.pop %v4940
        %v7165 = vtanh.pop %v4942
        %v7166 = vtanh.pop %v5613
        %v7167 = vtanh.pop %v5615
        %v7168 = vtanh.pop %v6286
        %v7169 = vtanh.pop %v6288
        %v7170 = vtanh.pop %v4273
        %v7171 = vtanh.pop %v4275
        %v7172 = vtanh.pop %v4946
        %v7173 = vtanh.pop %v4948
        %v7174 = vtanh.pop %v5619
        %v7175 = vtanh.pop %v5621
        %v7176 = vtanh.pop %v6292
        %v7177 = vtanh.pop %v6294
        %v7178 = vtanh.pop %v4277
        %v7179 = vtanh.pop %v4279
        %v7180 = vtanh.pop %v4950
        %v7181 = vtanh.pop %v4952
        %v7182 = vtanh.pop %v5623
        %v7183 = vtanh.pop %v5625
        %v7184 = vtanh.pop %v6296
        %v7185 = vtanh.pop %v6298
        %v7186 = vtanh.pop %v4283
        %v7187 = vtanh.pop %v4285
        %v7188 = vtanh.pop %v4956
        %v7189 = vtanh.pop %v4958
        %v7190 = vtanh.pop %v5629
        %v7191 = vtanh.pop %v5631
        %v7192 = vtanh.pop %v6302
        %v7193 = vtanh.pop %v6304
        %v7194 = vtanh.pop %v4287
        %v7195 = vtanh.pop %v4289
        %v7196 = vtanh.pop %v4960
        %v7197 = vtanh.pop %v4962
        %v7198 = vtanh.pop %v5633
        %v7199 = vtanh.pop %v5635
        %v7200 = vtanh.pop %v6306
        %v7201 = vtanh.pop %v6308
        %v7202 = vtanh.pop %v4293
        %v7203 = vtanh.pop %v4295
        %v7204 = vtanh.pop %v4966
        %v7205 = vtanh.pop %v4968
        %v7206 = vtanh.pop %v5639
        %v7207 = vtanh.pop %v5641
        %v7208 = vtanh.pop %v6312
        %v7209 = vtanh.pop %v6314
        %v7210 = vtanh.pop %v4297
        %v7211 = vtanh.pop %v4299
        %v7212 = vtanh.pop %v4970
        %v7213 = vtanh.pop %v4972
        %v7214 = vtanh.pop %v5643
        %v7215 = vtanh.pop %v5645
        %v7216 = vtanh.pop %v6316
        %v7217 = vtanh.pop %v6318
        %v7218 = vtanh.pop %v4303
        %v7219 = vtanh.pop %v4305
        %v7220 = vtanh.pop %v4976
        %v7221 = vtanh.pop %v4978
        %v7222 = vtanh.pop %v5649
        %v7223 = vtanh.pop %v5651
        %v7224 = vtanh.pop %v6322
        %v7225 = vtanh.pop %v6324
        %v7226 = vtanh.pop %v4307
        %v7227 = vtanh.pop %v4309
        %v7228 = vtanh.pop %v4980
        %v7229 = vtanh.pop %v4982
        %v7230 = vtanh.pop %v5653
        %v7231 = vtanh.pop %v5655
        %v7232 = vtanh.pop %v6326
        %v7233 = vtanh.pop %v6328
        %v7234 = vtanh.pop %v4313
        %v7235 = vtanh.pop %v4315
        %v7236 = vtanh.pop %v4986
        %v7237 = vtanh.pop %v4988
        %v7238 = vtanh.pop %v5659
        %v7239 = vtanh.pop %v5661
        %v7240 = vtanh.pop %v6332
        %v7241 = vtanh.pop %v6334
        %v7242 = vtanh.pop %v4317
        %v7243 = vtanh.pop %v4319
        %v7244 = vtanh.pop %v4990
        %v7245 = vtanh.pop %v4992
        %v7246 = vtanh.pop %v5663
        %v7247 = vtanh.pop %v5665
        %v7248 = vtanh.pop %v6336
        %v7249 = vtanh.pop %v6338
        %v7250 = vtanh.pop %v4323
        %v7251 = vtanh.pop %v4325
        %v7252 = vtanh.pop %v4996
        %v7253 = vtanh.pop %v4998
        %v7254 = vtanh.pop %v5669
        %v7255 = vtanh.pop %v5671
        %v7256 = vtanh.pop %v6342
        %v7257 = vtanh.pop %v6344
        %v7258 = vtanh.pop %v4327
        %v7259 = vtanh.pop %v4329
        %v7260 = vtanh.pop %v5000
        %v7261 = vtanh.pop %v5002
        %v7262 = vtanh.pop %v5673
        %v7263 = vtanh.pop %v5675
        %v7264 = vtanh.pop %v6346
        %v7265 = vtanh.pop %v6348
        %v7266 = vtanh.pop %v4333
        %v7267 = vtanh.pop %v4335
        %v7268 = vtanh.pop %v5006
        %v7269 = vtanh.pop %v5008
        %v7270 = vtanh.pop %v5679
        %v7271 = vtanh.pop %v5681
        %v7272 = vtanh.pop %v6352
        %v7273 = vtanh.pop %v6354
        %v7274 = vtanh.pop %v4337
        %v7275 = vtanh.pop %v4339
        %v7276 = vtanh.pop %v5010
        %v7277 = vtanh.pop %v5012
        %v7278 = vtanh.pop %v5683
        %v7279 = vtanh.pop %v5685
        %v7280 = vtanh.pop %v6356
        %v7281 = vtanh.pop %v6358
        %v7282 = vtanh.pop %v4343
        %v7283 = vtanh.pop %v4345
        %v7284 = vtanh.pop %v5016
        %v7285 = vtanh.pop %v5018
        %v7286 = vtanh.pop %v5689
        %v7287 = vtanh.pop %v5691
        %v7288 = vtanh.pop %v6362
        %v7289 = vtanh.pop %v6364
        %v7290 = vtanh.pop %v4347
        %v7291 = vtanh.pop %v4349
        %v7292 = vtanh.pop %v5020
        %v7293 = vtanh.pop %v5022
        %v7294 = vtanh.pop %v5693
        %v7295 = vtanh.pop %v5695
        %v7296 = vtanh.pop %v6366
        %v7297 = vtanh.pop %v6368
        %v7298 = vtanh.pop %v4353
        %v7299 = vtanh.pop %v4355
        %v7300 = vtanh.pop %v5026
        %v7301 = vtanh.pop %v5028
        %v7302 = vtanh.pop %v5699
        %v7303 = vtanh.pop %v5701
        %v7304 = vtanh.pop %v6372
        %v7305 = vtanh.pop %v6374
        %v7306 = vtanh.pop %v4357
        %v7307 = vtanh.pop %v4359
        %v7308 = vtanh.pop %v5030
        %v7309 = vtanh.pop %v5032
        %v7310 = vtanh.pop %v5703
        %v7311 = vtanh.pop %v5705
        %v7312 = vtanh.pop %v6376
        %v7313 = vtanh.pop %v6378
        %v7314 = vtanh.pop %v4363
        %v7315 = vtanh.pop %v4365
        %v7316 = vtanh.pop %v5036
        %v7317 = vtanh.pop %v5038
        %v7318 = vtanh.pop %v5709
        %v7319 = vtanh.pop %v5711
        %v7320 = vtanh.pop %v6382
        %v7321 = vtanh.pop %v6384
        %v7322 = vtanh.pop %v4367
        %v7323 = vtanh.pop %v4369
        %v7324 = vtanh.pop %v5040
        %v7325 = vtanh.pop %v5042
        %v7326 = vtanh.pop %v5713
        %v7327 = vtanh.pop %v5715
        %v7328 = vtanh.pop %v6386
        %v7329 = vtanh.pop %v6388
        %v7330 = vtanh.pop %v4373
        %v7331 = vtanh.pop %v4375
        %v7332 = vtanh.pop %v5046
        %v7333 = vtanh.pop %v5048
        %v7334 = vtanh.pop %v5719
        %v7335 = vtanh.pop %v5721
        %v7336 = vtanh.pop %v6392
        %v7337 = vtanh.pop %v6394
        %v7338 = vtanh.pop %v4377
        %v7339 = vtanh.pop %v4379
        %v7340 = vtanh.pop %v5050
        %v7341 = vtanh.pop %v5052
        %v7342 = vtanh.pop %v5723
        %v7343 = vtanh.pop %v5725
        %v7344 = vtanh.pop %v6396
        %v7345 = vtanh.pop %v6398
        %v7346 = vtanh.pop %v4383
        %v7347 = vtanh.pop %v4385
        %v7348 = vtanh.pop %v5056
        %v7349 = vtanh.pop %v5058
        %v7350 = vtanh.pop %v5729
        %v7351 = vtanh.pop %v5731
        %v7352 = vtanh.pop %v6402
        %v7353 = vtanh.pop %v6404
        %v7354 = vtanh.pop %v4387
        %v7355 = vtanh.pop %v4389
        %v7356 = vtanh.pop %v5060
        %v7357 = vtanh.pop %v5062
        %v7358 = vtanh.pop %v5733
        %v7359 = vtanh.pop %v5735
        %v7360 = vtanh.pop %v6406
        %v7361 = vtanh.pop %v6408
        %v7362 = vtanh.pop %v4393
        %v7363 = vtanh.pop %v4395
        %v7364 = vtanh.pop %v5066
        %v7365 = vtanh.pop %v5068
        %v7366 = vtanh.pop %v5739
        %v7367 = vtanh.pop %v5741
        %v7368 = vtanh.pop %v6412
        %v7369 = vtanh.pop %v6414
        %v7370 = vtanh.pop %v4397
        %v7371 = vtanh.pop %v4399
        %v7372 = vtanh.pop %v5070
        %v7373 = vtanh.pop %v5072
        %v7374 = vtanh.pop %v5743
        %v7375 = vtanh.pop %v5745
        %v7376 = vtanh.pop %v6416
        %v7377 = vtanh.pop %v6418
        %v7378 = vtanh.pop %v4403
        %v7379 = vtanh.pop %v4405
        %v7380 = vtanh.pop %v5076
        %v7381 = vtanh.pop %v5078
        %v7382 = vtanh.pop %v5749
        %v7383 = vtanh.pop %v5751
        %v7384 = vtanh.pop %v6422
        %v7385 = vtanh.pop %v6424
        %v7386 = vtanh.pop %v4407
        %v7387 = vtanh.pop %v4409
        %v7388 = vtanh.pop %v5080
        %v7389 = vtanh.pop %v5082
        %v7390 = vtanh.pop %v5753
        %v7391 = vtanh.pop %v5755
        %v7392 = vtanh.pop %v6426
        %v7393 = vtanh.pop %v6428
        %v7394 = vtanh.pop %v4413
        %v7395 = vtanh.pop %v4415
        %v7396 = vtanh.pop %v5086
        %v7397 = vtanh.pop %v5088
        %v7398 = vtanh.pop %v5759
        %v7399 = vtanh.pop %v5761
        %v7400 = vtanh.pop %v6432
        %v7401 = vtanh.pop %v6434
        %v7402 = vtanh.pop %v4417
        %v7403 = vtanh.pop %v4419
        %v7404 = vtanh.pop %v5090
        %v7405 = vtanh.pop %v5092
        %v7406 = vtanh.pop %v5763
        %v7407 = vtanh.pop %v5765
        %v7408 = vtanh.pop %v6436
        %v7409 = vtanh.pop %v6438
        %v7410 = vtanh.pop %v4423
        %v7411 = vtanh.pop %v4425
        %v7412 = vtanh.pop %v5096
        %v7413 = vtanh.pop %v5098
        %v7414 = vtanh.pop %v5769
        %v7415 = vtanh.pop %v5771
        %v7416 = vtanh.pop %v6442
        %v7417 = vtanh.pop %v6444
        %v7418 = vtanh.pop %v4427
        %v7419 = vtanh.pop %v4429
        %v7420 = vtanh.pop %v5100
        %v7421 = vtanh.pop %v5102
        %v7422 = vtanh.pop %v5773
        %v7423 = vtanh.pop %v5775
        %v7424 = vtanh.pop %v6446
        %v7425 = vtanh.pop %v6448
        %v7426 = vtanh.pop %v4433
        %v7427 = vtanh.pop %v4435
        %v7428 = vtanh.pop %v5106
        %v7429 = vtanh.pop %v5108
        %v7430 = vtanh.pop %v5779
        %v7431 = vtanh.pop %v5781
        %v7432 = vtanh.pop %v6452
        %v7433 = vtanh.pop %v6454
        %v7434 = vtanh.pop %v4437
        %v7435 = vtanh.pop %v4439
        %v7436 = vtanh.pop %v5110
        %v7437 = vtanh.pop %v5112
        %v7438 = vtanh.pop %v5783
        %v7439 = vtanh.pop %v5785
        %v7440 = vtanh.pop %v6456
        %v7441 = vtanh.pop %v6458
        %v7442 = vtanh.pop %v4443
        %v7443 = vtanh.pop %v4445
        %v7444 = vtanh.pop %v5116
        %v7445 = vtanh.pop %v5118
        %v7446 = vtanh.pop %v5789
        %v7447 = vtanh.pop %v5791
        %v7448 = vtanh.pop %v6462
        %v7449 = vtanh.pop %v6464
        %v7450 = vtanh.pop %v4447
        %v7451 = vtanh.pop %v4449
        %v7452 = vtanh.pop %v5120
        %v7453 = vtanh.pop %v5122
        %v7454 = vtanh.pop %v5793
        %v7455 = vtanh.pop %v5795
        %v7456 = vtanh.pop %v6466
        %v7457 = vtanh.pop %v6468
        %v7458 = vtanh.pop %v4453
        %v7459 = vtanh.pop %v4455
        %v7460 = vtanh.pop %v5126
        %v7461 = vtanh.pop %v5128
        %v7462 = vtanh.pop %v5799
        %v7463 = vtanh.pop %v5801
        %v7464 = vtanh.pop %v6472
        %v7465 = vtanh.pop %v6474
        %v7466 = vtanh.pop %v4457
        %v7467 = vtanh.pop %v4459
        %v7468 = vtanh.pop %v5130
        %v7469 = vtanh.pop %v5132
        %v7470 = vtanh.pop %v5803
        %v7471 = vtanh.pop %v5805
        %v7472 = vtanh.pop %v6476
        %v7473 = vtanh.pop %v6478
        %v7474 = vtanh.pop %v4463
        %v7475 = vtanh.pop %v4465
        %v7476 = vtanh.pop %v5136
        %v7477 = vtanh.pop %v5138
        %v7478 = vtanh.pop %v5809
        %v7479 = vtanh.pop %v5811
        %v7480 = vtanh.pop %v6482
        %v7481 = vtanh.pop %v6484
        %v7482 = vtanh.pop %v4467
        %v7483 = vtanh.pop %v4469
        %v7484 = vtanh.pop %v5140
        %v7485 = vtanh.pop %v5142
        %v7486 = vtanh.pop %v5813
        %v7487 = vtanh.pop %v5815
        %v7488 = vtanh.pop %v6486
        %v7489 = vtanh.pop %v6488
        %v7490 = vtanh.pop %v4473
        %v7491 = vtanh.pop %v4475
        %v7492 = vtanh.pop %v5146
        %v7493 = vtanh.pop %v5148
        %v7494 = vtanh.pop %v5819
        %v7495 = vtanh.pop %v5821
        %v7496 = vtanh.pop %v6492
        %v7497 = vtanh.pop %v6494
        %v7498 = vtanh.pop %v4477
        %v7499 = vtanh.pop %v4479
        %v7500 = vtanh.pop %v5150
        %v7501 = vtanh.pop %v5152
        %v7502 = vtanh.pop %v5823
        %v7503 = vtanh.pop %v5825
        %v7504 = vtanh.pop %v6496
        %v7505 = vtanh.pop %v6498
        %v7506 = vtanh.pop %v4483
        %v7507 = vtanh.pop %v4485
        %v7508 = vtanh.pop %v5156
        %v7509 = vtanh.pop %v5158
        %v7510 = vtanh.pop %v5829
        %v7511 = vtanh.pop %v5831
        %v7512 = vtanh.pop %v6502
        %v7513 = vtanh.pop %v6504
        %v7514 = vtanh.pop %v4487
        %v7515 = vtanh.pop %v4489
        %v7516 = vtanh.pop %v5160
        %v7517 = vtanh.pop %v5162
        %v7518 = vtanh.pop %v5833
        %v7519 = vtanh.pop %v5835
        %v7520 = vtanh.pop %v6506
        %v7521 = vtanh.pop %v6508
        %v7522 = vtanh.pop %v4493
        %v7523 = vtanh.pop %v4495
        %v7524 = vtanh.pop %v5166
        %v7525 = vtanh.pop %v5168
        %v7526 = vtanh.pop %v5839
        %v7527 = vtanh.pop %v5841
        %v7528 = vtanh.pop %v6512
        %v7529 = vtanh.pop %v6514
        %v7530 = vtanh.pop %v4497
        %v7531 = vtanh.pop %v4499
        %v7532 = vtanh.pop %v5170
        %v7533 = vtanh.pop %v5172
        %v7534 = vtanh.pop %v5843
        %v7535 = vtanh.pop %v5845
        %v7536 = vtanh.pop %v6516
        %v7537 = vtanh.pop %v6518
        %v7538 = vtanh.pop %v4503
        %v7539 = vtanh.pop %v4505
        %v7540 = vtanh.pop %v5176
        %v7541 = vtanh.pop %v5178
        %v7542 = vtanh.pop %v5849
        %v7543 = vtanh.pop %v5851
        %v7544 = vtanh.pop %v6522
        %v7545 = vtanh.pop %v6524
        %v7546 = vtanh.pop %v4507
        %v7547 = vtanh.pop %v4509
        %v7548 = vtanh.pop %v5180
        %v7549 = vtanh.pop %v5182
        %v7550 = vtanh.pop %v5853
        %v7551 = vtanh.pop %v5855
        %v7552 = vtanh.pop %v6526
        %v7553 = vtanh.pop %v6528
        %v7554 = vmax.f32 %v6530, %v6538
        %v7555 = vmax.f32 %v7554, %v6546
        %v7556 = vmax.f32 %v7555, %v6554
        %v7557 = vmax.f32 %v7556, %v6562
        %v7558 = vmax.f32 %v7557, %v6570
        %v7559 = vmax.f32 %v7558, %v6578
        %v7560 = vmax.f32 %v7559, %v6586
        %v7561 = vmax.f32 %v7560, %v6594
        %v7562 = vmax.f32 %v7561, %v6602
        %v7563 = vmax.f32 %v7562, %v6610
        %v7564 = vmax.f32 %v7563, %v6618
        %v7565 = vmax.f32 %v7564, %v6626
        %v7566 = vmax.f32 %v7565, %v6634
        %v7567 = vmax.f32 %v7566, %v6642
        %v7568 = vmax.f32 %v7567, %v6650
        %v7569 = vrot.slane %v7568, 4
        %v7570 = vmax.f32 %v7568, %v7569
        %v7571 = vrot.slane %v7570, 2
        %v7572 = vmax.f32 %v7570, %v7571
        %v7573 = vrot.slane %v7572, 1
        %v7574 = vmax.f32 %v7572, %v7573
        %v7575 = vmax.f32 %v6531, %v6539
        %v7576 = vmax.f32 %v7575, %v6547
        %v7577 = vmax.f32 %v7576, %v6555
        %v7578 = vmax.f32 %v7577, %v6563
        %v7579 = vmax.f32 %v7578, %v6571
        %v7580 = vmax.f32 %v7579, %v6579
        %v7581 = vmax.f32 %v7580, %v6587
        %v7582 = vmax.f32 %v7581, %v6595
        %v7583 = vmax.f32 %v7582, %v6603
        %v7584 = vmax.f32 %v7583, %v6611
        %v7585 = vmax.f32 %v7584, %v6619
        %v7586 = vmax.f32 %v7585, %v6627
        %v7587 = vmax.f32 %v7586, %v6635
        %v7588 = vmax.f32 %v7587, %v6643
        %v7589 = vmax.f32 %v7588, %v6651
        %v7590 = vrot.slane %v7589, 4
        %v7591 = vmax.f32 %v7589, %v7590
        %v7592 = vrot.slane %v7591, 2
        %v7593 = vmax.f32 %v7591, %v7592
        %v7594 = vrot.slane %v7593, 1
        %v7595 = vmax.f32 %v7593, %v7594
        %v7596 = vmax.f32 %v6532, %v6540
        %v7597 = vmax.f32 %v7596, %v6548
        %v7598 = vmax.f32 %v7597, %v6556
        %v7599 = vmax.f32 %v7598, %v6564
        %v7600 = vmax.f32 %v7599, %v6572
        %v7601 = vmax.f32 %v7600, %v6580
        %v7602 = vmax.f32 %v7601, %v6588
        %v7603 = vmax.f32 %v7602, %v6596
        %v7604 = vmax.f32 %v7603, %v6604
        %v7605 = vmax.f32 %v7604, %v6612
        %v7606 = vmax.f32 %v7605, %v6620
        %v7607 = vmax.f32 %v7606, %v6628
        %v7608 = vmax.f32 %v7607, %v6636
        %v7609 = vmax.f32 %v7608, %v6644
        %v7610 = vmax.f32 %v7609, %v6652
        %v7611 = vrot.slane %v7610, 4
        %v7612 = vmax.f32 %v7610, %v7611
        %v7613 = vrot.slane %v7612, 2
        %v7614 = vmax.f32 %v7612, %v7613
        %v7615 = vrot.slane %v7614, 1
        %v7616 = vmax.f32 %v7614, %v7615
        %v7617 = vmax.f32 %v6533, %v6541
        %v7618 = vmax.f32 %v7617, %v6549
        %v7619 = vmax.f32 %v7618, %v6557
        %v7620 = vmax.f32 %v7619, %v6565
        %v7621 = vmax.f32 %v7620, %v6573
        %v7622 = vmax.f32 %v7621, %v6581
        %v7623 = vmax.f32 %v7622, %v6589
        %v7624 = vmax.f32 %v7623, %v6597
        %v7625 = vmax.f32 %v7624, %v6605
        %v7626 = vmax.f32 %v7625, %v6613
        %v7627 = vmax.f32 %v7626, %v6621
        %v7628 = vmax.f32 %v7627, %v6629
        %v7629 = vmax.f32 %v7628, %v6637
        %v7630 = vmax.f32 %v7629, %v6645
        %v7631 = vmax.f32 %v7630, %v6653
        %v7632 = vrot.slane %v7631, 4
        %v7633 = vmax.f32 %v7631, %v7632
        %v7634 = vrot.slane %v7633, 2
        %v7635 = vmax.f32 %v7633, %v7634
        %v7636 = vrot.slane %v7635, 1
        %v7637 = vmax.f32 %v7635, %v7636
        %v7638 = vmax.f32 %v6534, %v6542
        %v7639 = vmax.f32 %v7638, %v6550
        %v7640 = vmax.f32 %v7639, %v6558
        %v7641 = vmax.f32 %v7640, %v6566
        %v7642 = vmax.f32 %v7641, %v6574
        %v7643 = vmax.f32 %v7642, %v6582
        %v7644 = vmax.f32 %v7643, %v6590
        %v7645 = vmax.f32 %v7644, %v6598
        %v7646 = vmax.f32 %v7645, %v6606
        %v7647 = vmax.f32 %v7646, %v6614
        %v7648 = vmax.f32 %v7647, %v6622
        %v7649 = vmax.f32 %v7648, %v6630
        %v7650 = vmax.f32 %v7649, %v6638
        %v7651 = vmax.f32 %v7650, %v6646
        %v7652 = vmax.f32 %v7651, %v6654
        %v7653 = vrot.slane %v7652, 4
        %v7654 = vmax.f32 %v7652, %v7653
        %v7655 = vrot.slane %v7654, 2
        %v7656 = vmax.f32 %v7654, %v7655
        %v7657 = vrot.slane %v7656, 1
        %v7658 = vmax.f32 %v7656, %v7657
        %v7659 = vmax.f32 %v6535, %v6543
        %v7660 = vmax.f32 %v7659, %v6551
        %v7661 = vmax.f32 %v7660, %v6559
        %v7662 = vmax.f32 %v7661, %v6567
        %v7663 = vmax.f32 %v7662, %v6575
        %v7664 = vmax.f32 %v7663, %v6583
        %v7665 = vmax.f32 %v7664, %v6591
        %v7666 = vmax.f32 %v7665, %v6599
        %v7667 = vmax.f32 %v7666, %v6607
        %v7668 = vmax.f32 %v7667, %v6615
        %v7669 = vmax.f32 %v7668, %v6623
        %v7670 = vmax.f32 %v7669, %v6631
        %v7671 = vmax.f32 %v7670, %v6639
        %v7672 = vmax.f32 %v7671, %v6647
        %v7673 = vmax.f32 %v7672, %v6655
        %v7674 = vrot.slane %v7673, 4
        %v7675 = vmax.f32 %v7673, %v7674
        %v7676 = vrot.slane %v7675, 2
        %v7677 = vmax.f32 %v7675, %v7676
        %v7678 = vrot.slane %v7677, 1
        %v7679 = vmax.f32 %v7677, %v7678
        %v7680 = vmax.f32 %v6536, %v6544
        %v7681 = vmax.f32 %v7680, %v6552
        %v7682 = vmax.f32 %v7681, %v6560
        %v7683 = vmax.f32 %v7682, %v6568
        %v7684 = vmax.f32 %v7683, %v6576
        %v7685 = vmax.f32 %v7684, %v6584
        %v7686 = vmax.f32 %v7685, %v6592
        %v7687 = vmax.f32 %v7686, %v6600
        %v7688 = vmax.f32 %v7687, %v6608
        %v7689 = vmax.f32 %v7688, %v6616
        %v7690 = vmax.f32 %v7689, %v6624
        %v7691 = vmax.f32 %v7690, %v6632
        %v7692 = vmax.f32 %v7691, %v6640
        %v7693 = vmax.f32 %v7692, %v6648
        %v7694 = vmax.f32 %v7693, %v6656
        %v7695 = vrot.slane %v7694, 4
        %v7696 = vmax.f32 %v7694, %v7695
        %v7697 = vrot.slane %v7696, 2
        %v7698 = vmax.f32 %v7696, %v7697
        %v7699 = vrot.slane %v7698, 1
        %v7700 = vmax.f32 %v7698, %v7699
        %v7701 = vmax.f32 %v6537, %v6545
        %v7702 = vmax.f32 %v7701, %v6553
        %v7703 = vmax.f32 %v7702, %v6561
        %v7704 = vmax.f32 %v7703, %v6569
        %v7705 = vmax.f32 %v7704, %v6577
        %v7706 = vmax.f32 %v7705, %v6585
        %v7707 = vmax.f32 %v7706, %v6593
        %v7708 = vmax.f32 %v7707, %v6601
        %v7709 = vmax.f32 %v7708, %v6609
        %v7710 = vmax.f32 %v7709, %v6617
        %v7711 = vmax.f32 %v7710, %v6625
        %v7712 = vmax.f32 %v7711, %v6633
        %v7713 = vmax.f32 %v7712, %v6641
        %v7714 = vmax.f32 %v7713, %v6649
        %v7715 = vmax.f32 %v7714, %v6657
        %v7716 = vrot.slane %v7715, 4
        %v7717 = vmax.f32 %v7715, %v7716
        %v7718 = vrot.slane %v7717, 2
        %v7719 = vmax.f32 %v7717, %v7718
        %v7720 = vrot.slane %v7719, 1
        %v7721 = vmax.f32 %v7719, %v7720
        %v7722 = vmax.f32 %v6658, %v6666
        %v7723 = vmax.f32 %v7722, %v6674
        %v7724 = vmax.f32 %v7723, %v6682
        %v7725 = vmax.f32 %v7724, %v6690
        %v7726 = vmax.f32 %v7725, %v6698
        %v7727 = vmax.f32 %v7726, %v6706
        %v7728 = vmax.f32 %v7727, %v6714
        %v7729 = vmax.f32 %v7728, %v6722
        %v7730 = vmax.f32 %v7729, %v6730
        %v7731 = vmax.f32 %v7730, %v6738
        %v7732 = vmax.f32 %v7731, %v6746
        %v7733 = vmax.f32 %v7732, %v6754
        %v7734 = vmax.f32 %v7733, %v6762
        %v7735 = vmax.f32 %v7734, %v6770
        %v7736 = vmax.f32 %v7735, %v6778
        %v7737 = vrot.slane %v7736, 4
        %v7738 = vmax.f32 %v7736, %v7737
        %v7739 = vrot.slane %v7738, 2
        %v7740 = vmax.f32 %v7738, %v7739
        %v7741 = vrot.slane %v7740, 1
        %v7742 = vmax.f32 %v7740, %v7741
        %v7743 = vmax.f32 %v6659, %v6667
        %v7744 = vmax.f32 %v7743, %v6675
        %v7745 = vmax.f32 %v7744, %v6683
        %v7746 = vmax.f32 %v7745, %v6691
        %v7747 = vmax.f32 %v7746, %v6699
        %v7748 = vmax.f32 %v7747, %v6707
        %v7749 = vmax.f32 %v7748, %v6715
        %v7750 = vmax.f32 %v7749, %v6723
        %v7751 = vmax.f32 %v7750, %v6731
        %v7752 = vmax.f32 %v7751, %v6739
        %v7753 = vmax.f32 %v7752, %v6747
        %v7754 = vmax.f32 %v7753, %v6755
        %v7755 = vmax.f32 %v7754, %v6763
        %v7756 = vmax.f32 %v7755, %v6771
        %v7757 = vmax.f32 %v7756, %v6779
        %v7758 = vrot.slane %v7757, 4
        %v7759 = vmax.f32 %v7757, %v7758
        %v7760 = vrot.slane %v7759, 2
        %v7761 = vmax.f32 %v7759, %v7760
        %v7762 = vrot.slane %v7761, 1
        %v7763 = vmax.f32 %v7761, %v7762
        %v7764 = vmax.f32 %v6660, %v6668
        %v7765 = vmax.f32 %v7764, %v6676
        %v7766 = vmax.f32 %v7765, %v6684
        %v7767 = vmax.f32 %v7766, %v6692
        %v7768 = vmax.f32 %v7767, %v6700
        %v7769 = vmax.f32 %v7768, %v6708
        %v7770 = vmax.f32 %v7769, %v6716
        %v7771 = vmax.f32 %v7770, %v6724
        %v7772 = vmax.f32 %v7771, %v6732
        %v7773 = vmax.f32 %v7772, %v6740
        %v7774 = vmax.f32 %v7773, %v6748
        %v7775 = vmax.f32 %v7774, %v6756
        %v7776 = vmax.f32 %v7775, %v6764
        %v7777 = vmax.f32 %v7776, %v6772
        %v7778 = vmax.f32 %v7777, %v6780
        %v7779 = vrot.slane %v7778, 4
        %v7780 = vmax.f32 %v7778, %v7779
        %v7781 = vrot.slane %v7780, 2
        %v7782 = vmax.f32 %v7780, %v7781
        %v7783 = vrot.slane %v7782, 1
        %v7784 = vmax.f32 %v7782, %v7783
        %v7785 = vmax.f32 %v6661, %v6669
        %v7786 = vmax.f32 %v7785, %v6677
        %v7787 = vmax.f32 %v7786, %v6685
        %v7788 = vmax.f32 %v7787, %v6693
        %v7789 = vmax.f32 %v7788, %v6701
        %v7790 = vmax.f32 %v7789, %v6709
        %v7791 = vmax.f32 %v7790, %v6717
        %v7792 = vmax.f32 %v7791, %v6725
        %v7793 = vmax.f32 %v7792, %v6733
        %v7794 = vmax.f32 %v7793, %v6741
        %v7795 = vmax.f32 %v7794, %v6749
        %v7796 = vmax.f32 %v7795, %v6757
        %v7797 = vmax.f32 %v7796, %v6765
        %v7798 = vmax.f32 %v7797, %v6773
        %v7799 = vmax.f32 %v7798, %v6781
        %v7800 = vrot.slane %v7799, 4
        %v7801 = vmax.f32 %v7799, %v7800
        %v7802 = vrot.slane %v7801, 2
        %v7803 = vmax.f32 %v7801, %v7802
        %v7804 = vrot.slane %v7803, 1
        %v7805 = vmax.f32 %v7803, %v7804
        %v7806 = vmax.f32 %v6662, %v6670
        %v7807 = vmax.f32 %v7806, %v6678
        %v7808 = vmax.f32 %v7807, %v6686
        %v7809 = vmax.f32 %v7808, %v6694
        %v7810 = vmax.f32 %v7809, %v6702
        %v7811 = vmax.f32 %v7810, %v6710
        %v7812 = vmax.f32 %v7811, %v6718
        %v7813 = vmax.f32 %v7812, %v6726
        %v7814 = vmax.f32 %v7813, %v6734
        %v7815 = vmax.f32 %v7814, %v6742
        %v7816 = vmax.f32 %v7815, %v6750
        %v7817 = vmax.f32 %v7816, %v6758
        %v7818 = vmax.f32 %v7817, %v6766
        %v7819 = vmax.f32 %v7818, %v6774
        %v7820 = vmax.f32 %v7819, %v6782
        %v7821 = vrot.slane %v7820, 4
        %v7822 = vmax.f32 %v7820, %v7821
        %v7823 = vrot.slane %v7822, 2
        %v7824 = vmax.f32 %v7822, %v7823
        %v7825 = vrot.slane %v7824, 1
        %v7826 = vmax.f32 %v7824, %v7825
        %v7827 = vmax.f32 %v6663, %v6671
        %v7828 = vmax.f32 %v7827, %v6679
        %v7829 = vmax.f32 %v7828, %v6687
        %v7830 = vmax.f32 %v7829, %v6695
        %v7831 = vmax.f32 %v7830, %v6703
        %v7832 = vmax.f32 %v7831, %v6711
        %v7833 = vmax.f32 %v7832, %v6719
        %v7834 = vmax.f32 %v7833, %v6727
        %v7835 = vmax.f32 %v7834, %v6735
        %v7836 = vmax.f32 %v7835, %v6743
        %v7837 = vmax.f32 %v7836, %v6751
        %v7838 = vmax.f32 %v7837, %v6759
        %v7839 = vmax.f32 %v7838, %v6767
        %v7840 = vmax.f32 %v7839, %v6775
        %v7841 = vmax.f32 %v7840, %v6783
        %v7842 = vrot.slane %v7841, 4
        %v7843 = vmax.f32 %v7841, %v7842
        %v7844 = vrot.slane %v7843, 2
        %v7845 = vmax.f32 %v7843, %v7844
        %v7846 = vrot.slane %v7845, 1
        %v7847 = vmax.f32 %v7845, %v7846
        %v7848 = vmax.f32 %v6664, %v6672
        %v7849 = vmax.f32 %v7848, %v6680
        %v7850 = vmax.f32 %v7849, %v6688
        %v7851 = vmax.f32 %v7850, %v6696
        %v7852 = vmax.f32 %v7851, %v6704
        %v7853 = vmax.f32 %v7852, %v6712
        %v7854 = vmax.f32 %v7853, %v6720
        %v7855 = vmax.f32 %v7854, %v6728
        %v7856 = vmax.f32 %v7855, %v6736
        %v7857 = vmax.f32 %v7856, %v6744
        %v7858 = vmax.f32 %v7857, %v6752
        %v7859 = vmax.f32 %v7858, %v6760
        %v7860 = vmax.f32 %v7859, %v6768
        %v7861 = vmax.f32 %v7860, %v6776
        %v7862 = vmax.f32 %v7861, %v6784
        %v7863 = vrot.slane %v7862, 4
        %v7864 = vmax.f32 %v7862, %v7863
        %v7865 = vrot.slane %v7864, 2
        %v7866 = vmax.f32 %v7864, %v7865
        %v7867 = vrot.slane %v7866, 1
        %v7868 = vmax.f32 %v7866, %v7867
        %v7869 = vmax.f32 %v6665, %v6673
        %v7870 = vmax.f32 %v7869, %v6681
        %v7871 = vmax.f32 %v7870, %v6689
        %v7872 = vmax.f32 %v7871, %v6697
        %v7873 = vmax.f32 %v7872, %v6705
        %v7874 = vmax.f32 %v7873, %v6713
        %v7875 = vmax.f32 %v7874, %v6721
        %v7876 = vmax.f32 %v7875, %v6729
        %v7877 = vmax.f32 %v7876, %v6737
        %v7878 = vmax.f32 %v7877, %v6745
        %v7879 = vmax.f32 %v7878, %v6753
        %v7880 = vmax.f32 %v7879, %v6761
        %v7881 = vmax.f32 %v7880, %v6769
        %v7882 = vmax.f32 %v7881, %v6777
        %v7883 = vmax.f32 %v7882, %v6785
        %v7884 = vrot.slane %v7883, 4
        %v7885 = vmax.f32 %v7883, %v7884
        %v7886 = vrot.slane %v7885, 2
        %v7887 = vmax.f32 %v7885, %v7886
        %v7888 = vrot.slane %v7887, 1
        %v7889 = vmax.f32 %v7887, %v7888
        %v7890 = vmax.f32 %v6786, %v6794
        %v7891 = vmax.f32 %v7890, %v6802
        %v7892 = vmax.f32 %v7891, %v6810
        %v7893 = vmax.f32 %v7892, %v6818
        %v7894 = vmax.f32 %v7893, %v6826
        %v7895 = vmax.f32 %v7894, %v6834
        %v7896 = vmax.f32 %v7895, %v6842
        %v7897 = vmax.f32 %v7896, %v6850
        %v7898 = vmax.f32 %v7897, %v6858
        %v7899 = vmax.f32 %v7898, %v6866
        %v7900 = vmax.f32 %v7899, %v6874
        %v7901 = vmax.f32 %v7900, %v6882
        %v7902 = vmax.f32 %v7901, %v6890
        %v7903 = vmax.f32 %v7902, %v6898
        %v7904 = vmax.f32 %v7903, %v6906
        %v7905 = vrot.slane %v7904, 4
        %v7906 = vmax.f32 %v7904, %v7905
        %v7907 = vrot.slane %v7906, 2
        %v7908 = vmax.f32 %v7906, %v7907
        %v7909 = vrot.slane %v7908, 1
        %v7910 = vmax.f32 %v7908, %v7909
        %v7911 = vmax.f32 %v6787, %v6795
        %v7912 = vmax.f32 %v7911, %v6803
        %v7913 = vmax.f32 %v7912, %v6811
        %v7914 = vmax.f32 %v7913, %v6819
        %v7915 = vmax.f32 %v7914, %v6827
        %v7916 = vmax.f32 %v7915, %v6835
        %v7917 = vmax.f32 %v7916, %v6843
        %v7918 = vmax.f32 %v7917, %v6851
        %v7919 = vmax.f32 %v7918, %v6859
        %v7920 = vmax.f32 %v7919, %v6867
        %v7921 = vmax.f32 %v7920, %v6875
        %v7922 = vmax.f32 %v7921, %v6883
        %v7923 = vmax.f32 %v7922, %v6891
        %v7924 = vmax.f32 %v7923, %v6899
        %v7925 = vmax.f32 %v7924, %v6907
        %v7926 = vrot.slane %v7925, 4
        %v7927 = vmax.f32 %v7925, %v7926
        %v7928 = vrot.slane %v7927, 2
        %v7929 = vmax.f32 %v7927, %v7928
        %v7930 = vrot.slane %v7929, 1
        %v7931 = vmax.f32 %v7929, %v7930
        %v7932 = vmax.f32 %v6788, %v6796
        %v7933 = vmax.f32 %v7932, %v6804
        %v7934 = vmax.f32 %v7933, %v6812
        %v7935 = vmax.f32 %v7934, %v6820
        %v7936 = vmax.f32 %v7935, %v6828
        %v7937 = vmax.f32 %v7936, %v6836
        %v7938 = vmax.f32 %v7937, %v6844
        %v7939 = vmax.f32 %v7938, %v6852
        %v7940 = vmax.f32 %v7939, %v6860
        %v7941 = vmax.f32 %v7940, %v6868
        %v7942 = vmax.f32 %v7941, %v6876
        %v7943 = vmax.f32 %v7942, %v6884
        %v7944 = vmax.f32 %v7943, %v6892
        %v7945 = vmax.f32 %v7944, %v6900
        %v7946 = vmax.f32 %v7945, %v6908
        %v7947 = vrot.slane %v7946, 4
        %v7948 = vmax.f32 %v7946, %v7947
        %v7949 = vrot.slane %v7948, 2
        %v7950 = vmax.f32 %v7948, %v7949
        %v7951 = vrot.slane %v7950, 1
        %v7952 = vmax.f32 %v7950, %v7951
        %v7953 = vmax.f32 %v6789, %v6797
        %v7954 = vmax.f32 %v7953, %v6805
        %v7955 = vmax.f32 %v7954, %v6813
        %v7956 = vmax.f32 %v7955, %v6821
        %v7957 = vmax.f32 %v7956, %v6829
        %v7958 = vmax.f32 %v7957, %v6837
        %v7959 = vmax.f32 %v7958, %v6845
        %v7960 = vmax.f32 %v7959, %v6853
        %v7961 = vmax.f32 %v7960, %v6861
        %v7962 = vmax.f32 %v7961, %v6869
        %v7963 = vmax.f32 %v7962, %v6877
        %v7964 = vmax.f32 %v7963, %v6885
        %v7965 = vmax.f32 %v7964, %v6893
        %v7966 = vmax.f32 %v7965, %v6901
        %v7967 = vmax.f32 %v7966, %v6909
        %v7968 = vrot.slane %v7967, 4
        %v7969 = vmax.f32 %v7967, %v7968
        %v7970 = vrot.slane %v7969, 2
        %v7971 = vmax.f32 %v7969, %v7970
        %v7972 = vrot.slane %v7971, 1
        %v7973 = vmax.f32 %v7971, %v7972
        %v7974 = vmax.f32 %v6790, %v6798
        %v7975 = vmax.f32 %v7974, %v6806
        %v7976 = vmax.f32 %v7975, %v6814
        %v7977 = vmax.f32 %v7976, %v6822
        %v7978 = vmax.f32 %v7977, %v6830
        %v7979 = vmax.f32 %v7978, %v6838
        %v7980 = vmax.f32 %v7979, %v6846
        %v7981 = vmax.f32 %v7980, %v6854
        %v7982 = vmax.f32 %v7981, %v6862
        %v7983 = vmax.f32 %v7982, %v6870
        %v7984 = vmax.f32 %v7983, %v6878
        %v7985 = vmax.f32 %v7984, %v6886
        %v7986 = vmax.f32 %v7985, %v6894
        %v7987 = vmax.f32 %v7986, %v6902
        %v7988 = vmax.f32 %v7987, %v6910
        %v7989 = vrot.slane %v7988, 4
        %v7990 = vmax.f32 %v7988, %v7989
        %v7991 = vrot.slane %v7990, 2
        %v7992 = vmax.f32 %v7990, %v7991
        %v7993 = vrot.slane %v7992, 1
        %v7994 = vmax.f32 %v7992, %v7993
        %v7995 = vmax.f32 %v6791, %v6799
        %v7996 = vmax.f32 %v7995, %v6807
        %v7997 = vmax.f32 %v7996, %v6815
        %v7998 = vmax.f32 %v7997, %v6823
        %v7999 = vmax.f32 %v7998, %v6831
        %v8000 = vmax.f32 %v7999, %v6839
        %v8001 = vmax.f32 %v8000, %v6847
        %v8002 = vmax.f32 %v8001, %v6855
        %v8003 = vmax.f32 %v8002, %v6863
        %v8004 = vmax.f32 %v8003, %v6871
        %v8005 = vmax.f32 %v8004, %v6879
        %v8006 = vmax.f32 %v8005, %v6887
        %v8007 = vmax.f32 %v8006, %v6895
        %v8008 = vmax.f32 %v8007, %v6903
        %v8009 = vmax.f32 %v8008, %v6911
        %v8010 = vrot.slane %v8009, 4
        %v8011 = vmax.f32 %v8009, %v8010
        %v8012 = vrot.slane %v8011, 2
        %v8013 = vmax.f32 %v8011, %v8012
        %v8014 = vrot.slane %v8013, 1
        %v8015 = vmax.f32 %v8013, %v8014
        %v8016 = vmax.f32 %v6792, %v6800
        %v8017 = vmax.f32 %v8016, %v6808
        %v8018 = vmax.f32 %v8017, %v6816
        %v8019 = vmax.f32 %v8018, %v6824
        %v8020 = vmax.f32 %v8019, %v6832
        %v8021 = vmax.f32 %v8020, %v6840
        %v8022 = vmax.f32 %v8021, %v6848
        %v8023 = vmax.f32 %v8022, %v6856
        %v8024 = vmax.f32 %v8023, %v6864
        %v8025 = vmax.f32 %v8024, %v6872
        %v8026 = vmax.f32 %v8025, %v6880
        %v8027 = vmax.f32 %v8026, %v6888
        %v8028 = vmax.f32 %v8027, %v6896
        %v8029 = vmax.f32 %v8028, %v6904
        %v8030 = vmax.f32 %v8029, %v6912
        %v8031 = vrot.slane %v8030, 4
        %v8032 = vmax.f32 %v8030, %v8031
        %v8033 = vrot.slane %v8032, 2
        %v8034 = vmax.f32 %v8032, %v8033
        %v8035 = vrot.slane %v8034, 1
        %v8036 = vmax.f32 %v8034, %v8035
        %v8037 = vmax.f32 %v6793, %v6801
        %v8038 = vmax.f32 %v8037, %v6809
        %v8039 = vmax.f32 %v8038, %v6817
        %v8040 = vmax.f32 %v8039, %v6825
        %v8041 = vmax.f32 %v8040, %v6833
        %v8042 = vmax.f32 %v8041, %v6841
        %v8043 = vmax.f32 %v8042, %v6849
        %v8044 = vmax.f32 %v8043, %v6857
        %v8045 = vmax.f32 %v8044, %v6865
        %v8046 = vmax.f32 %v8045, %v6873
        %v8047 = vmax.f32 %v8046, %v6881
        %v8048 = vmax.f32 %v8047, %v6889
        %v8049 = vmax.f32 %v8048, %v6897
        %v8050 = vmax.f32 %v8049, %v6905
        %v8051 = vmax.f32 %v8050, %v6913
        %v8052 = vrot.slane %v8051, 4
        %v8053 = vmax.f32 %v8051, %v8052
        %v8054 = vrot.slane %v8053, 2
        %v8055 = vmax.f32 %v8053, %v8054
        %v8056 = vrot.slane %v8055, 1
        %v8057 = vmax.f32 %v8055, %v8056
        %v8058 = vmax.f32 %v6914, %v6922
        %v8059 = vmax.f32 %v8058, %v6930
        %v8060 = vmax.f32 %v8059, %v6938
        %v8061 = vmax.f32 %v8060, %v6946
        %v8062 = vmax.f32 %v8061, %v6954
        %v8063 = vmax.f32 %v8062, %v6962
        %v8064 = vmax.f32 %v8063, %v6970
        %v8065 = vmax.f32 %v8064, %v6978
        %v8066 = vmax.f32 %v8065, %v6986
        %v8067 = vmax.f32 %v8066, %v6994
        %v8068 = vmax.f32 %v8067, %v7002
        %v8069 = vmax.f32 %v8068, %v7010
        %v8070 = vmax.f32 %v8069, %v7018
        %v8071 = vmax.f32 %v8070, %v7026
        %v8072 = vmax.f32 %v8071, %v7034
        %v8073 = vrot.slane %v8072, 4
        %v8074 = vmax.f32 %v8072, %v8073
        %v8075 = vrot.slane %v8074, 2
        %v8076 = vmax.f32 %v8074, %v8075
        %v8077 = vrot.slane %v8076, 1
        %v8078 = vmax.f32 %v8076, %v8077
        %v8079 = vmax.f32 %v6915, %v6923
        %v8080 = vmax.f32 %v8079, %v6931
        %v8081 = vmax.f32 %v8080, %v6939
        %v8082 = vmax.f32 %v8081, %v6947
        %v8083 = vmax.f32 %v8082, %v6955
        %v8084 = vmax.f32 %v8083, %v6963
        %v8085 = vmax.f32 %v8084, %v6971
        %v8086 = vmax.f32 %v8085, %v6979
        %v8087 = vmax.f32 %v8086, %v6987
        %v8088 = vmax.f32 %v8087, %v6995
        %v8089 = vmax.f32 %v8088, %v7003
        %v8090 = vmax.f32 %v8089, %v7011
        %v8091 = vmax.f32 %v8090, %v7019
        %v8092 = vmax.f32 %v8091, %v7027
        %v8093 = vmax.f32 %v8092, %v7035
        %v8094 = vrot.slane %v8093, 4
        %v8095 = vmax.f32 %v8093, %v8094
        %v8096 = vrot.slane %v8095, 2
        %v8097 = vmax.f32 %v8095, %v8096
        %v8098 = vrot.slane %v8097, 1
        %v8099 = vmax.f32 %v8097, %v8098
        %v8100 = vmax.f32 %v6916, %v6924
        %v8101 = vmax.f32 %v8100, %v6932
        %v8102 = vmax.f32 %v8101, %v6940
        %v8103 = vmax.f32 %v8102, %v6948
        %v8104 = vmax.f32 %v8103, %v6956
        %v8105 = vmax.f32 %v8104, %v6964
        %v8106 = vmax.f32 %v8105, %v6972
        %v8107 = vmax.f32 %v8106, %v6980
        %v8108 = vmax.f32 %v8107, %v6988
        %v8109 = vmax.f32 %v8108, %v6996
        %v8110 = vmax.f32 %v8109, %v7004
        %v8111 = vmax.f32 %v8110, %v7012
        %v8112 = vmax.f32 %v8111, %v7020
        %v8113 = vmax.f32 %v8112, %v7028
        %v8114 = vmax.f32 %v8113, %v7036
        %v8115 = vrot.slane %v8114, 4
        %v8116 = vmax.f32 %v8114, %v8115
        %v8117 = vrot.slane %v8116, 2
        %v8118 = vmax.f32 %v8116, %v8117
        %v8119 = vrot.slane %v8118, 1
        %v8120 = vmax.f32 %v8118, %v8119
        %v8121 = vmax.f32 %v6917, %v6925
        %v8122 = vmax.f32 %v8121, %v6933
        %v8123 = vmax.f32 %v8122, %v6941
        %v8124 = vmax.f32 %v8123, %v6949
        %v8125 = vmax.f32 %v8124, %v6957
        %v8126 = vmax.f32 %v8125, %v6965
        %v8127 = vmax.f32 %v8126, %v6973
        %v8128 = vmax.f32 %v8127, %v6981
        %v8129 = vmax.f32 %v8128, %v6989
        %v8130 = vmax.f32 %v8129, %v6997
        %v8131 = vmax.f32 %v8130, %v7005
        %v8132 = vmax.f32 %v8131, %v7013
        %v8133 = vmax.f32 %v8132, %v7021
        %v8134 = vmax.f32 %v8133, %v7029
        %v8135 = vmax.f32 %v8134, %v7037
        %v8136 = vrot.slane %v8135, 4
        %v8137 = vmax.f32 %v8135, %v8136
        %v8138 = vrot.slane %v8137, 2
        %v8139 = vmax.f32 %v8137, %v8138
        %v8140 = vrot.slane %v8139, 1
        %v8141 = vmax.f32 %v8139, %v8140
        %v8142 = vmax.f32 %v6918, %v6926
        %v8143 = vmax.f32 %v8142, %v6934
        %v8144 = vmax.f32 %v8143, %v6942
        %v8145 = vmax.f32 %v8144, %v6950
        %v8146 = vmax.f32 %v8145, %v6958
        %v8147 = vmax.f32 %v8146, %v6966
        %v8148 = vmax.f32 %v8147, %v6974
        %v8149 = vmax.f32 %v8148, %v6982
        %v8150 = vmax.f32 %v8149, %v6990
        %v8151 = vmax.f32 %v8150, %v6998
        %v8152 = vmax.f32 %v8151, %v7006
        %v8153 = vmax.f32 %v8152, %v7014
        %v8154 = vmax.f32 %v8153, %v7022
        %v8155 = vmax.f32 %v8154, %v7030
        %v8156 = vmax.f32 %v8155, %v7038
        %v8157 = vrot.slane %v8156, 4
        %v8158 = vmax.f32 %v8156, %v8157
        %v8159 = vrot.slane %v8158, 2
        %v8160 = vmax.f32 %v8158, %v8159
        %v8161 = vrot.slane %v8160, 1
        %v8162 = vmax.f32 %v8160, %v8161
        %v8163 = vmax.f32 %v6919, %v6927
        %v8164 = vmax.f32 %v8163, %v6935
        %v8165 = vmax.f32 %v8164, %v6943
        %v8166 = vmax.f32 %v8165, %v6951
        %v8167 = vmax.f32 %v8166, %v6959
        %v8168 = vmax.f32 %v8167, %v6967
        %v8169 = vmax.f32 %v8168, %v6975
        %v8170 = vmax.f32 %v8169, %v6983
        %v8171 = vmax.f32 %v8170, %v6991
        %v8172 = vmax.f32 %v8171, %v6999
        %v8173 = vmax.f32 %v8172, %v7007
        %v8174 = vmax.f32 %v8173, %v7015
        %v8175 = vmax.f32 %v8174, %v7023
        %v8176 = vmax.f32 %v8175, %v7031
        %v8177 = vmax.f32 %v8176, %v7039
        %v8178 = vrot.slane %v8177, 4
        %v8179 = vmax.f32 %v8177, %v8178
        %v8180 = vrot.slane %v8179, 2
        %v8181 = vmax.f32 %v8179, %v8180
        %v8182 = vrot.slane %v8181, 1
        %v8183 = vmax.f32 %v8181, %v8182
        %v8184 = vmax.f32 %v6920, %v6928
        %v8185 = vmax.f32 %v8184, %v6936
        %v8186 = vmax.f32 %v8185, %v6944
        %v8187 = vmax.f32 %v8186, %v6952
        %v8188 = vmax.f32 %v8187, %v6960
        %v8189 = vmax.f32 %v8188, %v6968
        %v8190 = vmax.f32 %v8189, %v6976
        %v8191 = vmax.f32 %v8190, %v6984
        %v8192 = vmax.f32 %v8191, %v6992
        %v8193 = vmax.f32 %v8192, %v7000
        %v8194 = vmax.f32 %v8193, %v7008
        %v8195 = vmax.f32 %v8194, %v7016
        %v8196 = vmax.f32 %v8195, %v7024
        %v8197 = vmax.f32 %v8196, %v7032
        %v8198 = vmax.f32 %v8197, %v7040
        %v8199 = vrot.slane %v8198, 4
        %v8200 = vmax.f32 %v8198, %v8199
        %v8201 = vrot.slane %v8200, 2
        %v8202 = vmax.f32 %v8200, %v8201
        %v8203 = vrot.slane %v8202, 1
        %v8204 = vmax.f32 %v8202, %v8203
        %v8205 = vmax.f32 %v6921, %v6929
        %v8206 = vmax.f32 %v8205, %v6937
        %v8207 = vmax.f32 %v8206, %v6945
        %v8208 = vmax.f32 %v8207, %v6953
        %v8209 = vmax.f32 %v8208, %v6961
        %v8210 = vmax.f32 %v8209, %v6969
        %v8211 = vmax.f32 %v8210, %v6977
        %v8212 = vmax.f32 %v8211, %v6985
        %v8213 = vmax.f32 %v8212, %v6993
        %v8214 = vmax.f32 %v8213, %v7001
        %v8215 = vmax.f32 %v8214, %v7009
        %v8216 = vmax.f32 %v8215, %v7017
        %v8217 = vmax.f32 %v8216, %v7025
        %v8218 = vmax.f32 %v8217, %v7033
        %v8219 = vmax.f32 %v8218, %v7041
        %v8220 = vrot.slane %v8219, 4
        %v8221 = vmax.f32 %v8219, %v8220
        %v8222 = vrot.slane %v8221, 2
        %v8223 = vmax.f32 %v8221, %v8222
        %v8224 = vrot.slane %v8223, 1
        %v8225 = vmax.f32 %v8223, %v8224
        %v8226 = vmax.f32 %v7042, %v7050
        %v8227 = vmax.f32 %v8226, %v7058
        %v8228 = vmax.f32 %v8227, %v7066
        %v8229 = vmax.f32 %v8228, %v7074
        %v8230 = vmax.f32 %v8229, %v7082
        %v8231 = vmax.f32 %v8230, %v7090
        %v8232 = vmax.f32 %v8231, %v7098
        %v8233 = vmax.f32 %v8232, %v7106
        %v8234 = vmax.f32 %v8233, %v7114
        %v8235 = vmax.f32 %v8234, %v7122
        %v8236 = vmax.f32 %v8235, %v7130
        %v8237 = vmax.f32 %v8236, %v7138
        %v8238 = vmax.f32 %v8237, %v7146
        %v8239 = vmax.f32 %v8238, %v7154
        %v8240 = vmax.f32 %v8239, %v7162
        %v8241 = vrot.slane %v8240, 4
        %v8242 = vmax.f32 %v8240, %v8241
        %v8243 = vrot.slane %v8242, 2
        %v8244 = vmax.f32 %v8242, %v8243
        %v8245 = vrot.slane %v8244, 1
        %v8246 = vmax.f32 %v8244, %v8245
        %v8247 = vmax.f32 %v7043, %v7051
        %v8248 = vmax.f32 %v8247, %v7059
        %v8249 = vmax.f32 %v8248, %v7067
        %v8250 = vmax.f32 %v8249, %v7075
        %v8251 = vmax.f32 %v8250, %v7083
        %v8252 = vmax.f32 %v8251, %v7091
        %v8253 = vmax.f32 %v8252, %v7099
        %v8254 = vmax.f32 %v8253, %v7107
        %v8255 = vmax.f32 %v8254, %v7115
        %v8256 = vmax.f32 %v8255, %v7123
        %v8257 = vmax.f32 %v8256, %v7131
        %v8258 = vmax.f32 %v8257, %v7139
        %v8259 = vmax.f32 %v8258, %v7147
        %v8260 = vmax.f32 %v8259, %v7155
        %v8261 = vmax.f32 %v8260, %v7163
        %v8262 = vrot.slane %v8261, 4
        %v8263 = vmax.f32 %v8261, %v8262
        %v8264 = vrot.slane %v8263, 2
        %v8265 = vmax.f32 %v8263, %v8264
        %v8266 = vrot.slane %v8265, 1
        %v8267 = vmax.f32 %v8265, %v8266
        %v8268 = vmax.f32 %v7044, %v7052
        %v8269 = vmax.f32 %v8268, %v7060
        %v8270 = vmax.f32 %v8269, %v7068
        %v8271 = vmax.f32 %v8270, %v7076
        %v8272 = vmax.f32 %v8271, %v7084
        %v8273 = vmax.f32 %v8272, %v7092
        %v8274 = vmax.f32 %v8273, %v7100
        %v8275 = vmax.f32 %v8274, %v7108
        %v8276 = vmax.f32 %v8275, %v7116
        %v8277 = vmax.f32 %v8276, %v7124
        %v8278 = vmax.f32 %v8277, %v7132
        %v8279 = vmax.f32 %v8278, %v7140
        %v8280 = vmax.f32 %v8279, %v7148
        %v8281 = vmax.f32 %v8280, %v7156
        %v8282 = vmax.f32 %v8281, %v7164
        %v8283 = vrot.slane %v8282, 4
        %v8284 = vmax.f32 %v8282, %v8283
        %v8285 = vrot.slane %v8284, 2
        %v8286 = vmax.f32 %v8284, %v8285
        %v8287 = vrot.slane %v8286, 1
        %v8288 = vmax.f32 %v8286, %v8287
        %v8289 = vmax.f32 %v7045, %v7053
        %v8290 = vmax.f32 %v8289, %v7061
        %v8291 = vmax.f32 %v8290, %v7069
        %v8292 = vmax.f32 %v8291, %v7077
        %v8293 = vmax.f32 %v8292, %v7085
        %v8294 = vmax.f32 %v8293, %v7093
        %v8295 = vmax.f32 %v8294, %v7101
        %v8296 = vmax.f32 %v8295, %v7109
        %v8297 = vmax.f32 %v8296, %v7117
        %v8298 = vmax.f32 %v8297, %v7125
        %v8299 = vmax.f32 %v8298, %v7133
        %v8300 = vmax.f32 %v8299, %v7141
        %v8301 = vmax.f32 %v8300, %v7149
        %v8302 = vmax.f32 %v8301, %v7157
        %v8303 = vmax.f32 %v8302, %v7165
        %v8304 = vrot.slane %v8303, 4
        %v8305 = vmax.f32 %v8303, %v8304
        %v8306 = vrot.slane %v8305, 2
        %v8307 = vmax.f32 %v8305, %v8306
        %v8308 = vrot.slane %v8307, 1
        %v8309 = vmax.f32 %v8307, %v8308
        %v8310 = vmax.f32 %v7046, %v7054
        %v8311 = vmax.f32 %v8310, %v7062
        %v8312 = vmax.f32 %v8311, %v7070
        %v8313 = vmax.f32 %v8312, %v7078
        %v8314 = vmax.f32 %v8313, %v7086
        %v8315 = vmax.f32 %v8314, %v7094
        %v8316 = vmax.f32 %v8315, %v7102
        %v8317 = vmax.f32 %v8316, %v7110
        %v8318 = vmax.f32 %v8317, %v7118
        %v8319 = vmax.f32 %v8318, %v7126
        %v8320 = vmax.f32 %v8319, %v7134
        %v8321 = vmax.f32 %v8320, %v7142
        %v8322 = vmax.f32 %v8321, %v7150
        %v8323 = vmax.f32 %v8322, %v7158
        %v8324 = vmax.f32 %v8323, %v7166
        %v8325 = vrot.slane %v8324, 4
        %v8326 = vmax.f32 %v8324, %v8325
        %v8327 = vrot.slane %v8326, 2
        %v8328 = vmax.f32 %v8326, %v8327
        %v8329 = vrot.slane %v8328, 1
        %v8330 = vmax.f32 %v8328, %v8329
        %v8331 = vmax.f32 %v7047, %v7055
        %v8332 = vmax.f32 %v8331, %v7063
        %v8333 = vmax.f32 %v8332, %v7071
        %v8334 = vmax.f32 %v8333, %v7079
        %v8335 = vmax.f32 %v8334, %v7087
        %v8336 = vmax.f32 %v8335, %v7095
        %v8337 = vmax.f32 %v8336, %v7103
        %v8338 = vmax.f32 %v8337, %v7111
        %v8339 = vmax.f32 %v8338, %v7119
        %v8340 = vmax.f32 %v8339, %v7127
        %v8341 = vmax.f32 %v8340, %v7135
        %v8342 = vmax.f32 %v8341, %v7143
        %v8343 = vmax.f32 %v8342, %v7151
        %v8344 = vmax.f32 %v8343, %v7159
        %v8345 = vmax.f32 %v8344, %v7167
        %v8346 = vrot.slane %v8345, 4
        %v8347 = vmax.f32 %v8345, %v8346
        %v8348 = vrot.slane %v8347, 2
        %v8349 = vmax.f32 %v8347, %v8348
        %v8350 = vrot.slane %v8349, 1
        %v8351 = vmax.f32 %v8349, %v8350
        %v8352 = vmax.f32 %v7048, %v7056
        %v8353 = vmax.f32 %v8352, %v7064
        %v8354 = vmax.f32 %v8353, %v7072
        %v8355 = vmax.f32 %v8354, %v7080
        %v8356 = vmax.f32 %v8355, %v7088
        %v8357 = vmax.f32 %v8356, %v7096
        %v8358 = vmax.f32 %v8357, %v7104
        %v8359 = vmax.f32 %v8358, %v7112
        %v8360 = vmax.f32 %v8359, %v7120
        %v8361 = vmax.f32 %v8360, %v7128
        %v8362 = vmax.f32 %v8361, %v7136
        %v8363 = vmax.f32 %v8362, %v7144
        %v8364 = vmax.f32 %v8363, %v7152
        %v8365 = vmax.f32 %v8364, %v7160
        %v8366 = vmax.f32 %v8365, %v7168
        %v8367 = vrot.slane %v8366, 4
        %v8368 = vmax.f32 %v8366, %v8367
        %v8369 = vrot.slane %v8368, 2
        %v8370 = vmax.f32 %v8368, %v8369
        %v8371 = vrot.slane %v8370, 1
        %v8372 = vmax.f32 %v8370, %v8371
        %v8373 = vmax.f32 %v7049, %v7057
        %v8374 = vmax.f32 %v8373, %v7065
        %v8375 = vmax.f32 %v8374, %v7073
        %v8376 = vmax.f32 %v8375, %v7081
        %v8377 = vmax.f32 %v8376, %v7089
        %v8378 = vmax.f32 %v8377, %v7097
        %v8379 = vmax.f32 %v8378, %v7105
        %v8380 = vmax.f32 %v8379, %v7113
        %v8381 = vmax.f32 %v8380, %v7121
        %v8382 = vmax.f32 %v8381, %v7129
        %v8383 = vmax.f32 %v8382, %v7137
        %v8384 = vmax.f32 %v8383, %v7145
        %v8385 = vmax.f32 %v8384, %v7153
        %v8386 = vmax.f32 %v8385, %v7161
        %v8387 = vmax.f32 %v8386, %v7169
        %v8388 = vrot.slane %v8387, 4
        %v8389 = vmax.f32 %v8387, %v8388
        %v8390 = vrot.slane %v8389, 2
        %v8391 = vmax.f32 %v8389, %v8390
        %v8392 = vrot.slane %v8391, 1
        %v8393 = vmax.f32 %v8391, %v8392
        %v8394 = vmax.f32 %v7170, %v7178
        %v8395 = vmax.f32 %v8394, %v7186
        %v8396 = vmax.f32 %v8395, %v7194
        %v8397 = vmax.f32 %v8396, %v7202
        %v8398 = vmax.f32 %v8397, %v7210
        %v8399 = vmax.f32 %v8398, %v7218
        %v8400 = vmax.f32 %v8399, %v7226
        %v8401 = vmax.f32 %v8400, %v7234
        %v8402 = vmax.f32 %v8401, %v7242
        %v8403 = vmax.f32 %v8402, %v7250
        %v8404 = vmax.f32 %v8403, %v7258
        %v8405 = vmax.f32 %v8404, %v7266
        %v8406 = vmax.f32 %v8405, %v7274
        %v8407 = vmax.f32 %v8406, %v7282
        %v8408 = vmax.f32 %v8407, %v7290
        %v8409 = vrot.slane %v8408, 4
        %v8410 = vmax.f32 %v8408, %v8409
        %v8411 = vrot.slane %v8410, 2
        %v8412 = vmax.f32 %v8410, %v8411
        %v8413 = vrot.slane %v8412, 1
        %v8414 = vmax.f32 %v8412, %v8413
        %v8415 = vmax.f32 %v7171, %v7179
        %v8416 = vmax.f32 %v8415, %v7187
        %v8417 = vmax.f32 %v8416, %v7195
        %v8418 = vmax.f32 %v8417, %v7203
        %v8419 = vmax.f32 %v8418, %v7211
        %v8420 = vmax.f32 %v8419, %v7219
        %v8421 = vmax.f32 %v8420, %v7227
        %v8422 = vmax.f32 %v8421, %v7235
        %v8423 = vmax.f32 %v8422, %v7243
        %v8424 = vmax.f32 %v8423, %v7251
        %v8425 = vmax.f32 %v8424, %v7259
        %v8426 = vmax.f32 %v8425, %v7267
        %v8427 = vmax.f32 %v8426, %v7275
        %v8428 = vmax.f32 %v8427, %v7283
        %v8429 = vmax.f32 %v8428, %v7291
        %v8430 = vrot.slane %v8429, 4
        %v8431 = vmax.f32 %v8429, %v8430
        %v8432 = vrot.slane %v8431, 2
        %v8433 = vmax.f32 %v8431, %v8432
        %v8434 = vrot.slane %v8433, 1
        %v8435 = vmax.f32 %v8433, %v8434
        %v8436 = vmax.f32 %v7172, %v7180
        %v8437 = vmax.f32 %v8436, %v7188
        %v8438 = vmax.f32 %v8437, %v7196
        %v8439 = vmax.f32 %v8438, %v7204
        %v8440 = vmax.f32 %v8439, %v7212
        %v8441 = vmax.f32 %v8440, %v7220
        %v8442 = vmax.f32 %v8441, %v7228
        %v8443 = vmax.f32 %v8442, %v7236
        %v8444 = vmax.f32 %v8443, %v7244
        %v8445 = vmax.f32 %v8444, %v7252
        %v8446 = vmax.f32 %v8445, %v7260
        %v8447 = vmax.f32 %v8446, %v7268
        %v8448 = vmax.f32 %v8447, %v7276
        %v8449 = vmax.f32 %v8448, %v7284
        %v8450 = vmax.f32 %v8449, %v7292
        %v8451 = vrot.slane %v8450, 4
        %v8452 = vmax.f32 %v8450, %v8451
        %v8453 = vrot.slane %v8452, 2
        %v8454 = vmax.f32 %v8452, %v8453
        %v8455 = vrot.slane %v8454, 1
        %v8456 = vmax.f32 %v8454, %v8455
        %v8457 = vmax.f32 %v7173, %v7181
        %v8458 = vmax.f32 %v8457, %v7189
        %v8459 = vmax.f32 %v8458, %v7197
        %v8460 = vmax.f32 %v8459, %v7205
        %v8461 = vmax.f32 %v8460, %v7213
        %v8462 = vmax.f32 %v8461, %v7221
        %v8463 = vmax.f32 %v8462, %v7229
        %v8464 = vmax.f32 %v8463, %v7237
        %v8465 = vmax.f32 %v8464, %v7245
        %v8466 = vmax.f32 %v8465, %v7253
        %v8467 = vmax.f32 %v8466, %v7261
        %v8468 = vmax.f32 %v8467, %v7269
        %v8469 = vmax.f32 %v8468, %v7277
        %v8470 = vmax.f32 %v8469, %v7285
        %v8471 = vmax.f32 %v8470, %v7293
        %v8472 = vrot.slane %v8471, 4
        %v8473 = vmax.f32 %v8471, %v8472
        %v8474 = vrot.slane %v8473, 2
        %v8475 = vmax.f32 %v8473, %v8474
        %v8476 = vrot.slane %v8475, 1
        %v8477 = vmax.f32 %v8475, %v8476
        %v8478 = vmax.f32 %v7174, %v7182
        %v8479 = vmax.f32 %v8478, %v7190
        %v8480 = vmax.f32 %v8479, %v7198
        %v8481 = vmax.f32 %v8480, %v7206
        %v8482 = vmax.f32 %v8481, %v7214
        %v8483 = vmax.f32 %v8482, %v7222
        %v8484 = vmax.f32 %v8483, %v7230
        %v8485 = vmax.f32 %v8484, %v7238
        %v8486 = vmax.f32 %v8485, %v7246
        %v8487 = vmax.f32 %v8486, %v7254
        %v8488 = vmax.f32 %v8487, %v7262
        %v8489 = vmax.f32 %v8488, %v7270
        %v8490 = vmax.f32 %v8489, %v7278
        %v8491 = vmax.f32 %v8490, %v7286
        %v8492 = vmax.f32 %v8491, %v7294
        %v8493 = vrot.slane %v8492, 4
        %v8494 = vmax.f32 %v8492, %v8493
        %v8495 = vrot.slane %v8494, 2
        %v8496 = vmax.f32 %v8494, %v8495
        %v8497 = vrot.slane %v8496, 1
        %v8498 = vmax.f32 %v8496, %v8497
        %v8499 = vmax.f32 %v7175, %v7183
        %v8500 = vmax.f32 %v8499, %v7191
        %v8501 = vmax.f32 %v8500, %v7199
        %v8502 = vmax.f32 %v8501, %v7207
        %v8503 = vmax.f32 %v8502, %v7215
        %v8504 = vmax.f32 %v8503, %v7223
        %v8505 = vmax.f32 %v8504, %v7231
        %v8506 = vmax.f32 %v8505, %v7239
        %v8507 = vmax.f32 %v8506, %v7247
        %v8508 = vmax.f32 %v8507, %v7255
        %v8509 = vmax.f32 %v8508, %v7263
        %v8510 = vmax.f32 %v8509, %v7271
        %v8511 = vmax.f32 %v8510, %v7279
        %v8512 = vmax.f32 %v8511, %v7287
        %v8513 = vmax.f32 %v8512, %v7295
        %v8514 = vrot.slane %v8513, 4
        %v8515 = vmax.f32 %v8513, %v8514
        %v8516 = vrot.slane %v8515, 2
        %v8517 = vmax.f32 %v8515, %v8516
        %v8518 = vrot.slane %v8517, 1
        %v8519 = vmax.f32 %v8517, %v8518
        %v8520 = vmax.f32 %v7176, %v7184
        %v8521 = vmax.f32 %v8520, %v7192
        %v8522 = vmax.f32 %v8521, %v7200
        %v8523 = vmax.f32 %v8522, %v7208
        %v8524 = vmax.f32 %v8523, %v7216
        %v8525 = vmax.f32 %v8524, %v7224
        %v8526 = vmax.f32 %v8525, %v7232
        %v8527 = vmax.f32 %v8526, %v7240
        %v8528 = vmax.f32 %v8527, %v7248
        %v8529 = vmax.f32 %v8528, %v7256
        %v8530 = vmax.f32 %v8529, %v7264
        %v8531 = vmax.f32 %v8530, %v7272
        %v8532 = vmax.f32 %v8531, %v7280
        %v8533 = vmax.f32 %v8532, %v7288
        %v8534 = vmax.f32 %v8533, %v7296
        %v8535 = vrot.slane %v8534, 4
        %v8536 = vmax.f32 %v8534, %v8535
        %v8537 = vrot.slane %v8536, 2
        %v8538 = vmax.f32 %v8536, %v8537
        %v8539 = vrot.slane %v8538, 1
        %v8540 = vmax.f32 %v8538, %v8539
        %v8541 = vmax.f32 %v7177, %v7185
        %v8542 = vmax.f32 %v8541, %v7193
        %v8543 = vmax.f32 %v8542, %v7201
        %v8544 = vmax.f32 %v8543, %v7209
        %v8545 = vmax.f32 %v8544, %v7217
        %v8546 = vmax.f32 %v8545, %v7225
        %v8547 = vmax.f32 %v8546, %v7233
        %v8548 = vmax.f32 %v8547, %v7241
        %v8549 = vmax.f32 %v8548, %v7249
        %v8550 = vmax.f32 %v8549, %v7257
        %v8551 = vmax.f32 %v8550, %v7265
        %v8552 = vmax.f32 %v8551, %v7273
        %v8553 = vmax.f32 %v8552, %v7281
        %v8554 = vmax.f32 %v8553, %v7289
        %v8555 = vmax.f32 %v8554, %v7297
        %v8556 = vrot.slane %v8555, 4
        %v8557 = vmax.f32 %v8555, %v8556
        %v8558 = vrot.slane %v8557, 2
        %v8559 = vmax.f32 %v8557, %v8558
        %v8560 = vrot.slane %v8559, 1
        %v8561 = vmax.f32 %v8559, %v8560
        %v8562 = vmax.f32 %v7298, %v7306
        %v8563 = vmax.f32 %v8562, %v7314
        %v8564 = vmax.f32 %v8563, %v7322
        %v8565 = vmax.f32 %v8564, %v7330
        %v8566 = vmax.f32 %v8565, %v7338
        %v8567 = vmax.f32 %v8566, %v7346
        %v8568 = vmax.f32 %v8567, %v7354
        %v8569 = vmax.f32 %v8568, %v7362
        %v8570 = vmax.f32 %v8569, %v7370
        %v8571 = vmax.f32 %v8570, %v7378
        %v8572 = vmax.f32 %v8571, %v7386
        %v8573 = vmax.f32 %v8572, %v7394
        %v8574 = vmax.f32 %v8573, %v7402
        %v8575 = vmax.f32 %v8574, %v7410
        %v8576 = vmax.f32 %v8575, %v7418
        %v8577 = vrot.slane %v8576, 4
        %v8578 = vmax.f32 %v8576, %v8577
        %v8579 = vrot.slane %v8578, 2
        %v8580 = vmax.f32 %v8578, %v8579
        %v8581 = vrot.slane %v8580, 1
        %v8582 = vmax.f32 %v8580, %v8581
        %v8583 = vmax.f32 %v7299, %v7307
        %v8584 = vmax.f32 %v8583, %v7315
        %v8585 = vmax.f32 %v8584, %v7323
        %v8586 = vmax.f32 %v8585, %v7331
        %v8587 = vmax.f32 %v8586, %v7339
        %v8588 = vmax.f32 %v8587, %v7347
        %v8589 = vmax.f32 %v8588, %v7355
        %v8590 = vmax.f32 %v8589, %v7363
        %v8591 = vmax.f32 %v8590, %v7371
        %v8592 = vmax.f32 %v8591, %v7379
        %v8593 = vmax.f32 %v8592, %v7387
        %v8594 = vmax.f32 %v8593, %v7395
        %v8595 = vmax.f32 %v8594, %v7403
        %v8596 = vmax.f32 %v8595, %v7411
        %v8597 = vmax.f32 %v8596, %v7419
        %v8598 = vrot.slane %v8597, 4
        %v8599 = vmax.f32 %v8597, %v8598
        %v8600 = vrot.slane %v8599, 2
        %v8601 = vmax.f32 %v8599, %v8600
        %v8602 = vrot.slane %v8601, 1
        %v8603 = vmax.f32 %v8601, %v8602
        %v8604 = vmax.f32 %v7300, %v7308
        %v8605 = vmax.f32 %v8604, %v7316
        %v8606 = vmax.f32 %v8605, %v7324
        %v8607 = vmax.f32 %v8606, %v7332
        %v8608 = vmax.f32 %v8607, %v7340
        %v8609 = vmax.f32 %v8608, %v7348
        %v8610 = vmax.f32 %v8609, %v7356
        %v8611 = vmax.f32 %v8610, %v7364
        %v8612 = vmax.f32 %v8611, %v7372
        %v8613 = vmax.f32 %v8612, %v7380
        %v8614 = vmax.f32 %v8613, %v7388
        %v8615 = vmax.f32 %v8614, %v7396
        %v8616 = vmax.f32 %v8615, %v7404
        %v8617 = vmax.f32 %v8616, %v7412
        %v8618 = vmax.f32 %v8617, %v7420
        %v8619 = vrot.slane %v8618, 4
        %v8620 = vmax.f32 %v8618, %v8619
        %v8621 = vrot.slane %v8620, 2
        %v8622 = vmax.f32 %v8620, %v8621
        %v8623 = vrot.slane %v8622, 1
        %v8624 = vmax.f32 %v8622, %v8623
        %v8625 = vmax.f32 %v7301, %v7309
        %v8626 = vmax.f32 %v8625, %v7317
        %v8627 = vmax.f32 %v8626, %v7325
        %v8628 = vmax.f32 %v8627, %v7333
        %v8629 = vmax.f32 %v8628, %v7341
        %v8630 = vmax.f32 %v8629, %v7349
        %v8631 = vmax.f32 %v8630, %v7357
        %v8632 = vmax.f32 %v8631, %v7365
        %v8633 = vmax.f32 %v8632, %v7373
        %v8634 = vmax.f32 %v8633, %v7381
        %v8635 = vmax.f32 %v8634, %v7389
        %v8636 = vmax.f32 %v8635, %v7397
        %v8637 = vmax.f32 %v8636, %v7405
        %v8638 = vmax.f32 %v8637, %v7413
        %v8639 = vmax.f32 %v8638, %v7421
        %v8640 = vrot.slane %v8639, 4
        %v8641 = vmax.f32 %v8639, %v8640
        %v8642 = vrot.slane %v8641, 2
        %v8643 = vmax.f32 %v8641, %v8642
        %v8644 = vrot.slane %v8643, 1
        %v8645 = vmax.f32 %v8643, %v8644
        %v8646 = vmax.f32 %v7302, %v7310
        %v8647 = vmax.f32 %v8646, %v7318
        %v8648 = vmax.f32 %v8647, %v7326
        %v8649 = vmax.f32 %v8648, %v7334
        %v8650 = vmax.f32 %v8649, %v7342
        %v8651 = vmax.f32 %v8650, %v7350
        %v8652 = vmax.f32 %v8651, %v7358
        %v8653 = vmax.f32 %v8652, %v7366
        %v8654 = vmax.f32 %v8653, %v7374
        %v8655 = vmax.f32 %v8654, %v7382
        %v8656 = vmax.f32 %v8655, %v7390
        %v8657 = vmax.f32 %v8656, %v7398
        %v8658 = vmax.f32 %v8657, %v7406
        %v8659 = vmax.f32 %v8658, %v7414
        %v8660 = vmax.f32 %v8659, %v7422
        %v8661 = vrot.slane %v8660, 4
        %v8662 = vmax.f32 %v8660, %v8661
        %v8663 = vrot.slane %v8662, 2
        %v8664 = vmax.f32 %v8662, %v8663
        %v8665 = vrot.slane %v8664, 1
        %v8666 = vmax.f32 %v8664, %v8665
        %v8667 = vmax.f32 %v7303, %v7311
        %v8668 = vmax.f32 %v8667, %v7319
        %v8669 = vmax.f32 %v8668, %v7327
        %v8670 = vmax.f32 %v8669, %v7335
        %v8671 = vmax.f32 %v8670, %v7343
        %v8672 = vmax.f32 %v8671, %v7351
        %v8673 = vmax.f32 %v8672, %v7359
        %v8674 = vmax.f32 %v8673, %v7367
        %v8675 = vmax.f32 %v8674, %v7375
        %v8676 = vmax.f32 %v8675, %v7383
        %v8677 = vmax.f32 %v8676, %v7391
        %v8678 = vmax.f32 %v8677, %v7399
        %v8679 = vmax.f32 %v8678, %v7407
        %v8680 = vmax.f32 %v8679, %v7415
        %v8681 = vmax.f32 %v8680, %v7423
        %v8682 = vrot.slane %v8681, 4
        %v8683 = vmax.f32 %v8681, %v8682
        %v8684 = vrot.slane %v8683, 2
        %v8685 = vmax.f32 %v8683, %v8684
        %v8686 = vrot.slane %v8685, 1
        %v8687 = vmax.f32 %v8685, %v8686
        %v8688 = vmax.f32 %v7304, %v7312
        %v8689 = vmax.f32 %v8688, %v7320
        %v8690 = vmax.f32 %v8689, %v7328
        %v8691 = vmax.f32 %v8690, %v7336
        %v8692 = vmax.f32 %v8691, %v7344
        %v8693 = vmax.f32 %v8692, %v7352
        %v8694 = vmax.f32 %v8693, %v7360
        %v8695 = vmax.f32 %v8694, %v7368
        %v8696 = vmax.f32 %v8695, %v7376
        %v8697 = vmax.f32 %v8696, %v7384
        %v8698 = vmax.f32 %v8697, %v7392
        %v8699 = vmax.f32 %v8698, %v7400
        %v8700 = vmax.f32 %v8699, %v7408
        %v8701 = vmax.f32 %v8700, %v7416
        %v8702 = vmax.f32 %v8701, %v7424
        %v8703 = vrot.slane %v8702, 4
        %v8704 = vmax.f32 %v8702, %v8703
        %v8705 = vrot.slane %v8704, 2
        %v8706 = vmax.f32 %v8704, %v8705
        %v8707 = vrot.slane %v8706, 1
        %v8708 = vmax.f32 %v8706, %v8707
        %v8709 = vmax.f32 %v7305, %v7313
        %v8710 = vmax.f32 %v8709, %v7321
        %v8711 = vmax.f32 %v8710, %v7329
        %v8712 = vmax.f32 %v8711, %v7337
        %v8713 = vmax.f32 %v8712, %v7345
        %v8714 = vmax.f32 %v8713, %v7353
        %v8715 = vmax.f32 %v8714, %v7361
        %v8716 = vmax.f32 %v8715, %v7369
        %v8717 = vmax.f32 %v8716, %v7377
        %v8718 = vmax.f32 %v8717, %v7385
        %v8719 = vmax.f32 %v8718, %v7393
        %v8720 = vmax.f32 %v8719, %v7401
        %v8721 = vmax.f32 %v8720, %v7409
        %v8722 = vmax.f32 %v8721, %v7417
        %v8723 = vmax.f32 %v8722, %v7425
        %v8724 = vrot.slane %v8723, 4
        %v8725 = vmax.f32 %v8723, %v8724
        %v8726 = vrot.slane %v8725, 2
        %v8727 = vmax.f32 %v8725, %v8726
        %v8728 = vrot.slane %v8727, 1
        %v8729 = vmax.f32 %v8727, %v8728
        %v8730 = vmax.f32 %v7426, %v7434
        %v8731 = vmax.f32 %v8730, %v7442
        %v8732 = vmax.f32 %v8731, %v7450
        %v8733 = vmax.f32 %v8732, %v7458
        %v8734 = vmax.f32 %v8733, %v7466
        %v8735 = vmax.f32 %v8734, %v7474
        %v8736 = vmax.f32 %v8735, %v7482
        %v8737 = vmax.f32 %v8736, %v7490
        %v8738 = vmax.f32 %v8737, %v7498
        %v8739 = vmax.f32 %v8738, %v7506
        %v8740 = vmax.f32 %v8739, %v7514
        %v8741 = vmax.f32 %v8740, %v7522
        %v8742 = vmax.f32 %v8741, %v7530
        %v8743 = vmax.f32 %v8742, %v7538
        %v8744 = vmax.f32 %v8743, %v7546
        %v8745 = vrot.slane %v8744, 4
        %v8746 = vmax.f32 %v8744, %v8745
        %v8747 = vrot.slane %v8746, 2
        %v8748 = vmax.f32 %v8746, %v8747
        %v8749 = vrot.slane %v8748, 1
        %v8750 = vmax.f32 %v8748, %v8749
        %v8751 = vmax.f32 %v7427, %v7435
        %v8752 = vmax.f32 %v8751, %v7443
        %v8753 = vmax.f32 %v8752, %v7451
        %v8754 = vmax.f32 %v8753, %v7459
        %v8755 = vmax.f32 %v8754, %v7467
        %v8756 = vmax.f32 %v8755, %v7475
        %v8757 = vmax.f32 %v8756, %v7483
        %v8758 = vmax.f32 %v8757, %v7491
        %v8759 = vmax.f32 %v8758, %v7499
        %v8760 = vmax.f32 %v8759, %v7507
        %v8761 = vmax.f32 %v8760, %v7515
        %v8762 = vmax.f32 %v8761, %v7523
        %v8763 = vmax.f32 %v8762, %v7531
        %v8764 = vmax.f32 %v8763, %v7539
        %v8765 = vmax.f32 %v8764, %v7547
        %v8766 = vrot.slane %v8765, 4
        %v8767 = vmax.f32 %v8765, %v8766
        %v8768 = vrot.slane %v8767, 2
        %v8769 = vmax.f32 %v8767, %v8768
        %v8770 = vrot.slane %v8769, 1
        %v8771 = vmax.f32 %v8769, %v8770
        %v8772 = vmax.f32 %v7428, %v7436
        %v8773 = vmax.f32 %v8772, %v7444
        %v8774 = vmax.f32 %v8773, %v7452
        %v8775 = vmax.f32 %v8774, %v7460
        %v8776 = vmax.f32 %v8775, %v7468
        %v8777 = vmax.f32 %v8776, %v7476
        %v8778 = vmax.f32 %v8777, %v7484
        %v8779 = vmax.f32 %v8778, %v7492
        %v8780 = vmax.f32 %v8779, %v7500
        %v8781 = vmax.f32 %v8780, %v7508
        %v8782 = vmax.f32 %v8781, %v7516
        %v8783 = vmax.f32 %v8782, %v7524
        %v8784 = vmax.f32 %v8783, %v7532
        %v8785 = vmax.f32 %v8784, %v7540
        %v8786 = vmax.f32 %v8785, %v7548
        %v8787 = vrot.slane %v8786, 4
        %v8788 = vmax.f32 %v8786, %v8787
        %v8789 = vrot.slane %v8788, 2
        %v8790 = vmax.f32 %v8788, %v8789
        %v8791 = vrot.slane %v8790, 1
        %v8792 = vmax.f32 %v8790, %v8791
        %v8793 = vmax.f32 %v7429, %v7437
        %v8794 = vmax.f32 %v8793, %v7445
        %v8795 = vmax.f32 %v8794, %v7453
        %v8796 = vmax.f32 %v8795, %v7461
        %v8797 = vmax.f32 %v8796, %v7469
        %v8798 = vmax.f32 %v8797, %v7477
        %v8799 = vmax.f32 %v8798, %v7485
        %v8800 = vmax.f32 %v8799, %v7493
        %v8801 = vmax.f32 %v8800, %v7501
        %v8802 = vmax.f32 %v8801, %v7509
        %v8803 = vmax.f32 %v8802, %v7517
        %v8804 = vmax.f32 %v8803, %v7525
        %v8805 = vmax.f32 %v8804, %v7533
        %v8806 = vmax.f32 %v8805, %v7541
        %v8807 = vmax.f32 %v8806, %v7549
        %v8808 = vrot.slane %v8807, 4
        %v8809 = vmax.f32 %v8807, %v8808
        %v8810 = vrot.slane %v8809, 2
        %v8811 = vmax.f32 %v8809, %v8810
        %v8812 = vrot.slane %v8811, 1
        %v8813 = vmax.f32 %v8811, %v8812
        %v8814 = vmax.f32 %v7430, %v7438
        %v8815 = vmax.f32 %v8814, %v7446
        %v8816 = vmax.f32 %v8815, %v7454
        %v8817 = vmax.f32 %v8816, %v7462
        %v8818 = vmax.f32 %v8817, %v7470
        %v8819 = vmax.f32 %v8818, %v7478
        %v8820 = vmax.f32 %v8819, %v7486
        %v8821 = vmax.f32 %v8820, %v7494
        %v8822 = vmax.f32 %v8821, %v7502
        %v8823 = vmax.f32 %v8822, %v7510
        %v8824 = vmax.f32 %v8823, %v7518
        %v8825 = vmax.f32 %v8824, %v7526
        %v8826 = vmax.f32 %v8825, %v7534
        %v8827 = vmax.f32 %v8826, %v7542
        %v8828 = vmax.f32 %v8827, %v7550
        %v8829 = vrot.slane %v8828, 4
        %v8830 = vmax.f32 %v8828, %v8829
        %v8831 = vrot.slane %v8830, 2
        %v8832 = vmax.f32 %v8830, %v8831
        %v8833 = vrot.slane %v8832, 1
        %v8834 = vmax.f32 %v8832, %v8833
        %v8835 = vmax.f32 %v7431, %v7439
        %v8836 = vmax.f32 %v8835, %v7447
        %v8837 = vmax.f32 %v8836, %v7455
        %v8838 = vmax.f32 %v8837, %v7463
        %v8839 = vmax.f32 %v8838, %v7471
        %v8840 = vmax.f32 %v8839, %v7479
        %v8841 = vmax.f32 %v8840, %v7487
        %v8842 = vmax.f32 %v8841, %v7495
        %v8843 = vmax.f32 %v8842, %v7503
        %v8844 = vmax.f32 %v8843, %v7511
        %v8845 = vmax.f32 %v8844, %v7519
        %v8846 = vmax.f32 %v8845, %v7527
        %v8847 = vmax.f32 %v8846, %v7535
        %v8848 = vmax.f32 %v8847, %v7543
        %v8849 = vmax.f32 %v8848, %v7551
        %v8850 = vrot.slane %v8849, 4
        %v8851 = vmax.f32 %v8849, %v8850
        %v8852 = vrot.slane %v8851, 2
        %v8853 = vmax.f32 %v8851, %v8852
        %v8854 = vrot.slane %v8853, 1
        %v8855 = vmax.f32 %v8853, %v8854
        %v8856 = vmax.f32 %v7432, %v7440
        %v8857 = vmax.f32 %v8856, %v7448
        %v8858 = vmax.f32 %v8857, %v7456
        %v8859 = vmax.f32 %v8858, %v7464
        %v8860 = vmax.f32 %v8859, %v7472
        %v8861 = vmax.f32 %v8860, %v7480
        %v8862 = vmax.f32 %v8861, %v7488
        %v8863 = vmax.f32 %v8862, %v7496
        %v8864 = vmax.f32 %v8863, %v7504
        %v8865 = vmax.f32 %v8864, %v7512
        %v8866 = vmax.f32 %v8865, %v7520
        %v8867 = vmax.f32 %v8866, %v7528
        %v8868 = vmax.f32 %v8867, %v7536
        %v8869 = vmax.f32 %v8868, %v7544
        %v8870 = vmax.f32 %v8869, %v7552
        %v8871 = vrot.slane %v8870, 4
        %v8872 = vmax.f32 %v8870, %v8871
        %v8873 = vrot.slane %v8872, 2
        %v8874 = vmax.f32 %v8872, %v8873
        %v8875 = vrot.slane %v8874, 1
        %v8876 = vmax.f32 %v8874, %v8875
        %v8877 = vmax.f32 %v7433, %v7441
        %v8878 = vmax.f32 %v8877, %v7449
        %v8879 = vmax.f32 %v8878, %v7457
        %v8880 = vmax.f32 %v8879, %v7465
        %v8881 = vmax.f32 %v8880, %v7473
        %v8882 = vmax.f32 %v8881, %v7481
        %v8883 = vmax.f32 %v8882, %v7489
        %v8884 = vmax.f32 %v8883, %v7497
        %v8885 = vmax.f32 %v8884, %v7505
        %v8886 = vmax.f32 %v8885, %v7513
        %v8887 = vmax.f32 %v8886, %v7521
        %v8888 = vmax.f32 %v8887, %v7529
        %v8889 = vmax.f32 %v8888, %v7537
        %v8890 = vmax.f32 %v8889, %v7545
        %v8891 = vmax.f32 %v8890, %v7553
        %v8892 = vrot.slane %v8891, 4
        %v8893 = vmax.f32 %v8891, %v8892
        %v8894 = vrot.slane %v8893, 2
        %v8895 = vmax.f32 %v8893, %v8894
        %v8896 = vrot.slane %v8895, 1
        %v8897 = vmax.f32 %v8895, %v8896
        %v8898 = vld [vmem:[#allocation2] sm:$0xff]
        %v8899 = vld [vmem:[#allocation2 + $0x8] sm:$0xff]
        %v8900 = vld [vmem:[#allocation2 + $0x10] sm:$0xff]
        %v8901 = vld [vmem:[#allocation2 + $0x18] sm:$0xff]
        %v8902 = vld [vmem:[#allocation2 + $0x20] sm:$0xff]
        %v8903 = vld [vmem:[#allocation2 + $0x28] sm:$0xff]
        %v8904 = vld [vmem:[#allocation2 + $0x30] sm:$0xff]
        %v8905 = vld [vmem:[#allocation2 + $0x38] sm:$0xff]
        %vm8970 = vcmask 1041409
        %v8971 = vsel %vm8970, %v7742, %v7574
        %vm8972 = vcmask 1042434
        %v8973 = vsel %vm8972, %v7910, %v8971
        %vm8974 = vcmask 1043459
        %v8975 = vsel %vm8974, %v8078, %v8973
        %vm8976 = vcmask 1044484
        %v8977 = vsel %vm8976, %v8246, %v8975
        %vm8978 = vcmask 1045509
        %v8979 = vsel %vm8978, %v8414, %v8977
        %vm8980 = vcmask 1046534
        %v8981 = vsel %vm8980, %v8582, %v8979
        %vm8982 = vcmask 1047559
        %v8983 = vsel %vm8982, %v8750, %v8981
        %v8984 = vsel %vm8970, %v7763, %v7595
        %v8985 = vsel %vm8972, %v7931, %v8984
        %v8986 = vsel %vm8974, %v8099, %v8985
        %v8987 = vsel %vm8976, %v8267, %v8986
        %v8988 = vsel %vm8978, %v8435, %v8987
        %v8989 = vsel %vm8980, %v8603, %v8988
        %v8990 = vsel %vm8982, %v8771, %v8989
        %v8991 = vsel %vm8970, %v7784, %v7616
        %v8992 = vsel %vm8972, %v7952, %v8991
        %v8993 = vsel %vm8974, %v8120, %v8992
        %v8994 = vsel %vm8976, %v8288, %v8993
        %v8995 = vsel %vm8978, %v8456, %v8994
        %v8996 = vsel %vm8980, %v8624, %v8995
        %v8997 = vsel %vm8982, %v8792, %v8996
        %v8998 = vsel %vm8970, %v7805, %v7637
        %v8999 = vsel %vm8972, %v7973, %v8998
        %v9000 = vsel %vm8974, %v8141, %v8999
        %v9001 = vsel %vm8976, %v8309, %v9000
        %v9002 = vsel %vm8978, %v8477, %v9001
        %v9003 = vsel %vm8980, %v8645, %v9002
        %v9004 = vsel %vm8982, %v8813, %v9003
        %v9005 = vsel %vm8970, %v7826, %v7658
        %v9006 = vsel %vm8972, %v7994, %v9005
        %v9007 = vsel %vm8974, %v8162, %v9006
        %v9008 = vsel %vm8976, %v8330, %v9007
        %v9009 = vsel %vm8978, %v8498, %v9008
        %v9010 = vsel %vm8980, %v8666, %v9009
        %v9011 = vsel %vm8982, %v8834, %v9010
        %v9012 = vsel %vm8970, %v7847, %v7679
        %v9013 = vsel %vm8972, %v8015, %v9012
        %v9014 = vsel %vm8974, %v8183, %v9013
        %v9015 = vsel %vm8976, %v8351, %v9014
        %v9016 = vsel %vm8978, %v8519, %v9015
        %v9017 = vsel %vm8980, %v8687, %v9016
        %v9018 = vsel %vm8982, %v8855, %v9017
        %v9019 = vsel %vm8970, %v7868, %v7700
        %v9020 = vsel %vm8972, %v8036, %v9019
        %v9021 = vsel %vm8974, %v8204, %v9020
        %v9022 = vsel %vm8976, %v8372, %v9021
        %v9023 = vsel %vm8978, %v8540, %v9022
        %v9024 = vsel %vm8980, %v8708, %v9023
        %v9025 = vsel %vm8982, %v8876, %v9024
        %v9026 = vsel %vm8970, %v7889, %v7721
        %v9027 = vsel %vm8972, %v8057, %v9026
        %v9028 = vsel %vm8974, %v8225, %v9027
        %v9029 = vsel %vm8976, %v8393, %v9028
        %v9030 = vsel %vm8978, %v8561, %v9029
        %v9031 = vsel %vm8980, %v8729, %v9030
        %v9032 = vsel %vm8982, %v8897, %v9031
        %v9041 = vmax.f32 %v8898, %v8983
        %v9042 = vmax.f32 %v8899, %v8990
        %v9043 = vmax.f32 %v8900, %v8997
        %v9044 = vmax.f32 %v8901, %v9004
        %v9045 = vmax.f32 %v8902, %v9011
        %v9046 = vmax.f32 %v8903, %v9018
        %v9047 = vmax.f32 %v8904, %v9025
        %v9048 = vmax.f32 %v8905, %v9032
        %9049 = vst [vmem:[#allocation2] sm:$0xff] %v9041
        %9050 = vst [vmem:[#allocation2 + $0x8] sm:$0xff] %v9042
        %9051 = vst [vmem:[#allocation2 + $0x10] sm:$0xff] %v9043
        %9052 = vst [vmem:[#allocation2 + $0x18] sm:$0xff] %v9044
        %9053 = vst [vmem:[#allocation2 + $0x20] sm:$0xff] %v9045
        %9054 = vst [vmem:[#allocation2 + $0x28] sm:$0xff] %v9046
        %9055 = vst [vmem:[#allocation2 + $0x30] sm:$0xff] %v9047
        %9056 = vst [vmem:[#allocation2 + $0x38] sm:$0xff] %v9048
        %p9057 = scmp.eq.s32.totalorder %s30, 1
        // Predicated region
        $region122: #{stnkd_forward.1} parent=112 // pred_check
          %p9058 = pneg %p9057
        $region123: #{stnkd_forward.1} parent=112 // pred_check_branch
          %9060 = sbr.rel (%p9058) target = $region125
        $region124: #{stnkd_forward.1} parent=112 // pred_region
          %v9061 = vld [vmem:[#allocation2] sm:$0xff]
          %v9062 = vld [vmem:[#allocation2 + $0x8] sm:$0xff]
          %v9063 = vld [vmem:[#allocation2 + $0x10] sm:$0xff]
          %v9064 = vld [vmem:[#allocation2 + $0x18] sm:$0xff]
          %v9065 = vld [vmem:[#allocation2 + $0x20] sm:$0xff]
          %v9066 = vld [vmem:[#allocation2 + $0x28] sm:$0xff]
          %v9067 = vld [vmem:[#allocation2 + $0x30] sm:$0xff]
          %v9068 = vld [vmem:[#allocation2 + $0x38] sm:$0xff]
          %v9069 = vpack.c.bf16 %v9061, %v9061
          %v9070 = vpack.c.bf16 %v9062, %v9062
          %v9071 = vpack.c.bf16 %v9063, %v9063
          %v9072 = vpack.c.bf16 %v9064, %v9064
          %v9073 = vpack.c.bf16 %v9065, %v9065
          %v9074 = vpack.c.bf16 %v9066, %v9066
          %v9075 = vpack.c.bf16 %v9067, %v9067
          %v9076 = vpack.c.bf16 %v9068, %v9068
          %v9077 = vld [vmem:[%s7] sm:$0xff]
          %v9078 = vld [vmem:[%s7 + $0x8] sm:$0xff]
          %v9079 = vld [vmem:[%s7 + $0x10] sm:$0xff]
          %v9080 = vld [vmem:[%s7 + $0x18] sm:$0xff]
          %v9081 = vld [vmem:[%s7 + $0x20] sm:$0xff]
          %v9082 = vld [vmem:[%s7 + $0x28] sm:$0xff]
          %v9083 = vld [vmem:[%s7 + $0x30] sm:$0xff]
          %v9084 = vld [vmem:[%s7 + $0x38] sm:$0xff]
          %v9085 = vld [vmem:[%s7 + $0x40] sm:$0xff]
          %v9086 = vld [vmem:[%s7 + $0x48] sm:$0xff]
          %v9087 = vld [vmem:[%s7 + $0x50] sm:$0xff]
          %v9088 = vld [vmem:[%s7 + $0x58] sm:$0xff]
          %v9089 = vld [vmem:[%s7 + $0x60] sm:$0xff]
          %v9090 = vld [vmem:[%s7 + $0x68] sm:$0xff]
          %v9091 = vld [vmem:[%s7 + $0x70] sm:$0xff]
          %v9092 = vld [vmem:[%s7 + $0x78] sm:$0xff]
          %v9093 = vld [vmem:[%s7 + $0x80] sm:$0xff]
          %v9094 = vld [vmem:[%s7 + $0x88] sm:$0xff]
          %v9095 = vld [vmem:[%s7 + $0x90] sm:$0xff]
          %v9096 = vld [vmem:[%s7 + $0x98] sm:$0xff]
          %v9097 = vld [vmem:[%s7 + $0xa0] sm:$0xff]
          %v9098 = vld [vmem:[%s7 + $0xa8] sm:$0xff]
          %v9099 = vld [vmem:[%s7 + $0xb0] sm:$0xff]
          %v9100 = vld [vmem:[%s7 + $0xb8] sm:$0xff]
          %v9101 = vld [vmem:[%s7 + $0xc0] sm:$0xff]
          %v9102 = vld [vmem:[%s7 + $0xc8] sm:$0xff]
          %v9103 = vld [vmem:[%s7 + $0xd0] sm:$0xff]
          %v9104 = vld [vmem:[%s7 + $0xd8] sm:$0xff]
          %v9105 = vld [vmem:[%s7 + $0xe0] sm:$0xff]
          %v9106 = vld [vmem:[%s7 + $0xe8] sm:$0xff]
          %v9107 = vld [vmem:[%s7 + $0xf0] sm:$0xff]
          %v9108 = vld [vmem:[%s7 + $0xf8] sm:$0xff]
          %v9109 = vld [vmem:[%s7 + $0x100] sm:$0xff]
          %v9110 = vld [vmem:[%s7 + $0x108] sm:$0xff]
          %v9111 = vld [vmem:[%s7 + $0x110] sm:$0xff]
          %v9112 = vld [vmem:[%s7 + $0x118] sm:$0xff]
          %v9113 = vld [vmem:[%s7 + $0x120] sm:$0xff]
          %v9114 = vld [vmem:[%s7 + $0x128] sm:$0xff]
          %v9115 = vld [vmem:[%s7 + $0x130] sm:$0xff]
          %v9116 = vld [vmem:[%s7 + $0x138] sm:$0xff]
          %v9117 = vld [vmem:[%s7 + $0x140] sm:$0xff]
          %v9118 = vld [vmem:[%s7 + $0x148] sm:$0xff]
          %v9119 = vld [vmem:[%s7 + $0x150] sm:$0xff]
          %v9120 = vld [vmem:[%s7 + $0x158] sm:$0xff]
          %v9121 = vld [vmem:[%s7 + $0x160] sm:$0xff]
          %v9122 = vld [vmem:[%s7 + $0x168] sm:$0xff]
          %v9123 = vld [vmem:[%s7 + $0x170] sm:$0xff]
          %v9124 = vld [vmem:[%s7 + $0x178] sm:$0xff]
          %v9125 = vld [vmem:[%s7 + $0x180] sm:$0xff]
          %v9126 = vld [vmem:[%s7 + $0x188] sm:$0xff]
          %v9127 = vld [vmem:[%s7 + $0x190] sm:$0xff]
          %v9128 = vld [vmem:[%s7 + $0x198] sm:$0xff]
          %v9129 = vld [vmem:[%s7 + $0x1a0] sm:$0xff]
          %v9130 = vld [vmem:[%s7 + $0x1a8] sm:$0xff]
          %v9131 = vld [vmem:[%s7 + $0x1b0] sm:$0xff]
          %v9132 = vld [vmem:[%s7 + $0x1b8] sm:$0xff]
          %v9133 = vld [vmem:[%s7 + $0x1c0] sm:$0xff]
          %v9134 = vld [vmem:[%s7 + $0x1c8] sm:$0xff]
          %v9135 = vld [vmem:[%s7 + $0x1d0] sm:$0xff]
          %v9136 = vld [vmem:[%s7 + $0x1d8] sm:$0xff]
          %v9137 = vld [vmem:[%s7 + $0x1e0] sm:$0xff]
          %v9138 = vld [vmem:[%s7 + $0x1e8] sm:$0xff]
          %v9139 = vld [vmem:[%s7 + $0x1f0] sm:$0xff]
          %v9140 = vld [vmem:[%s7 + $0x1f8] sm:$0xff]
          %v9141 = vld [vmem:[%s7 + $0x200] sm:$0xff]
          %v9142 = vld [vmem:[%s7 + $0x208] sm:$0xff]
          %v9143 = vld [vmem:[%s7 + $0x210] sm:$0xff]
          %v9144 = vld [vmem:[%s7 + $0x218] sm:$0xff]
          %v9145 = vld [vmem:[%s7 + $0x220] sm:$0xff]
          %v9146 = vld [vmem:[%s7 + $0x228] sm:$0xff]
          %v9147 = vld [vmem:[%s7 + $0x230] sm:$0xff]
          %v9148 = vld [vmem:[%s7 + $0x238] sm:$0xff]
          %v9149 = vld [vmem:[%s7 + $0x240] sm:$0xff]
          %v9150 = vld [vmem:[%s7 + $0x248] sm:$0xff]
          %v9151 = vld [vmem:[%s7 + $0x250] sm:$0xff]
          %v9152 = vld [vmem:[%s7 + $0x258] sm:$0xff]
          %v9153 = vld [vmem:[%s7 + $0x260] sm:$0xff]
          %v9154 = vld [vmem:[%s7 + $0x268] sm:$0xff]
          %v9155 = vld [vmem:[%s7 + $0x270] sm:$0xff]
          %v9156 = vld [vmem:[%s7 + $0x278] sm:$0xff]
          %v9157 = vld [vmem:[%s7 + $0x280] sm:$0xff]
          %v9158 = vld [vmem:[%s7 + $0x288] sm:$0xff]
          %v9159 = vld [vmem:[%s7 + $0x290] sm:$0xff]
          %v9160 = vld [vmem:[%s7 + $0x298] sm:$0xff]
          %v9161 = vld [vmem:[%s7 + $0x2a0] sm:$0xff]
          %v9162 = vld [vmem:[%s7 + $0x2a8] sm:$0xff]
          %v9163 = vld [vmem:[%s7 + $0x2b0] sm:$0xff]
          %v9164 = vld [vmem:[%s7 + $0x2b8] sm:$0xff]
          %v9165 = vld [vmem:[%s7 + $0x2c0] sm:$0xff]
          %v9166 = vld [vmem:[%s7 + $0x2c8] sm:$0xff]
          %v9167 = vld [vmem:[%s7 + $0x2d0] sm:$0xff]
          %v9168 = vld [vmem:[%s7 + $0x2d8] sm:$0xff]
          %v9169 = vld [vmem:[%s7 + $0x2e0] sm:$0xff]
          %v9170 = vld [vmem:[%s7 + $0x2e8] sm:$0xff]
          %v9171 = vld [vmem:[%s7 + $0x2f0] sm:$0xff]
          %v9172 = vld [vmem:[%s7 + $0x2f8] sm:$0xff]
          %v9173 = vld [vmem:[%s7 + $0x300] sm:$0xff]
          %v9174 = vld [vmem:[%s7 + $0x308] sm:$0xff]
          %v9175 = vld [vmem:[%s7 + $0x310] sm:$0xff]
          %v9176 = vld [vmem:[%s7 + $0x318] sm:$0xff]
          %v9177 = vld [vmem:[%s7 + $0x320] sm:$0xff]
          %v9178 = vld [vmem:[%s7 + $0x328] sm:$0xff]
          %v9179 = vld [vmem:[%s7 + $0x330] sm:$0xff]
          %v9180 = vld [vmem:[%s7 + $0x338] sm:$0xff]
          %v9181 = vld [vmem:[%s7 + $0x340] sm:$0xff]
          %v9182 = vld [vmem:[%s7 + $0x348] sm:$0xff]
          %v9183 = vld [vmem:[%s7 + $0x350] sm:$0xff]
          %v9184 = vld [vmem:[%s7 + $0x358] sm:$0xff]
          %v9185 = vld [vmem:[%s7 + $0x360] sm:$0xff]
          %v9186 = vld [vmem:[%s7 + $0x368] sm:$0xff]
          %v9187 = vld [vmem:[%s7 + $0x370] sm:$0xff]
          %v9188 = vld [vmem:[%s7 + $0x378] sm:$0xff]
          %v9189 = vld [vmem:[%s7 + $0x380] sm:$0xff]
          %v9190 = vld [vmem:[%s7 + $0x388] sm:$0xff]
          %v9191 = vld [vmem:[%s7 + $0x390] sm:$0xff]
          %v9192 = vld [vmem:[%s7 + $0x398] sm:$0xff]
          %v9193 = vld [vmem:[%s7 + $0x3a0] sm:$0xff]
          %v9194 = vld [vmem:[%s7 + $0x3a8] sm:$0xff]
          %v9195 = vld [vmem:[%s7 + $0x3b0] sm:$0xff]
          %v9196 = vld [vmem:[%s7 + $0x3b8] sm:$0xff]
          %v9197 = vld [vmem:[%s7 + $0x3c0] sm:$0xff]
          %v9198 = vld [vmem:[%s7 + $0x3c8] sm:$0xff]
          %v9199 = vld [vmem:[%s7 + $0x3d0] sm:$0xff]
          %v9200 = vld [vmem:[%s7 + $0x3d8] sm:$0xff]
          %v9201 = vld [vmem:[%s7 + $0x3e0] sm:$0xff]
          %v9202 = vld [vmem:[%s7 + $0x3e8] sm:$0xff]
          %v9203 = vld [vmem:[%s7 + $0x3f0] sm:$0xff]
          %v9204 = vld [vmem:[%s7 + $0x3f8] sm:$0xff]
          %v9205 = vld [vmem:[%s7 + $0x400] sm:$0xff]
          %v9206 = vld [vmem:[%s7 + $0x408] sm:$0xff]
          %v9207 = vld [vmem:[%s7 + $0x410] sm:$0xff]
          %v9208 = vld [vmem:[%s7 + $0x418] sm:$0xff]
          %v9209 = vld [vmem:[%s7 + $0x420] sm:$0xff]
          %v9210 = vld [vmem:[%s7 + $0x428] sm:$0xff]
          %v9211 = vld [vmem:[%s7 + $0x430] sm:$0xff]
          %v9212 = vld [vmem:[%s7 + $0x438] sm:$0xff]
          %v9213 = vld [vmem:[%s7 + $0x440] sm:$0xff]
          %v9214 = vld [vmem:[%s7 + $0x448] sm:$0xff]
          %v9215 = vld [vmem:[%s7 + $0x450] sm:$0xff]
          %v9216 = vld [vmem:[%s7 + $0x458] sm:$0xff]
          %v9217 = vld [vmem:[%s7 + $0x460] sm:$0xff]
          %v9218 = vld [vmem:[%s7 + $0x468] sm:$0xff]
          %v9219 = vld [vmem:[%s7 + $0x470] sm:$0xff]
          %v9220 = vld [vmem:[%s7 + $0x478] sm:$0xff]
          %v9221 = vld [vmem:[%s7 + $0x480] sm:$0xff]
          %v9222 = vld [vmem:[%s7 + $0x488] sm:$0xff]
          %v9223 = vld [vmem:[%s7 + $0x490] sm:$0xff]
          %v9224 = vld [vmem:[%s7 + $0x498] sm:$0xff]
          %v9225 = vld [vmem:[%s7 + $0x4a0] sm:$0xff]
          %v9226 = vld [vmem:[%s7 + $0x4a8] sm:$0xff]
          %v9227 = vld [vmem:[%s7 + $0x4b0] sm:$0xff]
          %v9228 = vld [vmem:[%s7 + $0x4b8] sm:$0xff]
          %v9229 = vld [vmem:[%s7 + $0x4c0] sm:$0xff]
          %v9230 = vld [vmem:[%s7 + $0x4c8] sm:$0xff]
          %v9231 = vld [vmem:[%s7 + $0x4d0] sm:$0xff]
          %v9232 = vld [vmem:[%s7 + $0x4d8] sm:$0xff]
          %v9233 = vld [vmem:[%s7 + $0x4e0] sm:$0xff]
          %v9234 = vld [vmem:[%s7 + $0x4e8] sm:$0xff]
          %v9235 = vld [vmem:[%s7 + $0x4f0] sm:$0xff]
          %v9236 = vld [vmem:[%s7 + $0x4f8] sm:$0xff]
          %v9237 = vld [vmem:[%s7 + $0x500] sm:$0xff]
          %v9238 = vld [vmem:[%s7 + $0x508] sm:$0xff]
          %v9239 = vld [vmem:[%s7 + $0x510] sm:$0xff]
          %v9240 = vld [vmem:[%s7 + $0x518] sm:$0xff]
          %v9241 = vld [vmem:[%s7 + $0x520] sm:$0xff]
          %v9242 = vld [vmem:[%s7 + $0x528] sm:$0xff]
          %v9243 = vld [vmem:[%s7 + $0x530] sm:$0xff]
          %v9244 = vld [vmem:[%s7 + $0x538] sm:$0xff]
          %v9245 = vld [vmem:[%s7 + $0x540] sm:$0xff]
          %v9246 = vld [vmem:[%s7 + $0x548] sm:$0xff]
          %v9247 = vld [vmem:[%s7 + $0x550] sm:$0xff]
          %v9248 = vld [vmem:[%s7 + $0x558] sm:$0xff]
          %v9249 = vld [vmem:[%s7 + $0x560] sm:$0xff]
          %v9250 = vld [vmem:[%s7 + $0x568] sm:$0xff]
          %v9251 = vld [vmem:[%s7 + $0x570] sm:$0xff]
          %v9252 = vld [vmem:[%s7 + $0x578] sm:$0xff]
          %v9253 = vld [vmem:[%s7 + $0x580] sm:$0xff]
          %v9254 = vld [vmem:[%s7 + $0x588] sm:$0xff]
          %v9255 = vld [vmem:[%s7 + $0x590] sm:$0xff]
          %v9256 = vld [vmem:[%s7 + $0x598] sm:$0xff]
          %v9257 = vld [vmem:[%s7 + $0x5a0] sm:$0xff]
          %v9258 = vld [vmem:[%s7 + $0x5a8] sm:$0xff]
          %v9259 = vld [vmem:[%s7 + $0x5b0] sm:$0xff]
          %v9260 = vld [vmem:[%s7 + $0x5b8] sm:$0xff]
          %v9261 = vld [vmem:[%s7 + $0x5c0] sm:$0xff]
          %v9262 = vld [vmem:[%s7 + $0x5c8] sm:$0xff]
          %v9263 = vld [vmem:[%s7 + $0x5d0] sm:$0xff]
          %v9264 = vld [vmem:[%s7 + $0x5d8] sm:$0xff]
          %v9265 = vld [vmem:[%s7 + $0x5e0] sm:$0xff]
          %v9266 = vld [vmem:[%s7 + $0x5e8] sm:$0xff]
          %v9267 = vld [vmem:[%s7 + $0x5f0] sm:$0xff]
          %v9268 = vld [vmem:[%s7 + $0x5f8] sm:$0xff]
          %v9269 = vld [vmem:[%s7 + $0x600] sm:$0xff]
          %v9270 = vld [vmem:[%s7 + $0x608] sm:$0xff]
          %v9271 = vld [vmem:[%s7 + $0x610] sm:$0xff]
          %v9272 = vld [vmem:[%s7 + $0x618] sm:$0xff]
          %v9273 = vld [vmem:[%s7 + $0x620] sm:$0xff]
          %v9274 = vld [vmem:[%s7 + $0x628] sm:$0xff]
          %v9275 = vld [vmem:[%s7 + $0x630] sm:$0xff]
          %v9276 = vld [vmem:[%s7 + $0x638] sm:$0xff]
          %v9277 = vld [vmem:[%s7 + $0x640] sm:$0xff]
          %v9278 = vld [vmem:[%s7 + $0x648] sm:$0xff]
          %v9279 = vld [vmem:[%s7 + $0x650] sm:$0xff]
          %v9280 = vld [vmem:[%s7 + $0x658] sm:$0xff]
          %v9281 = vld [vmem:[%s7 + $0x660] sm:$0xff]
          %v9282 = vld [vmem:[%s7 + $0x668] sm:$0xff]
          %v9283 = vld [vmem:[%s7 + $0x670] sm:$0xff]
          %v9284 = vld [vmem:[%s7 + $0x678] sm:$0xff]
          %v9285 = vld [vmem:[%s7 + $0x680] sm:$0xff]
          %v9286 = vld [vmem:[%s7 + $0x688] sm:$0xff]
          %v9287 = vld [vmem:[%s7 + $0x690] sm:$0xff]
          %v9288 = vld [vmem:[%s7 + $0x698] sm:$0xff]
          %v9289 = vld [vmem:[%s7 + $0x6a0] sm:$0xff]
          %v9290 = vld [vmem:[%s7 + $0x6a8] sm:$0xff]
          %v9291 = vld [vmem:[%s7 + $0x6b0] sm:$0xff]
          %v9292 = vld [vmem:[%s7 + $0x6b8] sm:$0xff]
          %v9293 = vld [vmem:[%s7 + $0x6c0] sm:$0xff]
          %v9294 = vld [vmem:[%s7 + $0x6c8] sm:$0xff]
          %v9295 = vld [vmem:[%s7 + $0x6d0] sm:$0xff]
          %v9296 = vld [vmem:[%s7 + $0x6d8] sm:$0xff]
          %v9297 = vld [vmem:[%s7 + $0x6e0] sm:$0xff]
          %v9298 = vld [vmem:[%s7 + $0x6e8] sm:$0xff]
          %v9299 = vld [vmem:[%s7 + $0x6f0] sm:$0xff]
          %v9300 = vld [vmem:[%s7 + $0x6f8] sm:$0xff]
          %v9301 = vld [vmem:[%s7 + $0x700] sm:$0xff]
          %v9302 = vld [vmem:[%s7 + $0x708] sm:$0xff]
          %v9303 = vld [vmem:[%s7 + $0x710] sm:$0xff]
          %v9304 = vld [vmem:[%s7 + $0x718] sm:$0xff]
          %v9305 = vld [vmem:[%s7 + $0x720] sm:$0xff]
          %v9306 = vld [vmem:[%s7 + $0x728] sm:$0xff]
          %v9307 = vld [vmem:[%s7 + $0x730] sm:$0xff]
          %v9308 = vld [vmem:[%s7 + $0x738] sm:$0xff]
          %v9309 = vld [vmem:[%s7 + $0x740] sm:$0xff]
          %v9310 = vld [vmem:[%s7 + $0x748] sm:$0xff]
          %v9311 = vld [vmem:[%s7 + $0x750] sm:$0xff]
          %v9312 = vld [vmem:[%s7 + $0x758] sm:$0xff]
          %v9313 = vld [vmem:[%s7 + $0x760] sm:$0xff]
          %v9314 = vld [vmem:[%s7 + $0x768] sm:$0xff]
          %v9315 = vld [vmem:[%s7 + $0x770] sm:$0xff]
          %v9316 = vld [vmem:[%s7 + $0x778] sm:$0xff]
          %v9317 = vld [vmem:[%s7 + $0x780] sm:$0xff]
          %v9318 = vld [vmem:[%s7 + $0x788] sm:$0xff]
          %v9319 = vld [vmem:[%s7 + $0x790] sm:$0xff]
          %v9320 = vld [vmem:[%s7 + $0x798] sm:$0xff]
          %v9321 = vld [vmem:[%s7 + $0x7a0] sm:$0xff]
          %v9322 = vld [vmem:[%s7 + $0x7a8] sm:$0xff]
          %v9323 = vld [vmem:[%s7 + $0x7b0] sm:$0xff]
          %v9324 = vld [vmem:[%s7 + $0x7b8] sm:$0xff]
          %v9325 = vld [vmem:[%s7 + $0x7c0] sm:$0xff]
          %v9326 = vld [vmem:[%s7 + $0x7c8] sm:$0xff]
          %v9327 = vld [vmem:[%s7 + $0x7d0] sm:$0xff]
          %v9328 = vld [vmem:[%s7 + $0x7d8] sm:$0xff]
          %v9329 = vld [vmem:[%s7 + $0x7e0] sm:$0xff]
          %v9330 = vld [vmem:[%s7 + $0x7e8] sm:$0xff]
          %v9331 = vld [vmem:[%s7 + $0x7f0] sm:$0xff]
          %v9332 = vld [vmem:[%s7 + $0x7f8] sm:$0xff]
          %v9333 = vld [vmem:[%s8] sm:$0xf]
          %v9335 = vlaneseq
          %v9336 = vshrl.u32 %v9335, 7
          %v9337 = vsub.s32 0, %v9336
          %v9338 = vrot.slane %v9333, %v9337
          %v9339 = vlaneseq
          %v9340 = vshrl.u32 %v9339, 7
          %v9341 = vsub.s32 1, %v9340
          %v9342 = vrot.slane %v9333, %v9341
          %v9343 = vlaneseq
          %v9344 = vshrl.u32 %v9343, 7
          %v9345 = vsub.s32 2, %v9344
          %v9346 = vrot.slane %v9333, %v9345
          %v9347 = vlaneseq
          %v9348 = vshrl.u32 %v9347, 7
          %v9349 = vsub.s32 3, %v9348
          %v9350 = vrot.slane %v9333, %v9349
          %v9611 = vunpack.c.l.b16 %v9077
          %v9612 = vunpack.c.h.b16 %v9077
          %v9613 = vunpack.c.l.b16 %v9078
          %v9614 = vunpack.c.h.b16 %v9078
          %v9615 = vunpack.c.l.b16 %v9079
          %v9616 = vunpack.c.h.b16 %v9079
          %v9617 = vunpack.c.l.b16 %v9080
          %v9618 = vunpack.c.h.b16 %v9080
          %v9619 = vunpack.c.l.b16 %v9081
          %v9620 = vunpack.c.h.b16 %v9081
          %v9621 = vunpack.c.l.b16 %v9082
          %v9622 = vunpack.c.h.b16 %v9082
          %v9623 = vunpack.c.l.b16 %v9083
          %v9624 = vunpack.c.h.b16 %v9083
          %v9625 = vunpack.c.l.b16 %v9084
          %v9626 = vunpack.c.h.b16 %v9084
          %v9627 = vunpack.c.l.b16 %v9085
          %v9628 = vunpack.c.h.b16 %v9085
          %v9629 = vunpack.c.l.b16 %v9086
          %v9630 = vunpack.c.h.b16 %v9086
          %v9631 = vunpack.c.l.b16 %v9087
          %v9632 = vunpack.c.h.b16 %v9087
          %v9633 = vunpack.c.l.b16 %v9088
          %v9634 = vunpack.c.h.b16 %v9088
          %v9635 = vunpack.c.l.b16 %v9089
          %v9636 = vunpack.c.h.b16 %v9089
          %v9637 = vunpack.c.l.b16 %v9090
          %v9638 = vunpack.c.h.b16 %v9090
          %v9639 = vunpack.c.l.b16 %v9091
          %v9640 = vunpack.c.h.b16 %v9091
          %v9641 = vunpack.c.l.b16 %v9092
          %v9642 = vunpack.c.h.b16 %v9092
          %v9643 = vunpack.c.l.b16 %v9093
          %v9644 = vunpack.c.h.b16 %v9093
          %v9645 = vunpack.c.l.b16 %v9094
          %v9646 = vunpack.c.h.b16 %v9094
          %v9647 = vunpack.c.l.b16 %v9095
          %v9648 = vunpack.c.h.b16 %v9095
          %v9649 = vunpack.c.l.b16 %v9096
          %v9650 = vunpack.c.h.b16 %v9096
          %v9651 = vunpack.c.l.b16 %v9097
          %v9652 = vunpack.c.h.b16 %v9097
          %v9653 = vunpack.c.l.b16 %v9098
          %v9654 = vunpack.c.h.b16 %v9098
          %v9655 = vunpack.c.l.b16 %v9099
          %v9656 = vunpack.c.h.b16 %v9099
          %v9657 = vunpack.c.l.b16 %v9100
          %v9658 = vunpack.c.h.b16 %v9100
          %v9659 = vunpack.c.l.b16 %v9101
          %v9660 = vunpack.c.h.b16 %v9101
          %v9661 = vunpack.c.l.b16 %v9102
          %v9662 = vunpack.c.h.b16 %v9102
          %v9663 = vunpack.c.l.b16 %v9103
          %v9664 = vunpack.c.h.b16 %v9103
          %v9665 = vunpack.c.l.b16 %v9104
          %v9666 = vunpack.c.h.b16 %v9104
          %v9667 = vunpack.c.l.b16 %v9105
          %v9668 = vunpack.c.h.b16 %v9105
          %v9669 = vunpack.c.l.b16 %v9106
          %v9670 = vunpack.c.h.b16 %v9106
          %v9671 = vunpack.c.l.b16 %v9107
          %v9672 = vunpack.c.h.b16 %v9107
          %v9673 = vunpack.c.l.b16 %v9108
          %v9674 = vunpack.c.h.b16 %v9108
          %v9675 = vunpack.c.l.b16 %v9109
          %v9676 = vunpack.c.h.b16 %v9109
          %v9677 = vunpack.c.l.b16 %v9110
          %v9678 = vunpack.c.h.b16 %v9110
          %v9679 = vunpack.c.l.b16 %v9111
          %v9680 = vunpack.c.h.b16 %v9111
          %v9681 = vunpack.c.l.b16 %v9112
          %v9682 = vunpack.c.h.b16 %v9112
          %v9683 = vunpack.c.l.b16 %v9113
          %v9684 = vunpack.c.h.b16 %v9113
          %v9685 = vunpack.c.l.b16 %v9114
          %v9686 = vunpack.c.h.b16 %v9114
          %v9687 = vunpack.c.l.b16 %v9115
          %v9688 = vunpack.c.h.b16 %v9115
          %v9689 = vunpack.c.l.b16 %v9116
          %v9690 = vunpack.c.h.b16 %v9116
          %v9691 = vunpack.c.l.b16 %v9117
          %v9692 = vunpack.c.h.b16 %v9117
          %v9693 = vunpack.c.l.b16 %v9118
          %v9694 = vunpack.c.h.b16 %v9118
          %v9695 = vunpack.c.l.b16 %v9119
          %v9696 = vunpack.c.h.b16 %v9119
          %v9697 = vunpack.c.l.b16 %v9120
          %v9698 = vunpack.c.h.b16 %v9120
          %v9699 = vunpack.c.l.b16 %v9121
          %v9700 = vunpack.c.h.b16 %v9121
          %v9701 = vunpack.c.l.b16 %v9122
          %v9702 = vunpack.c.h.b16 %v9122
          %v9703 = vunpack.c.l.b16 %v9123
          %v9704 = vunpack.c.h.b16 %v9123
          %v9705 = vunpack.c.l.b16 %v9124
          %v9706 = vunpack.c.h.b16 %v9124
          %v9707 = vunpack.c.l.b16 %v9125
          %v9708 = vunpack.c.h.b16 %v9125
          %v9709 = vunpack.c.l.b16 %v9126
          %v9710 = vunpack.c.h.b16 %v9126
          %v9711 = vunpack.c.l.b16 %v9127
          %v9712 = vunpack.c.h.b16 %v9127
          %v9713 = vunpack.c.l.b16 %v9128
          %v9714 = vunpack.c.h.b16 %v9128
          %v9715 = vunpack.c.l.b16 %v9129
          %v9716 = vunpack.c.h.b16 %v9129
          %v9717 = vunpack.c.l.b16 %v9130
          %v9718 = vunpack.c.h.b16 %v9130
          %v9719 = vunpack.c.l.b16 %v9131
          %v9720 = vunpack.c.h.b16 %v9131
          %v9721 = vunpack.c.l.b16 %v9132
          %v9722 = vunpack.c.h.b16 %v9132
          %v9723 = vunpack.c.l.b16 %v9133
          %v9724 = vunpack.c.h.b16 %v9133
          %v9725 = vunpack.c.l.b16 %v9134
          %v9726 = vunpack.c.h.b16 %v9134
          %v9727 = vunpack.c.l.b16 %v9135
          %v9728 = vunpack.c.h.b16 %v9135
          %v9729 = vunpack.c.l.b16 %v9136
          %v9730 = vunpack.c.h.b16 %v9136
          %v9731 = vunpack.c.l.b16 %v9137
          %v9732 = vunpack.c.h.b16 %v9137
          %v9733 = vunpack.c.l.b16 %v9138
          %v9734 = vunpack.c.h.b16 %v9138
          %v9735 = vunpack.c.l.b16 %v9139
          %v9736 = vunpack.c.h.b16 %v9139
          %v9737 = vunpack.c.l.b16 %v9140
          %v9738 = vunpack.c.h.b16 %v9140
          %v9739 = vunpack.c.l.b16 %v9141
          %v9740 = vunpack.c.h.b16 %v9141
          %v9741 = vunpack.c.l.b16 %v9142
          %v9742 = vunpack.c.h.b16 %v9142
          %v9743 = vunpack.c.l.b16 %v9143
          %v9744 = vunpack.c.h.b16 %v9143
          %v9745 = vunpack.c.l.b16 %v9144
          %v9746 = vunpack.c.h.b16 %v9144
          %v9747 = vunpack.c.l.b16 %v9145
          %v9748 = vunpack.c.h.b16 %v9145
          %v9749 = vunpack.c.l.b16 %v9146
          %v9750 = vunpack.c.h.b16 %v9146
          %v9751 = vunpack.c.l.b16 %v9147
          %v9752 = vunpack.c.h.b16 %v9147
          %v9753 = vunpack.c.l.b16 %v9148
          %v9754 = vunpack.c.h.b16 %v9148
          %v9755 = vunpack.c.l.b16 %v9149
          %v9756 = vunpack.c.h.b16 %v9149
          %v9757 = vunpack.c.l.b16 %v9150
          %v9758 = vunpack.c.h.b16 %v9150
          %v9759 = vunpack.c.l.b16 %v9151
          %v9760 = vunpack.c.h.b16 %v9151
          %v9761 = vunpack.c.l.b16 %v9152
          %v9762 = vunpack.c.h.b16 %v9152
          %v9763 = vunpack.c.l.b16 %v9153
          %v9764 = vunpack.c.h.b16 %v9153
          %v9765 = vunpack.c.l.b16 %v9154
          %v9766 = vunpack.c.h.b16 %v9154
          %v9767 = vunpack.c.l.b16 %v9155
          %v9768 = vunpack.c.h.b16 %v9155
          %v9769 = vunpack.c.l.b16 %v9156
          %v9770 = vunpack.c.h.b16 %v9156
          %v9771 = vunpack.c.l.b16 %v9157
          %v9772 = vunpack.c.h.b16 %v9157
          %v9773 = vunpack.c.l.b16 %v9158
          %v9774 = vunpack.c.h.b16 %v9158
          %v9775 = vunpack.c.l.b16 %v9159
          %v9776 = vunpack.c.h.b16 %v9159
          %v9777 = vunpack.c.l.b16 %v9160
          %v9778 = vunpack.c.h.b16 %v9160
          %v9779 = vunpack.c.l.b16 %v9161
          %v9780 = vunpack.c.h.b16 %v9161
          %v9781 = vunpack.c.l.b16 %v9162
          %v9782 = vunpack.c.h.b16 %v9162
          %v9783 = vunpack.c.l.b16 %v9163
          %v9784 = vunpack.c.h.b16 %v9163
          %v9785 = vunpack.c.l.b16 %v9164
          %v9786 = vunpack.c.h.b16 %v9164
          %v9787 = vunpack.c.l.b16 %v9165
          %v9788 = vunpack.c.h.b16 %v9165
          %v9789 = vunpack.c.l.b16 %v9166
          %v9790 = vunpack.c.h.b16 %v9166
          %v9791 = vunpack.c.l.b16 %v9167
          %v9792 = vunpack.c.h.b16 %v9167
          %v9793 = vunpack.c.l.b16 %v9168
          %v9794 = vunpack.c.h.b16 %v9168
          %v9795 = vunpack.c.l.b16 %v9169
          %v9796 = vunpack.c.h.b16 %v9169
          %v9797 = vunpack.c.l.b16 %v9170
          %v9798 = vunpack.c.h.b16 %v9170
          %v9799 = vunpack.c.l.b16 %v9171
          %v9800 = vunpack.c.h.b16 %v9171
          %v9801 = vunpack.c.l.b16 %v9172
          %v9802 = vunpack.c.h.b16 %v9172
          %v9803 = vunpack.c.l.b16 %v9173
          %v9804 = vunpack.c.h.b16 %v9173
          %v9805 = vunpack.c.l.b16 %v9174
          %v9806 = vunpack.c.h.b16 %v9174
          %v9807 = vunpack.c.l.b16 %v9175
          %v9808 = vunpack.c.h.b16 %v9175
          %v9809 = vunpack.c.l.b16 %v9176
          %v9810 = vunpack.c.h.b16 %v9176
          %v9811 = vunpack.c.l.b16 %v9177
          %v9812 = vunpack.c.h.b16 %v9177
          %v9813 = vunpack.c.l.b16 %v9178
          %v9814 = vunpack.c.h.b16 %v9178
          %v9815 = vunpack.c.l.b16 %v9179
          %v9816 = vunpack.c.h.b16 %v9179
          %v9817 = vunpack.c.l.b16 %v9180
          %v9818 = vunpack.c.h.b16 %v9180
          %v9819 = vunpack.c.l.b16 %v9181
          %v9820 = vunpack.c.h.b16 %v9181
          %v9821 = vunpack.c.l.b16 %v9182
          %v9822 = vunpack.c.h.b16 %v9182
          %v9823 = vunpack.c.l.b16 %v9183
          %v9824 = vunpack.c.h.b16 %v9183
          %v9825 = vunpack.c.l.b16 %v9184
          %v9826 = vunpack.c.h.b16 %v9184
          %v9827 = vunpack.c.l.b16 %v9185
          %v9828 = vunpack.c.h.b16 %v9185
          %v9829 = vunpack.c.l.b16 %v9186
          %v9830 = vunpack.c.h.b16 %v9186
          %v9831 = vunpack.c.l.b16 %v9187
          %v9832 = vunpack.c.h.b16 %v9187
          %v9833 = vunpack.c.l.b16 %v9188
          %v9834 = vunpack.c.h.b16 %v9188
          %v9835 = vunpack.c.l.b16 %v9189
          %v9836 = vunpack.c.h.b16 %v9189
          %v9837 = vunpack.c.l.b16 %v9190
          %v9838 = vunpack.c.h.b16 %v9190
          %v9839 = vunpack.c.l.b16 %v9191
          %v9840 = vunpack.c.h.b16 %v9191
          %v9841 = vunpack.c.l.b16 %v9192
          %v9842 = vunpack.c.h.b16 %v9192
          %v9843 = vunpack.c.l.b16 %v9193
          %v9844 = vunpack.c.h.b16 %v9193
          %v9845 = vunpack.c.l.b16 %v9194
          %v9846 = vunpack.c.h.b16 %v9194
          %v9847 = vunpack.c.l.b16 %v9195
          %v9848 = vunpack.c.h.b16 %v9195
          %v9849 = vunpack.c.l.b16 %v9196
          %v9850 = vunpack.c.h.b16 %v9196
          %v9851 = vunpack.c.l.b16 %v9197
          %v9852 = vunpack.c.h.b16 %v9197
          %v9853 = vunpack.c.l.b16 %v9198
          %v9854 = vunpack.c.h.b16 %v9198
          %v9855 = vunpack.c.l.b16 %v9199
          %v9856 = vunpack.c.h.b16 %v9199
          %v9857 = vunpack.c.l.b16 %v9200
          %v9858 = vunpack.c.h.b16 %v9200
          %v9859 = vunpack.c.l.b16 %v9201
          %v9860 = vunpack.c.h.b16 %v9201
          %v9861 = vunpack.c.l.b16 %v9202
          %v9862 = vunpack.c.h.b16 %v9202
          %v9863 = vunpack.c.l.b16 %v9203
          %v9864 = vunpack.c.h.b16 %v9203
          %v9865 = vunpack.c.l.b16 %v9204
          %v9866 = vunpack.c.h.b16 %v9204
          %v9867 = vunpack.c.l.b16 %v9205
          %v9868 = vunpack.c.h.b16 %v9205
          %v9869 = vunpack.c.l.b16 %v9206
          %v9870 = vunpack.c.h.b16 %v9206
          %v9871 = vunpack.c.l.b16 %v9207
          %v9872 = vunpack.c.h.b16 %v9207
          %v9873 = vunpack.c.l.b16 %v9208
          %v9874 = vunpack.c.h.b16 %v9208
          %v9875 = vunpack.c.l.b16 %v9209
          %v9876 = vunpack.c.h.b16 %v9209
          %v9877 = vunpack.c.l.b16 %v9210
          %v9878 = vunpack.c.h.b16 %v9210
          %v9879 = vunpack.c.l.b16 %v9211
          %v9880 = vunpack.c.h.b16 %v9211
          %v9881 = vunpack.c.l.b16 %v9212
          %v9882 = vunpack.c.h.b16 %v9212
          %v9883 = vunpack.c.l.b16 %v9213
          %v9884 = vunpack.c.h.b16 %v9213
          %v9885 = vunpack.c.l.b16 %v9214
          %v9886 = vunpack.c.h.b16 %v9214
          %v9887 = vunpack.c.l.b16 %v9215
          %v9888 = vunpack.c.h.b16 %v9215
          %v9889 = vunpack.c.l.b16 %v9216
          %v9890 = vunpack.c.h.b16 %v9216
          %v9891 = vunpack.c.l.b16 %v9217
          %v9892 = vunpack.c.h.b16 %v9217
          %v9893 = vunpack.c.l.b16 %v9218
          %v9894 = vunpack.c.h.b16 %v9218
          %v9895 = vunpack.c.l.b16 %v9219
          %v9896 = vunpack.c.h.b16 %v9219
          %v9897 = vunpack.c.l.b16 %v9220
          %v9898 = vunpack.c.h.b16 %v9220
          %v9899 = vunpack.c.l.b16 %v9221
          %v9900 = vunpack.c.h.b16 %v9221
          %v9901 = vunpack.c.l.b16 %v9222
          %v9902 = vunpack.c.h.b16 %v9222
          %v9903 = vunpack.c.l.b16 %v9223
          %v9904 = vunpack.c.h.b16 %v9223
          %v9905 = vunpack.c.l.b16 %v9224
          %v9906 = vunpack.c.h.b16 %v9224
          %v9907 = vunpack.c.l.b16 %v9225
          %v9908 = vunpack.c.h.b16 %v9225
          %v9909 = vunpack.c.l.b16 %v9226
          %v9910 = vunpack.c.h.b16 %v9226
          %v9911 = vunpack.c.l.b16 %v9227
          %v9912 = vunpack.c.h.b16 %v9227
          %v9913 = vunpack.c.l.b16 %v9228
          %v9914 = vunpack.c.h.b16 %v9228
          %v9915 = vunpack.c.l.b16 %v9229
          %v9916 = vunpack.c.h.b16 %v9229
          %v9917 = vunpack.c.l.b16 %v9230
          %v9918 = vunpack.c.h.b16 %v9230
          %v9919 = vunpack.c.l.b16 %v9231
          %v9920 = vunpack.c.h.b16 %v9231
          %v9921 = vunpack.c.l.b16 %v9232
          %v9922 = vunpack.c.h.b16 %v9232
          %v9923 = vunpack.c.l.b16 %v9233
          %v9924 = vunpack.c.h.b16 %v9233
          %v9925 = vunpack.c.l.b16 %v9234
          %v9926 = vunpack.c.h.b16 %v9234
          %v9927 = vunpack.c.l.b16 %v9235
          %v9928 = vunpack.c.h.b16 %v9235
          %v9929 = vunpack.c.l.b16 %v9236
          %v9930 = vunpack.c.h.b16 %v9236
          %v9931 = vunpack.c.l.b16 %v9237
          %v9932 = vunpack.c.h.b16 %v9237
          %v9933 = vunpack.c.l.b16 %v9238
          %v9934 = vunpack.c.h.b16 %v9238
          %v9935 = vunpack.c.l.b16 %v9239
          %v9936 = vunpack.c.h.b16 %v9239
          %v9937 = vunpack.c.l.b16 %v9240
          %v9938 = vunpack.c.h.b16 %v9240
          %v9939 = vunpack.c.l.b16 %v9241
          %v9940 = vunpack.c.h.b16 %v9241
          %v9941 = vunpack.c.l.b16 %v9242
          %v9942 = vunpack.c.h.b16 %v9242
          %v9943 = vunpack.c.l.b16 %v9243
          %v9944 = vunpack.c.h.b16 %v9243
          %v9945 = vunpack.c.l.b16 %v9244
          %v9946 = vunpack.c.h.b16 %v9244
          %v9947 = vunpack.c.l.b16 %v9245
          %v9948 = vunpack.c.h.b16 %v9245
          %v9949 = vunpack.c.l.b16 %v9246
          %v9950 = vunpack.c.h.b16 %v9246
          %v9951 = vunpack.c.l.b16 %v9247
          %v9952 = vunpack.c.h.b16 %v9247
          %v9953 = vunpack.c.l.b16 %v9248
          %v9954 = vunpack.c.h.b16 %v9248
          %v9955 = vunpack.c.l.b16 %v9249
          %v9956 = vunpack.c.h.b16 %v9249
          %v9957 = vunpack.c.l.b16 %v9250
          %v9958 = vunpack.c.h.b16 %v9250
          %v9959 = vunpack.c.l.b16 %v9251
          %v9960 = vunpack.c.h.b16 %v9251
          %v9961 = vunpack.c.l.b16 %v9252
          %v9962 = vunpack.c.h.b16 %v9252
          %v9963 = vunpack.c.l.b16 %v9253
          %v9964 = vunpack.c.h.b16 %v9253
          %v9965 = vunpack.c.l.b16 %v9254
          %v9966 = vunpack.c.h.b16 %v9254
          %v9967 = vunpack.c.l.b16 %v9255
          %v9968 = vunpack.c.h.b16 %v9255
          %v9969 = vunpack.c.l.b16 %v9256
          %v9970 = vunpack.c.h.b16 %v9256
          %v9971 = vunpack.c.l.b16 %v9257
          %v9972 = vunpack.c.h.b16 %v9257
          %v9973 = vunpack.c.l.b16 %v9258
          %v9974 = vunpack.c.h.b16 %v9258
          %v9975 = vunpack.c.l.b16 %v9259
          %v9976 = vunpack.c.h.b16 %v9259
          %v9977 = vunpack.c.l.b16 %v9260
          %v9978 = vunpack.c.h.b16 %v9260
          %v9979 = vunpack.c.l.b16 %v9261
          %v9980 = vunpack.c.h.b16 %v9261
          %v9981 = vunpack.c.l.b16 %v9262
          %v9982 = vunpack.c.h.b16 %v9262
          %v9983 = vunpack.c.l.b16 %v9263
          %v9984 = vunpack.c.h.b16 %v9263
          %v9985 = vunpack.c.l.b16 %v9264
          %v9986 = vunpack.c.h.b16 %v9264
          %v9987 = vunpack.c.l.b16 %v9265
          %v9988 = vunpack.c.h.b16 %v9265
          %v9989 = vunpack.c.l.b16 %v9266
          %v9990 = vunpack.c.h.b16 %v9266
          %v9991 = vunpack.c.l.b16 %v9267
          %v9992 = vunpack.c.h.b16 %v9267
          %v9993 = vunpack.c.l.b16 %v9268
          %v9994 = vunpack.c.h.b16 %v9268
          %v9995 = vunpack.c.l.b16 %v9269
          %v9996 = vunpack.c.h.b16 %v9269
          %v9997 = vunpack.c.l.b16 %v9270
          %v9998 = vunpack.c.h.b16 %v9270
          %v9999 = vunpack.c.l.b16 %v9271
          %v10000 = vunpack.c.h.b16 %v9271
          %v10001 = vunpack.c.l.b16 %v9272
          %v10002 = vunpack.c.h.b16 %v9272
          %v10003 = vunpack.c.l.b16 %v9273
          %v10004 = vunpack.c.h.b16 %v9273
          %v10005 = vunpack.c.l.b16 %v9274
          %v10006 = vunpack.c.h.b16 %v9274
          %v10007 = vunpack.c.l.b16 %v9275
          %v10008 = vunpack.c.h.b16 %v9275
          %v10009 = vunpack.c.l.b16 %v9276
          %v10010 = vunpack.c.h.b16 %v9276
          %v10011 = vunpack.c.l.b16 %v9277
          %v10012 = vunpack.c.h.b16 %v9277
          %v10013 = vunpack.c.l.b16 %v9278
          %v10014 = vunpack.c.h.b16 %v9278
          %v10015 = vunpack.c.l.b16 %v9279
          %v10016 = vunpack.c.h.b16 %v9279
          %v10017 = vunpack.c.l.b16 %v9280
          %v10018 = vunpack.c.h.b16 %v9280
          %v10019 = vunpack.c.l.b16 %v9281
          %v10020 = vunpack.c.h.b16 %v9281
          %v10021 = vunpack.c.l.b16 %v9282
          %v10022 = vunpack.c.h.b16 %v9282
          %v10023 = vunpack.c.l.b16 %v9283
          %v10024 = vunpack.c.h.b16 %v9283
          %v10025 = vunpack.c.l.b16 %v9284
          %v10026 = vunpack.c.h.b16 %v9284
          %v10027 = vunpack.c.l.b16 %v9285
          %v10028 = vunpack.c.h.b16 %v9285
          %v10029 = vunpack.c.l.b16 %v9286
          %v10030 = vunpack.c.h.b16 %v9286
          %v10031 = vunpack.c.l.b16 %v9287
          %v10032 = vunpack.c.h.b16 %v9287
          %v10033 = vunpack.c.l.b16 %v9288
          %v10034 = vunpack.c.h.b16 %v9288
          %v10035 = vunpack.c.l.b16 %v9289
          %v10036 = vunpack.c.h.b16 %v9289
          %v10037 = vunpack.c.l.b16 %v9290
          %v10038 = vunpack.c.h.b16 %v9290
          %v10039 = vunpack.c.l.b16 %v9291
          %v10040 = vunpack.c.h.b16 %v9291
          %v10041 = vunpack.c.l.b16 %v9292
          %v10042 = vunpack.c.h.b16 %v9292
          %v10043 = vunpack.c.l.b16 %v9293
          %v10044 = vunpack.c.h.b16 %v9293
          %v10045 = vunpack.c.l.b16 %v9294
          %v10046 = vunpack.c.h.b16 %v9294
          %v10047 = vunpack.c.l.b16 %v9295
          %v10048 = vunpack.c.h.b16 %v9295
          %v10049 = vunpack.c.l.b16 %v9296
          %v10050 = vunpack.c.h.b16 %v9296
          %v10051 = vunpack.c.l.b16 %v9297
          %v10052 = vunpack.c.h.b16 %v9297
          %v10053 = vunpack.c.l.b16 %v9298
          %v10054 = vunpack.c.h.b16 %v9298
          %v10055 = vunpack.c.l.b16 %v9299
          %v10056 = vunpack.c.h.b16 %v9299
          %v10057 = vunpack.c.l.b16 %v9300
          %v10058 = vunpack.c.h.b16 %v9300
          %v10059 = vunpack.c.l.b16 %v9301
          %v10060 = vunpack.c.h.b16 %v9301
          %v10061 = vunpack.c.l.b16 %v9302
          %v10062 = vunpack.c.h.b16 %v9302
          %v10063 = vunpack.c.l.b16 %v9303
          %v10064 = vunpack.c.h.b16 %v9303
          %v10065 = vunpack.c.l.b16 %v9304
          %v10066 = vunpack.c.h.b16 %v9304
          %v10067 = vunpack.c.l.b16 %v9305
          %v10068 = vunpack.c.h.b16 %v9305
          %v10069 = vunpack.c.l.b16 %v9306
          %v10070 = vunpack.c.h.b16 %v9306
          %v10071 = vunpack.c.l.b16 %v9307
          %v10072 = vunpack.c.h.b16 %v9307
          %v10073 = vunpack.c.l.b16 %v9308
          %v10074 = vunpack.c.h.b16 %v9308
          %v10075 = vunpack.c.l.b16 %v9309
          %v10076 = vunpack.c.h.b16 %v9309
          %v10077 = vunpack.c.l.b16 %v9310
          %v10078 = vunpack.c.h.b16 %v9310
          %v10079 = vunpack.c.l.b16 %v9311
          %v10080 = vunpack.c.h.b16 %v9311
          %v10081 = vunpack.c.l.b16 %v9312
          %v10082 = vunpack.c.h.b16 %v9312
          %v10083 = vunpack.c.l.b16 %v9313
          %v10084 = vunpack.c.h.b16 %v9313
          %v10085 = vunpack.c.l.b16 %v9314
          %v10086 = vunpack.c.h.b16 %v9314
          %v10087 = vunpack.c.l.b16 %v9315
          %v10088 = vunpack.c.h.b16 %v9315
          %v10089 = vunpack.c.l.b16 %v9316
          %v10090 = vunpack.c.h.b16 %v9316
          %v10091 = vunpack.c.l.b16 %v9317
          %v10092 = vunpack.c.h.b16 %v9317
          %v10093 = vunpack.c.l.b16 %v9318
          %v10094 = vunpack.c.h.b16 %v9318
          %v10095 = vunpack.c.l.b16 %v9319
          %v10096 = vunpack.c.h.b16 %v9319
          %v10097 = vunpack.c.l.b16 %v9320
          %v10098 = vunpack.c.h.b16 %v9320
          %v10099 = vunpack.c.l.b16 %v9321
          %v10100 = vunpack.c.h.b16 %v9321
          %v10101 = vunpack.c.l.b16 %v9322
          %v10102 = vunpack.c.h.b16 %v9322
          %v10103 = vunpack.c.l.b16 %v9323
          %v10104 = vunpack.c.h.b16 %v9323
          %v10105 = vunpack.c.l.b16 %v9324
          %v10106 = vunpack.c.h.b16 %v9324
          %v10107 = vunpack.c.l.b16 %v9325
          %v10108 = vunpack.c.h.b16 %v9325
          %v10109 = vunpack.c.l.b16 %v9326
          %v10110 = vunpack.c.h.b16 %v9326
          %v10111 = vunpack.c.l.b16 %v9327
          %v10112 = vunpack.c.h.b16 %v9327
          %v10113 = vunpack.c.l.b16 %v9328
          %v10114 = vunpack.c.h.b16 %v9328
          %v10115 = vunpack.c.l.b16 %v9329
          %v10116 = vunpack.c.h.b16 %v9329
          %v10117 = vunpack.c.l.b16 %v9330
          %v10118 = vunpack.c.h.b16 %v9330
          %v10119 = vunpack.c.l.b16 %v9331
          %v10120 = vunpack.c.h.b16 %v9331
          %v10121 = vunpack.c.l.b16 %v9332
          %v10122 = vunpack.c.h.b16 %v9332
          %v10123 = vpack.c.b16 %v9615, %v9611
          %v10124 = vpack.c.b16 %v9616, %v9612
          %v10125 = vpack.c.b16 %v9617, %v9613
          %v10126 = vpack.c.b16 %v9618, %v9614
          %v10127 = vpack.c.b16 %v9623, %v9619
          %v10128 = vpack.c.b16 %v9624, %v9620
          %v10129 = vpack.c.b16 %v9625, %v9621
          %v10130 = vpack.c.b16 %v9626, %v9622
          %v10131 = vpack.c.b16 %v9631, %v9627
          %v10132 = vpack.c.b16 %v9632, %v9628
          %v10133 = vpack.c.b16 %v9633, %v9629
          %v10134 = vpack.c.b16 %v9634, %v9630
          %v10135 = vpack.c.b16 %v9639, %v9635
          %v10136 = vpack.c.b16 %v9640, %v9636
          %v10137 = vpack.c.b16 %v9641, %v9637
          %v10138 = vpack.c.b16 %v9642, %v9638
          %v10139 = vpack.c.b16 %v9647, %v9643
          %v10140 = vpack.c.b16 %v9648, %v9644
          %v10141 = vpack.c.b16 %v9649, %v9645
          %v10142 = vpack.c.b16 %v9650, %v9646
          %v10143 = vpack.c.b16 %v9655, %v9651
          %v10144 = vpack.c.b16 %v9656, %v9652
          %v10145 = vpack.c.b16 %v9657, %v9653
          %v10146 = vpack.c.b16 %v9658, %v9654
          %v10147 = vpack.c.b16 %v9663, %v9659
          %v10148 = vpack.c.b16 %v9664, %v9660
          %v10149 = vpack.c.b16 %v9665, %v9661
          %v10150 = vpack.c.b16 %v9666, %v9662
          %v10151 = vpack.c.b16 %v9671, %v9667
          %v10152 = vpack.c.b16 %v9672, %v9668
          %v10153 = vpack.c.b16 %v9673, %v9669
          %v10154 = vpack.c.b16 %v9674, %v9670
          %v10155 = vpack.c.b16 %v9679, %v9675
          %v10156 = vpack.c.b16 %v9680, %v9676
          %v10157 = vpack.c.b16 %v9681, %v9677
          %v10158 = vpack.c.b16 %v9682, %v9678
          %v10159 = vpack.c.b16 %v9687, %v9683
          %v10160 = vpack.c.b16 %v9688, %v9684
          %v10161 = vpack.c.b16 %v9689, %v9685
          %v10162 = vpack.c.b16 %v9690, %v9686
          %v10163 = vpack.c.b16 %v9695, %v9691
          %v10164 = vpack.c.b16 %v9696, %v9692
          %v10165 = vpack.c.b16 %v9697, %v9693
          %v10166 = vpack.c.b16 %v9698, %v9694
          %v10167 = vpack.c.b16 %v9703, %v9699
          %v10168 = vpack.c.b16 %v9704, %v9700
          %v10169 = vpack.c.b16 %v9705, %v9701
          %v10170 = vpack.c.b16 %v9706, %v9702
          %v10171 = vpack.c.b16 %v9711, %v9707
          %v10172 = vpack.c.b16 %v9712, %v9708
          %v10173 = vpack.c.b16 %v9713, %v9709
          %v10174 = vpack.c.b16 %v9714, %v9710
          %v10175 = vpack.c.b16 %v9719, %v9715
          %v10176 = vpack.c.b16 %v9720, %v9716
          %v10177 = vpack.c.b16 %v9721, %v9717
          %v10178 = vpack.c.b16 %v9722, %v9718
          %v10179 = vpack.c.b16 %v9727, %v9723
          %v10180 = vpack.c.b16 %v9728, %v9724
          %v10181 = vpack.c.b16 %v9729, %v9725
          %v10182 = vpack.c.b16 %v9730, %v9726
          %v10183 = vpack.c.b16 %v9735, %v9731
          %v10184 = vpack.c.b16 %v9736, %v9732
          %v10185 = vpack.c.b16 %v9737, %v9733
          %v10186 = vpack.c.b16 %v9738, %v9734
          %v10187 = vpack.c.b16 %v9743, %v9739
          %v10188 = vpack.c.b16 %v9744, %v9740
          %v10189 = vpack.c.b16 %v9745, %v9741
          %v10190 = vpack.c.b16 %v9746, %v9742
          %v10191 = vpack.c.b16 %v9751, %v9747
          %v10192 = vpack.c.b16 %v9752, %v9748
          %v10193 = vpack.c.b16 %v9753, %v9749
          %v10194 = vpack.c.b16 %v9754, %v9750
          %v10195 = vpack.c.b16 %v9759, %v9755
          %v10196 = vpack.c.b16 %v9760, %v9756
          %v10197 = vpack.c.b16 %v9761, %v9757
          %v10198 = vpack.c.b16 %v9762, %v9758
          %v10199 = vpack.c.b16 %v9767, %v9763
          %v10200 = vpack.c.b16 %v9768, %v9764
          %v10201 = vpack.c.b16 %v9769, %v9765
          %v10202 = vpack.c.b16 %v9770, %v9766
          %v10203 = vpack.c.b16 %v9775, %v9771
          %v10204 = vpack.c.b16 %v9776, %v9772
          %v10205 = vpack.c.b16 %v9777, %v9773
          %v10206 = vpack.c.b16 %v9778, %v9774
          %v10207 = vpack.c.b16 %v9783, %v9779
          %v10208 = vpack.c.b16 %v9784, %v9780
          %v10209 = vpack.c.b16 %v9785, %v9781
          %v10210 = vpack.c.b16 %v9786, %v9782
          %v10211 = vpack.c.b16 %v9791, %v9787
          %v10212 = vpack.c.b16 %v9792, %v9788
          %v10213 = vpack.c.b16 %v9793, %v9789
          %v10214 = vpack.c.b16 %v9794, %v9790
          %v10215 = vpack.c.b16 %v9799, %v9795
          %v10216 = vpack.c.b16 %v9800, %v9796
          %v10217 = vpack.c.b16 %v9801, %v9797
          %v10218 = vpack.c.b16 %v9802, %v9798
          %v10219 = vpack.c.b16 %v9807, %v9803
          %v10220 = vpack.c.b16 %v9808, %v9804
          %v10221 = vpack.c.b16 %v9809, %v9805
          %v10222 = vpack.c.b16 %v9810, %v9806
          %v10223 = vpack.c.b16 %v9815, %v9811
          %v10224 = vpack.c.b16 %v9816, %v9812
          %v10225 = vpack.c.b16 %v9817, %v9813
          %v10226 = vpack.c.b16 %v9818, %v9814
          %v10227 = vpack.c.b16 %v9823, %v9819
          %v10228 = vpack.c.b16 %v9824, %v9820
          %v10229 = vpack.c.b16 %v9825, %v9821
          %v10230 = vpack.c.b16 %v9826, %v9822
          %v10231 = vpack.c.b16 %v9831, %v9827
          %v10232 = vpack.c.b16 %v9832, %v9828
          %v10233 = vpack.c.b16 %v9833, %v9829
          %v10234 = vpack.c.b16 %v9834, %v9830
          %v10235 = vpack.c.b16 %v9839, %v9835
          %v10236 = vpack.c.b16 %v9840, %v9836
          %v10237 = vpack.c.b16 %v9841, %v9837
          %v10238 = vpack.c.b16 %v9842, %v9838
          %v10239 = vpack.c.b16 %v9847, %v9843
          %v10240 = vpack.c.b16 %v9848, %v9844
          %v10241 = vpack.c.b16 %v9849, %v9845
          %v10242 = vpack.c.b16 %v9850, %v9846
          %v10243 = vpack.c.b16 %v9855, %v9851
          %v10244 = vpack.c.b16 %v9856, %v9852
          %v10245 = vpack.c.b16 %v9857, %v9853
          %v10246 = vpack.c.b16 %v9858, %v9854
          %v10247 = vpack.c.b16 %v9863, %v9859
          %v10248 = vpack.c.b16 %v9864, %v9860
          %v10249 = vpack.c.b16 %v9865, %v9861
          %v10250 = vpack.c.b16 %v9866, %v9862
          %v10251 = vpack.c.b16 %v9871, %v9867
          %v10252 = vpack.c.b16 %v9872, %v9868
          %v10253 = vpack.c.b16 %v9873, %v9869
          %v10254 = vpack.c.b16 %v9874, %v9870
          %v10255 = vpack.c.b16 %v9879, %v9875
          %v10256 = vpack.c.b16 %v9880, %v9876
          %v10257 = vpack.c.b16 %v9881, %v9877
          %v10258 = vpack.c.b16 %v9882, %v9878
          %v10259 = vpack.c.b16 %v9887, %v9883
          %v10260 = vpack.c.b16 %v9888, %v9884
          %v10261 = vpack.c.b16 %v9889, %v9885
          %v10262 = vpack.c.b16 %v9890, %v9886
          %v10263 = vpack.c.b16 %v9895, %v9891
          %v10264 = vpack.c.b16 %v9896, %v9892
          %v10265 = vpack.c.b16 %v9897, %v9893
          %v10266 = vpack.c.b16 %v9898, %v9894
          %v10267 = vpack.c.b16 %v9903, %v9899
          %v10268 = vpack.c.b16 %v9904, %v9900
          %v10269 = vpack.c.b16 %v9905, %v9901
          %v10270 = vpack.c.b16 %v9906, %v9902
          %v10271 = vpack.c.b16 %v9911, %v9907
          %v10272 = vpack.c.b16 %v9912, %v9908
          %v10273 = vpack.c.b16 %v9913, %v9909
          %v10274 = vpack.c.b16 %v9914, %v9910
          %v10275 = vpack.c.b16 %v9919, %v9915
          %v10276 = vpack.c.b16 %v9920, %v9916
          %v10277 = vpack.c.b16 %v9921, %v9917
          %v10278 = vpack.c.b16 %v9922, %v9918
          %v10279 = vpack.c.b16 %v9927, %v9923
          %v10280 = vpack.c.b16 %v9928, %v9924
          %v10281 = vpack.c.b16 %v9929, %v9925
          %v10282 = vpack.c.b16 %v9930, %v9926
          %v10283 = vpack.c.b16 %v9935, %v9931
          %v10284 = vpack.c.b16 %v9936, %v9932
          %v10285 = vpack.c.b16 %v9937, %v9933
          %v10286 = vpack.c.b16 %v9938, %v9934
          %v10287 = vpack.c.b16 %v9943, %v9939
          %v10288 = vpack.c.b16 %v9944, %v9940
          %v10289 = vpack.c.b16 %v9945, %v9941
          %v10290 = vpack.c.b16 %v9946, %v9942
          %v10291 = vpack.c.b16 %v9951, %v9947
          %v10292 = vpack.c.b16 %v9952, %v9948
          %v10293 = vpack.c.b16 %v9953, %v9949
          %v10294 = vpack.c.b16 %v9954, %v9950
          %v10295 = vpack.c.b16 %v9959, %v9955
          %v10296 = vpack.c.b16 %v9960, %v9956
          %v10297 = vpack.c.b16 %v9961, %v9957
          %v10298 = vpack.c.b16 %v9962, %v9958
          %v10299 = vpack.c.b16 %v9967, %v9963
          %v10300 = vpack.c.b16 %v9968, %v9964
          %v10301 = vpack.c.b16 %v9969, %v9965
          %v10302 = vpack.c.b16 %v9970, %v9966
          %v10303 = vpack.c.b16 %v9975, %v9971
          %v10304 = vpack.c.b16 %v9976, %v9972
          %v10305 = vpack.c.b16 %v9977, %v9973
          %v10306 = vpack.c.b16 %v9978, %v9974
          %v10307 = vpack.c.b16 %v9983, %v9979
          %v10308 = vpack.c.b16 %v9984, %v9980
          %v10309 = vpack.c.b16 %v9985, %v9981
          %v10310 = vpack.c.b16 %v9986, %v9982
          %v10311 = vpack.c.b16 %v9991, %v9987
          %v10312 = vpack.c.b16 %v9992, %v9988
          %v10313 = vpack.c.b16 %v9993, %v9989
          %v10314 = vpack.c.b16 %v9994, %v9990
          %v10315 = vpack.c.b16 %v9999, %v9995
          %v10316 = vpack.c.b16 %v10000, %v9996
          %v10317 = vpack.c.b16 %v10001, %v9997
          %v10318 = vpack.c.b16 %v10002, %v9998
          %v10319 = vpack.c.b16 %v10007, %v10003
          %v10320 = vpack.c.b16 %v10008, %v10004
          %v10321 = vpack.c.b16 %v10009, %v10005
          %v10322 = vpack.c.b16 %v10010, %v10006
          %v10323 = vpack.c.b16 %v10015, %v10011
          %v10324 = vpack.c.b16 %v10016, %v10012
          %v10325 = vpack.c.b16 %v10017, %v10013
          %v10326 = vpack.c.b16 %v10018, %v10014
          %v10327 = vpack.c.b16 %v10023, %v10019
          %v10328 = vpack.c.b16 %v10024, %v10020
          %v10329 = vpack.c.b16 %v10025, %v10021
          %v10330 = vpack.c.b16 %v10026, %v10022
          %v10331 = vpack.c.b16 %v10031, %v10027
          %v10332 = vpack.c.b16 %v10032, %v10028
          %v10333 = vpack.c.b16 %v10033, %v10029
          %v10334 = vpack.c.b16 %v10034, %v10030
          %v10335 = vpack.c.b16 %v10039, %v10035
          %v10336 = vpack.c.b16 %v10040, %v10036
          %v10337 = vpack.c.b16 %v10041, %v10037
          %v10338 = vpack.c.b16 %v10042, %v10038
          %v10339 = vpack.c.b16 %v10047, %v10043
          %v10340 = vpack.c.b16 %v10048, %v10044
          %v10341 = vpack.c.b16 %v10049, %v10045
          %v10342 = vpack.c.b16 %v10050, %v10046
          %v10343 = vpack.c.b16 %v10055, %v10051
          %v10344 = vpack.c.b16 %v10056, %v10052
          %v10345 = vpack.c.b16 %v10057, %v10053
          %v10346 = vpack.c.b16 %v10058, %v10054
          %v10347 = vpack.c.b16 %v10063, %v10059
          %v10348 = vpack.c.b16 %v10064, %v10060
          %v10349 = vpack.c.b16 %v10065, %v10061
          %v10350 = vpack.c.b16 %v10066, %v10062
          %v10351 = vpack.c.b16 %v10071, %v10067
          %v10352 = vpack.c.b16 %v10072, %v10068
          %v10353 = vpack.c.b16 %v10073, %v10069
          %v10354 = vpack.c.b16 %v10074, %v10070
          %v10355 = vpack.c.b16 %v10079, %v10075
          %v10356 = vpack.c.b16 %v10080, %v10076
          %v10357 = vpack.c.b16 %v10081, %v10077
          %v10358 = vpack.c.b16 %v10082, %v10078
          %v10359 = vpack.c.b16 %v10087, %v10083
          %v10360 = vpack.c.b16 %v10088, %v10084
          %v10361 = vpack.c.b16 %v10089, %v10085
          %v10362 = vpack.c.b16 %v10090, %v10086
          %v10363 = vpack.c.b16 %v10095, %v10091
          %v10364 = vpack.c.b16 %v10096, %v10092
          %v10365 = vpack.c.b16 %v10097, %v10093
          %v10366 = vpack.c.b16 %v10098, %v10094
          %v10367 = vpack.c.b16 %v10103, %v10099
          %v10368 = vpack.c.b16 %v10104, %v10100
          %v10369 = vpack.c.b16 %v10105, %v10101
          %v10370 = vpack.c.b16 %v10106, %v10102
          %v10371 = vpack.c.b16 %v10111, %v10107
          %v10372 = vpack.c.b16 %v10112, %v10108
          %v10373 = vpack.c.b16 %v10113, %v10109
          %v10374 = vpack.c.b16 %v10114, %v10110
          %v10375 = vpack.c.b16 %v10119, %v10115
          %v10376 = vpack.c.b16 %v10120, %v10116
          %v10377 = vpack.c.b16 %v10121, %v10117
          %v10378 = vpack.c.b16 %v10122, %v10118
          %10635 = vmatprep.subr.bf16.mxu0 %v10124
          %10636 = vmatpush1.bf16.msra.mxu0 %v10123
          %10637 = vmatprep.subr.bf16.mxu0 %v10128
          %10638 = vmatpush1.bf16.msra.mxu0 %v10127
          %10639 = vmatprep.subr.bf16.mxu0 %v10132
          %10640 = vmatpush1.bf16.msra.mxu0 %v10131
          %10641 = vmatprep.subr.bf16.mxu0 %v10136
          %10642 = vmatpush1.bf16.msra.mxu0 %v10135
          %10643 = vmatprep.subr.bf16.mxu0 %v10140
          %10644 = vmatpush1.bf16.msra.mxu0 %v10139
          %10645 = vmatprep.subr.bf16.mxu0 %v10144
          %10646 = vmatpush1.bf16.msra.mxu0 %v10143
          %10647 = vmatprep.subr.bf16.mxu0 %v10148
          %10648 = vmatpush1.bf16.msra.mxu0 %v10147
          %10649 = vmatprep.subr.bf16.mxu0 %v10152
          %10650 = vmatpush1.bf16.msra.mxu0 %v10151
          %10651 = vmatprep.subr.bf16.mxu0 %v10156
          %10652 = vmatpush1.bf16.msra.mxu0 %v10155
          %10653 = vmatprep.subr.bf16.mxu0 %v10160
          %10654 = vmatpush1.bf16.msra.mxu0 %v10159
          %10655 = vmatprep.subr.bf16.mxu0 %v10164
          %10656 = vmatpush1.bf16.msra.mxu0 %v10163
          %10657 = vmatprep.subr.bf16.mxu0 %v10168
          %10658 = vmatpush1.bf16.msra.mxu0 %v10167
          %10659 = vmatprep.subr.bf16.mxu0 %v10172
          %10660 = vmatpush1.bf16.msra.mxu0 %v10171
          %10661 = vmatprep.subr.bf16.mxu0 %v10176
          %10662 = vmatpush1.bf16.msra.mxu0 %v10175
          %10663 = vmatprep.subr.bf16.mxu0 %v10180
          %10664 = vmatpush1.bf16.msra.mxu0 %v10179
          %10665 = vmatprep.subr.bf16.mxu0 %v10184
          %10666 = vmatpush1.bf16.msra.mxu0 %v10183
          %10667 = vmatprep.mubr.bf16.mxu0 %v9070
          %10668 = vmatmul.mubr.bf16.gmra.mrb[0].mxu0 %v9069
          %v10669 = vpop.f32.mrb[0].mxu0
          %v10670 = vadd.f32 %v9338, %v10669
          %v10671 = vpop.f32.mrb[0].mxu0
          %v10672 = vadd.f32 %v9342, %v10671
          %v10673 = vpop.f32.mrb[0].mxu0
          %v10674 = vpop.f32.mrb[0].mxu0
          %10675 = vdwg.mxu0
          %10676 = vmatprep.subr.bf16.mxu0 %v10188
          %10677 = vmatpush1.bf16.msra.mxu0 %v10187
          %10678 = vmatprep.subr.bf16.mxu0 %v10192
          %10679 = vmatpush1.bf16.msra.mxu0 %v10191
          %10680 = vmatprep.subr.bf16.mxu0 %v10196
          %10681 = vmatpush1.bf16.msra.mxu0 %v10195
          %10682 = vmatprep.subr.bf16.mxu0 %v10200
          %10683 = vmatpush1.bf16.msra.mxu0 %v10199
          %10684 = vmatprep.subr.bf16.mxu0 %v10204
          %10685 = vmatpush1.bf16.msra.mxu0 %v10203
          %10686 = vmatprep.subr.bf16.mxu0 %v10208
          %10687 = vmatpush1.bf16.msra.mxu0 %v10207
          %10688 = vmatprep.subr.bf16.mxu0 %v10212
          %10689 = vmatpush1.bf16.msra.mxu0 %v10211
          %10690 = vmatprep.subr.bf16.mxu0 %v10216
          %10691 = vmatpush1.bf16.msra.mxu0 %v10215
          %10692 = vmatprep.subr.bf16.mxu0 %v10220
          %10693 = vmatpush1.bf16.msra.mxu0 %v10219
          %10694 = vmatprep.subr.bf16.mxu0 %v10224
          %10695 = vmatpush1.bf16.msra.mxu0 %v10223
          %10696 = vmatprep.subr.bf16.mxu0 %v10228
          %10697 = vmatpush1.bf16.msra.mxu0 %v10227
          %10698 = vmatprep.subr.bf16.mxu0 %v10232
          %10699 = vmatpush1.bf16.msra.mxu0 %v10231
          %10700 = vmatprep.subr.bf16.mxu0 %v10236
          %10701 = vmatpush1.bf16.msra.mxu0 %v10235
          %10702 = vmatprep.subr.bf16.mxu0 %v10240
          %10703 = vmatpush1.bf16.msra.mxu0 %v10239
          %10704 = vmatprep.subr.bf16.mxu0 %v10244
          %10705 = vmatpush1.bf16.msra.mxu0 %v10243
          %10706 = vmatprep.subr.bf16.mxu0 %v10248
          %10707 = vmatpush1.bf16.msra.mxu0 %v10247
          %10708 = vmatprep.mubr.bf16.mxu0 %v9072
          %10709 = vmatmul.mubr.bf16.gmra.mrb[0].mxu0 %v9071
          %v10710 = vpop.f32.mrb[0].mxu0
          %v10711 = vadd.f32 %v10670, %v10710
          %v10712 = vpop.f32.mrb[0].mxu0
          %v10713 = vadd.f32 %v10672, %v10712
          %v10714 = vpop.f32.mrb[0].mxu0
          %v10715 = vpop.f32.mrb[0].mxu0
          %10716 = vdwg.mxu0
          %10717 = vmatprep.subr.bf16.mxu0 %v10252
          %10718 = vmatpush1.bf16.msra.mxu0 %v10251
          %10719 = vmatprep.subr.bf16.mxu0 %v10256
          %10720 = vmatpush1.bf16.msra.mxu0 %v10255
          %10721 = vmatprep.subr.bf16.mxu0 %v10260
          %10722 = vmatpush1.bf16.msra.mxu0 %v10259
          %10723 = vmatprep.subr.bf16.mxu0 %v10264
          %10724 = vmatpush1.bf16.msra.mxu0 %v10263
          %10725 = vmatprep.subr.bf16.mxu0 %v10268
          %10726 = vmatpush1.bf16.msra.mxu0 %v10267
          %10727 = vmatprep.subr.bf16.mxu0 %v10272
          %10728 = vmatpush1.bf16.msra.mxu0 %v10271
          %10729 = vmatprep.subr.bf16.mxu0 %v10276
          %10730 = vmatpush1.bf16.msra.mxu0 %v10275
          %10731 = vmatprep.subr.bf16.mxu0 %v10280
          %10732 = vmatpush1.bf16.msra.mxu0 %v10279
          %10733 = vmatprep.subr.bf16.mxu0 %v10284
          %10734 = vmatpush1.bf16.msra.mxu0 %v10283
          %10735 = vmatprep.subr.bf16.mxu0 %v10288
          %10736 = vmatpush1.bf16.msra.mxu0 %v10287
          %10737 = vmatprep.subr.bf16.mxu0 %v10292
          %10738 = vmatpush1.bf16.msra.mxu0 %v10291
          %10739 = vmatprep.subr.bf16.mxu0 %v10296
          %10740 = vmatpush1.bf16.msra.mxu0 %v10295
          %10741 = vmatprep.subr.bf16.mxu0 %v10300
          %10742 = vmatpush1.bf16.msra.mxu0 %v10299
          %10743 = vmatprep.subr.bf16.mxu0 %v10304
          %10744 = vmatpush1.bf16.msra.mxu0 %v10303
          %10745 = vmatprep.subr.bf16.mxu0 %v10308
          %10746 = vmatpush1.bf16.msra.mxu0 %v10307
          %10747 = vmatprep.subr.bf16.mxu0 %v10312
          %10748 = vmatpush1.bf16.msra.mxu0 %v10311
          %10749 = vmatprep.mubr.bf16.mxu0 %v9074
          %10750 = vmatmul.mubr.bf16.gmra.mrb[0].mxu0 %v9073
          %v10751 = vpop.f32.mrb[0].mxu0
          %v10752 = vadd.f32 %v10711, %v10751
          %v10753 = vpop.f32.mrb[0].mxu0
          %v10754 = vadd.f32 %v10713, %v10753
          %v10755 = vpop.f32.mrb[0].mxu0
          %v10756 = vpop.f32.mrb[0].mxu0
          %10757 = vdwg.mxu0
          %10758 = vmatprep.subr.bf16.mxu0 %v10316
          %10759 = vmatpush1.bf16.msra.mxu0 %v10315
          %10760 = vmatprep.subr.bf16.mxu0 %v10320
          %10761 = vmatpush1.bf16.msra.mxu0 %v10319
          %10762 = vmatprep.subr.bf16.mxu0 %v10324
          %10763 = vmatpush1.bf16.msra.mxu0 %v10323
          %10764 = vmatprep.subr.bf16.mxu0 %v10328
          %10765 = vmatpush1.bf16.msra.mxu0 %v10327
          %10766 = vmatprep.subr.bf16.mxu0 %v10332
          %10767 = vmatpush1.bf16.msra.mxu0 %v10331
          %10768 = vmatprep.subr.bf16.mxu0 %v10336
          %10769 = vmatpush1.bf16.msra.mxu0 %v10335
          %10770 = vmatprep.subr.bf16.mxu0 %v10340
          %10771 = vmatpush1.bf16.msra.mxu0 %v10339
          %10772 = vmatprep.subr.bf16.mxu0 %v10344
          %10773 = vmatpush1.bf16.msra.mxu0 %v10343
          %10774 = vmatprep.subr.bf16.mxu0 %v10348
          %10775 = vmatpush1.bf16.msra.mxu0 %v10347
          %10776 = vmatprep.subr.bf16.mxu0 %v10352
          %10777 = vmatpush1.bf16.msra.mxu0 %v10351
          %10778 = vmatprep.subr.bf16.mxu0 %v10356
          %10779 = vmatpush1.bf16.msra.mxu0 %v10355
          %10780 = vmatprep.subr.bf16.mxu0 %v10360
          %10781 = vmatpush1.bf16.msra.mxu0 %v10359
          %10782 = vmatprep.subr.bf16.mxu0 %v10364
          %10783 = vmatpush1.bf16.msra.mxu0 %v10363
          %10784 = vmatprep.subr.bf16.mxu0 %v10368
          %10785 = vmatpush1.bf16.msra.mxu0 %v10367
          %10786 = vmatprep.subr.bf16.mxu0 %v10372
          %10787 = vmatpush1.bf16.msra.mxu0 %v10371
          %10788 = vmatprep.subr.bf16.mxu0 %v10376
          %10789 = vmatpush1.bf16.msra.mxu0 %v10375
          %10790 = vmatprep.mubr.bf16.mxu0 %v9076
          %10791 = vmatmul.mubr.bf16.gmra.mrb[0].mxu0 %v9075
          %v10792 = vpop.f32.mrb[0].mxu0
          %v10793 = vadd.f32 %v10752, %v10792
          %v10794 = vpop.f32.mrb[0].mxu0
          %v10795 = vadd.f32 %v10754, %v10794
          %v10796 = vpop.f32.mrb[0].mxu0
          %v10797 = vpop.f32.mrb[0].mxu0
          %10798 = vdwg.mxu0
          %10799 = vmatprep.subr.bf16.mxu0 %v10126
          %10800 = vmatpush1.bf16.msra.mxu0 %v10125
          %10801 = vmatprep.subr.bf16.mxu0 %v10130
          %10802 = vmatpush1.bf16.msra.mxu0 %v10129
          %10803 = vmatprep.subr.bf16.mxu0 %v10134
          %10804 = vmatpush1.bf16.msra.mxu0 %v10133
          %10805 = vmatprep.subr.bf16.mxu0 %v10138
          %10806 = vmatpush1.bf16.msra.mxu0 %v10137
          %10807 = vmatprep.subr.bf16.mxu0 %v10142
          %10808 = vmatpush1.bf16.msra.mxu0 %v10141
          %10809 = vmatprep.subr.bf16.mxu0 %v10146
          %10810 = vmatpush1.bf16.msra.mxu0 %v10145
          %10811 = vmatprep.subr.bf16.mxu0 %v10150
          %10812 = vmatpush1.bf16.msra.mxu0 %v10149
          %10813 = vmatprep.subr.bf16.mxu0 %v10154
          %10814 = vmatpush1.bf16.msra.mxu0 %v10153
          %10815 = vmatprep.subr.bf16.mxu0 %v10158
          %10816 = vmatpush1.bf16.msra.mxu0 %v10157
          %10817 = vmatprep.subr.bf16.mxu0 %v10162
          %10818 = vmatpush1.bf16.msra.mxu0 %v10161
          %10819 = vmatprep.subr.bf16.mxu0 %v10166
          %10820 = vmatpush1.bf16.msra.mxu0 %v10165
          %10821 = vmatprep.subr.bf16.mxu0 %v10170
          %10822 = vmatpush1.bf16.msra.mxu0 %v10169
          %10823 = vmatprep.subr.bf16.mxu0 %v10174
          %10824 = vmatpush1.bf16.msra.mxu0 %v10173
          %10825 = vmatprep.subr.bf16.mxu0 %v10178
          %10826 = vmatpush1.bf16.msra.mxu0 %v10177
          %10827 = vmatprep.subr.bf16.mxu0 %v10182
          %10828 = vmatpush1.bf16.msra.mxu0 %v10181
          %10829 = vmatprep.subr.bf16.mxu0 %v10186
          %10830 = vmatpush1.bf16.msra.mxu0 %v10185
          %10831 = vmatprep.mubr.bf16.mxu0 %v9070
          %10832 = vmatmul.mubr.bf16.gmra.mrb[0].mxu0 %v9069
          %v10833 = vpop.f32.mrb[0].mxu0
          %v10834 = vadd.f32 %v9346, %v10833
          %v10835 = vpop.f32.mrb[0].mxu0
          %v10836 = vadd.f32 %v9350, %v10835
          %v10837 = vpop.f32.mrb[0].mxu0
          %v10838 = vpop.f32.mrb[0].mxu0
          %10839 = vdwg.mxu0
          %10840 = vmatprep.subr.bf16.mxu0 %v10190
          %10841 = vmatpush1.bf16.msra.mxu0 %v10189
          %10842 = vmatprep.subr.bf16.mxu0 %v10194
          %10843 = vmatpush1.bf16.msra.mxu0 %v10193
          %10844 = vmatprep.subr.bf16.mxu0 %v10198
          %10845 = vmatpush1.bf16.msra.mxu0 %v10197
          %10846 = vmatprep.subr.bf16.mxu0 %v10202
          %10847 = vmatpush1.bf16.msra.mxu0 %v10201
          %10848 = vmatprep.subr.bf16.mxu0 %v10206
          %10849 = vmatpush1.bf16.msra.mxu0 %v10205
          %10850 = vmatprep.subr.bf16.mxu0 %v10210
          %10851 = vmatpush1.bf16.msra.mxu0 %v10209
          %10852 = vmatprep.subr.bf16.mxu0 %v10214
          %10853 = vmatpush1.bf16.msra.mxu0 %v10213
          %10854 = vmatprep.subr.bf16.mxu0 %v10218
          %10855 = vmatpush1.bf16.msra.mxu0 %v10217
          %10856 = vmatprep.subr.bf16.mxu0 %v10222
          %10857 = vmatpush1.bf16.msra.mxu0 %v10221
          %10858 = vmatprep.subr.bf16.mxu0 %v10226
          %10859 = vmatpush1.bf16.msra.mxu0 %v10225
          %10860 = vmatprep.subr.bf16.mxu0 %v10230
          %10861 = vmatpush1.bf16.msra.mxu0 %v10229
          %10862 = vmatprep.subr.bf16.mxu0 %v10234
          %10863 = vmatpush1.bf16.msra.mxu0 %v10233
          %10864 = vmatprep.subr.bf16.mxu0 %v10238
          %10865 = vmatpush1.bf16.msra.mxu0 %v10237
          %10866 = vmatprep.subr.bf16.mxu0 %v10242
          %10867 = vmatpush1.bf16.msra.mxu0 %v10241
          %10868 = vmatprep.subr.bf16.mxu0 %v10246
          %10869 = vmatpush1.bf16.msra.mxu0 %v10245
          %10870 = vmatprep.subr.bf16.mxu0 %v10250
          %10871 = vmatpush1.bf16.msra.mxu0 %v10249
          %10872 = vmatprep.mubr.bf16.mxu0 %v9072
          %10873 = vmatmul.mubr.bf16.gmra.mrb[0].mxu0 %v9071
          %v10874 = vpop.f32.mrb[0].mxu0
          %v10875 = vadd.f32 %v10834, %v10874
          %v10876 = vpop.f32.mrb[0].mxu0
          %v10877 = vadd.f32 %v10836, %v10876
          %v10878 = vpop.f32.mrb[0].mxu0
          %v10879 = vpop.f32.mrb[0].mxu0
          %10880 = vdwg.mxu0
          %10881 = vmatprep.subr.bf16.mxu0 %v10254
          %10882 = vmatpush1.bf16.msra.mxu0 %v10253
          %10883 = vmatprep.subr.bf16.mxu0 %v10258
          %10884 = vmatpush1.bf16.msra.mxu0 %v10257
          %10885 = vmatprep.subr.bf16.mxu0 %v10262
          %10886 = vmatpush1.bf16.msra.mxu0 %v10261
          %10887 = vmatprep.subr.bf16.mxu0 %v10266
          %10888 = vmatpush1.bf16.msra.mxu0 %v10265
          %10889 = vmatprep.subr.bf16.mxu0 %v10270
          %10890 = vmatpush1.bf16.msra.mxu0 %v10269
          %10891 = vmatprep.subr.bf16.mxu0 %v10274
          %10892 = vmatpush1.bf16.msra.mxu0 %v10273
          %10893 = vmatprep.subr.bf16.mxu0 %v10278
          %10894 = vmatpush1.bf16.msra.mxu0 %v10277
          %10895 = vmatprep.subr.bf16.mxu0 %v10282
          %10896 = vmatpush1.bf16.msra.mxu0 %v10281
          %10897 = vmatprep.subr.bf16.mxu0 %v10286
          %10898 = vmatpush1.bf16.msra.mxu0 %v10285
          %10899 = vmatprep.subr.bf16.mxu0 %v10290
          %10900 = vmatpush1.bf16.msra.mxu0 %v10289
          %10901 = vmatprep.subr.bf16.mxu0 %v10294
          %10902 = vmatpush1.bf16.msra.mxu0 %v10293
          %10903 = vmatprep.subr.bf16.mxu0 %v10298
          %10904 = vmatpush1.bf16.msra.mxu0 %v10297
          %10905 = vmatprep.subr.bf16.mxu0 %v10302
          %10906 = vmatpush1.bf16.msra.mxu0 %v10301
          %10907 = vmatprep.subr.bf16.mxu0 %v10306
          %10908 = vmatpush1.bf16.msra.mxu0 %v10305
          %10909 = vmatprep.subr.bf16.mxu0 %v10310
          %10910 = vmatpush1.bf16.msra.mxu0 %v10309
          %10911 = vmatprep.subr.bf16.mxu0 %v10314
          %10912 = vmatpush1.bf16.msra.mxu0 %v10313
          %10913 = vmatprep.mubr.bf16.mxu0 %v9074
          %10914 = vmatmul.mubr.bf16.gmra.mrb[0].mxu0 %v9073
          %v10915 = vpop.f32.mrb[0].mxu0
          %v10916 = vadd.f32 %v10875, %v10915
          %v10917 = vpop.f32.mrb[0].mxu0
          %v10918 = vadd.f32 %v10877, %v10917
          %v10919 = vpop.f32.mrb[0].mxu0
          %v10920 = vpop.f32.mrb[0].mxu0
          %10921 = vdwg.mxu0
          %10922 = vmatprep.subr.bf16.mxu0 %v10318
          %10923 = vmatpush1.bf16.msra.mxu0 %v10317
          %10924 = vmatprep.subr.bf16.mxu0 %v10322
          %10925 = vmatpush1.bf16.msra.mxu0 %v10321
          %10926 = vmatprep.subr.bf16.mxu0 %v10326
          %10927 = vmatpush1.bf16.msra.mxu0 %v10325
          %10928 = vmatprep.subr.bf16.mxu0 %v10330
          %10929 = vmatpush1.bf16.msra.mxu0 %v10329
          %10930 = vmatprep.subr.bf16.mxu0 %v10334
          %10931 = vmatpush1.bf16.msra.mxu0 %v10333
          %10932 = vmatprep.subr.bf16.mxu0 %v10338
          %10933 = vmatpush1.bf16.msra.mxu0 %v10337
          %10934 = vmatprep.subr.bf16.mxu0 %v10342
          %10935 = vmatpush1.bf16.msra.mxu0 %v10341
          %10936 = vmatprep.subr.bf16.mxu0 %v10346
          %10937 = vmatpush1.bf16.msra.mxu0 %v10345
          %10938 = vmatprep.subr.bf16.mxu0 %v10350
          %10939 = vmatpush1.bf16.msra.mxu0 %v10349
          %10940 = vmatprep.subr.bf16.mxu0 %v10354
          %10941 = vmatpush1.bf16.msra.mxu0 %v10353
          %10942 = vmatprep.subr.bf16.mxu0 %v10358
          %10943 = vmatpush1.bf16.msra.mxu0 %v10357
          %10944 = vmatprep.subr.bf16.mxu0 %v10362
          %10945 = vmatpush1.bf16.msra.mxu0 %v10361
          %10946 = vmatprep.subr.bf16.mxu0 %v10366
          %10947 = vmatpush1.bf16.msra.mxu0 %v10365
          %10948 = vmatprep.subr.bf16.mxu0 %v10370
          %10949 = vmatpush1.bf16.msra.mxu0 %v10369
          %10950 = vmatprep.subr.bf16.mxu0 %v10374
          %10951 = vmatpush1.bf16.msra.mxu0 %v10373
          %10952 = vmatprep.subr.bf16.mxu0 %v10378
          %10953 = vmatpush1.bf16.msra.mxu0 %v10377
          %10954 = vmatprep.mubr.bf16.mxu0 %v9076
          %10955 = vmatmul.mubr.bf16.gmra.mrb[0].mxu0 %v9075
          %v10956 = vpop.f32.mrb[0].mxu0
          %v10957 = vadd.f32 %v10916, %v10956
          %v10958 = vpop.f32.mrb[0].mxu0
          %v10959 = vadd.f32 %v10918, %v10958
          %v10960 = vpop.f32.mrb[0].mxu0
          %v10961 = vpop.f32.mrb[0].mxu0
          %10962 = vdwg.mxu0
          %v10963 = vtanh.pop %v10793
          %v10964 = vtanh.pop %v10795
          %v10965 = vtanh.pop %v10957
          %v10966 = vtanh.pop %v10959
          %v10967 = vpack.c.bf16 %v10963, %v10963
          %v10968 = vpack.c.bf16 %v10964, %v10964
          %v10969 = vpack.c.bf16 %v10965, %v10965
          %v10970 = vpack.c.bf16 %v10966, %v10966
          %v10971 = vld [vmem:[%s9] sm:$0xff]
          %v10972 = vld [vmem:[%s9 + $0x8] sm:$0xff]
          %v10973 = vld [vmem:[%s9 + $0x10] sm:$0xff]
          %v10974 = vld [vmem:[%s9 + $0x18] sm:$0xff]
          %v10975 = vld [vmem:[%s9 + $0x20] sm:$0xff]
          %v10976 = vld [vmem:[%s9 + $0x28] sm:$0xff]
          %v10977 = vld [vmem:[%s9 + $0x30] sm:$0xff]
          %v10978 = vld [vmem:[%s9 + $0x38] sm:$0xff]
          %v10979 = vld [vmem:[%s9 + $0x40] sm:$0xff]
          %v10980 = vld [vmem:[%s9 + $0x48] sm:$0xff]
          %v10981 = vld [vmem:[%s9 + $0x50] sm:$0xff]
          %v10982 = vld [vmem:[%s9 + $0x58] sm:$0xff]
          %v10983 = vld [vmem:[%s9 + $0x60] sm:$0xff]
          %v10984 = vld [vmem:[%s9 + $0x68] sm:$0xff]
          %v10985 = vld [vmem:[%s9 + $0x70] sm:$0xff]
          %v10986 = vld [vmem:[%s9 + $0x78] sm:$0xff]
          %v10987 = vld [vmem:[%s9 + $0x80] sm:$0xff]
          %v10988 = vld [vmem:[%s9 + $0x88] sm:$0xff]
          %v10989 = vld [vmem:[%s9 + $0x90] sm:$0xff]
          %v10990 = vld [vmem:[%s9 + $0x98] sm:$0xff]
          %v10991 = vld [vmem:[%s9 + $0xa0] sm:$0xff]
          %v10992 = vld [vmem:[%s9 + $0xa8] sm:$0xff]
          %v10993 = vld [vmem:[%s9 + $0xb0] sm:$0xff]
          %v10994 = vld [vmem:[%s9 + $0xb8] sm:$0xff]
          %v10995 = vld [vmem:[%s9 + $0xc0] sm:$0xff]
          %v10996 = vld [vmem:[%s9 + $0xc8] sm:$0xff]
          %v10997 = vld [vmem:[%s9 + $0xd0] sm:$0xff]
          %v10998 = vld [vmem:[%s9 + $0xd8] sm:$0xff]
          %v10999 = vld [vmem:[%s9 + $0xe0] sm:$0xff]
          %v11000 = vld [vmem:[%s9 + $0xe8] sm:$0xff]
          %v11001 = vld [vmem:[%s9 + $0xf0] sm:$0xff]
          %v11002 = vld [vmem:[%s9 + $0xf8] sm:$0xff]
          %v11003 = vld [vmem:[%s9 + $0x100] sm:$0xff]
          %v11004 = vld [vmem:[%s9 + $0x108] sm:$0xff]
          %v11005 = vld [vmem:[%s9 + $0x110] sm:$0xff]
          %v11006 = vld [vmem:[%s9 + $0x118] sm:$0xff]
          %v11007 = vld [vmem:[%s9 + $0x120] sm:$0xff]
          %v11008 = vld [vmem:[%s9 + $0x128] sm:$0xff]
          %v11009 = vld [vmem:[%s9 + $0x130] sm:$0xff]
          %v11010 = vld [vmem:[%s9 + $0x138] sm:$0xff]
          %v11011 = vld [vmem:[%s9 + $0x140] sm:$0xff]
          %v11012 = vld [vmem:[%s9 + $0x148] sm:$0xff]
          %v11013 = vld [vmem:[%s9 + $0x150] sm:$0xff]
          %v11014 = vld [vmem:[%s9 + $0x158] sm:$0xff]
          %v11015 = vld [vmem:[%s9 + $0x160] sm:$0xff]
          %v11016 = vld [vmem:[%s9 + $0x168] sm:$0xff]
          %v11017 = vld [vmem:[%s9 + $0x170] sm:$0xff]
          %v11018 = vld [vmem:[%s9 + $0x178] sm:$0xff]
          %v11019 = vld [vmem:[%s9 + $0x180] sm:$0xff]
          %v11020 = vld [vmem:[%s9 + $0x188] sm:$0xff]
          %v11021 = vld [vmem:[%s9 + $0x190] sm:$0xff]
          %v11022 = vld [vmem:[%s9 + $0x198] sm:$0xff]
          %v11023 = vld [vmem:[%s9 + $0x1a0] sm:$0xff]
          %v11024 = vld [vmem:[%s9 + $0x1a8] sm:$0xff]
          %v11025 = vld [vmem:[%s9 + $0x1b0] sm:$0xff]
          %v11026 = vld [vmem:[%s9 + $0x1b8] sm:$0xff]
          %v11027 = vld [vmem:[%s9 + $0x1c0] sm:$0xff]
          %v11028 = vld [vmem:[%s9 + $0x1c8] sm:$0xff]
          %v11029 = vld [vmem:[%s9 + $0x1d0] sm:$0xff]
          %v11030 = vld [vmem:[%s9 + $0x1d8] sm:$0xff]
          %v11031 = vld [vmem:[%s9 + $0x1e0] sm:$0xff]
          %v11032 = vld [vmem:[%s9 + $0x1e8] sm:$0xff]
          %v11033 = vld [vmem:[%s9 + $0x1f0] sm:$0xff]
          %v11034 = vld [vmem:[%s9 + $0x1f8] sm:$0xff]
          %v11035 = vld [vmem:[%s10] sm:$0x3]
          %v11037 = vlaneseq
          %v11038 = vshrl.u32 %v11037, 7
          %v11039 = vsub.s32 0, %v11038
          %v11040 = vrot.slane %v11035, %v11039
          %v11041 = vlaneseq
          %v11042 = vshrl.u32 %v11041, 7
          %v11043 = vsub.s32 1, %v11042
          %v11044 = vrot.slane %v11035, %v11043
          %v11111 = vunpack.c.l.b16 %v10971
          %v11112 = vunpack.c.h.b16 %v10971
          %v11113 = vunpack.c.l.b16 %v10972
          %v11114 = vunpack.c.h.b16 %v10972
          %v11115 = vunpack.c.l.b16 %v10973
          %v11116 = vunpack.c.h.b16 %v10973
          %v11117 = vunpack.c.l.b16 %v10974
          %v11118 = vunpack.c.h.b16 %v10974
          %v11119 = vunpack.c.l.b16 %v10975
          %v11120 = vunpack.c.h.b16 %v10975
          %v11121 = vunpack.c.l.b16 %v10976
          %v11122 = vunpack.c.h.b16 %v10976
          %v11123 = vunpack.c.l.b16 %v10977
          %v11124 = vunpack.c.h.b16 %v10977
          %v11125 = vunpack.c.l.b16 %v10978
          %v11126 = vunpack.c.h.b16 %v10978
          %v11127 = vunpack.c.l.b16 %v10979
          %v11128 = vunpack.c.h.b16 %v10979
          %v11129 = vunpack.c.l.b16 %v10980
          %v11130 = vunpack.c.h.b16 %v10980
          %v11131 = vunpack.c.l.b16 %v10981
          %v11132 = vunpack.c.h.b16 %v10981
          %v11133 = vunpack.c.l.b16 %v10982
          %v11134 = vunpack.c.h.b16 %v10982
          %v11135 = vunpack.c.l.b16 %v10983
          %v11136 = vunpack.c.h.b16 %v10983
          %v11137 = vunpack.c.l.b16 %v10984
          %v11138 = vunpack.c.h.b16 %v10984
          %v11139 = vunpack.c.l.b16 %v10985
          %v11140 = vunpack.c.h.b16 %v10985
          %v11141 = vunpack.c.l.b16 %v10986
          %v11142 = vunpack.c.h.b16 %v10986
          %v11143 = vunpack.c.l.b16 %v10987
          %v11144 = vunpack.c.h.b16 %v10987
          %v11145 = vunpack.c.l.b16 %v10988
          %v11146 = vunpack.c.h.b16 %v10988
          %v11147 = vunpack.c.l.b16 %v10989
          %v11148 = vunpack.c.h.b16 %v10989
          %v11149 = vunpack.c.l.b16 %v10990
          %v11150 = vunpack.c.h.b16 %v10990
          %v11151 = vunpack.c.l.b16 %v10991
          %v11152 = vunpack.c.h.b16 %v10991
          %v11153 = vunpack.c.l.b16 %v10992
          %v11154 = vunpack.c.h.b16 %v10992
          %v11155 = vunpack.c.l.b16 %v10993
          %v11156 = vunpack.c.h.b16 %v10993
          %v11157 = vunpack.c.l.b16 %v10994
          %v11158 = vunpack.c.h.b16 %v10994
          %v11159 = vunpack.c.l.b16 %v10995
          %v11160 = vunpack.c.h.b16 %v10995
          %v11161 = vunpack.c.l.b16 %v10996
          %v11162 = vunpack.c.h.b16 %v10996
          %v11163 = vunpack.c.l.b16 %v10997
          %v11164 = vunpack.c.h.b16 %v10997
          %v11165 = vunpack.c.l.b16 %v10998
          %v11166 = vunpack.c.h.b16 %v10998
          %v11167 = vunpack.c.l.b16 %v10999
          %v11168 = vunpack.c.h.b16 %v10999
          %v11169 = vunpack.c.l.b16 %v11000
          %v11170 = vunpack.c.h.b16 %v11000
          %v11171 = vunpack.c.l.b16 %v11001
          %v11172 = vunpack.c.h.b16 %v11001
          %v11173 = vunpack.c.l.b16 %v11002
          %v11174 = vunpack.c.h.b16 %v11002
          %v11175 = vunpack.c.l.b16 %v11003
          %v11176 = vunpack.c.h.b16 %v11003
          %v11177 = vunpack.c.l.b16 %v11004
          %v11178 = vunpack.c.h.b16 %v11004
          %v11179 = vunpack.c.l.b16 %v11005
          %v11180 = vunpack.c.h.b16 %v11005
          %v11181 = vunpack.c.l.b16 %v11006
          %v11182 = vunpack.c.h.b16 %v11006
          %v11183 = vunpack.c.l.b16 %v11007
          %v11184 = vunpack.c.h.b16 %v11007
          %v11185 = vunpack.c.l.b16 %v11008
          %v11186 = vunpack.c.h.b16 %v11008
          %v11187 = vunpack.c.l.b16 %v11009
          %v11188 = vunpack.c.h.b16 %v11009
          %v11189 = vunpack.c.l.b16 %v11010
          %v11190 = vunpack.c.h.b16 %v11010
          %v11191 = vunpack.c.l.b16 %v11011
          %v11192 = vunpack.c.h.b16 %v11011
          %v11193 = vunpack.c.l.b16 %v11012
          %v11194 = vunpack.c.h.b16 %v11012
          %v11195 = vunpack.c.l.b16 %v11013
          %v11196 = vunpack.c.h.b16 %v11013
          %v11197 = vunpack.c.l.b16 %v11014
          %v11198 = vunpack.c.h.b16 %v11014
          %v11199 = vunpack.c.l.b16 %v11015
          %v11200 = vunpack.c.h.b16 %v11015
          %v11201 = vunpack.c.l.b16 %v11016
          %v11202 = vunpack.c.h.b16 %v11016
          %v11203 = vunpack.c.l.b16 %v11017
          %v11204 = vunpack.c.h.b16 %v11017
          %v11205 = vunpack.c.l.b16 %v11018
          %v11206 = vunpack.c.h.b16 %v11018
          %v11207 = vunpack.c.l.b16 %v11019
          %v11208 = vunpack.c.h.b16 %v11019
          %v11209 = vunpack.c.l.b16 %v11020
          %v11210 = vunpack.c.h.b16 %v11020
          %v11211 = vunpack.c.l.b16 %v11021
          %v11212 = vunpack.c.h.b16 %v11021
          %v11213 = vunpack.c.l.b16 %v11022
          %v11214 = vunpack.c.h.b16 %v11022
          %v11215 = vunpack.c.l.b16 %v11023
          %v11216 = vunpack.c.h.b16 %v11023
          %v11217 = vunpack.c.l.b16 %v11024
          %v11218 = vunpack.c.h.b16 %v11024
          %v11219 = vunpack.c.l.b16 %v11025
          %v11220 = vunpack.c.h.b16 %v11025
          %v11221 = vunpack.c.l.b16 %v11026
          %v11222 = vunpack.c.h.b16 %v11026
          %v11223 = vunpack.c.l.b16 %v11027
          %v11224 = vunpack.c.h.b16 %v11027
          %v11225 = vunpack.c.l.b16 %v11028
          %v11226 = vunpack.c.h.b16 %v11028
          %v11227 = vunpack.c.l.b16 %v11029
          %v11228 = vunpack.c.h.b16 %v11029
          %v11229 = vunpack.c.l.b16 %v11030
          %v11230 = vunpack.c.h.b16 %v11030
          %v11231 = vunpack.c.l.b16 %v11031
          %v11232 = vunpack.c.h.b16 %v11031
          %v11233 = vunpack.c.l.b16 %v11032
          %v11234 = vunpack.c.h.b16 %v11032
          %v11235 = vunpack.c.l.b16 %v11033
          %v11236 = vunpack.c.h.b16 %v11033
          %v11237 = vunpack.c.l.b16 %v11034
          %v11238 = vunpack.c.h.b16 %v11034
          %v11239 = vpack.c.b16 %v11113, %v11111
          %v11240 = vpack.c.b16 %v11114, %v11112
          %v11241 = vpack.c.b16 %v11117, %v11115
          %v11242 = vpack.c.b16 %v11118, %v11116
          %v11243 = vpack.c.b16 %v11121, %v11119
          %v11244 = vpack.c.b16 %v11122, %v11120
          %v11245 = vpack.c.b16 %v11125, %v11123
          %v11246 = vpack.c.b16 %v11126, %v11124
          %v11247 = vpack.c.b16 %v11129, %v11127
          %v11248 = vpack.c.b16 %v11130, %v11128
          %v11249 = vpack.c.b16 %v11133, %v11131
          %v11250 = vpack.c.b16 %v11134, %v11132
          %v11251 = vpack.c.b16 %v11137, %v11135
          %v11252 = vpack.c.b16 %v11138, %v11136
          %v11253 = vpack.c.b16 %v11141, %v11139
          %v11254 = vpack.c.b16 %v11142, %v11140
          %v11255 = vpack.c.b16 %v11145, %v11143
          %v11256 = vpack.c.b16 %v11146, %v11144
          %v11257 = vpack.c.b16 %v11149, %v11147
          %v11258 = vpack.c.b16 %v11150, %v11148
          %v11259 = vpack.c.b16 %v11153, %v11151
          %v11260 = vpack.c.b16 %v11154, %v11152
          %v11261 = vpack.c.b16 %v11157, %v11155
          %v11262 = vpack.c.b16 %v11158, %v11156
          %v11263 = vpack.c.b16 %v11161, %v11159
          %v11264 = vpack.c.b16 %v11162, %v11160
          %v11265 = vpack.c.b16 %v11165, %v11163
          %v11266 = vpack.c.b16 %v11166, %v11164
          %v11267 = vpack.c.b16 %v11169, %v11167
          %v11268 = vpack.c.b16 %v11170, %v11168
          %v11269 = vpack.c.b16 %v11173, %v11171
          %v11270 = vpack.c.b16 %v11174, %v11172
          %v11271 = vpack.c.b16 %v11177, %v11175
          %v11272 = vpack.c.b16 %v11178, %v11176
          %v11273 = vpack.c.b16 %v11181, %v11179
          %v11274 = vpack.c.b16 %v11182, %v11180
          %v11275 = vpack.c.b16 %v11185, %v11183
          %v11276 = vpack.c.b16 %v11186, %v11184
          %v11277 = vpack.c.b16 %v11189, %v11187
          %v11278 = vpack.c.b16 %v11190, %v11188
          %v11279 = vpack.c.b16 %v11193, %v11191
          %v11280 = vpack.c.b16 %v11194, %v11192
          %v11281 = vpack.c.b16 %v11197, %v11195
          %v11282 = vpack.c.b16 %v11198, %v11196
          %v11283 = vpack.c.b16 %v11201, %v11199
          %v11284 = vpack.c.b16 %v11202, %v11200
          %v11285 = vpack.c.b16 %v11205, %v11203
          %v11286 = vpack.c.b16 %v11206, %v11204
          %v11287 = vpack.c.b16 %v11209, %v11207
          %v11288 = vpack.c.b16 %v11210, %v11208
          %v11289 = vpack.c.b16 %v11213, %v11211
          %v11290 = vpack.c.b16 %v11214, %v11212
          %v11291 = vpack.c.b16 %v11217, %v11215
          %v11292 = vpack.c.b16 %v11218, %v11216
          %v11293 = vpack.c.b16 %v11221, %v11219
          %v11294 = vpack.c.b16 %v11222, %v11220
          %v11295 = vpack.c.b16 %v11225, %v11223
          %v11296 = vpack.c.b16 %v11226, %v11224
          %v11297 = vpack.c.b16 %v11229, %v11227
          %v11298 = vpack.c.b16 %v11230, %v11228
          %v11299 = vpack.c.b16 %v11233, %v11231
          %v11300 = vpack.c.b16 %v11234, %v11232
          %v11301 = vpack.c.b16 %v11237, %v11235
          %v11302 = vpack.c.b16 %v11238, %v11236
          %11367 = vmatprep.subr.bf16.mxu0 %v11240
          %11368 = vmatpush1.bf16.msra.mxu0 %v11239
          %11369 = vmatprep.subr.bf16.mxu0 %v11242
          %11370 = vmatpush1.bf16.msra.mxu0 %v11241
          %11371 = vmatprep.subr.bf16.mxu0 %v11244
          %11372 = vmatpush1.bf16.msra.mxu0 %v11243
          %11373 = vmatprep.subr.bf16.mxu0 %v11246
          %11374 = vmatpush1.bf16.msra.mxu0 %v11245
          %11375 = vmatprep.subr.bf16.mxu0 %v11248
          %11376 = vmatpush1.bf16.msra.mxu0 %v11247
          %11377 = vmatprep.subr.bf16.mxu0 %v11250
          %11378 = vmatpush1.bf16.msra.mxu0 %v11249
          %11379 = vmatprep.subr.bf16.mxu0 %v11252
          %11380 = vmatpush1.bf16.msra.mxu0 %v11251
          %11381 = vmatprep.subr.bf16.mxu0 %v11254
          %11382 = vmatpush1.bf16.msra.mxu0 %v11253
          %11383 = vmatprep.subr.bf16.mxu0 %v11256
          %11384 = vmatpush1.bf16.msra.mxu0 %v11255
          %11385 = vmatprep.subr.bf16.mxu0 %v11258
          %11386 = vmatpush1.bf16.msra.mxu0 %v11257
          %11387 = vmatprep.subr.bf16.mxu0 %v11260
          %11388 = vmatpush1.bf16.msra.mxu0 %v11259
          %11389 = vmatprep.subr.bf16.mxu0 %v11262
          %11390 = vmatpush1.bf16.msra.mxu0 %v11261
          %11391 = vmatprep.subr.bf16.mxu0 %v11264
          %11392 = vmatpush1.bf16.msra.mxu0 %v11263
          %11393 = vmatprep.subr.bf16.mxu0 %v11266
          %11394 = vmatpush1.bf16.msra.mxu0 %v11265
          %11395 = vmatprep.subr.bf16.mxu0 %v11268
          %11396 = vmatpush1.bf16.msra.mxu0 %v11267
          %11397 = vmatprep.subr.bf16.mxu0 %v11270
          %11398 = vmatpush1.bf16.msra.mxu0 %v11269
          %11399 = vmatprep.mubr.bf16.mxu0 %v10968
          %11400 = vmatmul.mubr.bf16.gmra.mrb[0].mxu0 %v10967
          %v11401 = vpop.f32.mrb[0].mxu0
          %v11402 = vadd.f32 %v11040, %v11401
          %v11403 = vpop.f32.mrb[0].mxu0
          %v11404 = vadd.f32 %v11044, %v11403
          %v11405 = vpop.f32.mrb[0].mxu0
          %v11406 = vpop.f32.mrb[0].mxu0
          %11407 = vdwg.mxu0
          %11408 = vmatprep.subr.bf16.mxu0 %v11272
          %11409 = vmatpush1.bf16.msra.mxu0 %v11271
          %11410 = vmatprep.subr.bf16.mxu0 %v11274
          %11411 = vmatpush1.bf16.msra.mxu0 %v11273
          %11412 = vmatprep.subr.bf16.mxu0 %v11276
          %11413 = vmatpush1.bf16.msra.mxu0 %v11275
          %11414 = vmatprep.subr.bf16.mxu0 %v11278
          %11415 = vmatpush1.bf16.msra.mxu0 %v11277
          %11416 = vmatprep.subr.bf16.mxu0 %v11280
          %11417 = vmatpush1.bf16.msra.mxu0 %v11279
          %11418 = vmatprep.subr.bf16.mxu0 %v11282
          %11419 = vmatpush1.bf16.msra.mxu0 %v11281
          %11420 = vmatprep.subr.bf16.mxu0 %v11284
          %11421 = vmatpush1.bf16.msra.mxu0 %v11283
          %11422 = vmatprep.subr.bf16.mxu0 %v11286
          %11423 = vmatpush1.bf16.msra.mxu0 %v11285
          %11424 = vmatprep.subr.bf16.mxu0 %v11288
          %11425 = vmatpush1.bf16.msra.mxu0 %v11287
          %11426 = vmatprep.subr.bf16.mxu0 %v11290
          %11427 = vmatpush1.bf16.msra.mxu0 %v11289
          %11428 = vmatprep.subr.bf16.mxu0 %v11292
          %11429 = vmatpush1.bf16.msra.mxu0 %v11291
          %11430 = vmatprep.subr.bf16.mxu0 %v11294
          %11431 = vmatpush1.bf16.msra.mxu0 %v11293
          %11432 = vmatprep.subr.bf16.mxu0 %v11296
          %11433 = vmatpush1.bf16.msra.mxu0 %v11295
          %11434 = vmatprep.subr.bf16.mxu0 %v11298
          %11435 = vmatpush1.bf16.msra.mxu0 %v11297
          %11436 = vmatprep.subr.bf16.mxu0 %v11300
          %11437 = vmatpush1.bf16.msra.mxu0 %v11299
          %11438 = vmatprep.subr.bf16.mxu0 %v11302
          %11439 = vmatpush1.bf16.msra.mxu0 %v11301
          %11440 = vmatprep.mubr.bf16.mxu0 %v10970
          %11441 = vmatmul.mubr.bf16.gmra.mrb[0].mxu0 %v10969
          %v11442 = vpop.f32.mrb[0].mxu0
          %v11443 = vadd.f32 %v11402, %v11442
          %v11444 = vpop.f32.mrb[0].mxu0
          %v11445 = vadd.f32 %v11404, %v11444
          %v11446 = vpop.f32.mrb[0].mxu0
          %v11447 = vpop.f32.mrb[0].mxu0
          %11448 = vdwg.mxu0
          %v11449 = vtanh.pop %v11443
          %v11450 = vtanh.pop %v11445
          %v11451 = vpack.c.bf16 %v11449, %v11449
          %v11452 = vpack.c.bf16 %v11450, %v11450
          %v11453 = vld [vmem:[%s11] sm:$0xff]
          %v11454 = vld [vmem:[%s11 + $0x8] sm:$0xff]
          %v11455 = vld [vmem:[%s11 + $0x10] sm:$0xff]
          %v11456 = vld [vmem:[%s11 + $0x18] sm:$0xff]
          %v11457 = vld [vmem:[%s11 + $0x20] sm:$0xff]
          %v11458 = vld [vmem:[%s11 + $0x28] sm:$0xff]
          %v11459 = vld [vmem:[%s11 + $0x30] sm:$0xff]
          %v11460 = vld [vmem:[%s11 + $0x38] sm:$0xff]
          %v11461 = vld [vmem:[%s11 + $0x40] sm:$0xff]
          %v11462 = vld [vmem:[%s11 + $0x48] sm:$0xff]
          %v11463 = vld [vmem:[%s11 + $0x50] sm:$0xff]
          %v11464 = vld [vmem:[%s11 + $0x58] sm:$0xff]
          %v11465 = vld [vmem:[%s11 + $0x60] sm:$0xff]
          %v11466 = vld [vmem:[%s11 + $0x68] sm:$0xff]
          %v11467 = vld [vmem:[%s11 + $0x70] sm:$0xff]
          %v11468 = vld [vmem:[%s11 + $0x78] sm:$0xff]
          %v11469 = vld [vmem:[%s11 + $0x80] sm:$0xff]
          %v11470 = vld [vmem:[%s11 + $0x88] sm:$0xff]
          %v11471 = vld [vmem:[%s11 + $0x90] sm:$0xff]
          %v11472 = vld [vmem:[%s11 + $0x98] sm:$0xff]
          %v11473 = vld [vmem:[%s11 + $0xa0] sm:$0xff]
          %v11474 = vld [vmem:[%s11 + $0xa8] sm:$0xff]
          %v11475 = vld [vmem:[%s11 + $0xb0] sm:$0xff]
          %v11476 = vld [vmem:[%s11 + $0xb8] sm:$0xff]
          %v11477 = vld [vmem:[%s11 + $0xc0] sm:$0xff]
          %v11478 = vld [vmem:[%s11 + $0xc8] sm:$0xff]
          %v11479 = vld [vmem:[%s11 + $0xd0] sm:$0xff]
          %v11480 = vld [vmem:[%s11 + $0xd8] sm:$0xff]
          %v11481 = vld [vmem:[%s11 + $0xe0] sm:$0xff]
          %v11482 = vld [vmem:[%s11 + $0xe8] sm:$0xff]
          %v11483 = vld [vmem:[%s11 + $0xf0] sm:$0xff]
          %v11484 = vld [vmem:[%s11 + $0xf8] sm:$0xff]
          %v11485 = vld [vmem:[%s12] sm:$0x3]
          %v11487 = vlaneseq
          %v11488 = vshrl.u32 %v11487, 7
          %v11489 = vsub.s32 0, %v11488
          %v11490 = vrot.slane %v11485, %v11489
          %v11491 = vlaneseq
          %v11492 = vshrl.u32 %v11491, 7
          %v11493 = vsub.s32 1, %v11492
          %v11494 = vrot.slane %v11485, %v11493
          %v11529 = vunpack.c.l.b16 %v11453
          %v11530 = vunpack.c.h.b16 %v11453
          %v11531 = vunpack.c.l.b16 %v11454
          %v11532 = vunpack.c.h.b16 %v11454
          %v11533 = vunpack.c.l.b16 %v11455
          %v11534 = vunpack.c.h.b16 %v11455
          %v11535 = vunpack.c.l.b16 %v11456
          %v11536 = vunpack.c.h.b16 %v11456
          %v11537 = vunpack.c.l.b16 %v11457
          %v11538 = vunpack.c.h.b16 %v11457
          %v11539 = vunpack.c.l.b16 %v11458
          %v11540 = vunpack.c.h.b16 %v11458
          %v11541 = vunpack.c.l.b16 %v11459
          %v11542 = vunpack.c.h.b16 %v11459
          %v11543 = vunpack.c.l.b16 %v11460
          %v11544 = vunpack.c.h.b16 %v11460
          %v11545 = vunpack.c.l.b16 %v11461
          %v11546 = vunpack.c.h.b16 %v11461
          %v11547 = vunpack.c.l.b16 %v11462
          %v11548 = vunpack.c.h.b16 %v11462
          %v11549 = vunpack.c.l.b16 %v11463
          %v11550 = vunpack.c.h.b16 %v11463
          %v11551 = vunpack.c.l.b16 %v11464
          %v11552 = vunpack.c.h.b16 %v11464
          %v11553 = vunpack.c.l.b16 %v11465
          %v11554 = vunpack.c.h.b16 %v11465
          %v11555 = vunpack.c.l.b16 %v11466
          %v11556 = vunpack.c.h.b16 %v11466
          %v11557 = vunpack.c.l.b16 %v11467
          %v11558 = vunpack.c.h.b16 %v11467
          %v11559 = vunpack.c.l.b16 %v11468
          %v11560 = vunpack.c.h.b16 %v11468
          %v11561 = vunpack.c.l.b16 %v11469
          %v11562 = vunpack.c.h.b16 %v11469
          %v11563 = vunpack.c.l.b16 %v11470
          %v11564 = vunpack.c.h.b16 %v11470
          %v11565 = vunpack.c.l.b16 %v11471
          %v11566 = vunpack.c.h.b16 %v11471
          %v11567 = vunpack.c.l.b16 %v11472
          %v11568 = vunpack.c.h.b16 %v11472
          %v11569 = vunpack.c.l.b16 %v11473
          %v11570 = vunpack.c.h.b16 %v11473
          %v11571 = vunpack.c.l.b16 %v11474
          %v11572 = vunpack.c.h.b16 %v11474
          %v11573 = vunpack.c.l.b16 %v11475
          %v11574 = vunpack.c.h.b16 %v11475
          %v11575 = vunpack.c.l.b16 %v11476
          %v11576 = vunpack.c.h.b16 %v11476
          %v11577 = vunpack.c.l.b16 %v11477
          %v11578 = vunpack.c.h.b16 %v11477
          %v11579 = vunpack.c.l.b16 %v11478
          %v11580 = vunpack.c.h.b16 %v11478
          %v11581 = vunpack.c.l.b16 %v11479
          %v11582 = vunpack.c.h.b16 %v11479
          %v11583 = vunpack.c.l.b16 %v11480
          %v11584 = vunpack.c.h.b16 %v11480
          %v11585 = vunpack.c.l.b16 %v11481
          %v11586 = vunpack.c.h.b16 %v11481
          %v11587 = vunpack.c.l.b16 %v11482
          %v11588 = vunpack.c.h.b16 %v11482
          %v11589 = vunpack.c.l.b16 %v11483
          %v11590 = vunpack.c.h.b16 %v11483
          %v11591 = vunpack.c.l.b16 %v11484
          %v11592 = vunpack.c.h.b16 %v11484
          %v11593 = vpack.c.b16 %v11531, %v11529
          %v11594 = vpack.c.b16 %v11532, %v11530
          %v11595 = vpack.c.b16 %v11535, %v11533
          %v11596 = vpack.c.b16 %v11536, %v11534
          %v11597 = vpack.c.b16 %v11539, %v11537
          %v11598 = vpack.c.b16 %v11540, %v11538
          %v11599 = vpack.c.b16 %v11543, %v11541
          %v11600 = vpack.c.b16 %v11544, %v11542
          %v11601 = vpack.c.b16 %v11547, %v11545
          %v11602 = vpack.c.b16 %v11548, %v11546
          %v11603 = vpack.c.b16 %v11551, %v11549
          %v11604 = vpack.c.b16 %v11552, %v11550
          %v11605 = vpack.c.b16 %v11555, %v11553
          %v11606 = vpack.c.b16 %v11556, %v11554
          %v11607 = vpack.c.b16 %v11559, %v11557
          %v11608 = vpack.c.b16 %v11560, %v11558
          %v11609 = vpack.c.b16 %v11563, %v11561
          %v11610 = vpack.c.b16 %v11564, %v11562
          %v11611 = vpack.c.b16 %v11567, %v11565
          %v11612 = vpack.c.b16 %v11568, %v11566
          %v11613 = vpack.c.b16 %v11571, %v11569
          %v11614 = vpack.c.b16 %v11572, %v11570
          %v11615 = vpack.c.b16 %v11575, %v11573
          %v11616 = vpack.c.b16 %v11576, %v11574
          %v11617 = vpack.c.b16 %v11579, %v11577
          %v11618 = vpack.c.b16 %v11580, %v11578
          %v11619 = vpack.c.b16 %v11583, %v11581
          %v11620 = vpack.c.b16 %v11584, %v11582
          %v11621 = vpack.c.b16 %v11587, %v11585
          %v11622 = vpack.c.b16 %v11588, %v11586
          %v11623 = vpack.c.b16 %v11591, %v11589
          %v11624 = vpack.c.b16 %v11592, %v11590
          %11657 = vmatprep.subr.bf16.mxu0 %v11594
          %11658 = vmatpush1.bf16.msra.mxu0 %v11593
          %11659 = vmatprep.subr.bf16.mxu0 %v11596
          %11660 = vmatpush1.bf16.msra.mxu0 %v11595
          %11661 = vmatprep.subr.bf16.mxu0 %v11598
          %11662 = vmatpush1.bf16.msra.mxu0 %v11597
          %11663 = vmatprep.subr.bf16.mxu0 %v11600
          %11664 = vmatpush1.bf16.msra.mxu0 %v11599
          %11665 = vmatprep.subr.bf16.mxu0 %v11602
          %11666 = vmatpush1.bf16.msra.mxu0 %v11601
          %11667 = vmatprep.subr.bf16.mxu0 %v11604
          %11668 = vmatpush1.bf16.msra.mxu0 %v11603
          %11669 = vmatprep.subr.bf16.mxu0 %v11606
          %11670 = vmatpush1.bf16.msra.mxu0 %v11605
          %11671 = vmatprep.subr.bf16.mxu0 %v11608
          %11672 = vmatpush1.bf16.msra.mxu0 %v11607
          %11673 = vmatprep.subr.bf16.mxu0 %v11610
          %11674 = vmatpush1.bf16.msra.mxu0 %v11609
          %11675 = vmatprep.subr.bf16.mxu0 %v11612
          %11676 = vmatpush1.bf16.msra.mxu0 %v11611
          %11677 = vmatprep.subr.bf16.mxu0 %v11614
          %11678 = vmatpush1.bf16.msra.mxu0 %v11613
          %11679 = vmatprep.subr.bf16.mxu0 %v11616
          %11680 = vmatpush1.bf16.msra.mxu0 %v11615
          %11681 = vmatprep.subr.bf16.mxu0 %v11618
          %11682 = vmatpush1.bf16.msra.mxu0 %v11617
          %11683 = vmatprep.subr.bf16.mxu0 %v11620
          %11684 = vmatpush1.bf16.msra.mxu0 %v11619
          %11685 = vmatprep.subr.bf16.mxu0 %v11622
          %11686 = vmatpush1.bf16.msra.mxu0 %v11621
          %11687 = vmatprep.subr.bf16.mxu0 %v11624
          %11688 = vmatpush1.bf16.msra.mxu0 %v11623
          %11689 = vmatprep.mubr.bf16.mxu0 %v11452
          %11690 = vmatmul.mubr.bf16.gmra.mrb[0].mxu0 %v11451
          %v11691 = vpop.f32.mrb[0].mxu0
          %v11692 = vadd.f32 %v11490, %v11691
          %v11693 = vpop.f32.mrb[0].mxu0
          %v11694 = vadd.f32 %v11494, %v11693
          %v11695 = vpop.f32.mrb[0].mxu0
          %v11696 = vpop.f32.mrb[0].mxu0
          %11697 = vdwg.mxu0
          %v11698 = vld [vmem:[%s13] sm:$0x3]
          %v11700 = vlaneseq
          %v11701 = vshrl.u32 %v11700, 7
          %v11702 = vsub.s32 0, %v11701
          %v11703 = vrot.slane %v11698, %v11702
          %v11704 = vlaneseq
          %v11705 = vshrl.u32 %v11704, 7
          %v11706 = vsub.s32 1, %v11705
          %v11707 = vrot.slane %v11698, %v11706
          %v11710 = vadd.f32 %v11692, %v11703
          %v11711 = vadd.f32 %v11694, %v11707
          %11712 = vst [vmem:[%s1036] sm:$0xff] %v11710
          %11713 = vst [vmem:[%s1036 + $0x8] sm:$0xff] %v11711
        $region125: #{stnkd_forward.1} parent=112 // pred_fallthru
          _
        %p11714 = scmp.lt.s32.totalorder %s29, 1
        %s11715 = scalar_select %p11714, %s29, 1
        %s11716 = smul.addr %s11715, 2
        %s11717 = smul.addr %s11716, 8
        %s11718 = scalar_lea.vmem %s14, %s11717
        // Predicated region
        $region126: #{stnkd_forward.1} parent=112 // pred_check
          %p11719 = pneg %p356
        $region127: #{stnkd_forward.1} parent=112 // pred_check_branch
          %11721 = sbr.rel (%p11719) target = $region129
        $region128: #{stnkd_forward.1} parent=112 // pred_region
          _
        $region129: #{stnkd_forward.1} parent=112 // pred_fallthru
          _
      $region113: #{stnkd_forward.1} parent=5 // pred_fallthru
        _
      %p11722 = scmp.le.s32.totalorder 2, %s20
      // Predicated region
      $region130: #{stnkd_forward.1} parent=5 // pred_check
        %p11723 = pneg %p11722
      $region131: #{stnkd_forward.1} parent=5 // pred_check_branch
        %11725 = sbr.rel (%p11723) target = $region133
      $region132: #{stnkd_forward.1} parent=5 // pred_region
        %s11726 = ssub.s32 %s20, 2
        // Predicated region
        $region134: #{stnkd_forward.1} parent=132 // pred_check
          %p11727 = pneg %p362
        $region135: #{stnkd_forward.1} parent=132 // pred_check_branch
          %11729 = sbr.rel (%p11727) target = $region137
        $region136: #{stnkd_forward.1} parent=132 // pred_region
          %p11730 = scmp.lt.s32.totalorder %s31, 1
          %s11731 = scalar_select %p11730, %s31, 1
          %s11732 = smul.addr %s11731, 2
          %s11733 = smul.addr %s11732, 8
          %s11734 = scalar_lea.vmem %s14, %s11733
        $region137: #{stnkd_forward.1} parent=132 // pred_fallthru
          _
      $region133: #{stnkd_forward.1} parent=5 // pred_fallthru
        _
    $region6: #{stnkd_forward.1} parent=1 // loop_footer
      %s24 = sadd.s32 1, %s20
    $region7: #{stnkd_forward.1} parent=1 // loop_footer_branch
      %19 = sbr.rel target = $region3
    $region8: #{stnkd_forward.1} parent=1 // loop_exit
      _

</llo_original>
